<compile_context>
chip_gen: v7x
topology: tpu7x:2x2x1
jax: 0.10.0
libtpu: 0.0.40
codegen_flags: <defaults>
</compile_context>

<pallas_src>
import jax
import jax.numpy as jnp
from jax.experimental import pallas as pl
from jax.experimental.pallas import tpu as pltpu

HIDDEN_DIM = 400
LATENT_DIM = 200
LANE = 128


def _round_up(n, m=LANE):
    return ((n + m - 1) // m) * m


HID_PAD = _round_up(HIDDEN_DIM)   # 512
LAT_PAD = _round_up(LATENT_DIM)   # 256


def _leaky_relu(x, slope=0.2):
    # Matches nn.LeakyReLU(0.2) in the reference module.
    return jnp.where(x > 0, x, slope * x)


def _linear(x_f32, w_ref, b_ref):
    # x: (TB, in) f32, w: (in, out) bf16, b: (1, out) f32.
    # bf16 only on the MXU operands; f32 accumulate and bias add.
    return jnp.dot(x_f32.astype(jnp.bfloat16), w_ref[...],
                   preferred_element_type=jnp.float32) + b_ref[...]


def vae_kernel(x_ref, eps_ref,
               w_in_ref, b_in_ref, w_in2_ref, b_in2_ref,
               w_mv_ref, b_mv_ref,
               w_h1_ref, b_h1_ref, w_h2_ref, b_h2_ref,
               w_out_ref, b_out_ref,
               xhat_ref, mean_ref, logvar_ref):
    x = x_ref[...]

    # ---- Encoder ----
    h = _leaky_relu(_linear(x, w_in_ref, b_in_ref))
    h = _leaky_relu(_linear(h, w_in2_ref, b_in2_ref))
    # Fused mean|log_var head: one (HID_PAD, 2*LAT_PAD) matmul, static lane-aligned split.
    mv = _linear(h, w_mv_ref, b_mv_ref)
    mean = mv[:, :LAT_PAD]
    log_var = mv[:, LAT_PAD:]

    # ---- Reparameterization: z = mean + exp(0.5 * log_var) * eps ----
    z = mean + jnp.exp(0.5 * log_var) * eps_ref[...]

    # ---- Decoder ----
    d = _leaky_relu(_linear(z, w_h1_ref, b_h1_ref))
    d = _leaky_relu(_linear(d, w_h2_ref, b_h2_ref))
    logits = _linear(d, w_out_ref, b_out_ref)

    # Exact sigmoid via tanh: single EUP op, output naturally bounded in [0, 1].
    xhat_ref[...] = 0.5 * jnp.tanh(0.5 * logits) + 0.5
    mean_ref[...] = mean
    logvar_ref[...] = log_var


def vae_forward(x, eps, params, *, batch_tile=128):
    """x: (B, input_dim) f32, eps: (B, LATENT_DIM) f32, params: padded/bf16 dict."""
    B, input_dim = x.shape
    in_pad = _round_up(input_dim)

    # Batch tile: sublane-friendly, capped at batch_tile.  Pad B to a tile multiple.
    TB = min(batch_tile, _round_up(max(B, 1), 8))
    B_pad = ((B + TB - 1) // TB) * TB
    n_tiles = B_pad // TB

    x_p = jnp.pad(x.astype(jnp.float32),
                  ((0, B_pad - B), (0, in_pad - input_dim)))
    eps_p = jnp.pad(eps.astype(jnp.float32),
                    ((0, B_pad - B), (0, LAT_PAD - LATENT_DIM)))

    def batch_spec(feat):
        # Tiled over the batch axis; features whole (lane-dense, 128-multiple).
        return pl.BlockSpec((TB, feat), lambda i: (i, 0))

    def weight_spec(shape):
        # Whole-array block, constant index map: DMA'd once per core, then resident
        # across all batch tiles (no re-fetch as the grid advances).
        return pl.BlockSpec(shape, lambda i: (0, 0))

    in_specs = [
        batch_spec(in_pad),                       # x
        batch_spec(LAT_PAD),                      # eps
        weight_spec((in_pad, HID_PAD)),  weight_spec((1, HID_PAD)),      # FC_input
        weight_spec((HID_PAD, HID_PAD)), weight_spec((1, HID_PAD)),      # FC_input2
        weight_spec((HID_PAD, 2 * LAT_PAD)), weight_spec((1, 2 * LAT_PAD)),  # mean|var
        weight_spec((LAT_PAD, HID_PAD)), weight_spec((1, HID_PAD)),      # FC_hidden
        weight_spec((HID_PAD, HID_PAD)), weight_spec((1, HID_PAD)),      # FC_hidden2
        weight_spec((HID_PAD, in_pad)),  weight_spec((1, in_pad)),       # FC_output
    ]
    out_specs = (batch_spec(in_pad), batch_spec(LAT_PAD), batch_spec(LAT_PAD))
    out_shapes = (
        jax.ShapeDtypeStruct((B_pad, in_pad), jnp.float32),    # x_hat (padded)
        jax.ShapeDtypeStruct((B_pad, LAT_PAD), jnp.float32),   # mean (padded)
        jax.ShapeDtypeStruct((B_pad, LAT_PAD), jnp.float32),   # log_var (padded)
    )

    # Advisory cost estimate so XLA can schedule around the call.
    flops = 2 * B_pad * (in_pad * HID_PAD + HID_PAD * HID_PAD + HID_PAD * 2 * LAT_PAD
                         + LAT_PAD * HID_PAD + HID_PAD * HID_PAD + HID_PAD * in_pad)
    weight_bytes = 2 * (in_pad * HID_PAD + HID_PAD * HID_PAD + HID_PAD * 2 * LAT_PAD
                        + LAT_PAD * HID_PAD + HID_PAD * HID_PAD + HID_PAD * in_pad)
    bias_bytes = 4 * (HID_PAD + HID_PAD + 2 * LAT_PAD + HID_PAD + HID_PAD + in_pad)
    io_bytes = 4 * (B_pad * in_pad + B_pad * LAT_PAD + B_pad * in_pad + 2 * B_pad * LAT_PAD)
    cost = pl.CostEstimate(
        flops=flops,
        transcendentals=B_pad * (LAT_PAD + in_pad),
        bytes_accessed=weight_bytes + bias_bytes + io_bytes,
    )

    xh_p, mean_p, logvar_p = pl.pallas_call(
        vae_kernel,
        out_shape=out_shapes,
        grid=(n_tiles,),
        in_specs=in_specs,
        out_specs=out_specs,
        compiler_params=pltpu.CompilerParams(
            dimension_semantics=("parallel",)),   # batch tiles split across TCs on v7x
        cost_estimate=cost,
    )(
        x_p, eps_p,
        params["w_in"], params["b_in"],
        params["w_in2"], params["b_in2"],
        params["w_mv"], params["b_mv"],
        params["w_h1"], params["b_h1"],
        params["w_h2"], params["b_h2"],
        params["w_out"], params["b_out"],
    )

    # Drop zero-padded rows/columns (padded x_hat lanes would be sigmoid(0)=0.5).
    return (xh_p[:B, :input_dim],
            mean_p[:B, :LATENT_DIM],
            logvar_p[:B, :LATENT_DIM])


# ---------------- host-side parameter construction ----------------

def _init_linear(key, in_features, out_features):
    """nn.Linear default init: U(-1/sqrt(in), 1/sqrt(in)); weight returned as (in, out)."""
    kw, kb = jax.random.split(key)
    bound = 1.0 / (in_features ** 0.5)
    w = jax.random.uniform(kw, (in_features, out_features), jnp.float32, -bound, bound)
    b = jax.random.uniform(kb, (1, out_features), jnp.float32, -bound, bound)
    return w, b


def _pad_w(w, in_pad, out_pad):
    w = jnp.pad(w, ((0, in_pad - w.shape[0]), (0, out_pad - w.shape[1])))
    return w.astype(jnp.bfloat16)


def _pad_b(b, out_pad):
    return jnp.pad(b, ((0, 0), (0, out_pad - b.shape[1]))).astype(jnp.float32)


def make_params(key, input_dim, hidden_dim=HIDDEN_DIM, latent_dim=LATENT_DIM):
    """Init at the original (unpadded) sizes, then zero-pad to lane multiples and
    cast weights to bf16. mean/var heads are fused into one weight/bias."""
    in_pad = _round_up(input_dim)
    keys = jax.random.split(key, 8)

    w_in, b_in = _init_linear(keys[0], input_dim, hidden_dim)
    w_in2, b_in2 = _init_linear(keys[1], hidden_dim, hidden_dim)
    w_mean, b_mean = _init_linear(keys[2], hidden_dim, latent_dim)
    w_var, b_var = _init_linear(keys[3], hidden_dim, latent_dim)
    w_h1, b_h1 = _init_linear(keys[4], latent_dim, hidden_dim)
    w_h2, b_h2 = _init_linear(keys[5], hidden_dim, hidden_dim)
    w_out, b_out = _init_linear(keys[6], hidden_dim, input_dim)

    # Fuse mean|log_var heads, padding each half to LAT_PAD columns so the
    # in-kernel split lands on a 128-lane boundary.
    w_mean_p = jnp.pad(w_mean, ((0, 0), (0, LAT_PAD - latent_dim)))
    w_var_p = jnp.pad(w_var, ((0, 0), (0, LAT_PAD - latent_dim)))
    w_mv = jnp.concatenate([w_mean_p, w_var_p], axis=1)          # (hidden, 2*LAT_PAD)
    b_mean_p = jnp.pad(b_mean, ((0, 0), (0, LAT_PAD - latent_dim)))
    b_var_p = jnp.pad(b_var, ((0, 0), (0, LAT_PAD - latent_dim)))
    b_mv = jnp.concatenate([b_mean_p, b_var_p], axis=1)          # (1, 2*LAT_PAD)

    p = {
        "w_in": _pad_w(w_in, in_pad, HID_PAD), "b_in": _pad_b(b_in, HID_PAD),
        "w_in2": _pad_w(w_in2, HID_PAD, HID_PAD), "b_in2": _pad_b(b_in2, HID_PAD),
        "w_mv": _pad_w(w_mv, HID_PAD, 2 * LAT_PAD), "b_mv": _pad_b(b_mv, 2 * LAT_PAD),
        "w_h1": _pad_w(w_h1, LAT_PAD, HID_PAD), "b_h1": _pad_b(b_h1, HID_PAD),
        "w_h2": _pad_w(w_h2, HID_PAD, HID_PAD), "b_h2": _pad_b(b_h2, HID_PAD),
        "w_out": _pad_w(w_out, HID_PAD, in_pad), "b_out": _pad_b(b_out, in_pad),
    }
    return p


if __name__ == "__main__":
    key = jax.random.PRNGKey(0)
    k_params, k_x, k_eps = jax.random.split(key, 3)

    # Batch raised per the performance review: the ~3.7 MB weight fetch is
    # amortized over many samples and tiled over a (parallel) batch grid.
    batch = 512
    input_dim = 784  # MNIST-like flattened input

    params = make_params(k_params, input_dim)
    x = jax.random.uniform(k_x, (batch, input_dim), jnp.float32)      # pixel-like input
    eps = jax.random.normal(k_eps, (batch, LATENT_DIM), jnp.float32)  # torch.randn_like(var)

    x_hat, mean, log_var = jax.jit(vae_forward)(x, eps, params)
    jax.block_until_ready((x_hat, mean, log_var))

    assert x_hat.shape == (batch, input_dim)
    assert mean.shape == (batch, LATENT_DIM)
    assert log_var.shape == (batch, LATENT_DIM)
    assert bool(jnp.all(jnp.isfinite(x_hat)))
    assert bool(jnp.all((x_hat >= 0.0) & (x_hat <= 1.0)))
    assert bool(jnp.all(jnp.isfinite(mean)))
    assert bool(jnp.all(jnp.isfinite(log_var)))

    print("KERNEL_OK")
</pallas_src>

<mosaic_0001>
module attributes {stable_mosaic.version = 11 : i64} {
  func.func @vae_kernel(%arg0: i32, %arg1: memref<128x896xf32, #tpu.memory_space<vmem>>, %arg2: memref<128x256xf32, #tpu.memory_space<vmem>>, %arg3: memref<896x512xbf16, #tpu.memory_space<vmem>>, %arg4: memref<1x512xf32, #tpu.memory_space<vmem>>, %arg5: memref<512x512xbf16, #tpu.memory_space<vmem>>, %arg6: memref<1x512xf32, #tpu.memory_space<vmem>>, %arg7: memref<512x512xbf16, #tpu.memory_space<vmem>>, %arg8: memref<1x512xf32, #tpu.memory_space<vmem>>, %arg9: memref<256x512xbf16, #tpu.memory_space<vmem>>, %arg10: memref<1x512xf32, #tpu.memory_space<vmem>>, %arg11: memref<512x512xbf16, #tpu.memory_space<vmem>>, %arg12: memref<1x512xf32, #tpu.memory_space<vmem>>, %arg13: memref<512x896xbf16, #tpu.memory_space<vmem>>, %arg14: memref<1x896xf32, #tpu.memory_space<vmem>>, %arg15: memref<128x896xf32, #tpu.memory_space<vmem>>, %arg16: memref<128x256xf32, #tpu.memory_space<vmem>>, %arg17: memref<128x256xf32, #tpu.memory_space<vmem>>) attributes {dimension_semantics = [#tpu.dimension_semantics<parallel>], iteration_bounds = array<i64: 4>, scalar_prefetch = 0 : i64, scratch_operands = 0 : i64, tpu.core_type = #tpu.core_type<tc>, window_params = [{transform_indices = @transform_0, window_bounds = array<i64: 128, 896>}, {transform_indices = @transform_1, window_bounds = array<i64: 128, 256>}, {pipeline_mode = #tpu.pipeline_mode<synchronous>, transform_indices = @transform_2, window_bounds = array<i64: 896, 512>}, {pipeline_mode = #tpu.pipeline_mode<synchronous>, transform_indices = @transform_3, window_bounds = array<i64: 1, 512>}, {pipeline_mode = #tpu.pipeline_mode<synchronous>, transform_indices = @transform_4, window_bounds = array<i64: 512, 512>}, {pipeline_mode = #tpu.pipeline_mode<synchronous>, transform_indices = @transform_5, window_bounds = array<i64: 1, 512>}, {pipeline_mode = #tpu.pipeline_mode<synchronous>, transform_indices = @transform_6, window_bounds = array<i64: 512, 512>}, {pipeline_mode = #tpu.pipeline_mode<synchronous>, transform_indices = @transform_7, window_bounds = array<i64: 1, 512>}, {pipeline_mode = #tpu.pipeline_mode<synchronous>, transform_indices = @transform_8, window_bounds = array<i64: 256, 512>}, {pipeline_mode = #tpu.pipeline_mode<synchronous>, transform_indices = @transform_9, window_bounds = array<i64: 1, 512>}, {pipeline_mode = #tpu.pipeline_mode<synchronous>, transform_indices = @transform_10, window_bounds = array<i64: 512, 512>}, {pipeline_mode = #tpu.pipeline_mode<synchronous>, transform_indices = @transform_11, window_bounds = array<i64: 1, 512>}, {pipeline_mode = #tpu.pipeline_mode<synchronous>, transform_indices = @transform_12, window_bounds = array<i64: 512, 896>}, {pipeline_mode = #tpu.pipeline_mode<synchronous>, transform_indices = @transform_13, window_bounds = array<i64: 1, 896>}, {transform_indices = @transform_14, window_bounds = array<i64: 128, 896>}, {transform_indices = @transform_15, window_bounds = array<i64: 128, 256>}, {transform_indices = @transform_16, window_bounds = array<i64: 128, 256>}]} {
    %c0 = arith.constant 0 : index
    %c0_0 = arith.constant 0 : index
    %0 = vector.load %arg1[%c0, %c0_0] : memref<128x896xf32, #tpu.memory_space<vmem>>, vector<128x896xf32>
    %1 = arith.truncf %0 : vector<128x896xf32> to vector<128x896xbf16>
    %c0_1 = arith.constant 0 : index
    %c0_2 = arith.constant 0 : index
    %2 = vector.load %arg3[%c0_1, %c0_2] : memref<896x512xbf16, #tpu.memory_space<vmem>>, vector<896x512xbf16>
    %cst = arith.constant dense<0.000000e+00> : vector<128x512xf32>
    %3 = tpu.matmul %1, %2, %cst {dimension_numbers = #tpu.dot_dimension_numbers<[1], [0], [0], [1], [0, 0, 1, 1], [], []>} : vector<128x896xbf16>, vector<896x512xbf16>, vector<128x512xf32> -> vector<128x512xf32>
    %c0_3 = arith.constant 0 : index
    %c0_4 = arith.constant 0 : index
    %4 = vector.load %arg4[%c0_3, %c0_4] : memref<1x512xf32, #tpu.memory_space<vmem>>, vector<1x512xf32>
    %5 = vector.broadcast %4 : vector<1x512xf32> to vector<128x512xf32>
    %6 = arith.addf %3, %5 : vector<128x512xf32>
    %cst_5 = arith.constant 0.000000e+00 : f32
    %7 = vector.broadcast %cst_5 : f32 to vector<128x512xf32>
    %8 = arith.cmpf ogt, %6, %7 : vector<128x512xf32>
    %cst_6 = arith.constant 2.000000e-01 : f32
    %9 = vector.broadcast %cst_6 : f32 to vector<128x512xf32>
    %10 = arith.mulf %9, %6 : vector<128x512xf32>
    %11 = arith.select %8, %6, %10 : vector<128x512xi1>, vector<128x512xf32>
    %12 = arith.truncf %11 : vector<128x512xf32> to vector<128x512xbf16>
    %c0_7 = arith.constant 0 : index
    %c0_8 = arith.constant 0 : index
    %13 = vector.load %arg5[%c0_7, %c0_8] : memref<512x512xbf16, #tpu.memory_space<vmem>>, vector<512x512xbf16>
    %cst_9 = arith.constant dense<0.000000e+00> : vector<128x512xf32>
    %14 = tpu.matmul %12, %13, %cst_9 {dimension_numbers = #tpu.dot_dimension_numbers<[1], [0], [0], [1], [0, 0, 1, 1], [], []>} : vector<128x512xbf16>, vector<512x512xbf16>, vector<128x512xf32> -> vector<128x512xf32>
    %c0_10 = arith.constant 0 : index
    %c0_11 = arith.constant 0 : index
    %15 = vector.load %arg6[%c0_10, %c0_11] : memref<1x512xf32, #tpu.memory_space<vmem>>, vector<1x512xf32>
    %16 = vector.broadcast %15 : vector<1x512xf32> to vector<128x512xf32>
    %17 = arith.addf %14, %16 : vector<128x512xf32>
    %cst_12 = arith.constant 0.000000e+00 : f32
    %18 = vector.broadcast %cst_12 : f32 to vector<128x512xf32>
    %19 = arith.cmpf ogt, %17, %18 : vector<128x512xf32>
    %cst_13 = arith.constant 2.000000e-01 : f32
    %20 = vector.broadcast %cst_13 : f32 to vector<128x512xf32>
    %21 = arith.mulf %20, %17 : vector<128x512xf32>
    %22 = arith.select %19, %17, %21 : vector<128x512xi1>, vector<128x512xf32>
    %23 = arith.truncf %22 : vector<128x512xf32> to vector<128x512xbf16>
    %c0_14 = arith.constant 0 : index
    %c0_15 = arith.constant 0 : index
    %24 = vector.load %arg7[%c0_14, %c0_15] : memref<512x512xbf16, #tpu.memory_space<vmem>>, vector<512x512xbf16>
    %cst_16 = arith.constant dense<0.000000e+00> : vector<128x512xf32>
    %25 = tpu.matmul %23, %24, %cst_16 {dimension_numbers = #tpu.dot_dimension_numbers<[1], [0], [0], [1], [0, 0, 1, 1], [], []>} : vector<128x512xbf16>, vector<512x512xbf16>, vector<128x512xf32> -> vector<128x512xf32>
    %c0_17 = arith.constant 0 : index
    %c0_18 = arith.constant 0 : index
    %26 = vector.load %arg8[%c0_17, %c0_18] : memref<1x512xf32, #tpu.memory_space<vmem>>, vector<1x512xf32>
    %27 = vector.broadcast %26 : vector<1x512xf32> to vector<128x512xf32>
    %28 = arith.addf %25, %27 : vector<128x512xf32>
    %29 = vector.extract_strided_slice %28 {offsets = [0, 0], sizes = [128, 256], strides = [1, 1]} : vector<128x512xf32> to vector<128x256xf32>
    %30 = vector.extract_strided_slice %28 {offsets = [0, 256], sizes = [128, 256], strides = [1, 1]} : vector<128x512xf32> to vector<128x256xf32>
    %cst_19 = arith.constant 5.000000e-01 : f32
    %31 = vector.broadcast %cst_19 : f32 to vector<128x256xf32>
    %32 = arith.mulf %31, %30 : vector<128x256xf32>
    %33 = math.exp %32 : vector<128x256xf32>
    %c0_20 = arith.constant 0 : index
    %c0_21 = arith.constant 0 : index
    %34 = vector.load %arg2[%c0_20, %c0_21] : memref<128x256xf32, #tpu.memory_space<vmem>>, vector<128x256xf32>
    %35 = arith.mulf %33, %34 : vector<128x256xf32>
    %36 = arith.addf %29, %35 : vector<128x256xf32>
    %37 = arith.truncf %36 : vector<128x256xf32> to vector<128x256xbf16>
    %c0_22 = arith.constant 0 : index
    %c0_23 = arith.constant 0 : index
    %38 = vector.load %arg9[%c0_22, %c0_23] : memref<256x512xbf16, #tpu.memory_space<vmem>>, vector<256x512xbf16>
    %cst_24 = arith.constant dense<0.000000e+00> : vector<128x512xf32>
    %39 = tpu.matmul %37, %38, %cst_24 {dimension_numbers = #tpu.dot_dimension_numbers<[1], [0], [0], [1], [0, 0, 1, 1], [], []>} : vector<128x256xbf16>, vector<256x512xbf16>, vector<128x512xf32> -> vector<128x512xf32>
    %c0_25 = arith.constant 0 : index
    %c0_26 = arith.constant 0 : index
    %40 = vector.load %arg10[%c0_25, %c0_26] : memref<1x512xf32, #tpu.memory_space<vmem>>, vector<1x512xf32>
    %41 = vector.broadcast %40 : vector<1x512xf32> to vector<128x512xf32>
    %42 = arith.addf %39, %41 : vector<128x512xf32>
    %cst_27 = arith.constant 0.000000e+00 : f32
    %43 = vector.broadcast %cst_27 : f32 to vector<128x512xf32>
    %44 = arith.cmpf ogt, %42, %43 : vector<128x512xf32>
    %cst_28 = arith.constant 2.000000e-01 : f32
    %45 = vector.broadcast %cst_28 : f32 to vector<128x512xf32>
    %46 = arith.mulf %45, %42 : vector<128x512xf32>
    %47 = arith.select %44, %42, %46 : vector<128x512xi1>, vector<128x512xf32>
    %48 = arith.truncf %47 : vector<128x512xf32> to vector<128x512xbf16>
    %c0_29 = arith.constant 0 : index
    %c0_30 = arith.constant 0 : index
    %49 = vector.load %arg11[%c0_29, %c0_30] : memref<512x512xbf16, #tpu.memory_space<vmem>>, vector<512x512xbf16>
    %cst_31 = arith.constant dense<0.000000e+00> : vector<128x512xf32>
    %50 = tpu.matmul %48, %49, %cst_31 {dimension_numbers = #tpu.dot_dimension_numbers<[1], [0], [0], [1], [0, 0, 1, 1], [], []>} : vector<128x512xbf16>, vector<512x512xbf16>, vector<128x512xf32> -> vector<128x512xf32>
    %c0_32 = arith.constant 0 : index
    %c0_33 = arith.constant 0 : index
    %51 = vector.load %arg12[%c0_32, %c0_33] : memref<1x512xf32, #tpu.memory_space<vmem>>, vector<1x512xf32>
    %52 = vector.broadcast %51 : vector<1x512xf32> to vector<128x512xf32>
    %53 = arith.addf %50, %52 : vector<128x512xf32>
    %cst_34 = arith.constant 0.000000e+00 : f32
    %54 = vector.broadcast %cst_34 : f32 to vector<128x512xf32>
    %55 = arith.cmpf ogt, %53, %54 : vector<128x512xf32>
    %cst_35 = arith.constant 2.000000e-01 : f32
    %56 = vector.broadcast %cst_35 : f32 to vector<128x512xf32>
    %57 = arith.mulf %56, %53 : vector<128x512xf32>
    %58 = arith.select %55, %53, %57 : vector<128x512xi1>, vector<128x512xf32>
    %59 = arith.truncf %58 : vector<128x512xf32> to vector<128x512xbf16>
    %c0_36 = arith.constant 0 : index
    %c0_37 = arith.constant 0 : index
    %60 = vector.load %arg13[%c0_36, %c0_37] : memref<512x896xbf16, #tpu.memory_space<vmem>>, vector<512x896xbf16>
    %cst_38 = arith.constant dense<0.000000e+00> : vector<128x896xf32>
    %61 = tpu.matmul %59, %60, %cst_38 {dimension_numbers = #tpu.dot_dimension_numbers<[1], [0], [0], [1], [0, 0, 1, 1], [], []>} : vector<128x512xbf16>, vector<512x896xbf16>, vector<128x896xf32> -> vector<128x896xf32>
    %c0_39 = arith.constant 0 : index
    %c0_40 = arith.constant 0 : index
    %62 = vector.load %arg14[%c0_39, %c0_40] : memref<1x896xf32, #tpu.memory_space<vmem>>, vector<1x896xf32>
    %63 = vector.broadcast %62 : vector<1x896xf32> to vector<128x896xf32>
    %64 = arith.addf %61, %63 : vector<128x896xf32>
    %cst_41 = arith.constant 5.000000e-01 : f32
    %65 = vector.broadcast %cst_41 : f32 to vector<128x896xf32>
    %66 = arith.mulf %65, %64 : vector<128x896xf32>
    %67 = math.tanh %66 : vector<128x896xf32>
    %cst_42 = arith.constant 5.000000e-01 : f32
    %68 = vector.broadcast %cst_42 : f32 to vector<128x896xf32>
    %69 = arith.mulf %68, %67 : vector<128x896xf32>
    %cst_43 = arith.constant 5.000000e-01 : f32
    %70 = vector.broadcast %cst_43 : f32 to vector<128x896xf32>
    %71 = arith.addf %69, %70 : vector<128x896xf32>
    %c0_44 = arith.constant 0 : index
    %c0_45 = arith.constant 0 : index
    %72 = vector.load %arg15[%c0_44, %c0_45] : memref<128x896xf32, #tpu.memory_space<vmem>>, vector<128x896xf32>
    tpu.vector_store %arg15[%c0_44, %c0_45], %71 {strides = array<i32>} : memref<128x896xf32, #tpu.memory_space<vmem>>, vector<128x896xf32>,
    %c0_46 = arith.constant 0 : index
    %c0_47 = arith.constant 0 : index
    %73 = vector.load %arg16[%c0_46, %c0_47] : memref<128x256xf32, #tpu.memory_space<vmem>>, vector<128x256xf32>
    tpu.vector_store %arg16[%c0_46, %c0_47], %29 {strides = array<i32>} : memref<128x256xf32, #tpu.memory_space<vmem>>, vector<128x256xf32>,
    %c0_48 = arith.constant 0 : index
    %c0_49 = arith.constant 0 : index
    %74 = vector.load %arg17[%c0_48, %c0_49] : memref<128x256xf32, #tpu.memory_space<vmem>>, vector<128x256xf32>
    tpu.vector_store %arg17[%c0_48, %c0_49], %30 {strides = array<i32>} : memref<128x256xf32, #tpu.memory_space<vmem>>, vector<128x256xf32>,
    return
  }
  func.func @transform_0(%arg0: i32) -> (i32, i32) {
    %c0_i32 = arith.constant 0 : i32
    %c0_i32_0 = arith.constant 0 : i32
    return %arg0, %c0_i32 : i32, i32
  }
  func.func @transform_1(%arg0: i32) -> (i32, i32) {
    %c0_i32 = arith.constant 0 : i32
    %c0_i32_0 = arith.constant 0 : i32
    return %arg0, %c0_i32 : i32, i32
  }
  func.func @transform_2(%arg0: i32) -> (i32, i32) {
    %c0_i32 = arith.constant 0 : i32
    %c0_i32_0 = arith.constant 0 : i32
    %c0_i32_1 = arith.constant 0 : i32
    return %c0_i32, %c0_i32_0 : i32, i32
  }
  func.func @transform_3(%arg0: i32) -> (i32, i32) {
    %c0_i32 = arith.constant 0 : i32
    %c0_i32_0 = arith.constant 0 : i32
    %c0_i32_1 = arith.constant 0 : i32
    return %c0_i32, %c0_i32_0 : i32, i32
  }
  func.func @transform_4(%arg0: i32) -> (i32, i32) {
    %c0_i32 = arith.constant 0 : i32
    %c0_i32_0 = arith.constant 0 : i32
    %c0_i32_1 = arith.constant 0 : i32
    return %c0_i32, %c0_i32_0 : i32, i32
  }
  func.func @transform_5(%arg0: i32) -> (i32, i32) {
    %c0_i32 = arith.constant 0 : i32
    %c0_i32_0 = arith.constant 0 : i32
    %c0_i32_1 = arith.constant 0 : i32
    return %c0_i32, %c0_i32_0 : i32, i32
  }
  func.func @transform_6(%arg0: i32) -> (i32, i32) {
    %c0_i32 = arith.constant 0 : i32
    %c0_i32_0 = arith.constant 0 : i32
    %c0_i32_1 = arith.constant 0 : i32
    return %c0_i32, %c0_i32_0 : i32, i32
  }
  func.func @transform_7(%arg0: i32) -> (i32, i32) {
    %c0_i32 = arith.constant 0 : i32
    %c0_i32_0 = arith.constant 0 : i32
    %c0_i32_1 = arith.constant 0 : i32
    return %c0_i32, %c0_i32_0 : i32, i32
  }
  func.func @transform_8(%arg0: i32) -> (i32, i32) {
    %c0_i32 = arith.constant 0 : i32
    %c0_i32_0 = arith.constant 0 : i32
    %c0_i32_1 = arith.constant 0 : i32
    return %c0_i32, %c0_i32_0 : i32, i32
  }
  func.func @transform_9(%arg0: i32) -> (i32, i32) {
    %c0_i32 = arith.constant 0 : i32
    %c0_i32_0 = arith.constant 0 : i32
    %c0_i32_1 = arith.constant 0 : i32
    return %c0_i32, %c0_i32_0 : i32, i32
  }
  func.func @transform_10(%arg0: i32) -> (i32, i32) {
    %c0_i32 = arith.constant 0 : i32
    %c0_i32_0 = arith.constant 0 : i32
    %c0_i32_1 = arith.constant 0 : i32
    return %c0_i32, %c0_i32_0 : i32, i32
  }
  func.func @transform_11(%arg0: i32) -> (i32, i32) {
    %c0_i32 = arith.constant 0 : i32
    %c0_i32_0 = arith.constant 0 : i32
    %c0_i32_1 = arith.constant 0 : i32
    return %c0_i32, %c0_i32_0 : i32, i32
  }
  func.func @transform_12(%arg0: i32) -> (i32, i32) {
    %c0_i32 = arith.constant 0 : i32
    %c0_i32_0 = arith.constant 0 : i32
    %c0_i32_1 = arith.constant 0 : i32
    return %c0_i32, %c0_i32_0 : i32, i32
  }
  func.func @transform_13(%arg0: i32) -> (i32, i32) {
    %c0_i32 = arith.constant 0 : i32
    %c0_i32_0 = arith.constant 0 : i32
    %c0_i32_1 = arith.constant 0 : i32
    return %c0_i32, %c0_i32_0 : i32, i32
  }
  func.func @transform_14(%arg0: i32) -> (i32, i32) {
    %c0_i32 = arith.constant 0 : i32
    %c0_i32_0 = arith.constant 0 : i32
    return %arg0, %c0_i32 : i32, i32
  }
  func.func @transform_15(%arg0: i32) -> (i32, i32) {
    %c0_i32 = arith.constant 0 : i32
    %c0_i32_0 = arith.constant 0 : i32
    return %arg0, %c0_i32 : i32, i32
  }
  func.func @transform_16(%arg0: i32) -> (i32, i32) {
    %c0_i32 = arith.constant 0 : i32
    %c0_i32_0 = arith.constant 0 : i32
    return %arg0, %c0_i32 : i32, i32
  }
}

</mosaic_0001>

<llo_original>
// kernel: vae_forward.1
$region0: #{vae_forward.1}
  #allocation0 [shape = 'u32[]', space=smem, size = 0x4, offset = 0x4, fixed_abs, tag = 'smem constant byte address 0x4 - core index']
  #allocation1 [shape = 'u32[144,128]{1,0:T(1,128)}', space=vmem, size = 0x12000, scoped, tag = 'internal scratch']
  %s0 = inlined_call_operand.vmem [shape: f32[512,896], index: 0, kind: input, shape index: {}]
  %s1 = inlined_call_operand.vmem [shape: f32[512,256], index: 1, kind: input, shape index: {}]
  %s2 = inlined_call_operand.vmem [shape: bf16[896,512], index: 2, kind: input, shape index: {}]
  %s3 = inlined_call_operand.vmem [shape: f32[1,512], index: 3, kind: input, shape index: {}]
  %s4 = inlined_call_operand.vmem [shape: bf16[512,512], index: 4, kind: input, shape index: {}]
  %s5 = inlined_call_operand.vmem [shape: f32[1,512], index: 5, kind: input, shape index: {}]
  %s6 = inlined_call_operand.vmem [shape: bf16[512,512], index: 6, kind: input, shape index: {}]
  %s7 = inlined_call_operand.vmem [shape: f32[1,512], index: 7, kind: input, shape index: {}]
  %s8 = inlined_call_operand.vmem [shape: bf16[256,512], index: 8, kind: input, shape index: {}]
  %s9 = inlined_call_operand.vmem [shape: f32[1,512], index: 9, kind: input, shape index: {}]
  %s10 = inlined_call_operand.vmem [shape: bf16[512,512], index: 10, kind: input, shape index: {}]
  %s11 = inlined_call_operand.vmem [shape: f32[1,512], index: 11, kind: input, shape index: {}]
  %s12 = inlined_call_operand.vmem [shape: bf16[512,896], index: 12, kind: input, shape index: {}]
  %s13 = inlined_call_operand.vmem [shape: f32[1,896], index: 13, kind: input, shape index: {}]
  %s14 = inlined_call_operand.vmem [shape: f32[512,896], index: 14, kind: output, shape index: {0}]
  %s15 = inlined_call_operand.vmem [shape: f32[512,256], index: 15, kind: output, shape index: {1}]
  %s16 = inlined_call_operand.vmem [shape: f32[512,256], index: 16, kind: output, shape index: {2}]
  %17 = xla_tuple %s14, %s15, %s16
  %s18 = sld [smem:[#allocation0]]
  $region105: #{vae_forward.1} parent=0
    _
  %s20 = ssub.s32 1, %s18
  %s21 = scalar_select 0, %s20, %s18
  loop: start=0, step=1, limit=6
  $region2: #{vae_forward.1} parent=0 // loop_pre_header
    _
  $region3: #{vae_forward.1} parent=0 // loop_header
    %s23 = sphi 0, %s27
    %p24 = scmp.ge.s32.totalorder %s23, 6
    %s33 = sphi 0, %s35
    %s36 = sphi 0, %s33
    %s37 = sphi 0, %s36
    %s53 = sphi 0, %s37
    %s59 = sphi 0, %s61
    %s62 = sphi 0, %s59
    %s63 = sphi 0, %s62
    %s79 = sphi 0, %s63
    %s83 = sphi 0, %s83
    %s85 = sphi 0, %s83
    %s86 = sphi 0, %s85
    %s100 = sphi 0, %s86
    %s104 = sphi 0, %s104
    %s106 = sphi 0, %s104
    %s107 = sphi 0, %s106
    %s121 = sphi 0, %s107
    %s125 = sphi 0, %s125
    %s127 = sphi 0, %s125
    %s128 = sphi 0, %s127
    %s142 = sphi 0, %s128
    %s146 = sphi 0, %s146
    %s148 = sphi 0, %s146
    %s149 = sphi 0, %s148
    %s163 = sphi 0, %s149
    %s167 = sphi 0, %s167
    %s169 = sphi 0, %s167
    %s170 = sphi 0, %s169
    %s184 = sphi 0, %s170
    %s188 = sphi 0, %s188
    %s190 = sphi 0, %s188
    %s191 = sphi 0, %s190
    %s205 = sphi 0, %s191
    %s209 = sphi 0, %s209
    %s211 = sphi 0, %s209
    %s212 = sphi 0, %s211
    %s226 = sphi 0, %s212
    %s230 = sphi 0, %s230
    %s232 = sphi 0, %s230
    %s233 = sphi 0, %s232
    %s247 = sphi 0, %s233
    %s251 = sphi 0, %s251
    %s253 = sphi 0, %s251
    %s254 = sphi 0, %s253
    %s268 = sphi 0, %s254
    %s272 = sphi 0, %s272
    %s274 = sphi 0, %s272
    %s275 = sphi 0, %s274
    %s289 = sphi 0, %s275
    %s293 = sphi 0, %s293
    %s295 = sphi 0, %s293
    %s296 = sphi 0, %s295
    %s310 = sphi 0, %s296
    %s314 = sphi 0, %s314
    %s316 = sphi 0, %s314
    %s317 = sphi 0, %s316
    %s331 = sphi 0, %s317
    %s337 = sphi 0, %s339
    %s340 = sphi 0, %s337
    %s341 = sphi 0, %s340
    %s357 = sphi 0, %s341
    %s363 = sphi 0, %s365
    %s366 = sphi 0, %s363
    %s367 = sphi 0, %s366
    %s383 = sphi 0, %s367
    %s389 = sphi 0, %s391
    %s392 = sphi 0, %s389
    %s393 = sphi 0, %s392
    %s409 = sphi 0, %s393
  $region4: #{vae_forward.1} parent=0 // loop_header_branch
    %26 = sbr.rel (%p24) target = $region8
  $region5: #{vae_forward.1} parent=0 // loop_body
    %s28 = ssub.s32 %s23, 1
    %s29 = ssub.s32 %s23, 2
    %s30 = sadd.s32 %s23, 1
    %s31 = ssub.s32 %s23, %s30
    %p32 = scmp.eq.s32.totalorder %s31, 0
    %s34 = sadd.s32 %s33, 1
    %s35 = scalar_select %p32, %s33, %s34
    %p38 = pneg %p32
    %p39 = scmp.eq.s32.totalorder %s23, 3
    %p40 = por %p38, %p39
    %p41 = scmp.ne.s32.totalorder %s33, %s36
    %p42 = scmp.eq.s32.totalorder %s23, 0
    %p43 = por %p41, %p42
    %p44 = scmp.ne.s32.totalorder %s33, %s36
    %p45 = scmp.eq.s32.totalorder %s28, 3
    %p46 = por %p44, %p45
    %p47 = scmp.ne.s32.totalorder %s36, %s37
    %p48 = scmp.eq.s32.totalorder %s28, 0
    %p49 = por %p47, %p48
    %p50 = scmp.ne.s32.totalorder %s36, %s37
    %p51 = scmp.eq.s32.totalorder %s29, 3
    %p52 = por %p50, %p51
    %p54 = scmp.ne.s32.totalorder %s37, %s53
    %p55 = scmp.eq.s32.totalorder %s29, 0
    %p56 = por %p54, %p55
    %s57 = ssub.s32 %s23, %s30
    %p58 = scmp.eq.s32.totalorder %s57, 0
    %s60 = sadd.s32 %s59, 1
    %s61 = scalar_select %p58, %s59, %s60
    %p64 = pneg %p58
    %p65 = scmp.eq.s32.totalorder %s23, 3
    %p66 = por %p64, %p65
    %p67 = scmp.ne.s32.totalorder %s59, %s62
    %p68 = scmp.eq.s32.totalorder %s23, 0
    %p69 = por %p67, %p68
    %p70 = scmp.ne.s32.totalorder %s59, %s62
    %p71 = scmp.eq.s32.totalorder %s28, 3
    %p72 = por %p70, %p71
    %p73 = scmp.ne.s32.totalorder %s62, %s63
    %p74 = scmp.eq.s32.totalorder %s28, 0
    %p75 = por %p73, %p74
    %p76 = scmp.ne.s32.totalorder %s62, %s63
    %p77 = scmp.eq.s32.totalorder %s29, 3
    %p78 = por %p76, %p77
    %p80 = scmp.ne.s32.totalorder %s63, %s79
    %p81 = scmp.eq.s32.totalorder %s29, 0
    %p82 = por %p80, %p81
    %s84 = sadd.s32 %s83, 1
    %p87 = scmp.eq.s32.totalorder %s23, 3
    %p88 = scmp.ne.s32.totalorder %s83, %s85
    %p89 = scmp.eq.s32.totalorder %s23, 0
    %p90 = por %p88, %p89
    %p91 = scmp.ne.s32.totalorder %s83, %s85
    %p92 = scmp.eq.s32.totalorder %s28, 3
    %p93 = por %p91, %p92
    %p94 = scmp.ne.s32.totalorder %s85, %s86
    %p95 = scmp.eq.s32.totalorder %s28, 0
    %p96 = por %p94, %p95
    %p97 = scmp.ne.s32.totalorder %s85, %s86
    %p98 = scmp.eq.s32.totalorder %s29, 3
    %p99 = por %p97, %p98
    %p101 = scmp.ne.s32.totalorder %s86, %s100
    %p102 = scmp.eq.s32.totalorder %s29, 0
    %p103 = por %p101, %p102
    %s105 = sadd.s32 %s104, 1
    %p108 = scmp.eq.s32.totalorder %s23, 3
    %p109 = scmp.ne.s32.totalorder %s104, %s106
    %p110 = scmp.eq.s32.totalorder %s23, 0
    %p111 = por %p109, %p110
    %p112 = scmp.ne.s32.totalorder %s104, %s106
    %p113 = scmp.eq.s32.totalorder %s28, 3
    %p114 = por %p112, %p113
    %p115 = scmp.ne.s32.totalorder %s106, %s107
    %p116 = scmp.eq.s32.totalorder %s28, 0
    %p117 = por %p115, %p116
    %p118 = scmp.ne.s32.totalorder %s106, %s107
    %p119 = scmp.eq.s32.totalorder %s29, 3
    %p120 = por %p118, %p119
    %p122 = scmp.ne.s32.totalorder %s107, %s121
    %p123 = scmp.eq.s32.totalorder %s29, 0
    %p124 = por %p122, %p123
    %s126 = sadd.s32 %s125, 1
    %p129 = scmp.eq.s32.totalorder %s23, 3
    %p130 = scmp.ne.s32.totalorder %s125, %s127
    %p131 = scmp.eq.s32.totalorder %s23, 0
    %p132 = por %p130, %p131
    %p133 = scmp.ne.s32.totalorder %s125, %s127
    %p134 = scmp.eq.s32.totalorder %s28, 3
    %p135 = por %p133, %p134
    %p136 = scmp.ne.s32.totalorder %s127, %s128
    %p137 = scmp.eq.s32.totalorder %s28, 0
    %p138 = por %p136, %p137
    %p139 = scmp.ne.s32.totalorder %s127, %s128
    %p140 = scmp.eq.s32.totalorder %s29, 3
    %p141 = por %p139, %p140
    %p143 = scmp.ne.s32.totalorder %s128, %s142
    %p144 = scmp.eq.s32.totalorder %s29, 0
    %p145 = por %p143, %p144
    %s147 = sadd.s32 %s146, 1
    %p150 = scmp.eq.s32.totalorder %s23, 3
    %p151 = scmp.ne.s32.totalorder %s146, %s148
    %p152 = scmp.eq.s32.totalorder %s23, 0
    %p153 = por %p151, %p152
    %p154 = scmp.ne.s32.totalorder %s146, %s148
    %p155 = scmp.eq.s32.totalorder %s28, 3
    %p156 = por %p154, %p155
    %p157 = scmp.ne.s32.totalorder %s148, %s149
    %p158 = scmp.eq.s32.totalorder %s28, 0
    %p159 = por %p157, %p158
    %p160 = scmp.ne.s32.totalorder %s148, %s149
    %p161 = scmp.eq.s32.totalorder %s29, 3
    %p162 = por %p160, %p161
    %p164 = scmp.ne.s32.totalorder %s149, %s163
    %p165 = scmp.eq.s32.totalorder %s29, 0
    %p166 = por %p164, %p165
    %s168 = sadd.s32 %s167, 1
    %p171 = scmp.eq.s32.totalorder %s23, 3
    %p172 = scmp.ne.s32.totalorder %s167, %s169
    %p173 = scmp.eq.s32.totalorder %s23, 0
    %p174 = por %p172, %p173
    %p175 = scmp.ne.s32.totalorder %s167, %s169
    %p176 = scmp.eq.s32.totalorder %s28, 3
    %p177 = por %p175, %p176
    %p178 = scmp.ne.s32.totalorder %s169, %s170
    %p179 = scmp.eq.s32.totalorder %s28, 0
    %p180 = por %p178, %p179
    %p181 = scmp.ne.s32.totalorder %s169, %s170
    %p182 = scmp.eq.s32.totalorder %s29, 3
    %p183 = por %p181, %p182
    %p185 = scmp.ne.s32.totalorder %s170, %s184
    %p186 = scmp.eq.s32.totalorder %s29, 0
    %p187 = por %p185, %p186
    %s189 = sadd.s32 %s188, 1
    %p192 = scmp.eq.s32.totalorder %s23, 3
    %p193 = scmp.ne.s32.totalorder %s188, %s190
    %p194 = scmp.eq.s32.totalorder %s23, 0
    %p195 = por %p193, %p194
    %p196 = scmp.ne.s32.totalorder %s188, %s190
    %p197 = scmp.eq.s32.totalorder %s28, 3
    %p198 = por %p196, %p197
    %p199 = scmp.ne.s32.totalorder %s190, %s191
    %p200 = scmp.eq.s32.totalorder %s28, 0
    %p201 = por %p199, %p200
    %p202 = scmp.ne.s32.totalorder %s190, %s191
    %p203 = scmp.eq.s32.totalorder %s29, 3
    %p204 = por %p202, %p203
    %p206 = scmp.ne.s32.totalorder %s191, %s205
    %p207 = scmp.eq.s32.totalorder %s29, 0
    %p208 = por %p206, %p207
    %s210 = sadd.s32 %s209, 1
    %p213 = scmp.eq.s32.totalorder %s23, 3
    %p214 = scmp.ne.s32.totalorder %s209, %s211
    %p215 = scmp.eq.s32.totalorder %s23, 0
    %p216 = por %p214, %p215
    %p217 = scmp.ne.s32.totalorder %s209, %s211
    %p218 = scmp.eq.s32.totalorder %s28, 3
    %p219 = por %p217, %p218
    %p220 = scmp.ne.s32.totalorder %s211, %s212
    %p221 = scmp.eq.s32.totalorder %s28, 0
    %p222 = por %p220, %p221
    %p223 = scmp.ne.s32.totalorder %s211, %s212
    %p224 = scmp.eq.s32.totalorder %s29, 3
    %p225 = por %p223, %p224
    %p227 = scmp.ne.s32.totalorder %s212, %s226
    %p228 = scmp.eq.s32.totalorder %s29, 0
    %p229 = por %p227, %p228
    %s231 = sadd.s32 %s230, 1
    %p234 = scmp.eq.s32.totalorder %s23, 3
    %p235 = scmp.ne.s32.totalorder %s230, %s232
    %p236 = scmp.eq.s32.totalorder %s23, 0
    %p237 = por %p235, %p236
    %p238 = scmp.ne.s32.totalorder %s230, %s232
    %p239 = scmp.eq.s32.totalorder %s28, 3
    %p240 = por %p238, %p239
    %p241 = scmp.ne.s32.totalorder %s232, %s233
    %p242 = scmp.eq.s32.totalorder %s28, 0
    %p243 = por %p241, %p242
    %p244 = scmp.ne.s32.totalorder %s232, %s233
    %p245 = scmp.eq.s32.totalorder %s29, 3
    %p246 = por %p244, %p245
    %p248 = scmp.ne.s32.totalorder %s233, %s247
    %p249 = scmp.eq.s32.totalorder %s29, 0
    %p250 = por %p248, %p249
    %s252 = sadd.s32 %s251, 1
    %p255 = scmp.eq.s32.totalorder %s23, 3
    %p256 = scmp.ne.s32.totalorder %s251, %s253
    %p257 = scmp.eq.s32.totalorder %s23, 0
    %p258 = por %p256, %p257
    %p259 = scmp.ne.s32.totalorder %s251, %s253
    %p260 = scmp.eq.s32.totalorder %s28, 3
    %p261 = por %p259, %p260
    %p262 = scmp.ne.s32.totalorder %s253, %s254
    %p263 = scmp.eq.s32.totalorder %s28, 0
    %p264 = por %p262, %p263
    %p265 = scmp.ne.s32.totalorder %s253, %s254
    %p266 = scmp.eq.s32.totalorder %s29, 3
    %p267 = por %p265, %p266
    %p269 = scmp.ne.s32.totalorder %s254, %s268
    %p270 = scmp.eq.s32.totalorder %s29, 0
    %p271 = por %p269, %p270
    %s273 = sadd.s32 %s272, 1
    %p276 = scmp.eq.s32.totalorder %s23, 3
    %p277 = scmp.ne.s32.totalorder %s272, %s274
    %p278 = scmp.eq.s32.totalorder %s23, 0
    %p279 = por %p277, %p278
    %p280 = scmp.ne.s32.totalorder %s272, %s274
    %p281 = scmp.eq.s32.totalorder %s28, 3
    %p282 = por %p280, %p281
    %p283 = scmp.ne.s32.totalorder %s274, %s275
    %p284 = scmp.eq.s32.totalorder %s28, 0
    %p285 = por %p283, %p284
    %p286 = scmp.ne.s32.totalorder %s274, %s275
    %p287 = scmp.eq.s32.totalorder %s29, 3
    %p288 = por %p286, %p287
    %p290 = scmp.ne.s32.totalorder %s275, %s289
    %p291 = scmp.eq.s32.totalorder %s29, 0
    %p292 = por %p290, %p291
    %s294 = sadd.s32 %s293, 1
    %p297 = scmp.eq.s32.totalorder %s23, 3
    %p298 = scmp.ne.s32.totalorder %s293, %s295
    %p299 = scmp.eq.s32.totalorder %s23, 0
    %p300 = por %p298, %p299
    %p301 = scmp.ne.s32.totalorder %s293, %s295
    %p302 = scmp.eq.s32.totalorder %s28, 3
    %p303 = por %p301, %p302
    %p304 = scmp.ne.s32.totalorder %s295, %s296
    %p305 = scmp.eq.s32.totalorder %s28, 0
    %p306 = por %p304, %p305
    %p307 = scmp.ne.s32.totalorder %s295, %s296
    %p308 = scmp.eq.s32.totalorder %s29, 3
    %p309 = por %p307, %p308
    %p311 = scmp.ne.s32.totalorder %s296, %s310
    %p312 = scmp.eq.s32.totalorder %s29, 0
    %p313 = por %p311, %p312
    %s315 = sadd.s32 %s314, 1
    %p318 = scmp.eq.s32.totalorder %s23, 3
    %p319 = scmp.ne.s32.totalorder %s314, %s316
    %p320 = scmp.eq.s32.totalorder %s23, 0
    %p321 = por %p319, %p320
    %p322 = scmp.ne.s32.totalorder %s314, %s316
    %p323 = scmp.eq.s32.totalorder %s28, 3
    %p324 = por %p322, %p323
    %p325 = scmp.ne.s32.totalorder %s316, %s317
    %p326 = scmp.eq.s32.totalorder %s28, 0
    %p327 = por %p325, %p326
    %p328 = scmp.ne.s32.totalorder %s316, %s317
    %p329 = scmp.eq.s32.totalorder %s29, 3
    %p330 = por %p328, %p329
    %p332 = scmp.ne.s32.totalorder %s317, %s331
    %p333 = scmp.eq.s32.totalorder %s29, 0
    %p334 = por %p332, %p333
    %s335 = ssub.s32 %s23, %s30
    %p336 = scmp.eq.s32.totalorder %s335, 0
    %s338 = sadd.s32 %s337, 1
    %s339 = scalar_select %p336, %s337, %s338
    %p342 = pneg %p336
    %p343 = scmp.eq.s32.totalorder %s23, 3
    %p344 = por %p342, %p343
    %p345 = scmp.ne.s32.totalorder %s337, %s340
    %p346 = scmp.eq.s32.totalorder %s23, 0
    %p347 = por %p345, %p346
    %p348 = scmp.ne.s32.totalorder %s337, %s340
    %p349 = scmp.eq.s32.totalorder %s28, 3
    %p350 = por %p348, %p349
    %p351 = scmp.ne.s32.totalorder %s340, %s341
    %p352 = scmp.eq.s32.totalorder %s28, 0
    %p353 = por %p351, %p352
    %p354 = scmp.ne.s32.totalorder %s340, %s341
    %p355 = scmp.eq.s32.totalorder %s29, 3
    %p356 = por %p354, %p355
    %p358 = scmp.ne.s32.totalorder %s341, %s357
    %p359 = scmp.eq.s32.totalorder %s29, 0
    %p360 = por %p358, %p359
    %s361 = ssub.s32 %s23, %s30
    %p362 = scmp.eq.s32.totalorder %s361, 0
    %s364 = sadd.s32 %s363, 1
    %s365 = scalar_select %p362, %s363, %s364
    %p368 = pneg %p362
    %p369 = scmp.eq.s32.totalorder %s23, 3
    %p370 = por %p368, %p369
    %p371 = scmp.ne.s32.totalorder %s363, %s366
    %p372 = scmp.eq.s32.totalorder %s23, 0
    %p373 = por %p371, %p372
    %p374 = scmp.ne.s32.totalorder %s363, %s366
    %p375 = scmp.eq.s32.totalorder %s28, 3
    %p376 = por %p374, %p375
    %p377 = scmp.ne.s32.totalorder %s366, %s367
    %p378 = scmp.eq.s32.totalorder %s28, 0
    %p379 = por %p377, %p378
    %p380 = scmp.ne.s32.totalorder %s366, %s367
    %p381 = scmp.eq.s32.totalorder %s29, 3
    %p382 = por %p380, %p381
    %p384 = scmp.ne.s32.totalorder %s367, %s383
    %p385 = scmp.eq.s32.totalorder %s29, 0
    %p386 = por %p384, %p385
    %s387 = ssub.s32 %s23, %s30
    %p388 = scmp.eq.s32.totalorder %s387, 0
    %s390 = sadd.s32 %s389, 1
    %s391 = scalar_select %p388, %s389, %s390
    %p394 = pneg %p388
    %p395 = scmp.eq.s32.totalorder %s23, 3
    %p396 = por %p394, %p395
    %p397 = scmp.ne.s32.totalorder %s389, %s392
    %p398 = scmp.eq.s32.totalorder %s23, 0
    %p399 = por %p397, %p398
    %p400 = scmp.ne.s32.totalorder %s389, %s392
    %p401 = scmp.eq.s32.totalorder %s28, 3
    %p402 = por %p400, %p401
    %p403 = scmp.ne.s32.totalorder %s392, %s393
    %p404 = scmp.eq.s32.totalorder %s28, 0
    %p405 = por %p403, %p404
    %p406 = scmp.ne.s32.totalorder %s392, %s393
    %p407 = scmp.eq.s32.totalorder %s29, 3
    %p408 = por %p406, %p407
    %p410 = scmp.ne.s32.totalorder %s393, %s409
    %p411 = scmp.eq.s32.totalorder %s29, 0
    %p412 = por %p410, %p411
    %p413 = scmp.le.s32.totalorder 1, %s23
    %p414 = scmp.lt.s32.totalorder %s23, 5
    %p415 = pnand %p413, %p414
    %p416 = pneg %p415
    // Predicated region
    $region9: #{vae_forward.1} parent=5 // pred_check
      _
    $region10: #{vae_forward.1} parent=5 // pred_check_branch
      %418 = sbr.rel (%p415) target = $region12
    $region11: #{vae_forward.1} parent=5 // pred_region
      %s419 = ssub.s32 %s23, 1
      // Predicated region
      $region13: #{vae_forward.1} parent=11 // pred_check
        %p420 = pneg %p96
      $region14: #{vae_forward.1} parent=11 // pred_check_branch
        %422 = sbr.rel (%p420) target = $region16
      $region15: #{vae_forward.1} parent=11 // pred_region
        _
      $region16: #{vae_forward.1} parent=11 // pred_fallthru
        _
      // Predicated region
      $region17: #{vae_forward.1} parent=11 // pred_check
        %p423 = pneg %p117
      $region18: #{vae_forward.1} parent=11 // pred_check_branch
        %425 = sbr.rel (%p423) target = $region20
      $region19: #{vae_forward.1} parent=11 // pred_region
        _
      $region20: #{vae_forward.1} parent=11 // pred_fallthru
        _
      // Predicated region
      $region21: #{vae_forward.1} parent=11 // pred_check
        %p426 = pneg %p138
      $region22: #{vae_forward.1} parent=11 // pred_check_branch
        %428 = sbr.rel (%p426) target = $region24
      $region23: #{vae_forward.1} parent=11 // pred_region
        _
      $region24: #{vae_forward.1} parent=11 // pred_fallthru
        _
      // Predicated region
      $region25: #{vae_forward.1} parent=11 // pred_check
        %p429 = pneg %p159
      $region26: #{vae_forward.1} parent=11 // pred_check_branch
        %431 = sbr.rel (%p429) target = $region28
      $region27: #{vae_forward.1} parent=11 // pred_region
        _
      $region28: #{vae_forward.1} parent=11 // pred_fallthru
        _
      // Predicated region
      $region29: #{vae_forward.1} parent=11 // pred_check
        %p432 = pneg %p180
      $region30: #{vae_forward.1} parent=11 // pred_check_branch
        %434 = sbr.rel (%p432) target = $region32
      $region31: #{vae_forward.1} parent=11 // pred_region
        _
      $region32: #{vae_forward.1} parent=11 // pred_fallthru
        _
      // Predicated region
      $region33: #{vae_forward.1} parent=11 // pred_check
        %p435 = pneg %p201
      $region34: #{vae_forward.1} parent=11 // pred_check_branch
        %437 = sbr.rel (%p435) target = $region36
      $region35: #{vae_forward.1} parent=11 // pred_region
        _
      $region36: #{vae_forward.1} parent=11 // pred_fallthru
        _
      // Predicated region
      $region37: #{vae_forward.1} parent=11 // pred_check
        %p438 = pneg %p222
      $region38: #{vae_forward.1} parent=11 // pred_check_branch
        %440 = sbr.rel (%p438) target = $region40
      $region39: #{vae_forward.1} parent=11 // pred_region
        _
      $region40: #{vae_forward.1} parent=11 // pred_fallthru
        _
      // Predicated region
      $region41: #{vae_forward.1} parent=11 // pred_check
        %p441 = pneg %p243
      $region42: #{vae_forward.1} parent=11 // pred_check_branch
        %443 = sbr.rel (%p441) target = $region44
      $region43: #{vae_forward.1} parent=11 // pred_region
        _
      $region44: #{vae_forward.1} parent=11 // pred_fallthru
        _
      // Predicated region
      $region45: #{vae_forward.1} parent=11 // pred_check
        %p444 = pneg %p264
      $region46: #{vae_forward.1} parent=11 // pred_check_branch
        %446 = sbr.rel (%p444) target = $region48
      $region47: #{vae_forward.1} parent=11 // pred_region
        _
      $region48: #{vae_forward.1} parent=11 // pred_fallthru
        _
      // Predicated region
      $region49: #{vae_forward.1} parent=11 // pred_check
        %p447 = pneg %p285
      $region50: #{vae_forward.1} parent=11 // pred_check_branch
        %449 = sbr.rel (%p447) target = $region52
      $region51: #{vae_forward.1} parent=11 // pred_region
        _
      $region52: #{vae_forward.1} parent=11 // pred_fallthru
        _
      // Predicated region
      $region53: #{vae_forward.1} parent=11 // pred_check
        %p450 = pneg %p306
      $region54: #{vae_forward.1} parent=11 // pred_check_branch
        %452 = sbr.rel (%p450) target = $region56
      $region55: #{vae_forward.1} parent=11 // pred_region
        _
      $region56: #{vae_forward.1} parent=11 // pred_fallthru
        _
      // Predicated region
      $region57: #{vae_forward.1} parent=11 // pred_check
        %p453 = pneg %p327
      $region58: #{vae_forward.1} parent=11 // pred_check_branch
        %455 = sbr.rel (%p453) target = $region60
      $region59: #{vae_forward.1} parent=11 // pred_region
        _
      $region60: #{vae_forward.1} parent=11 // pred_fallthru
        _
    $region12: #{vae_forward.1} parent=5 // pred_fallthru
      _
    %p456 = scmp.lt.s32.totalorder %s23, 4
    // Predicated region
    $region61: #{vae_forward.1} parent=5 // pred_check
      %p457 = pneg %p456
    $region62: #{vae_forward.1} parent=5 // pred_check_branch
      %459 = sbr.rel (%p457) target = $region64
    $region63: #{vae_forward.1} parent=5 // pred_region
      // Predicated region
      $region65: #{vae_forward.1} parent=63 // pred_check
        %p460 = pneg %p43
      $region66: #{vae_forward.1} parent=63 // pred_check_branch
        %462 = sbr.rel (%p460) target = $region68
      $region67: #{vae_forward.1} parent=63 // pred_region
        %s463 = smul.u32 16, %s23
        %p464 = scmp.lt.s32.totalorder %s463, 63
        %s465 = scalar_select %p464, %s463, 63
        %s466 = smul.addr %s465, 7
        %s467 = smul.addr %s466, 8
        %s468 = scalar_lea.vmem %s0, %s467
        %s469 = smul.u32 16, %s23
      $region68: #{vae_forward.1} parent=63 // pred_fallthru
        _
      // Predicated region
      $region69: #{vae_forward.1} parent=63 // pred_check
        %p470 = pneg %p69
      $region70: #{vae_forward.1} parent=63 // pred_check_branch
        %472 = sbr.rel (%p470) target = $region72
      $region71: #{vae_forward.1} parent=63 // pred_region
        %s473 = smul.u32 16, %s23
        %p474 = scmp.lt.s32.totalorder %s473, 63
        %s475 = scalar_select %p474, %s473, 63
        %s476 = smul.addr %s475, 2
        %s477 = smul.addr %s476, 8
        %s478 = scalar_lea.vmem %s1, %s477
        %s479 = smul.u32 16, %s23
      $region72: #{vae_forward.1} parent=63 // pred_fallthru
        _
    $region64: #{vae_forward.1} parent=5 // pred_fallthru
      _
    %p480 = scmp.le.s32.totalorder 1, %s23
    %p481 = scmp.lt.s32.totalorder %s23, 5
    %p482 = pnand %p480, %p481
    %p483 = pneg %p482
    // Predicated region
    $region73: #{vae_forward.1} parent=5 // pred_check
      _
    $region74: #{vae_forward.1} parent=5 // pred_check_branch
      %485 = sbr.rel (%p482) target = $region76
    $region75: #{vae_forward.1} parent=5 // pred_region
      %s486 = ssub.s32 %s23, 1
      %s487 = smul.u32 16, %s28
      %p488 = scmp.lt.s32.totalorder %s487, 63
      %s489 = scalar_select %p488, %s487, 63
      %s490 = smul.addr %s489, 7
      %s491 = smul.addr %s490, 8
      %s492 = scalar_lea.vmem %s0, %s491
      %p493 = pneg %p49
      %p494 = pneg %p46
      %s495 = smul.u32 16, %s28
      %p496 = scmp.lt.s32.totalorder %s495, 63
      %s497 = scalar_select %p496, %s495, 63
      %s498 = smul.addr %s497, 2
      %s499 = smul.addr %s498, 8
      %s500 = scalar_lea.vmem %s1, %s499
      %p501 = pneg %p75
      %p502 = pneg %p72
      %p503 = pneg %p96
      %p504 = pneg %p93
      %p505 = pneg %p117
      %p506 = pneg %p114
      %p507 = pneg %p138
      %p508 = pneg %p135
      %p509 = pneg %p159
      %p510 = pneg %p156
      %p511 = pneg %p180
      %p512 = pneg %p177
      %p513 = pneg %p201
      %p514 = pneg %p198
      %p515 = pneg %p222
      %p516 = pneg %p219
      %p517 = pneg %p243
      %p518 = pneg %p240
      %p519 = pneg %p264
      %p520 = pneg %p261
      %p521 = pneg %p285
      %p522 = pneg %p282
      %p523 = pneg %p306
      %p524 = pneg %p303
      %p525 = pneg %p327
      %p526 = pneg %p324
      %p527 = pneg %p353
      %p528 = pneg %p350
      %s529 = smul.u32 16, %s28
      %p530 = scmp.lt.s32.totalorder %s529, 63
      %s531 = scalar_select %p530, %s529, 63
      %s532 = smul.addr %s531, 7
      %s533 = smul.addr %s532, 8
      %s534 = scalar_lea.vmem %s14, %s533
      %p535 = pneg %p379
      %p536 = pneg %p376
      %s537 = smul.u32 16, %s28
      %p538 = scmp.lt.s32.totalorder %s537, 63
      %s539 = scalar_select %p538, %s537, 63
      %s540 = smul.addr %s539, 2
      %s541 = smul.addr %s540, 8
      %s542 = scalar_lea.vmem %s15, %s541
      %p543 = pneg %p405
      %p544 = pneg %p402
      %s545 = smul.u32 16, %s28
      %p546 = scmp.lt.s32.totalorder %s545, 63
      %s547 = scalar_select %p546, %s545, 63
      %s548 = smul.addr %s547, 2
      %s549 = smul.addr %s548, 8
      %s550 = scalar_lea.vmem %s16, %s549
      %s551 = smul.u32 16, %s28
      %p552 = scmp.lt.s32.totalorder %s551, 63
      %s553 = scalar_select %p552, %s551, 63
      %s554 = smul.addr %s553, 7
      %s555 = smul.addr %s554, 8
      %s556 = scalar_lea.vmem %s0, %s555
      %s557 = smul.u32 16, %s28
      %s558 = smul.u32 16, %s28
      %p559 = scmp.lt.s32.totalorder %s558, 63
      %s560 = scalar_select %p559, %s558, 63
      %s561 = smul.addr %s560, 2
      %s562 = smul.addr %s561, 8
      %s563 = scalar_lea.vmem %s1, %s562
      %s564 = smul.u32 16, %s28
      %s565 = smul.u32 16, %s28
      %p566 = scmp.lt.s32.totalorder %s565, 63
      %s567 = scalar_select %p566, %s565, 63
      %s568 = smul.addr %s567, 7
      %s569 = smul.addr %s568, 8
      %s570 = scalar_lea.vmem %s14, %s569
      %s571 = smul.u32 16, %s28
      %s572 = smul.u32 16, %s28
      %p573 = scmp.lt.s32.totalorder %s572, 63
      %s574 = scalar_select %p573, %s572, 63
      %s575 = smul.addr %s574, 2
      %s576 = smul.addr %s575, 8
      %s577 = scalar_lea.vmem %s15, %s576
      %s578 = smul.u32 16, %s28
      %s579 = smul.u32 16, %s28
      %p580 = scmp.lt.s32.totalorder %s579, 63
      %s581 = scalar_select %p580, %s579, 63
      %s582 = smul.addr %s581, 2
      %s583 = smul.addr %s582, 8
      %s584 = scalar_lea.vmem %s16, %s583
      %s585 = smul.u32 16, %s28
      %v587 = vld [vmem:[%s556] sm:$0xff]
      %v588 = vld [vmem:[%s556 + $0x8] sm:$0xff]
      %v589 = vld [vmem:[%s556 + $0x10] sm:$0xff]
      %v590 = vld [vmem:[%s556 + $0x18] sm:$0xff]
      %v591 = vld [vmem:[%s556 + $0x20] sm:$0xff]
      %v592 = vld [vmem:[%s556 + $0x28] sm:$0xff]
      %v593 = vld [vmem:[%s556 + $0x30] sm:$0xff]
      %v594 = vld [vmem:[%s556 + $0x38] sm:$0xff]
      %v595 = vld [vmem:[%s556 + $0x40] sm:$0xff]
      %v596 = vld [vmem:[%s556 + $0x48] sm:$0xff]
      %v597 = vld [vmem:[%s556 + $0x50] sm:$0xff]
      %v598 = vld [vmem:[%s556 + $0x58] sm:$0xff]
      %v599 = vld [vmem:[%s556 + $0x60] sm:$0xff]
      %v600 = vld [vmem:[%s556 + $0x68] sm:$0xff]
      %v601 = vld [vmem:[%s556 + $0x70] sm:$0xff]
      %v602 = vld [vmem:[%s556 + $0x78] sm:$0xff]
      %v603 = vld [vmem:[%s556 + $0x80] sm:$0xff]
      %v604 = vld [vmem:[%s556 + $0x88] sm:$0xff]
      %v605 = vld [vmem:[%s556 + $0x90] sm:$0xff]
      %v606 = vld [vmem:[%s556 + $0x98] sm:$0xff]
      %v607 = vld [vmem:[%s556 + $0xa0] sm:$0xff]
      %v608 = vld [vmem:[%s556 + $0xa8] sm:$0xff]
      %v609 = vld [vmem:[%s556 + $0xb0] sm:$0xff]
      %v610 = vld [vmem:[%s556 + $0xb8] sm:$0xff]
      %v611 = vld [vmem:[%s556 + $0xc0] sm:$0xff]
      %v612 = vld [vmem:[%s556 + $0xc8] sm:$0xff]
      %v613 = vld [vmem:[%s556 + $0xd0] sm:$0xff]
      %v614 = vld [vmem:[%s556 + $0xd8] sm:$0xff]
      %v615 = vld [vmem:[%s556 + $0xe0] sm:$0xff]
      %v616 = vld [vmem:[%s556 + $0xe8] sm:$0xff]
      %v617 = vld [vmem:[%s556 + $0xf0] sm:$0xff]
      %v618 = vld [vmem:[%s556 + $0xf8] sm:$0xff]
      %v619 = vld [vmem:[%s556 + $0x100] sm:$0xff]
      %v620 = vld [vmem:[%s556 + $0x108] sm:$0xff]
      %v621 = vld [vmem:[%s556 + $0x110] sm:$0xff]
      %v622 = vld [vmem:[%s556 + $0x118] sm:$0xff]
      %v623 = vld [vmem:[%s556 + $0x120] sm:$0xff]
      %v624 = vld [vmem:[%s556 + $0x128] sm:$0xff]
      %v625 = vld [vmem:[%s556 + $0x130] sm:$0xff]
      %v626 = vld [vmem:[%s556 + $0x138] sm:$0xff]
      %v627 = vld [vmem:[%s556 + $0x140] sm:$0xff]
      %v628 = vld [vmem:[%s556 + $0x148] sm:$0xff]
      %v629 = vld [vmem:[%s556 + $0x150] sm:$0xff]
      %v630 = vld [vmem:[%s556 + $0x158] sm:$0xff]
      %v631 = vld [vmem:[%s556 + $0x160] sm:$0xff]
      %v632 = vld [vmem:[%s556 + $0x168] sm:$0xff]
      %v633 = vld [vmem:[%s556 + $0x170] sm:$0xff]
      %v634 = vld [vmem:[%s556 + $0x178] sm:$0xff]
      %v635 = vld [vmem:[%s556 + $0x180] sm:$0xff]
      %v636 = vld [vmem:[%s556 + $0x188] sm:$0xff]
      %v637 = vld [vmem:[%s556 + $0x190] sm:$0xff]
      %v638 = vld [vmem:[%s556 + $0x198] sm:$0xff]
      %v639 = vld [vmem:[%s556 + $0x1a0] sm:$0xff]
      %v640 = vld [vmem:[%s556 + $0x1a8] sm:$0xff]
      %v641 = vld [vmem:[%s556 + $0x1b0] sm:$0xff]
      %v642 = vld [vmem:[%s556 + $0x1b8] sm:$0xff]
      %v643 = vld [vmem:[%s556 + $0x1c0] sm:$0xff]
      %v644 = vld [vmem:[%s556 + $0x1c8] sm:$0xff]
      %v645 = vld [vmem:[%s556 + $0x1d0] sm:$0xff]
      %v646 = vld [vmem:[%s556 + $0x1d8] sm:$0xff]
      %v647 = vld [vmem:[%s556 + $0x1e0] sm:$0xff]
      %v648 = vld [vmem:[%s556 + $0x1e8] sm:$0xff]
      %v649 = vld [vmem:[%s556 + $0x1f0] sm:$0xff]
      %v650 = vld [vmem:[%s556 + $0x1f8] sm:$0xff]
      %v651 = vld [vmem:[%s556 + $0x200] sm:$0xff]
      %v652 = vld [vmem:[%s556 + $0x208] sm:$0xff]
      %v653 = vld [vmem:[%s556 + $0x210] sm:$0xff]
      %v654 = vld [vmem:[%s556 + $0x218] sm:$0xff]
      %v655 = vld [vmem:[%s556 + $0x220] sm:$0xff]
      %v656 = vld [vmem:[%s556 + $0x228] sm:$0xff]
      %v657 = vld [vmem:[%s556 + $0x230] sm:$0xff]
      %v658 = vld [vmem:[%s556 + $0x238] sm:$0xff]
      %v659 = vld [vmem:[%s556 + $0x240] sm:$0xff]
      %v660 = vld [vmem:[%s556 + $0x248] sm:$0xff]
      %v661 = vld [vmem:[%s556 + $0x250] sm:$0xff]
      %v662 = vld [vmem:[%s556 + $0x258] sm:$0xff]
      %v663 = vld [vmem:[%s556 + $0x260] sm:$0xff]
      %v664 = vld [vmem:[%s556 + $0x268] sm:$0xff]
      %v665 = vld [vmem:[%s556 + $0x270] sm:$0xff]
      %v666 = vld [vmem:[%s556 + $0x278] sm:$0xff]
      %v667 = vld [vmem:[%s556 + $0x280] sm:$0xff]
      %v668 = vld [vmem:[%s556 + $0x288] sm:$0xff]
      %v669 = vld [vmem:[%s556 + $0x290] sm:$0xff]
      %v670 = vld [vmem:[%s556 + $0x298] sm:$0xff]
      %v671 = vld [vmem:[%s556 + $0x2a0] sm:$0xff]
      %v672 = vld [vmem:[%s556 + $0x2a8] sm:$0xff]
      %v673 = vld [vmem:[%s556 + $0x2b0] sm:$0xff]
      %v674 = vld [vmem:[%s556 + $0x2b8] sm:$0xff]
      %v675 = vld [vmem:[%s556 + $0x2c0] sm:$0xff]
      %v676 = vld [vmem:[%s556 + $0x2c8] sm:$0xff]
      %v677 = vld [vmem:[%s556 + $0x2d0] sm:$0xff]
      %v678 = vld [vmem:[%s556 + $0x2d8] sm:$0xff]
      %v679 = vld [vmem:[%s556 + $0x2e0] sm:$0xff]
      %v680 = vld [vmem:[%s556 + $0x2e8] sm:$0xff]
      %v681 = vld [vmem:[%s556 + $0x2f0] sm:$0xff]
      %v682 = vld [vmem:[%s556 + $0x2f8] sm:$0xff]
      %v683 = vld [vmem:[%s556 + $0x300] sm:$0xff]
      %v684 = vld [vmem:[%s556 + $0x308] sm:$0xff]
      %v685 = vld [vmem:[%s556 + $0x310] sm:$0xff]
      %v686 = vld [vmem:[%s556 + $0x318] sm:$0xff]
      %v687 = vld [vmem:[%s556 + $0x320] sm:$0xff]
      %v688 = vld [vmem:[%s556 + $0x328] sm:$0xff]
      %v689 = vld [vmem:[%s556 + $0x330] sm:$0xff]
      %v690 = vld [vmem:[%s556 + $0x338] sm:$0xff]
      %v691 = vld [vmem:[%s556 + $0x340] sm:$0xff]
      %v692 = vld [vmem:[%s556 + $0x348] sm:$0xff]
      %v693 = vld [vmem:[%s556 + $0x350] sm:$0xff]
      %v694 = vld [vmem:[%s556 + $0x358] sm:$0xff]
      %v695 = vld [vmem:[%s556 + $0x360] sm:$0xff]
      %v696 = vld [vmem:[%s556 + $0x368] sm:$0xff]
      %v697 = vld [vmem:[%s556 + $0x370] sm:$0xff]
      %v698 = vld [vmem:[%s556 + $0x378] sm:$0xff]
      %v699 = vpack.c.bf16 %v594, %v587
      %v700 = vpack.c.bf16 %v595, %v588
      %v701 = vpack.c.bf16 %v596, %v589
      %v702 = vpack.c.bf16 %v597, %v590
      %v703 = vpack.c.bf16 %v598, %v591
      %v704 = vpack.c.bf16 %v599, %v592
      %v705 = vpack.c.bf16 %v600, %v593
      %v706 = vpack.c.bf16 %v608, %v601
      %v707 = vpack.c.bf16 %v609, %v602
      %v708 = vpack.c.bf16 %v610, %v603
      %v709 = vpack.c.bf16 %v611, %v604
      %v710 = vpack.c.bf16 %v612, %v605
      %v711 = vpack.c.bf16 %v613, %v606
      %v712 = vpack.c.bf16 %v614, %v607
      %v713 = vpack.c.bf16 %v622, %v615
      %v714 = vpack.c.bf16 %v623, %v616
      %v715 = vpack.c.bf16 %v624, %v617
      %v716 = vpack.c.bf16 %v625, %v618
      %v717 = vpack.c.bf16 %v626, %v619
      %v718 = vpack.c.bf16 %v627, %v620
      %v719 = vpack.c.bf16 %v628, %v621
      %v720 = vpack.c.bf16 %v636, %v629
      %v721 = vpack.c.bf16 %v637, %v630
      %v722 = vpack.c.bf16 %v638, %v631
      %v723 = vpack.c.bf16 %v639, %v632
      %v724 = vpack.c.bf16 %v640, %v633
      %v725 = vpack.c.bf16 %v641, %v634
      %v726 = vpack.c.bf16 %v642, %v635
      %v727 = vpack.c.bf16 %v650, %v643
      %v728 = vpack.c.bf16 %v651, %v644
      %v729 = vpack.c.bf16 %v652, %v645
      %v730 = vpack.c.bf16 %v653, %v646
      %v731 = vpack.c.bf16 %v654, %v647
      %v732 = vpack.c.bf16 %v655, %v648
      %v733 = vpack.c.bf16 %v656, %v649
      %v734 = vpack.c.bf16 %v664, %v657
      %v735 = vpack.c.bf16 %v665, %v658
      %v736 = vpack.c.bf16 %v666, %v659
      %v737 = vpack.c.bf16 %v667, %v660
      %v738 = vpack.c.bf16 %v668, %v661
      %v739 = vpack.c.bf16 %v669, %v662
      %v740 = vpack.c.bf16 %v670, %v663
      %v741 = vpack.c.bf16 %v678, %v671
      %v742 = vpack.c.bf16 %v679, %v672
      %v743 = vpack.c.bf16 %v680, %v673
      %v744 = vpack.c.bf16 %v681, %v674
      %v745 = vpack.c.bf16 %v682, %v675
      %v746 = vpack.c.bf16 %v683, %v676
      %v747 = vpack.c.bf16 %v684, %v677
      %v748 = vpack.c.bf16 %v692, %v685
      %v749 = vpack.c.bf16 %v693, %v686
      %v750 = vpack.c.bf16 %v694, %v687
      %v751 = vpack.c.bf16 %v695, %v688
      %v752 = vpack.c.bf16 %v696, %v689
      %v753 = vpack.c.bf16 %v697, %v690
      %v754 = vpack.c.bf16 %v698, %v691
      %v755 = vld [vmem:[%s2] sm:$0xff]
      %v756 = vld [vmem:[%s2 + $0x8] sm:$0xff]
      %v757 = vld [vmem:[%s2 + $0x10] sm:$0xff]
      %v758 = vld [vmem:[%s2 + $0x18] sm:$0xff]
      %v759 = vld [vmem:[%s2 + $0x20] sm:$0xff]
      %v760 = vld [vmem:[%s2 + $0x28] sm:$0xff]
      %v761 = vld [vmem:[%s2 + $0x30] sm:$0xff]
      %v762 = vld [vmem:[%s2 + $0x38] sm:$0xff]
      %v763 = vld [vmem:[%s2 + $0x40] sm:$0xff]
      %v764 = vld [vmem:[%s2 + $0x48] sm:$0xff]
      %v765 = vld [vmem:[%s2 + $0x50] sm:$0xff]
      %v766 = vld [vmem:[%s2 + $0x58] sm:$0xff]
      %v767 = vld [vmem:[%s2 + $0x60] sm:$0xff]
      %v768 = vld [vmem:[%s2 + $0x68] sm:$0xff]
      %v769 = vld [vmem:[%s2 + $0x70] sm:$0xff]
      %v770 = vld [vmem:[%s2 + $0x78] sm:$0xff]
      %v771 = vld [vmem:[%s2 + $0x80] sm:$0xff]
      %v772 = vld [vmem:[%s2 + $0x88] sm:$0xff]
      %v773 = vld [vmem:[%s2 + $0x90] sm:$0xff]
      %v774 = vld [vmem:[%s2 + $0x98] sm:$0xff]
      %v775 = vld [vmem:[%s2 + $0xa0] sm:$0xff]
      %v776 = vld [vmem:[%s2 + $0xa8] sm:$0xff]
      %v777 = vld [vmem:[%s2 + $0xb0] sm:$0xff]
      %v778 = vld [vmem:[%s2 + $0xb8] sm:$0xff]
      %v779 = vld [vmem:[%s2 + $0xc0] sm:$0xff]
      %v780 = vld [vmem:[%s2 + $0xc8] sm:$0xff]
      %v781 = vld [vmem:[%s2 + $0xd0] sm:$0xff]
      %v782 = vld [vmem:[%s2 + $0xd8] sm:$0xff]
      %v783 = vld [vmem:[%s2 + $0xe0] sm:$0xff]
      %v784 = vld [vmem:[%s2 + $0xe8] sm:$0xff]
      %v785 = vld [vmem:[%s2 + $0xf0] sm:$0xff]
      %v786 = vld [vmem:[%s2 + $0xf8] sm:$0xff]
      %v787 = vld [vmem:[%s2 + $0x100] sm:$0xff]
      %v788 = vld [vmem:[%s2 + $0x108] sm:$0xff]
      %v789 = vld [vmem:[%s2 + $0x110] sm:$0xff]
      %v790 = vld [vmem:[%s2 + $0x118] sm:$0xff]
      %v791 = vld [vmem:[%s2 + $0x120] sm:$0xff]
      %v792 = vld [vmem:[%s2 + $0x128] sm:$0xff]
      %v793 = vld [vmem:[%s2 + $0x130] sm:$0xff]
      %v794 = vld [vmem:[%s2 + $0x138] sm:$0xff]
      %v795 = vld [vmem:[%s2 + $0x140] sm:$0xff]
      %v796 = vld [vmem:[%s2 + $0x148] sm:$0xff]
      %v797 = vld [vmem:[%s2 + $0x150] sm:$0xff]
      %v798 = vld [vmem:[%s2 + $0x158] sm:$0xff]
      %v799 = vld [vmem:[%s2 + $0x160] sm:$0xff]
      %v800 = vld [vmem:[%s2 + $0x168] sm:$0xff]
      %v801 = vld [vmem:[%s2 + $0x170] sm:$0xff]
      %v802 = vld [vmem:[%s2 + $0x178] sm:$0xff]
      %v803 = vld [vmem:[%s2 + $0x180] sm:$0xff]
      %v804 = vld [vmem:[%s2 + $0x188] sm:$0xff]
      %v805 = vld [vmem:[%s2 + $0x190] sm:$0xff]
      %v806 = vld [vmem:[%s2 + $0x198] sm:$0xff]
      %v807 = vld [vmem:[%s2 + $0x1a0] sm:$0xff]
      %v808 = vld [vmem:[%s2 + $0x1a8] sm:$0xff]
      %v809 = vld [vmem:[%s2 + $0x1b0] sm:$0xff]
      %v810 = vld [vmem:[%s2 + $0x1b8] sm:$0xff]
      %v811 = vld [vmem:[%s2 + $0x1c0] sm:$0xff]
      %v812 = vld [vmem:[%s2 + $0x1c8] sm:$0xff]
      %v813 = vld [vmem:[%s2 + $0x1d0] sm:$0xff]
      %v814 = vld [vmem:[%s2 + $0x1d8] sm:$0xff]
      %v815 = vld [vmem:[%s2 + $0x1e0] sm:$0xff]
      %v816 = vld [vmem:[%s2 + $0x1e8] sm:$0xff]
      %v817 = vld [vmem:[%s2 + $0x1f0] sm:$0xff]
      %v818 = vld [vmem:[%s2 + $0x1f8] sm:$0xff]
      %v819 = vld [vmem:[%s2 + $0x200] sm:$0xff]
      %v820 = vld [vmem:[%s2 + $0x208] sm:$0xff]
      %v821 = vld [vmem:[%s2 + $0x210] sm:$0xff]
      %v822 = vld [vmem:[%s2 + $0x218] sm:$0xff]
      %v823 = vld [vmem:[%s2 + $0x220] sm:$0xff]
      %v824 = vld [vmem:[%s2 + $0x228] sm:$0xff]
      %v825 = vld [vmem:[%s2 + $0x230] sm:$0xff]
      %v826 = vld [vmem:[%s2 + $0x238] sm:$0xff]
      %v827 = vld [vmem:[%s2 + $0x240] sm:$0xff]
      %v828 = vld [vmem:[%s2 + $0x248] sm:$0xff]
      %v829 = vld [vmem:[%s2 + $0x250] sm:$0xff]
      %v830 = vld [vmem:[%s2 + $0x258] sm:$0xff]
      %v831 = vld [vmem:[%s2 + $0x260] sm:$0xff]
      %v832 = vld [vmem:[%s2 + $0x268] sm:$0xff]
      %v833 = vld [vmem:[%s2 + $0x270] sm:$0xff]
      %v834 = vld [vmem:[%s2 + $0x278] sm:$0xff]
      %v835 = vld [vmem:[%s2 + $0x280] sm:$0xff]
      %v836 = vld [vmem:[%s2 + $0x288] sm:$0xff]
      %v837 = vld [vmem:[%s2 + $0x290] sm:$0xff]
      %v838 = vld [vmem:[%s2 + $0x298] sm:$0xff]
      %v839 = vld [vmem:[%s2 + $0x2a0] sm:$0xff]
      %v840 = vld [vmem:[%s2 + $0x2a8] sm:$0xff]
      %v841 = vld [vmem:[%s2 + $0x2b0] sm:$0xff]
      %v842 = vld [vmem:[%s2 + $0x2b8] sm:$0xff]
      %v843 = vld [vmem:[%s2 + $0x2c0] sm:$0xff]
      %v844 = vld [vmem:[%s2 + $0x2c8] sm:$0xff]
      %v845 = vld [vmem:[%s2 + $0x2d0] sm:$0xff]
      %v846 = vld [vmem:[%s2 + $0x2d8] sm:$0xff]
      %v847 = vld [vmem:[%s2 + $0x2e0] sm:$0xff]
      %v848 = vld [vmem:[%s2 + $0x2e8] sm:$0xff]
      %v849 = vld [vmem:[%s2 + $0x2f0] sm:$0xff]
      %v850 = vld [vmem:[%s2 + $0x2f8] sm:$0xff]
      %v851 = vld [vmem:[%s2 + $0x300] sm:$0xff]
      %v852 = vld [vmem:[%s2 + $0x308] sm:$0xff]
      %v853 = vld [vmem:[%s2 + $0x310] sm:$0xff]
      %v854 = vld [vmem:[%s2 + $0x318] sm:$0xff]
      %v855 = vld [vmem:[%s2 + $0x320] sm:$0xff]
      %v856 = vld [vmem:[%s2 + $0x328] sm:$0xff]
      %v857 = vld [vmem:[%s2 + $0x330] sm:$0xff]
      %v858 = vld [vmem:[%s2 + $0x338] sm:$0xff]
      %v859 = vld [vmem:[%s2 + $0x340] sm:$0xff]
      %v860 = vld [vmem:[%s2 + $0x348] sm:$0xff]
      %v861 = vld [vmem:[%s2 + $0x350] sm:$0xff]
      %v862 = vld [vmem:[%s2 + $0x358] sm:$0xff]
      %v863 = vld [vmem:[%s2 + $0x360] sm:$0xff]
      %v864 = vld [vmem:[%s2 + $0x368] sm:$0xff]
      %v865 = vld [vmem:[%s2 + $0x370] sm:$0xff]
      %v866 = vld [vmem:[%s2 + $0x378] sm:$0xff]
      %v867 = vld [vmem:[%s2 + $0x380] sm:$0xff]
      %v868 = vld [vmem:[%s2 + $0x388] sm:$0xff]
      %v869 = vld [vmem:[%s2 + $0x390] sm:$0xff]
      %v870 = vld [vmem:[%s2 + $0x398] sm:$0xff]
      %v871 = vld [vmem:[%s2 + $0x3a0] sm:$0xff]
      %v872 = vld [vmem:[%s2 + $0x3a8] sm:$0xff]
      %v873 = vld [vmem:[%s2 + $0x3b0] sm:$0xff]
      %v874 = vld [vmem:[%s2 + $0x3b8] sm:$0xff]
      %v875 = vld [vmem:[%s2 + $0x3c0] sm:$0xff]
      %v876 = vld [vmem:[%s2 + $0x3c8] sm:$0xff]
      %v877 = vld [vmem:[%s2 + $0x3d0] sm:$0xff]
      %v878 = vld [vmem:[%s2 + $0x3d8] sm:$0xff]
      %v879 = vld [vmem:[%s2 + $0x3e0] sm:$0xff]
      %v880 = vld [vmem:[%s2 + $0x3e8] sm:$0xff]
      %v881 = vld [vmem:[%s2 + $0x3f0] sm:$0xff]
      %v882 = vld [vmem:[%s2 + $0x3f8] sm:$0xff]
      %v883 = vld [vmem:[%s2 + $0x400] sm:$0xff]
      %v884 = vld [vmem:[%s2 + $0x408] sm:$0xff]
      %v885 = vld [vmem:[%s2 + $0x410] sm:$0xff]
      %v886 = vld [vmem:[%s2 + $0x418] sm:$0xff]
      %v887 = vld [vmem:[%s2 + $0x420] sm:$0xff]
      %v888 = vld [vmem:[%s2 + $0x428] sm:$0xff]
      %v889 = vld [vmem:[%s2 + $0x430] sm:$0xff]
      %v890 = vld [vmem:[%s2 + $0x438] sm:$0xff]
      %v891 = vld [vmem:[%s2 + $0x440] sm:$0xff]
      %v892 = vld [vmem:[%s2 + $0x448] sm:$0xff]
      %v893 = vld [vmem:[%s2 + $0x450] sm:$0xff]
      %v894 = vld [vmem:[%s2 + $0x458] sm:$0xff]
      %v895 = vld [vmem:[%s2 + $0x460] sm:$0xff]
      %v896 = vld [vmem:[%s2 + $0x468] sm:$0xff]
      %v897 = vld [vmem:[%s2 + $0x470] sm:$0xff]
      %v898 = vld [vmem:[%s2 + $0x478] sm:$0xff]
      %v899 = vld [vmem:[%s2 + $0x480] sm:$0xff]
      %v900 = vld [vmem:[%s2 + $0x488] sm:$0xff]
      %v901 = vld [vmem:[%s2 + $0x490] sm:$0xff]
      %v902 = vld [vmem:[%s2 + $0x498] sm:$0xff]
      %v903 = vld [vmem:[%s2 + $0x4a0] sm:$0xff]
      %v904 = vld [vmem:[%s2 + $0x4a8] sm:$0xff]
      %v905 = vld [vmem:[%s2 + $0x4b0] sm:$0xff]
      %v906 = vld [vmem:[%s2 + $0x4b8] sm:$0xff]
      %v907 = vld [vmem:[%s2 + $0x4c0] sm:$0xff]
      %v908 = vld [vmem:[%s2 + $0x4c8] sm:$0xff]
      %v909 = vld [vmem:[%s2 + $0x4d0] sm:$0xff]
      %v910 = vld [vmem:[%s2 + $0x4d8] sm:$0xff]
      %v911 = vld [vmem:[%s2 + $0x4e0] sm:$0xff]
      %v912 = vld [vmem:[%s2 + $0x4e8] sm:$0xff]
      %v913 = vld [vmem:[%s2 + $0x4f0] sm:$0xff]
      %v914 = vld [vmem:[%s2 + $0x4f8] sm:$0xff]
      %v915 = vld [vmem:[%s2 + $0x500] sm:$0xff]
      %v916 = vld [vmem:[%s2 + $0x508] sm:$0xff]
      %v917 = vld [vmem:[%s2 + $0x510] sm:$0xff]
      %v918 = vld [vmem:[%s2 + $0x518] sm:$0xff]
      %v919 = vld [vmem:[%s2 + $0x520] sm:$0xff]
      %v920 = vld [vmem:[%s2 + $0x528] sm:$0xff]
      %v921 = vld [vmem:[%s2 + $0x530] sm:$0xff]
      %v922 = vld [vmem:[%s2 + $0x538] sm:$0xff]
      %v923 = vld [vmem:[%s2 + $0x540] sm:$0xff]
      %v924 = vld [vmem:[%s2 + $0x548] sm:$0xff]
      %v925 = vld [vmem:[%s2 + $0x550] sm:$0xff]
      %v926 = vld [vmem:[%s2 + $0x558] sm:$0xff]
      %v927 = vld [vmem:[%s2 + $0x560] sm:$0xff]
      %v928 = vld [vmem:[%s2 + $0x568] sm:$0xff]
      %v929 = vld [vmem:[%s2 + $0x570] sm:$0xff]
      %v930 = vld [vmem:[%s2 + $0x578] sm:$0xff]
      %v931 = vld [vmem:[%s2 + $0x580] sm:$0xff]
      %v932 = vld [vmem:[%s2 + $0x588] sm:$0xff]
      %v933 = vld [vmem:[%s2 + $0x590] sm:$0xff]
      %v934 = vld [vmem:[%s2 + $0x598] sm:$0xff]
      %v935 = vld [vmem:[%s2 + $0x5a0] sm:$0xff]
      %v936 = vld [vmem:[%s2 + $0x5a8] sm:$0xff]
      %v937 = vld [vmem:[%s2 + $0x5b0] sm:$0xff]
      %v938 = vld [vmem:[%s2 + $0x5b8] sm:$0xff]
      %v939 = vld [vmem:[%s2 + $0x5c0] sm:$0xff]
      %v940 = vld [vmem:[%s2 + $0x5c8] sm:$0xff]
      %v941 = vld [vmem:[%s2 + $0x5d0] sm:$0xff]
      %v942 = vld [vmem:[%s2 + $0x5d8] sm:$0xff]
      %v943 = vld [vmem:[%s2 + $0x5e0] sm:$0xff]
      %v944 = vld [vmem:[%s2 + $0x5e8] sm:$0xff]
      %v945 = vld [vmem:[%s2 + $0x5f0] sm:$0xff]
      %v946 = vld [vmem:[%s2 + $0x5f8] sm:$0xff]
      %v947 = vld [vmem:[%s2 + $0x600] sm:$0xff]
      %v948 = vld [vmem:[%s2 + $0x608] sm:$0xff]
      %v949 = vld [vmem:[%s2 + $0x610] sm:$0xff]
      %v950 = vld [vmem:[%s2 + $0x618] sm:$0xff]
      %v951 = vld [vmem:[%s2 + $0x620] sm:$0xff]
      %v952 = vld [vmem:[%s2 + $0x628] sm:$0xff]
      %v953 = vld [vmem:[%s2 + $0x630] sm:$0xff]
      %v954 = vld [vmem:[%s2 + $0x638] sm:$0xff]
      %v955 = vld [vmem:[%s2 + $0x640] sm:$0xff]
      %v956 = vld [vmem:[%s2 + $0x648] sm:$0xff]
      %v957 = vld [vmem:[%s2 + $0x650] sm:$0xff]
      %v958 = vld [vmem:[%s2 + $0x658] sm:$0xff]
      %v959 = vld [vmem:[%s2 + $0x660] sm:$0xff]
      %v960 = vld [vmem:[%s2 + $0x668] sm:$0xff]
      %v961 = vld [vmem:[%s2 + $0x670] sm:$0xff]
      %v962 = vld [vmem:[%s2 + $0x678] sm:$0xff]
      %v963 = vld [vmem:[%s2 + $0x680] sm:$0xff]
      %v964 = vld [vmem:[%s2 + $0x688] sm:$0xff]
      %v965 = vld [vmem:[%s2 + $0x690] sm:$0xff]
      %v966 = vld [vmem:[%s2 + $0x698] sm:$0xff]
      %v967 = vld [vmem:[%s2 + $0x6a0] sm:$0xff]
      %v968 = vld [vmem:[%s2 + $0x6a8] sm:$0xff]
      %v969 = vld [vmem:[%s2 + $0x6b0] sm:$0xff]
      %v970 = vld [vmem:[%s2 + $0x6b8] sm:$0xff]
      %v971 = vld [vmem:[%s2 + $0x6c0] sm:$0xff]
      %v972 = vld [vmem:[%s2 + $0x6c8] sm:$0xff]
      %v973 = vld [vmem:[%s2 + $0x6d0] sm:$0xff]
      %v974 = vld [vmem:[%s2 + $0x6d8] sm:$0xff]
      %v975 = vld [vmem:[%s2 + $0x6e0] sm:$0xff]
      %v976 = vld [vmem:[%s2 + $0x6e8] sm:$0xff]
      %v977 = vld [vmem:[%s2 + $0x6f0] sm:$0xff]
      %v978 = vld [vmem:[%s2 + $0x6f8] sm:$0xff]
      %v979 = vld [vmem:[%s3] sm:$0xf]
      %v981 = vlaneseq
      %v982 = vshrl.u32 %v981, 7
      %v983 = vsub.s32 0, %v982
      %v984 = vrot.slane %v979, %v983
      %v985 = vlaneseq
      %v986 = vshrl.u32 %v985, 7
      %v987 = vsub.s32 1, %v986
      %v988 = vrot.slane %v979, %v987
      %v989 = vlaneseq
      %v990 = vshrl.u32 %v989, 7
      %v991 = vsub.s32 2, %v990
      %v992 = vrot.slane %v979, %v991
      %v993 = vlaneseq
      %v994 = vshrl.u32 %v993, 7
      %v995 = vsub.s32 3, %v994
      %v996 = vrot.slane %v979, %v995
      %v1225 = vunpack.c.l.b16 %v755
      %v1226 = vunpack.c.h.b16 %v755
      %v1227 = vunpack.c.l.b16 %v756
      %v1228 = vunpack.c.h.b16 %v756
      %v1229 = vunpack.c.l.b16 %v757
      %v1230 = vunpack.c.h.b16 %v757
      %v1231 = vunpack.c.l.b16 %v758
      %v1232 = vunpack.c.h.b16 %v758
      %v1233 = vunpack.c.l.b16 %v759
      %v1234 = vunpack.c.h.b16 %v759
      %v1235 = vunpack.c.l.b16 %v760
      %v1236 = vunpack.c.h.b16 %v760
      %v1237 = vunpack.c.l.b16 %v761
      %v1238 = vunpack.c.h.b16 %v761
      %v1239 = vunpack.c.l.b16 %v762
      %v1240 = vunpack.c.h.b16 %v762
      %v1241 = vunpack.c.l.b16 %v763
      %v1242 = vunpack.c.h.b16 %v763
      %v1243 = vunpack.c.l.b16 %v764
      %v1244 = vunpack.c.h.b16 %v764
      %v1245 = vunpack.c.l.b16 %v765
      %v1246 = vunpack.c.h.b16 %v765
      %v1247 = vunpack.c.l.b16 %v766
      %v1248 = vunpack.c.h.b16 %v766
      %v1249 = vunpack.c.l.b16 %v767
      %v1250 = vunpack.c.h.b16 %v767
      %v1251 = vunpack.c.l.b16 %v768
      %v1252 = vunpack.c.h.b16 %v768
      %v1253 = vunpack.c.l.b16 %v769
      %v1254 = vunpack.c.h.b16 %v769
      %v1255 = vunpack.c.l.b16 %v770
      %v1256 = vunpack.c.h.b16 %v770
      %v1257 = vunpack.c.l.b16 %v771
      %v1258 = vunpack.c.h.b16 %v771
      %v1259 = vunpack.c.l.b16 %v772
      %v1260 = vunpack.c.h.b16 %v772
      %v1261 = vunpack.c.l.b16 %v773
      %v1262 = vunpack.c.h.b16 %v773
      %v1263 = vunpack.c.l.b16 %v774
      %v1264 = vunpack.c.h.b16 %v774
      %v1265 = vunpack.c.l.b16 %v775
      %v1266 = vunpack.c.h.b16 %v775
      %v1267 = vunpack.c.l.b16 %v776
      %v1268 = vunpack.c.h.b16 %v776
      %v1269 = vunpack.c.l.b16 %v777
      %v1270 = vunpack.c.h.b16 %v777
      %v1271 = vunpack.c.l.b16 %v778
      %v1272 = vunpack.c.h.b16 %v778
      %v1273 = vunpack.c.l.b16 %v779
      %v1274 = vunpack.c.h.b16 %v779
      %v1275 = vunpack.c.l.b16 %v780
      %v1276 = vunpack.c.h.b16 %v780
      %v1277 = vunpack.c.l.b16 %v781
      %v1278 = vunpack.c.h.b16 %v781
      %v1279 = vunpack.c.l.b16 %v782
      %v1280 = vunpack.c.h.b16 %v782
      %v1281 = vunpack.c.l.b16 %v783
      %v1282 = vunpack.c.h.b16 %v783
      %v1283 = vunpack.c.l.b16 %v784
      %v1284 = vunpack.c.h.b16 %v784
      %v1285 = vunpack.c.l.b16 %v785
      %v1286 = vunpack.c.h.b16 %v785
      %v1287 = vunpack.c.l.b16 %v786
      %v1288 = vunpack.c.h.b16 %v786
      %v1289 = vunpack.c.l.b16 %v787
      %v1290 = vunpack.c.h.b16 %v787
      %v1291 = vunpack.c.l.b16 %v788
      %v1292 = vunpack.c.h.b16 %v788
      %v1293 = vunpack.c.l.b16 %v789
      %v1294 = vunpack.c.h.b16 %v789
      %v1295 = vunpack.c.l.b16 %v790
      %v1296 = vunpack.c.h.b16 %v790
      %v1297 = vunpack.c.l.b16 %v791
      %v1298 = vunpack.c.h.b16 %v791
      %v1299 = vunpack.c.l.b16 %v792
      %v1300 = vunpack.c.h.b16 %v792
      %v1301 = vunpack.c.l.b16 %v793
      %v1302 = vunpack.c.h.b16 %v793
      %v1303 = vunpack.c.l.b16 %v794
      %v1304 = vunpack.c.h.b16 %v794
      %v1305 = vunpack.c.l.b16 %v795
      %v1306 = vunpack.c.h.b16 %v795
      %v1307 = vunpack.c.l.b16 %v796
      %v1308 = vunpack.c.h.b16 %v796
      %v1309 = vunpack.c.l.b16 %v797
      %v1310 = vunpack.c.h.b16 %v797
      %v1311 = vunpack.c.l.b16 %v798
      %v1312 = vunpack.c.h.b16 %v798
      %v1313 = vunpack.c.l.b16 %v799
      %v1314 = vunpack.c.h.b16 %v799
      %v1315 = vunpack.c.l.b16 %v800
      %v1316 = vunpack.c.h.b16 %v800
      %v1317 = vunpack.c.l.b16 %v801
      %v1318 = vunpack.c.h.b16 %v801
      %v1319 = vunpack.c.l.b16 %v802
      %v1320 = vunpack.c.h.b16 %v802
      %v1321 = vunpack.c.l.b16 %v803
      %v1322 = vunpack.c.h.b16 %v803
      %v1323 = vunpack.c.l.b16 %v804
      %v1324 = vunpack.c.h.b16 %v804
      %v1325 = vunpack.c.l.b16 %v805
      %v1326 = vunpack.c.h.b16 %v805
      %v1327 = vunpack.c.l.b16 %v806
      %v1328 = vunpack.c.h.b16 %v806
      %v1329 = vunpack.c.l.b16 %v807
      %v1330 = vunpack.c.h.b16 %v807
      %v1331 = vunpack.c.l.b16 %v808
      %v1332 = vunpack.c.h.b16 %v808
      %v1333 = vunpack.c.l.b16 %v809
      %v1334 = vunpack.c.h.b16 %v809
      %v1335 = vunpack.c.l.b16 %v810
      %v1336 = vunpack.c.h.b16 %v810
      %v1337 = vunpack.c.l.b16 %v811
      %v1338 = vunpack.c.h.b16 %v811
      %v1339 = vunpack.c.l.b16 %v812
      %v1340 = vunpack.c.h.b16 %v812
      %v1341 = vunpack.c.l.b16 %v813
      %v1342 = vunpack.c.h.b16 %v813
      %v1343 = vunpack.c.l.b16 %v814
      %v1344 = vunpack.c.h.b16 %v814
      %v1345 = vunpack.c.l.b16 %v815
      %v1346 = vunpack.c.h.b16 %v815
      %v1347 = vunpack.c.l.b16 %v816
      %v1348 = vunpack.c.h.b16 %v816
      %v1349 = vunpack.c.l.b16 %v817
      %v1350 = vunpack.c.h.b16 %v817
      %v1351 = vunpack.c.l.b16 %v818
      %v1352 = vunpack.c.h.b16 %v818
      %v1353 = vunpack.c.l.b16 %v819
      %v1354 = vunpack.c.h.b16 %v819
      %v1355 = vunpack.c.l.b16 %v820
      %v1356 = vunpack.c.h.b16 %v820
      %v1357 = vunpack.c.l.b16 %v821
      %v1358 = vunpack.c.h.b16 %v821
      %v1359 = vunpack.c.l.b16 %v822
      %v1360 = vunpack.c.h.b16 %v822
      %v1361 = vunpack.c.l.b16 %v823
      %v1362 = vunpack.c.h.b16 %v823
      %v1363 = vunpack.c.l.b16 %v824
      %v1364 = vunpack.c.h.b16 %v824
      %v1365 = vunpack.c.l.b16 %v825
      %v1366 = vunpack.c.h.b16 %v825
      %v1367 = vunpack.c.l.b16 %v826
      %v1368 = vunpack.c.h.b16 %v826
      %v1369 = vunpack.c.l.b16 %v827
      %v1370 = vunpack.c.h.b16 %v827
      %v1371 = vunpack.c.l.b16 %v828
      %v1372 = vunpack.c.h.b16 %v828
      %v1373 = vunpack.c.l.b16 %v829
      %v1374 = vunpack.c.h.b16 %v829
      %v1375 = vunpack.c.l.b16 %v830
      %v1376 = vunpack.c.h.b16 %v830
      %v1377 = vunpack.c.l.b16 %v831
      %v1378 = vunpack.c.h.b16 %v831
      %v1379 = vunpack.c.l.b16 %v832
      %v1380 = vunpack.c.h.b16 %v832
      %v1381 = vunpack.c.l.b16 %v833
      %v1382 = vunpack.c.h.b16 %v833
      %v1383 = vunpack.c.l.b16 %v834
      %v1384 = vunpack.c.h.b16 %v834
      %v1385 = vunpack.c.l.b16 %v835
      %v1386 = vunpack.c.h.b16 %v835
      %v1387 = vunpack.c.l.b16 %v836
      %v1388 = vunpack.c.h.b16 %v836
      %v1389 = vunpack.c.l.b16 %v837
      %v1390 = vunpack.c.h.b16 %v837
      %v1391 = vunpack.c.l.b16 %v838
      %v1392 = vunpack.c.h.b16 %v838
      %v1393 = vunpack.c.l.b16 %v839
      %v1394 = vunpack.c.h.b16 %v839
      %v1395 = vunpack.c.l.b16 %v840
      %v1396 = vunpack.c.h.b16 %v840
      %v1397 = vunpack.c.l.b16 %v841
      %v1398 = vunpack.c.h.b16 %v841
      %v1399 = vunpack.c.l.b16 %v842
      %v1400 = vunpack.c.h.b16 %v842
      %v1401 = vunpack.c.l.b16 %v843
      %v1402 = vunpack.c.h.b16 %v843
      %v1403 = vunpack.c.l.b16 %v844
      %v1404 = vunpack.c.h.b16 %v844
      %v1405 = vunpack.c.l.b16 %v845
      %v1406 = vunpack.c.h.b16 %v845
      %v1407 = vunpack.c.l.b16 %v846
      %v1408 = vunpack.c.h.b16 %v846
      %v1409 = vunpack.c.l.b16 %v847
      %v1410 = vunpack.c.h.b16 %v847
      %v1411 = vunpack.c.l.b16 %v848
      %v1412 = vunpack.c.h.b16 %v848
      %v1413 = vunpack.c.l.b16 %v849
      %v1414 = vunpack.c.h.b16 %v849
      %v1415 = vunpack.c.l.b16 %v850
      %v1416 = vunpack.c.h.b16 %v850
      %v1417 = vunpack.c.l.b16 %v851
      %v1418 = vunpack.c.h.b16 %v851
      %v1419 = vunpack.c.l.b16 %v852
      %v1420 = vunpack.c.h.b16 %v852
      %v1421 = vunpack.c.l.b16 %v853
      %v1422 = vunpack.c.h.b16 %v853
      %v1423 = vunpack.c.l.b16 %v854
      %v1424 = vunpack.c.h.b16 %v854
      %v1425 = vunpack.c.l.b16 %v855
      %v1426 = vunpack.c.h.b16 %v855
      %v1427 = vunpack.c.l.b16 %v856
      %v1428 = vunpack.c.h.b16 %v856
      %v1429 = vunpack.c.l.b16 %v857
      %v1430 = vunpack.c.h.b16 %v857
      %v1431 = vunpack.c.l.b16 %v858
      %v1432 = vunpack.c.h.b16 %v858
      %v1433 = vunpack.c.l.b16 %v859
      %v1434 = vunpack.c.h.b16 %v859
      %v1435 = vunpack.c.l.b16 %v860
      %v1436 = vunpack.c.h.b16 %v860
      %v1437 = vunpack.c.l.b16 %v861
      %v1438 = vunpack.c.h.b16 %v861
      %v1439 = vunpack.c.l.b16 %v862
      %v1440 = vunpack.c.h.b16 %v862
      %v1441 = vunpack.c.l.b16 %v863
      %v1442 = vunpack.c.h.b16 %v863
      %v1443 = vunpack.c.l.b16 %v864
      %v1444 = vunpack.c.h.b16 %v864
      %v1445 = vunpack.c.l.b16 %v865
      %v1446 = vunpack.c.h.b16 %v865
      %v1447 = vunpack.c.l.b16 %v866
      %v1448 = vunpack.c.h.b16 %v866
      %v1449 = vunpack.c.l.b16 %v867
      %v1450 = vunpack.c.h.b16 %v867
      %v1451 = vunpack.c.l.b16 %v868
      %v1452 = vunpack.c.h.b16 %v868
      %v1453 = vunpack.c.l.b16 %v869
      %v1454 = vunpack.c.h.b16 %v869
      %v1455 = vunpack.c.l.b16 %v870
      %v1456 = vunpack.c.h.b16 %v870
      %v1457 = vunpack.c.l.b16 %v871
      %v1458 = vunpack.c.h.b16 %v871
      %v1459 = vunpack.c.l.b16 %v872
      %v1460 = vunpack.c.h.b16 %v872
      %v1461 = vunpack.c.l.b16 %v873
      %v1462 = vunpack.c.h.b16 %v873
      %v1463 = vunpack.c.l.b16 %v874
      %v1464 = vunpack.c.h.b16 %v874
      %v1465 = vunpack.c.l.b16 %v875
      %v1466 = vunpack.c.h.b16 %v875
      %v1467 = vunpack.c.l.b16 %v876
      %v1468 = vunpack.c.h.b16 %v876
      %v1469 = vunpack.c.l.b16 %v877
      %v1470 = vunpack.c.h.b16 %v877
      %v1471 = vunpack.c.l.b16 %v878
      %v1472 = vunpack.c.h.b16 %v878
      %v1473 = vunpack.c.l.b16 %v879
      %v1474 = vunpack.c.h.b16 %v879
      %v1475 = vunpack.c.l.b16 %v880
      %v1476 = vunpack.c.h.b16 %v880
      %v1477 = vunpack.c.l.b16 %v881
      %v1478 = vunpack.c.h.b16 %v881
      %v1479 = vunpack.c.l.b16 %v882
      %v1480 = vunpack.c.h.b16 %v882
      %v1481 = vunpack.c.l.b16 %v883
      %v1482 = vunpack.c.h.b16 %v883
      %v1483 = vunpack.c.l.b16 %v884
      %v1484 = vunpack.c.h.b16 %v884
      %v1485 = vunpack.c.l.b16 %v885
      %v1486 = vunpack.c.h.b16 %v885
      %v1487 = vunpack.c.l.b16 %v886
      %v1488 = vunpack.c.h.b16 %v886
      %v1489 = vunpack.c.l.b16 %v887
      %v1490 = vunpack.c.h.b16 %v887
      %v1491 = vunpack.c.l.b16 %v888
      %v1492 = vunpack.c.h.b16 %v888
      %v1493 = vunpack.c.l.b16 %v889
      %v1494 = vunpack.c.h.b16 %v889
      %v1495 = vunpack.c.l.b16 %v890
      %v1496 = vunpack.c.h.b16 %v890
      %v1497 = vunpack.c.l.b16 %v891
      %v1498 = vunpack.c.h.b16 %v891
      %v1499 = vunpack.c.l.b16 %v892
      %v1500 = vunpack.c.h.b16 %v892
      %v1501 = vunpack.c.l.b16 %v893
      %v1502 = vunpack.c.h.b16 %v893
      %v1503 = vunpack.c.l.b16 %v894
      %v1504 = vunpack.c.h.b16 %v894
      %v1505 = vunpack.c.l.b16 %v895
      %v1506 = vunpack.c.h.b16 %v895
      %v1507 = vunpack.c.l.b16 %v896
      %v1508 = vunpack.c.h.b16 %v896
      %v1509 = vunpack.c.l.b16 %v897
      %v1510 = vunpack.c.h.b16 %v897
      %v1511 = vunpack.c.l.b16 %v898
      %v1512 = vunpack.c.h.b16 %v898
      %v1513 = vunpack.c.l.b16 %v899
      %v1514 = vunpack.c.h.b16 %v899
      %v1515 = vunpack.c.l.b16 %v900
      %v1516 = vunpack.c.h.b16 %v900
      %v1517 = vunpack.c.l.b16 %v901
      %v1518 = vunpack.c.h.b16 %v901
      %v1519 = vunpack.c.l.b16 %v902
      %v1520 = vunpack.c.h.b16 %v902
      %v1521 = vunpack.c.l.b16 %v903
      %v1522 = vunpack.c.h.b16 %v903
      %v1523 = vunpack.c.l.b16 %v904
      %v1524 = vunpack.c.h.b16 %v904
      %v1525 = vunpack.c.l.b16 %v905
      %v1526 = vunpack.c.h.b16 %v905
      %v1527 = vunpack.c.l.b16 %v906
      %v1528 = vunpack.c.h.b16 %v906
      %v1529 = vunpack.c.l.b16 %v907
      %v1530 = vunpack.c.h.b16 %v907
      %v1531 = vunpack.c.l.b16 %v908
      %v1532 = vunpack.c.h.b16 %v908
      %v1533 = vunpack.c.l.b16 %v909
      %v1534 = vunpack.c.h.b16 %v909
      %v1535 = vunpack.c.l.b16 %v910
      %v1536 = vunpack.c.h.b16 %v910
      %v1537 = vunpack.c.l.b16 %v911
      %v1538 = vunpack.c.h.b16 %v911
      %v1539 = vunpack.c.l.b16 %v912
      %v1540 = vunpack.c.h.b16 %v912
      %v1541 = vunpack.c.l.b16 %v913
      %v1542 = vunpack.c.h.b16 %v913
      %v1543 = vunpack.c.l.b16 %v914
      %v1544 = vunpack.c.h.b16 %v914
      %v1545 = vunpack.c.l.b16 %v915
      %v1546 = vunpack.c.h.b16 %v915
      %v1547 = vunpack.c.l.b16 %v916
      %v1548 = vunpack.c.h.b16 %v916
      %v1549 = vunpack.c.l.b16 %v917
      %v1550 = vunpack.c.h.b16 %v917
      %v1551 = vunpack.c.l.b16 %v918
      %v1552 = vunpack.c.h.b16 %v918
      %v1553 = vunpack.c.l.b16 %v919
      %v1554 = vunpack.c.h.b16 %v919
      %v1555 = vunpack.c.l.b16 %v920
      %v1556 = vunpack.c.h.b16 %v920
      %v1557 = vunpack.c.l.b16 %v921
      %v1558 = vunpack.c.h.b16 %v921
      %v1559 = vunpack.c.l.b16 %v922
      %v1560 = vunpack.c.h.b16 %v922
      %v1561 = vunpack.c.l.b16 %v923
      %v1562 = vunpack.c.h.b16 %v923
      %v1563 = vunpack.c.l.b16 %v924
      %v1564 = vunpack.c.h.b16 %v924
      %v1565 = vunpack.c.l.b16 %v925
      %v1566 = vunpack.c.h.b16 %v925
      %v1567 = vunpack.c.l.b16 %v926
      %v1568 = vunpack.c.h.b16 %v926
      %v1569 = vunpack.c.l.b16 %v927
      %v1570 = vunpack.c.h.b16 %v927
      %v1571 = vunpack.c.l.b16 %v928
      %v1572 = vunpack.c.h.b16 %v928
      %v1573 = vunpack.c.l.b16 %v929
      %v1574 = vunpack.c.h.b16 %v929
      %v1575 = vunpack.c.l.b16 %v930
      %v1576 = vunpack.c.h.b16 %v930
      %v1577 = vunpack.c.l.b16 %v931
      %v1578 = vunpack.c.h.b16 %v931
      %v1579 = vunpack.c.l.b16 %v932
      %v1580 = vunpack.c.h.b16 %v932
      %v1581 = vunpack.c.l.b16 %v933
      %v1582 = vunpack.c.h.b16 %v933
      %v1583 = vunpack.c.l.b16 %v934
      %v1584 = vunpack.c.h.b16 %v934
      %v1585 = vunpack.c.l.b16 %v935
      %v1586 = vunpack.c.h.b16 %v935
      %v1587 = vunpack.c.l.b16 %v936
      %v1588 = vunpack.c.h.b16 %v936
      %v1589 = vunpack.c.l.b16 %v937
      %v1590 = vunpack.c.h.b16 %v937
      %v1591 = vunpack.c.l.b16 %v938
      %v1592 = vunpack.c.h.b16 %v938
      %v1593 = vunpack.c.l.b16 %v939
      %v1594 = vunpack.c.h.b16 %v939
      %v1595 = vunpack.c.l.b16 %v940
      %v1596 = vunpack.c.h.b16 %v940
      %v1597 = vunpack.c.l.b16 %v941
      %v1598 = vunpack.c.h.b16 %v941
      %v1599 = vunpack.c.l.b16 %v942
      %v1600 = vunpack.c.h.b16 %v942
      %v1601 = vunpack.c.l.b16 %v943
      %v1602 = vunpack.c.h.b16 %v943
      %v1603 = vunpack.c.l.b16 %v944
      %v1604 = vunpack.c.h.b16 %v944
      %v1605 = vunpack.c.l.b16 %v945
      %v1606 = vunpack.c.h.b16 %v945
      %v1607 = vunpack.c.l.b16 %v946
      %v1608 = vunpack.c.h.b16 %v946
      %v1609 = vunpack.c.l.b16 %v947
      %v1610 = vunpack.c.h.b16 %v947
      %v1611 = vunpack.c.l.b16 %v948
      %v1612 = vunpack.c.h.b16 %v948
      %v1613 = vunpack.c.l.b16 %v949
      %v1614 = vunpack.c.h.b16 %v949
      %v1615 = vunpack.c.l.b16 %v950
      %v1616 = vunpack.c.h.b16 %v950
      %v1617 = vunpack.c.l.b16 %v951
      %v1618 = vunpack.c.h.b16 %v951
      %v1619 = vunpack.c.l.b16 %v952
      %v1620 = vunpack.c.h.b16 %v952
      %v1621 = vunpack.c.l.b16 %v953
      %v1622 = vunpack.c.h.b16 %v953
      %v1623 = vunpack.c.l.b16 %v954
      %v1624 = vunpack.c.h.b16 %v954
      %v1625 = vunpack.c.l.b16 %v955
      %v1626 = vunpack.c.h.b16 %v955
      %v1627 = vunpack.c.l.b16 %v956
      %v1628 = vunpack.c.h.b16 %v956
      %v1629 = vunpack.c.l.b16 %v957
      %v1630 = vunpack.c.h.b16 %v957
      %v1631 = vunpack.c.l.b16 %v958
      %v1632 = vunpack.c.h.b16 %v958
      %v1633 = vunpack.c.l.b16 %v959
      %v1634 = vunpack.c.h.b16 %v959
      %v1635 = vunpack.c.l.b16 %v960
      %v1636 = vunpack.c.h.b16 %v960
      %v1637 = vunpack.c.l.b16 %v961
      %v1638 = vunpack.c.h.b16 %v961
      %v1639 = vunpack.c.l.b16 %v962
      %v1640 = vunpack.c.h.b16 %v962
      %v1641 = vunpack.c.l.b16 %v963
      %v1642 = vunpack.c.h.b16 %v963
      %v1643 = vunpack.c.l.b16 %v964
      %v1644 = vunpack.c.h.b16 %v964
      %v1645 = vunpack.c.l.b16 %v965
      %v1646 = vunpack.c.h.b16 %v965
      %v1647 = vunpack.c.l.b16 %v966
      %v1648 = vunpack.c.h.b16 %v966
      %v1649 = vunpack.c.l.b16 %v967
      %v1650 = vunpack.c.h.b16 %v967
      %v1651 = vunpack.c.l.b16 %v968
      %v1652 = vunpack.c.h.b16 %v968
      %v1653 = vunpack.c.l.b16 %v969
      %v1654 = vunpack.c.h.b16 %v969
      %v1655 = vunpack.c.l.b16 %v970
      %v1656 = vunpack.c.h.b16 %v970
      %v1657 = vunpack.c.l.b16 %v971
      %v1658 = vunpack.c.h.b16 %v971
      %v1659 = vunpack.c.l.b16 %v972
      %v1660 = vunpack.c.h.b16 %v972
      %v1661 = vunpack.c.l.b16 %v973
      %v1662 = vunpack.c.h.b16 %v973
      %v1663 = vunpack.c.l.b16 %v974
      %v1664 = vunpack.c.h.b16 %v974
      %v1665 = vunpack.c.l.b16 %v975
      %v1666 = vunpack.c.h.b16 %v975
      %v1667 = vunpack.c.l.b16 %v976
      %v1668 = vunpack.c.h.b16 %v976
      %v1669 = vunpack.c.l.b16 %v977
      %v1670 = vunpack.c.h.b16 %v977
      %v1671 = vunpack.c.l.b16 %v978
      %v1672 = vunpack.c.h.b16 %v978
      %v1673 = vpack.c.b16 %v1229, %v1225
      %v1674 = vpack.c.b16 %v1230, %v1226
      %v1675 = vpack.c.b16 %v1231, %v1227
      %v1676 = vpack.c.b16 %v1232, %v1228
      %v1677 = vpack.c.b16 %v1237, %v1233
      %v1678 = vpack.c.b16 %v1238, %v1234
      %v1679 = vpack.c.b16 %v1239, %v1235
      %v1680 = vpack.c.b16 %v1240, %v1236
      %v1681 = vpack.c.b16 %v1245, %v1241
      %v1682 = vpack.c.b16 %v1246, %v1242
      %v1683 = vpack.c.b16 %v1247, %v1243
      %v1684 = vpack.c.b16 %v1248, %v1244
      %v1685 = vpack.c.b16 %v1253, %v1249
      %v1686 = vpack.c.b16 %v1254, %v1250
      %v1687 = vpack.c.b16 %v1255, %v1251
      %v1688 = vpack.c.b16 %v1256, %v1252
      %v1689 = vpack.c.b16 %v1261, %v1257
      %v1690 = vpack.c.b16 %v1262, %v1258
      %v1691 = vpack.c.b16 %v1263, %v1259
      %v1692 = vpack.c.b16 %v1264, %v1260
      %v1693 = vpack.c.b16 %v1269, %v1265
      %v1694 = vpack.c.b16 %v1270, %v1266
      %v1695 = vpack.c.b16 %v1271, %v1267
      %v1696 = vpack.c.b16 %v1272, %v1268
      %v1697 = vpack.c.b16 %v1277, %v1273
      %v1698 = vpack.c.b16 %v1278, %v1274
      %v1699 = vpack.c.b16 %v1279, %v1275
      %v1700 = vpack.c.b16 %v1280, %v1276
      %v1701 = vpack.c.b16 %v1285, %v1281
      %v1702 = vpack.c.b16 %v1286, %v1282
      %v1703 = vpack.c.b16 %v1287, %v1283
      %v1704 = vpack.c.b16 %v1288, %v1284
      %v1705 = vpack.c.b16 %v1293, %v1289
      %v1706 = vpack.c.b16 %v1294, %v1290
      %v1707 = vpack.c.b16 %v1295, %v1291
      %v1708 = vpack.c.b16 %v1296, %v1292
      %v1709 = vpack.c.b16 %v1301, %v1297
      %v1710 = vpack.c.b16 %v1302, %v1298
      %v1711 = vpack.c.b16 %v1303, %v1299
      %v1712 = vpack.c.b16 %v1304, %v1300
      %v1713 = vpack.c.b16 %v1309, %v1305
      %v1714 = vpack.c.b16 %v1310, %v1306
      %v1715 = vpack.c.b16 %v1311, %v1307
      %v1716 = vpack.c.b16 %v1312, %v1308
      %v1717 = vpack.c.b16 %v1317, %v1313
      %v1718 = vpack.c.b16 %v1318, %v1314
      %v1719 = vpack.c.b16 %v1319, %v1315
      %v1720 = vpack.c.b16 %v1320, %v1316
      %v1721 = vpack.c.b16 %v1325, %v1321
      %v1722 = vpack.c.b16 %v1326, %v1322
      %v1723 = vpack.c.b16 %v1327, %v1323
      %v1724 = vpack.c.b16 %v1328, %v1324
      %v1725 = vpack.c.b16 %v1333, %v1329
      %v1726 = vpack.c.b16 %v1334, %v1330
      %v1727 = vpack.c.b16 %v1335, %v1331
      %v1728 = vpack.c.b16 %v1336, %v1332
      %v1729 = vpack.c.b16 %v1341, %v1337
      %v1730 = vpack.c.b16 %v1342, %v1338
      %v1731 = vpack.c.b16 %v1343, %v1339
      %v1732 = vpack.c.b16 %v1344, %v1340
      %v1733 = vpack.c.b16 %v1349, %v1345
      %v1734 = vpack.c.b16 %v1350, %v1346
      %v1735 = vpack.c.b16 %v1351, %v1347
      %v1736 = vpack.c.b16 %v1352, %v1348
      %v1737 = vpack.c.b16 %v1357, %v1353
      %v1738 = vpack.c.b16 %v1358, %v1354
      %v1739 = vpack.c.b16 %v1359, %v1355
      %v1740 = vpack.c.b16 %v1360, %v1356
      %v1741 = vpack.c.b16 %v1365, %v1361
      %v1742 = vpack.c.b16 %v1366, %v1362
      %v1743 = vpack.c.b16 %v1367, %v1363
      %v1744 = vpack.c.b16 %v1368, %v1364
      %v1745 = vpack.c.b16 %v1373, %v1369
      %v1746 = vpack.c.b16 %v1374, %v1370
      %v1747 = vpack.c.b16 %v1375, %v1371
      %v1748 = vpack.c.b16 %v1376, %v1372
      %v1749 = vpack.c.b16 %v1381, %v1377
      %v1750 = vpack.c.b16 %v1382, %v1378
      %v1751 = vpack.c.b16 %v1383, %v1379
      %v1752 = vpack.c.b16 %v1384, %v1380
      %v1753 = vpack.c.b16 %v1389, %v1385
      %v1754 = vpack.c.b16 %v1390, %v1386
      %v1755 = vpack.c.b16 %v1391, %v1387
      %v1756 = vpack.c.b16 %v1392, %v1388
      %v1757 = vpack.c.b16 %v1397, %v1393
      %v1758 = vpack.c.b16 %v1398, %v1394
      %v1759 = vpack.c.b16 %v1399, %v1395
      %v1760 = vpack.c.b16 %v1400, %v1396
      %v1761 = vpack.c.b16 %v1405, %v1401
      %v1762 = vpack.c.b16 %v1406, %v1402
      %v1763 = vpack.c.b16 %v1407, %v1403
      %v1764 = vpack.c.b16 %v1408, %v1404
      %v1765 = vpack.c.b16 %v1413, %v1409
      %v1766 = vpack.c.b16 %v1414, %v1410
      %v1767 = vpack.c.b16 %v1415, %v1411
      %v1768 = vpack.c.b16 %v1416, %v1412
      %v1769 = vpack.c.b16 %v1421, %v1417
      %v1770 = vpack.c.b16 %v1422, %v1418
      %v1771 = vpack.c.b16 %v1423, %v1419
      %v1772 = vpack.c.b16 %v1424, %v1420
      %v1773 = vpack.c.b16 %v1429, %v1425
      %v1774 = vpack.c.b16 %v1430, %v1426
      %v1775 = vpack.c.b16 %v1431, %v1427
      %v1776 = vpack.c.b16 %v1432, %v1428
      %v1777 = vpack.c.b16 %v1437, %v1433
      %v1778 = vpack.c.b16 %v1438, %v1434
      %v1779 = vpack.c.b16 %v1439, %v1435
      %v1780 = vpack.c.b16 %v1440, %v1436
      %v1781 = vpack.c.b16 %v1445, %v1441
      %v1782 = vpack.c.b16 %v1446, %v1442
      %v1783 = vpack.c.b16 %v1447, %v1443
      %v1784 = vpack.c.b16 %v1448, %v1444
      %v1785 = vpack.c.b16 %v1453, %v1449
      %v1786 = vpack.c.b16 %v1454, %v1450
      %v1787 = vpack.c.b16 %v1455, %v1451
      %v1788 = vpack.c.b16 %v1456, %v1452
      %v1789 = vpack.c.b16 %v1461, %v1457
      %v1790 = vpack.c.b16 %v1462, %v1458
      %v1791 = vpack.c.b16 %v1463, %v1459
      %v1792 = vpack.c.b16 %v1464, %v1460
      %v1793 = vpack.c.b16 %v1469, %v1465
      %v1794 = vpack.c.b16 %v1470, %v1466
      %v1795 = vpack.c.b16 %v1471, %v1467
      %v1796 = vpack.c.b16 %v1472, %v1468
      %v1797 = vpack.c.b16 %v1477, %v1473
      %v1798 = vpack.c.b16 %v1478, %v1474
      %v1799 = vpack.c.b16 %v1479, %v1475
      %v1800 = vpack.c.b16 %v1480, %v1476
      %v1801 = vpack.c.b16 %v1485, %v1481
      %v1802 = vpack.c.b16 %v1486, %v1482
      %v1803 = vpack.c.b16 %v1487, %v1483
      %v1804 = vpack.c.b16 %v1488, %v1484
      %v1805 = vpack.c.b16 %v1493, %v1489
      %v1806 = vpack.c.b16 %v1494, %v1490
      %v1807 = vpack.c.b16 %v1495, %v1491
      %v1808 = vpack.c.b16 %v1496, %v1492
      %v1809 = vpack.c.b16 %v1501, %v1497
      %v1810 = vpack.c.b16 %v1502, %v1498
      %v1811 = vpack.c.b16 %v1503, %v1499
      %v1812 = vpack.c.b16 %v1504, %v1500
      %v1813 = vpack.c.b16 %v1509, %v1505
      %v1814 = vpack.c.b16 %v1510, %v1506
      %v1815 = vpack.c.b16 %v1511, %v1507
      %v1816 = vpack.c.b16 %v1512, %v1508
      %v1817 = vpack.c.b16 %v1517, %v1513
      %v1818 = vpack.c.b16 %v1518, %v1514
      %v1819 = vpack.c.b16 %v1519, %v1515
      %v1820 = vpack.c.b16 %v1520, %v1516
      %v1821 = vpack.c.b16 %v1525, %v1521
      %v1822 = vpack.c.b16 %v1526, %v1522
      %v1823 = vpack.c.b16 %v1527, %v1523
      %v1824 = vpack.c.b16 %v1528, %v1524
      %v1825 = vpack.c.b16 %v1533, %v1529
      %v1826 = vpack.c.b16 %v1534, %v1530
      %v1827 = vpack.c.b16 %v1535, %v1531
      %v1828 = vpack.c.b16 %v1536, %v1532
      %v1829 = vpack.c.b16 %v1541, %v1537
      %v1830 = vpack.c.b16 %v1542, %v1538
      %v1831 = vpack.c.b16 %v1543, %v1539
      %v1832 = vpack.c.b16 %v1544, %v1540
      %v1833 = vpack.c.b16 %v1549, %v1545
      %v1834 = vpack.c.b16 %v1550, %v1546
      %v1835 = vpack.c.b16 %v1551, %v1547
      %v1836 = vpack.c.b16 %v1552, %v1548
      %v1837 = vpack.c.b16 %v1557, %v1553
      %v1838 = vpack.c.b16 %v1558, %v1554
      %v1839 = vpack.c.b16 %v1559, %v1555
      %v1840 = vpack.c.b16 %v1560, %v1556
      %v1841 = vpack.c.b16 %v1565, %v1561
      %v1842 = vpack.c.b16 %v1566, %v1562
      %v1843 = vpack.c.b16 %v1567, %v1563
      %v1844 = vpack.c.b16 %v1568, %v1564
      %v1845 = vpack.c.b16 %v1573, %v1569
      %v1846 = vpack.c.b16 %v1574, %v1570
      %v1847 = vpack.c.b16 %v1575, %v1571
      %v1848 = vpack.c.b16 %v1576, %v1572
      %v1849 = vpack.c.b16 %v1581, %v1577
      %v1850 = vpack.c.b16 %v1582, %v1578
      %v1851 = vpack.c.b16 %v1583, %v1579
      %v1852 = vpack.c.b16 %v1584, %v1580
      %v1853 = vpack.c.b16 %v1589, %v1585
      %v1854 = vpack.c.b16 %v1590, %v1586
      %v1855 = vpack.c.b16 %v1591, %v1587
      %v1856 = vpack.c.b16 %v1592, %v1588
      %v1857 = vpack.c.b16 %v1597, %v1593
      %v1858 = vpack.c.b16 %v1598, %v1594
      %v1859 = vpack.c.b16 %v1599, %v1595
      %v1860 = vpack.c.b16 %v1600, %v1596
      %v1861 = vpack.c.b16 %v1605, %v1601
      %v1862 = vpack.c.b16 %v1606, %v1602
      %v1863 = vpack.c.b16 %v1607, %v1603
      %v1864 = vpack.c.b16 %v1608, %v1604
      %v1865 = vpack.c.b16 %v1613, %v1609
      %v1866 = vpack.c.b16 %v1614, %v1610
      %v1867 = vpack.c.b16 %v1615, %v1611
      %v1868 = vpack.c.b16 %v1616, %v1612
      %v1869 = vpack.c.b16 %v1621, %v1617
      %v1870 = vpack.c.b16 %v1622, %v1618
      %v1871 = vpack.c.b16 %v1623, %v1619
      %v1872 = vpack.c.b16 %v1624, %v1620
      %v1873 = vpack.c.b16 %v1629, %v1625
      %v1874 = vpack.c.b16 %v1630, %v1626
      %v1875 = vpack.c.b16 %v1631, %v1627
      %v1876 = vpack.c.b16 %v1632, %v1628
      %v1877 = vpack.c.b16 %v1637, %v1633
      %v1878 = vpack.c.b16 %v1638, %v1634
      %v1879 = vpack.c.b16 %v1639, %v1635
      %v1880 = vpack.c.b16 %v1640, %v1636
      %v1881 = vpack.c.b16 %v1645, %v1641
      %v1882 = vpack.c.b16 %v1646, %v1642
      %v1883 = vpack.c.b16 %v1647, %v1643
      %v1884 = vpack.c.b16 %v1648, %v1644
      %v1885 = vpack.c.b16 %v1653, %v1649
      %v1886 = vpack.c.b16 %v1654, %v1650
      %v1887 = vpack.c.b16 %v1655, %v1651
      %v1888 = vpack.c.b16 %v1656, %v1652
      %v1889 = vpack.c.b16 %v1661, %v1657
      %v1890 = vpack.c.b16 %v1662, %v1658
      %v1891 = vpack.c.b16 %v1663, %v1659
      %v1892 = vpack.c.b16 %v1664, %v1660
      %v1893 = vpack.c.b16 %v1669, %v1665
      %v1894 = vpack.c.b16 %v1670, %v1666
      %v1895 = vpack.c.b16 %v1671, %v1667
      %v1896 = vpack.c.b16 %v1672, %v1668
      %2121 = vmatprep.subr.bf16.mxu0 %v1674
      %2122 = vmatpush1.bf16.msra.mxu0 %v1673
      %2123 = vmatprep.subr.bf16.mxu0 %v1678
      %2124 = vmatpush1.bf16.msra.mxu0 %v1677
      %2125 = vmatprep.subr.bf16.mxu0 %v1682
      %2126 = vmatpush1.bf16.msra.mxu0 %v1681
      %2127 = vmatprep.subr.bf16.mxu0 %v1686
      %2128 = vmatpush1.bf16.msra.mxu0 %v1685
      %2129 = vmatprep.subr.bf16.mxu0 %v1690
      %2130 = vmatpush1.bf16.msra.mxu0 %v1689
      %2131 = vmatprep.subr.bf16.mxu0 %v1694
      %2132 = vmatpush1.bf16.msra.mxu0 %v1693
      %2133 = vmatprep.subr.bf16.mxu0 %v1698
      %2134 = vmatpush1.bf16.msra.mxu0 %v1697
      %2135 = vmatprep.subr.bf16.mxu0 %v1702
      %2136 = vmatpush1.bf16.msra.mxu0 %v1701
      %2137 = vmatprep.subr.bf16.mxu0 %v1706
      %2138 = vmatpush1.bf16.msra.mxu0 %v1705
      %2139 = vmatprep.subr.bf16.mxu0 %v1710
      %2140 = vmatpush1.bf16.msra.mxu0 %v1709
      %2141 = vmatprep.subr.bf16.mxu0 %v1714
      %2142 = vmatpush1.bf16.msra.mxu0 %v1713
      %2143 = vmatprep.subr.bf16.mxu0 %v1718
      %2144 = vmatpush1.bf16.msra.mxu0 %v1717
      %2145 = vmatprep.subr.bf16.mxu0 %v1722
      %2146 = vmatpush1.bf16.msra.mxu0 %v1721
      %2147 = vmatprep.subr.bf16.mxu0 %v1726
      %2148 = vmatpush1.bf16.msra.mxu0 %v1725
      %2149 = vmatprep.subr.bf16.mxu0 %v1730
      %2150 = vmatpush1.bf16.msra.mxu0 %v1729
      %2151 = vmatprep.subr.bf16.mxu0 %v1734
      %2152 = vmatpush1.bf16.msra.mxu0 %v1733
      %2153 = vmatprep.mubr.bf16.mxu0 %v700
      %2154 = vmatmul.mubr.bf16.gmra.mrb[0].mxu0 %v699
      %v2155 = vpop.f32.mrb[0].mxu0
      %v2156 = vadd.f32 %v984, %v2155
      %v2157 = vpop.f32.mrb[0].mxu0
      %v2158 = vadd.f32 %v988, %v2157
      %v2159 = vpop.f32.mrb[0].mxu0
      %v2160 = vadd.f32 %v984, %v2159
      %v2161 = vpop.f32.mrb[0].mxu0
      %v2162 = vadd.f32 %v988, %v2161
      %2163 = vmatprep.mubr.bf16.mxu0 %v707
      %2164 = vmatmul.mubr.bf16.gmra.mrb[0].mxu0 %v706
      %v2165 = vpop.f32.mrb[0].mxu0
      %v2166 = vadd.f32 %v984, %v2165
      %v2167 = vpop.f32.mrb[0].mxu0
      %v2168 = vadd.f32 %v988, %v2167
      %v2169 = vpop.f32.mrb[0].mxu0
      %v2170 = vadd.f32 %v984, %v2169
      %v2171 = vpop.f32.mrb[0].mxu0
      %v2172 = vadd.f32 %v988, %v2171
      %2173 = vmatprep.mubr.bf16.mxu0 %v714
      %2174 = vmatmul.mubr.bf16.gmra.mrb[0].mxu0 %v713
      %v2175 = vpop.f32.mrb[0].mxu0
      %v2176 = vadd.f32 %v984, %v2175
      %v2177 = vpop.f32.mrb[0].mxu0
      %v2178 = vadd.f32 %v988, %v2177
      %v2179 = vpop.f32.mrb[0].mxu0
      %v2180 = vadd.f32 %v984, %v2179
      %v2181 = vpop.f32.mrb[0].mxu0
      %v2182 = vadd.f32 %v988, %v2181
      %2183 = vmatprep.mubr.bf16.mxu0 %v721
      %2184 = vmatmul.mubr.bf16.gmra.mrb[0].mxu0 %v720
      %v2185 = vpop.f32.mrb[0].mxu0
      %v2186 = vadd.f32 %v984, %v2185
      %v2187 = vpop.f32.mrb[0].mxu0
      %v2188 = vadd.f32 %v988, %v2187
      %v2189 = vpop.f32.mrb[0].mxu0
      %v2190 = vadd.f32 %v984, %v2189
      %v2191 = vpop.f32.mrb[0].mxu0
      %v2192 = vadd.f32 %v988, %v2191
      %2193 = vmatprep.mubr.bf16.mxu0 %v728
      %2194 = vmatmul.mubr.bf16.gmra.mrb[0].mxu0 %v727
      %v2195 = vpop.f32.mrb[0].mxu0
      %v2196 = vadd.f32 %v984, %v2195
      %v2197 = vpop.f32.mrb[0].mxu0
      %v2198 = vadd.f32 %v988, %v2197
      %v2199 = vpop.f32.mrb[0].mxu0
      %v2200 = vadd.f32 %v984, %v2199
      %v2201 = vpop.f32.mrb[0].mxu0
      %v2202 = vadd.f32 %v988, %v2201
      %2203 = vmatprep.mubr.bf16.mxu0 %v735
      %2204 = vmatmul.mubr.bf16.gmra.mrb[0].mxu0 %v734
      %v2205 = vpop.f32.mrb[0].mxu0
      %v2206 = vadd.f32 %v984, %v2205
      %v2207 = vpop.f32.mrb[0].mxu0
      %v2208 = vadd.f32 %v988, %v2207
      %v2209 = vpop.f32.mrb[0].mxu0
      %v2210 = vadd.f32 %v984, %v2209
      %v2211 = vpop.f32.mrb[0].mxu0
      %v2212 = vadd.f32 %v988, %v2211
      %2213 = vmatprep.mubr.bf16.mxu0 %v742
      %2214 = vmatmul.mubr.bf16.gmra.mrb[0].mxu0 %v741
      %v2215 = vpop.f32.mrb[0].mxu0
      %v2216 = vadd.f32 %v984, %v2215
      %v2217 = vpop.f32.mrb[0].mxu0
      %v2218 = vadd.f32 %v988, %v2217
      %v2219 = vpop.f32.mrb[0].mxu0
      %v2220 = vadd.f32 %v984, %v2219
      %v2221 = vpop.f32.mrb[0].mxu0
      %v2222 = vadd.f32 %v988, %v2221
      %2223 = vmatprep.mubr.bf16.mxu0 %v749
      %2224 = vmatmul.mubr.bf16.gmra.mrb[0].mxu0 %v748
      %v2225 = vpop.f32.mrb[0].mxu0
      %v2226 = vadd.f32 %v984, %v2225
      %v2227 = vpop.f32.mrb[0].mxu0
      %v2228 = vadd.f32 %v988, %v2227
      %v2229 = vpop.f32.mrb[0].mxu0
      %v2230 = vadd.f32 %v984, %v2229
      %v2231 = vpop.f32.mrb[0].mxu0
      %v2232 = vadd.f32 %v988, %v2231
      %2233 = vdwg.mxu0
      %2234 = vmatprep.subr.bf16.mxu0 %v1738
      %2235 = vmatpush1.bf16.msra.mxu0 %v1737
      %2236 = vmatprep.subr.bf16.mxu0 %v1742
      %2237 = vmatpush1.bf16.msra.mxu0 %v1741
      %2238 = vmatprep.subr.bf16.mxu0 %v1746
      %2239 = vmatpush1.bf16.msra.mxu0 %v1745
      %2240 = vmatprep.subr.bf16.mxu0 %v1750
      %2241 = vmatpush1.bf16.msra.mxu0 %v1749
      %2242 = vmatprep.subr.bf16.mxu0 %v1754
      %2243 = vmatpush1.bf16.msra.mxu0 %v1753
      %2244 = vmatprep.subr.bf16.mxu0 %v1758
      %2245 = vmatpush1.bf16.msra.mxu0 %v1757
      %2246 = vmatprep.subr.bf16.mxu0 %v1762
      %2247 = vmatpush1.bf16.msra.mxu0 %v1761
      %2248 = vmatprep.subr.bf16.mxu0 %v1766
      %2249 = vmatpush1.bf16.msra.mxu0 %v1765
      %2250 = vmatprep.subr.bf16.mxu0 %v1770
      %2251 = vmatpush1.bf16.msra.mxu0 %v1769
      %2252 = vmatprep.subr.bf16.mxu0 %v1774
      %2253 = vmatpush1.bf16.msra.mxu0 %v1773
      %2254 = vmatprep.subr.bf16.mxu0 %v1778
      %2255 = vmatpush1.bf16.msra.mxu0 %v1777
      %2256 = vmatprep.subr.bf16.mxu0 %v1782
      %2257 = vmatpush1.bf16.msra.mxu0 %v1781
      %2258 = vmatprep.subr.bf16.mxu0 %v1786
      %2259 = vmatpush1.bf16.msra.mxu0 %v1785
      %2260 = vmatprep.subr.bf16.mxu0 %v1790
      %2261 = vmatpush1.bf16.msra.mxu0 %v1789
      %2262 = vmatprep.subr.bf16.mxu0 %v1794
      %2263 = vmatpush1.bf16.msra.mxu0 %v1793
      %2264 = vmatprep.subr.bf16.mxu0 %v1798
      %2265 = vmatpush1.bf16.msra.mxu0 %v1797
      %2266 = vmatprep.mubr.bf16.mxu0 %v702
      %2267 = vmatmul.mubr.bf16.gmra.mrb[0].mxu0 %v701
      %v2268 = vpop.f32.mrb[0].mxu0
      %v2269 = vadd.f32 %v2156, %v2268
      %v2270 = vpop.f32.mrb[0].mxu0
      %v2271 = vadd.f32 %v2158, %v2270
      %v2272 = vpop.f32.mrb[0].mxu0
      %v2273 = vadd.f32 %v2160, %v2272
      %v2274 = vpop.f32.mrb[0].mxu0
      %v2275 = vadd.f32 %v2162, %v2274
      %2276 = vmatprep.mubr.bf16.mxu0 %v709
      %2277 = vmatmul.mubr.bf16.gmra.mrb[0].mxu0 %v708
      %v2278 = vpop.f32.mrb[0].mxu0
      %v2279 = vadd.f32 %v2166, %v2278
      %v2280 = vpop.f32.mrb[0].mxu0
      %v2281 = vadd.f32 %v2168, %v2280
      %v2282 = vpop.f32.mrb[0].mxu0
      %v2283 = vadd.f32 %v2170, %v2282
      %v2284 = vpop.f32.mrb[0].mxu0
      %v2285 = vadd.f32 %v2172, %v2284
      %2286 = vmatprep.mubr.bf16.mxu0 %v716
      %2287 = vmatmul.mubr.bf16.gmra.mrb[0].mxu0 %v715
      %v2288 = vpop.f32.mrb[0].mxu0
      %v2289 = vadd.f32 %v2176, %v2288
      %v2290 = vpop.f32.mrb[0].mxu0
      %v2291 = vadd.f32 %v2178, %v2290
      %v2292 = vpop.f32.mrb[0].mxu0
      %v2293 = vadd.f32 %v2180, %v2292
      %v2294 = vpop.f32.mrb[0].mxu0
      %v2295 = vadd.f32 %v2182, %v2294
      %2296 = vmatprep.mubr.bf16.mxu0 %v723
      %2297 = vmatmul.mubr.bf16.gmra.mrb[0].mxu0 %v722
      %v2298 = vpop.f32.mrb[0].mxu0
      %v2299 = vadd.f32 %v2186, %v2298
      %v2300 = vpop.f32.mrb[0].mxu0
      %v2301 = vadd.f32 %v2188, %v2300
      %v2302 = vpop.f32.mrb[0].mxu0
      %v2303 = vadd.f32 %v2190, %v2302
      %v2304 = vpop.f32.mrb[0].mxu0
      %v2305 = vadd.f32 %v2192, %v2304
      %2306 = vmatprep.mubr.bf16.mxu0 %v730
      %2307 = vmatmul.mubr.bf16.gmra.mrb[0].mxu0 %v729
      %v2308 = vpop.f32.mrb[0].mxu0
      %v2309 = vadd.f32 %v2196, %v2308
      %v2310 = vpop.f32.mrb[0].mxu0
      %v2311 = vadd.f32 %v2198, %v2310
      %v2312 = vpop.f32.mrb[0].mxu0
      %v2313 = vadd.f32 %v2200, %v2312
      %v2314 = vpop.f32.mrb[0].mxu0
      %v2315 = vadd.f32 %v2202, %v2314
      %2316 = vmatprep.mubr.bf16.mxu0 %v737
      %2317 = vmatmul.mubr.bf16.gmra.mrb[0].mxu0 %v736
      %v2318 = vpop.f32.mrb[0].mxu0
      %v2319 = vadd.f32 %v2206, %v2318
      %v2320 = vpop.f32.mrb[0].mxu0
      %v2321 = vadd.f32 %v2208, %v2320
      %v2322 = vpop.f32.mrb[0].mxu0
      %v2323 = vadd.f32 %v2210, %v2322
      %v2324 = vpop.f32.mrb[0].mxu0
      %v2325 = vadd.f32 %v2212, %v2324
      %2326 = vmatprep.mubr.bf16.mxu0 %v744
      %2327 = vmatmul.mubr.bf16.gmra.mrb[0].mxu0 %v743
      %v2328 = vpop.f32.mrb[0].mxu0
      %v2329 = vadd.f32 %v2216, %v2328
      %v2330 = vpop.f32.mrb[0].mxu0
      %v2331 = vadd.f32 %v2218, %v2330
      %v2332 = vpop.f32.mrb[0].mxu0
      %v2333 = vadd.f32 %v2220, %v2332
      %v2334 = vpop.f32.mrb[0].mxu0
      %v2335 = vadd.f32 %v2222, %v2334
      %2336 = vmatprep.mubr.bf16.mxu0 %v751
      %2337 = vmatmul.mubr.bf16.gmra.mrb[0].mxu0 %v750
      %v2338 = vpop.f32.mrb[0].mxu0
      %v2339 = vadd.f32 %v2226, %v2338
      %v2340 = vpop.f32.mrb[0].mxu0
      %v2341 = vadd.f32 %v2228, %v2340
      %v2342 = vpop.f32.mrb[0].mxu0
      %v2343 = vadd.f32 %v2230, %v2342
      %v2344 = vpop.f32.mrb[0].mxu0
      %v2345 = vadd.f32 %v2232, %v2344
      %2346 = vdwg.mxu0
      %2347 = vmatprep.subr.bf16.mxu0 %v1802
      %2348 = vmatpush1.bf16.msra.mxu0 %v1801
      %2349 = vmatprep.subr.bf16.mxu0 %v1806
      %2350 = vmatpush1.bf16.msra.mxu0 %v1805
      %2351 = vmatprep.subr.bf16.mxu0 %v1810
      %2352 = vmatpush1.bf16.msra.mxu0 %v1809
      %2353 = vmatprep.subr.bf16.mxu0 %v1814
      %2354 = vmatpush1.bf16.msra.mxu0 %v1813
      %2355 = vmatprep.subr.bf16.mxu0 %v1818
      %2356 = vmatpush1.bf16.msra.mxu0 %v1817
      %2357 = vmatprep.subr.bf16.mxu0 %v1822
      %2358 = vmatpush1.bf16.msra.mxu0 %v1821
      %2359 = vmatprep.subr.bf16.mxu0 %v1826
      %2360 = vmatpush1.bf16.msra.mxu0 %v1825
      %2361 = vmatprep.subr.bf16.mxu0 %v1830
      %2362 = vmatpush1.bf16.msra.mxu0 %v1829
      %2363 = vmatprep.subr.bf16.mxu0 %v1834
      %2364 = vmatpush1.bf16.msra.mxu0 %v1833
      %2365 = vmatprep.subr.bf16.mxu0 %v1838
      %2366 = vmatpush1.bf16.msra.mxu0 %v1837
      %2367 = vmatprep.subr.bf16.mxu0 %v1842
      %2368 = vmatpush1.bf16.msra.mxu0 %v1841
      %2369 = vmatprep.subr.bf16.mxu0 %v1846
      %2370 = vmatpush1.bf16.msra.mxu0 %v1845
      %2371 = vmatprep.subr.bf16.mxu0 %v1850
      %2372 = vmatpush1.bf16.msra.mxu0 %v1849
      %2373 = vmatprep.subr.bf16.mxu0 %v1854
      %2374 = vmatpush1.bf16.msra.mxu0 %v1853
      %2375 = vmatprep.subr.bf16.mxu0 %v1858
      %2376 = vmatpush1.bf16.msra.mxu0 %v1857
      %2377 = vmatprep.subr.bf16.mxu0 %v1862
      %2378 = vmatpush1.bf16.msra.mxu0 %v1861
      %2379 = vmatprep.mubr.bf16.mxu0 %v704
      %2380 = vmatmul.mubr.bf16.gmra.mrb[0].mxu0 %v703
      %v2381 = vpop.f32.mrb[0].mxu0
      %v2382 = vadd.f32 %v2269, %v2381
      %v2383 = vpop.f32.mrb[0].mxu0
      %v2384 = vadd.f32 %v2271, %v2383
      %v2385 = vpop.f32.mrb[0].mxu0
      %v2386 = vadd.f32 %v2273, %v2385
      %v2387 = vpop.f32.mrb[0].mxu0
      %v2388 = vadd.f32 %v2275, %v2387
      %2389 = vmatprep.mubr.bf16.mxu0 %v711
      %2390 = vmatmul.mubr.bf16.gmra.mrb[0].mxu0 %v710
      %v2391 = vpop.f32.mrb[0].mxu0
      %v2392 = vadd.f32 %v2279, %v2391
      %v2393 = vpop.f32.mrb[0].mxu0
      %v2394 = vadd.f32 %v2281, %v2393
      %v2395 = vpop.f32.mrb[0].mxu0
      %v2396 = vadd.f32 %v2283, %v2395
      %v2397 = vpop.f32.mrb[0].mxu0
      %v2398 = vadd.f32 %v2285, %v2397
      %2399 = vmatprep.mubr.bf16.mxu0 %v718
      %2400 = vmatmul.mubr.bf16.gmra.mrb[0].mxu0 %v717
      %v2401 = vpop.f32.mrb[0].mxu0
      %v2402 = vadd.f32 %v2289, %v2401
      %v2403 = vpop.f32.mrb[0].mxu0
      %v2404 = vadd.f32 %v2291, %v2403
      %v2405 = vpop.f32.mrb[0].mxu0
      %v2406 = vadd.f32 %v2293, %v2405
      %v2407 = vpop.f32.mrb[0].mxu0
      %v2408 = vadd.f32 %v2295, %v2407
      %2409 = vmatprep.mubr.bf16.mxu0 %v725
      %2410 = vmatmul.mubr.bf16.gmra.mrb[0].mxu0 %v724
      %v2411 = vpop.f32.mrb[0].mxu0
      %v2412 = vadd.f32 %v2299, %v2411
      %v2413 = vpop.f32.mrb[0].mxu0
      %v2414 = vadd.f32 %v2301, %v2413
      %v2415 = vpop.f32.mrb[0].mxu0
      %v2416 = vadd.f32 %v2303, %v2415
      %v2417 = vpop.f32.mrb[0].mxu0
      %v2418 = vadd.f32 %v2305, %v2417
      %2419 = vmatprep.mubr.bf16.mxu0 %v732
      %2420 = vmatmul.mubr.bf16.gmra.mrb[0].mxu0 %v731
      %v2421 = vpop.f32.mrb[0].mxu0
      %v2422 = vadd.f32 %v2309, %v2421
      %v2423 = vpop.f32.mrb[0].mxu0
      %v2424 = vadd.f32 %v2311, %v2423
      %v2425 = vpop.f32.mrb[0].mxu0
      %v2426 = vadd.f32 %v2313, %v2425
      %v2427 = vpop.f32.mrb[0].mxu0
      %v2428 = vadd.f32 %v2315, %v2427
      %2429 = vmatprep.mubr.bf16.mxu0 %v739
      %2430 = vmatmul.mubr.bf16.gmra.mrb[0].mxu0 %v738
      %v2431 = vpop.f32.mrb[0].mxu0
      %v2432 = vadd.f32 %v2319, %v2431
      %v2433 = vpop.f32.mrb[0].mxu0
      %v2434 = vadd.f32 %v2321, %v2433
      %v2435 = vpop.f32.mrb[0].mxu0
      %v2436 = vadd.f32 %v2323, %v2435
      %v2437 = vpop.f32.mrb[0].mxu0
      %v2438 = vadd.f32 %v2325, %v2437
      %2439 = vmatprep.mubr.bf16.mxu0 %v746
      %2440 = vmatmul.mubr.bf16.gmra.mrb[0].mxu0 %v745
      %v2441 = vpop.f32.mrb[0].mxu0
      %v2442 = vadd.f32 %v2329, %v2441
      %v2443 = vpop.f32.mrb[0].mxu0
      %v2444 = vadd.f32 %v2331, %v2443
      %v2445 = vpop.f32.mrb[0].mxu0
      %v2446 = vadd.f32 %v2333, %v2445
      %v2447 = vpop.f32.mrb[0].mxu0
      %v2448 = vadd.f32 %v2335, %v2447
      %2449 = vmatprep.mubr.bf16.mxu0 %v753
      %2450 = vmatmul.mubr.bf16.gmra.mrb[0].mxu0 %v752
      %v2451 = vpop.f32.mrb[0].mxu0
      %v2452 = vadd.f32 %v2339, %v2451
      %v2453 = vpop.f32.mrb[0].mxu0
      %v2454 = vadd.f32 %v2341, %v2453
      %v2455 = vpop.f32.mrb[0].mxu0
      %v2456 = vadd.f32 %v2343, %v2455
      %v2457 = vpop.f32.mrb[0].mxu0
      %v2458 = vadd.f32 %v2345, %v2457
      %2459 = vdwg.mxu0
      %2460 = vmatprep.subr.bf16.mxu0 %v1866
      %2461 = vmatpush1.bf16.msra.mxu0 %v1865
      %2462 = vmatprep.subr.bf16.mxu0 %v1870
      %2463 = vmatpush1.bf16.msra.mxu0 %v1869
      %2464 = vmatprep.subr.bf16.mxu0 %v1874
      %2465 = vmatpush1.bf16.msra.mxu0 %v1873
      %2466 = vmatprep.subr.bf16.mxu0 %v1878
      %2467 = vmatpush1.bf16.msra.mxu0 %v1877
      %2468 = vmatprep.subr.bf16.mxu0 %v1882
      %2469 = vmatpush1.bf16.msra.mxu0 %v1881
      %2470 = vmatprep.subr.bf16.mxu0 %v1886
      %2471 = vmatpush1.bf16.msra.mxu0 %v1885
      %2472 = vmatprep.subr.bf16.mxu0 %v1890
      %2473 = vmatpush1.bf16.msra.mxu0 %v1889
      %2474 = vmatprep.subr.bf16.mxu0 %v1894
      %2475 = vmatpush1.bf16.msra.mxu0 %v1893
      %2476 = vmatprep.subr.bf16.mxu0 0
      %2477 = vmatpush1.bf16.msra.mxu0 0
      %2478 = vmatprep.subr.bf16.mxu0 0
      %2479 = vmatpush1.bf16.msra.mxu0 0
      %2480 = vmatprep.subr.bf16.mxu0 0
      %2481 = vmatpush1.bf16.msra.mxu0 0
      %2482 = vmatprep.subr.bf16.mxu0 0
      %2483 = vmatpush1.bf16.msra.mxu0 0
      %2484 = vmatprep.subr.bf16.mxu0 0
      %2485 = vmatpush1.bf16.msra.mxu0 0
      %2486 = vmatprep.subr.bf16.mxu0 0
      %2487 = vmatpush1.bf16.msra.mxu0 0
      %2488 = vmatprep.subr.bf16.mxu0 0
      %2489 = vmatpush1.bf16.msra.mxu0 0
      %2490 = vmatprep.subr.bf16.mxu0 0
      %2491 = vmatpush1.bf16.msra.mxu0 0
      %2492 = vmatprep.mubr.bf16.mxu0 0
      %2493 = vmatmul.mubr.bf16.gmra.mrb[0].mxu0 %v705
      %v2494 = vpop.f32.mrb[0].mxu0
      %v2495 = vadd.f32 %v2382, %v2494
      %v2496 = vpop.f32.mrb[0].mxu0
      %v2497 = vadd.f32 %v2384, %v2496
      %v2498 = vpop.f32.mrb[0].mxu0
      %v2499 = vadd.f32 %v2386, %v2498
      %v2500 = vpop.f32.mrb[0].mxu0
      %v2501 = vadd.f32 %v2388, %v2500
      %2502 = vmatprep.mubr.bf16.mxu0 0
      %2503 = vmatmul.mubr.bf16.gmra.mrb[0].mxu0 %v712
      %v2504 = vpop.f32.mrb[0].mxu0
      %v2505 = vadd.f32 %v2392, %v2504
      %v2506 = vpop.f32.mrb[0].mxu0
      %v2507 = vadd.f32 %v2394, %v2506
      %v2508 = vpop.f32.mrb[0].mxu0
      %v2509 = vadd.f32 %v2396, %v2508
      %v2510 = vpop.f32.mrb[0].mxu0
      %v2511 = vadd.f32 %v2398, %v2510
      %2512 = vmatprep.mubr.bf16.mxu0 0
      %2513 = vmatmul.mubr.bf16.gmra.mrb[0].mxu0 %v719
      %v2514 = vpop.f32.mrb[0].mxu0
      %v2515 = vadd.f32 %v2402, %v2514
      %v2516 = vpop.f32.mrb[0].mxu0
      %v2517 = vadd.f32 %v2404, %v2516
      %v2518 = vpop.f32.mrb[0].mxu0
      %v2519 = vadd.f32 %v2406, %v2518
      %v2520 = vpop.f32.mrb[0].mxu0
      %v2521 = vadd.f32 %v2408, %v2520
      %2522 = vmatprep.mubr.bf16.mxu0 0
      %2523 = vmatmul.mubr.bf16.gmra.mrb[0].mxu0 %v726
      %v2524 = vpop.f32.mrb[0].mxu0
      %v2525 = vadd.f32 %v2412, %v2524
      %v2526 = vpop.f32.mrb[0].mxu0
      %v2527 = vadd.f32 %v2414, %v2526
      %v2528 = vpop.f32.mrb[0].mxu0
      %v2529 = vadd.f32 %v2416, %v2528
      %v2530 = vpop.f32.mrb[0].mxu0
      %v2531 = vadd.f32 %v2418, %v2530
      %2532 = vmatprep.mubr.bf16.mxu0 0
      %2533 = vmatmul.mubr.bf16.gmra.mrb[0].mxu0 %v733
      %v2534 = vpop.f32.mrb[0].mxu0
      %v2535 = vadd.f32 %v2422, %v2534
      %v2536 = vpop.f32.mrb[0].mxu0
      %v2537 = vadd.f32 %v2424, %v2536
      %v2538 = vpop.f32.mrb[0].mxu0
      %v2539 = vadd.f32 %v2426, %v2538
      %v2540 = vpop.f32.mrb[0].mxu0
      %v2541 = vadd.f32 %v2428, %v2540
      %2542 = vmatprep.mubr.bf16.mxu0 0
      %2543 = vmatmul.mubr.bf16.gmra.mrb[0].mxu0 %v740
      %v2544 = vpop.f32.mrb[0].mxu0
      %v2545 = vadd.f32 %v2432, %v2544
      %v2546 = vpop.f32.mrb[0].mxu0
      %v2547 = vadd.f32 %v2434, %v2546
      %v2548 = vpop.f32.mrb[0].mxu0
      %v2549 = vadd.f32 %v2436, %v2548
      %v2550 = vpop.f32.mrb[0].mxu0
      %v2551 = vadd.f32 %v2438, %v2550
      %2552 = vmatprep.mubr.bf16.mxu0 0
      %2553 = vmatmul.mubr.bf16.gmra.mrb[0].mxu0 %v747
      %v2554 = vpop.f32.mrb[0].mxu0
      %v2555 = vadd.f32 %v2442, %v2554
      %v2556 = vpop.f32.mrb[0].mxu0
      %v2557 = vadd.f32 %v2444, %v2556
      %v2558 = vpop.f32.mrb[0].mxu0
      %v2559 = vadd.f32 %v2446, %v2558
      %v2560 = vpop.f32.mrb[0].mxu0
      %v2561 = vadd.f32 %v2448, %v2560
      %2562 = vmatprep.mubr.bf16.mxu0 0
      %2563 = vmatmul.mubr.bf16.gmra.mrb[0].mxu0 %v754
      %v2564 = vpop.f32.mrb[0].mxu0
      %v2565 = vadd.f32 %v2452, %v2564
      %v2566 = vpop.f32.mrb[0].mxu0
      %v2567 = vadd.f32 %v2454, %v2566
      %v2568 = vpop.f32.mrb[0].mxu0
      %v2569 = vadd.f32 %v2456, %v2568
      %v2570 = vpop.f32.mrb[0].mxu0
      %v2571 = vadd.f32 %v2458, %v2570
      %2572 = vdwg.mxu0
      %2573 = vmatprep.subr.bf16.mxu0 %v1676
      %2574 = vmatpush1.bf16.msra.mxu0 %v1675
      %2575 = vmatprep.subr.bf16.mxu0 %v1680
      %2576 = vmatpush1.bf16.msra.mxu0 %v1679
      %2577 = vmatprep.subr.bf16.mxu0 %v1684
      %2578 = vmatpush1.bf16.msra.mxu0 %v1683
      %2579 = vmatprep.subr.bf16.mxu0 %v1688
      %2580 = vmatpush1.bf16.msra.mxu0 %v1687
      %2581 = vmatprep.subr.bf16.mxu0 %v1692
      %2582 = vmatpush1.bf16.msra.mxu0 %v1691
      %2583 = vmatprep.subr.bf16.mxu0 %v1696
      %2584 = vmatpush1.bf16.msra.mxu0 %v1695
      %2585 = vmatprep.subr.bf16.mxu0 %v1700
      %2586 = vmatpush1.bf16.msra.mxu0 %v1699
      %2587 = vmatprep.subr.bf16.mxu0 %v1704
      %2588 = vmatpush1.bf16.msra.mxu0 %v1703
      %2589 = vmatprep.subr.bf16.mxu0 %v1708
      %2590 = vmatpush1.bf16.msra.mxu0 %v1707
      %2591 = vmatprep.subr.bf16.mxu0 %v1712
      %2592 = vmatpush1.bf16.msra.mxu0 %v1711
      %2593 = vmatprep.subr.bf16.mxu0 %v1716
      %2594 = vmatpush1.bf16.msra.mxu0 %v1715
      %2595 = vmatprep.subr.bf16.mxu0 %v1720
      %2596 = vmatpush1.bf16.msra.mxu0 %v1719
      %2597 = vmatprep.subr.bf16.mxu0 %v1724
      %2598 = vmatpush1.bf16.msra.mxu0 %v1723
      %2599 = vmatprep.subr.bf16.mxu0 %v1728
      %2600 = vmatpush1.bf16.msra.mxu0 %v1727
      %2601 = vmatprep.subr.bf16.mxu0 %v1732
      %2602 = vmatpush1.bf16.msra.mxu0 %v1731
      %2603 = vmatprep.subr.bf16.mxu0 %v1736
      %2604 = vmatpush1.bf16.msra.mxu0 %v1735
      %2605 = vmatprep.mubr.bf16.mxu0 %v700
      %2606 = vmatmul.mubr.bf16.gmra.mrb[0].mxu0 %v699
      %v2607 = vpop.f32.mrb[0].mxu0
      %v2608 = vadd.f32 %v992, %v2607
      %v2609 = vpop.f32.mrb[0].mxu0
      %v2610 = vadd.f32 %v996, %v2609
      %v2611 = vpop.f32.mrb[0].mxu0
      %v2612 = vadd.f32 %v992, %v2611
      %v2613 = vpop.f32.mrb[0].mxu0
      %v2614 = vadd.f32 %v996, %v2613
      %2615 = vmatprep.mubr.bf16.mxu0 %v707
      %2616 = vmatmul.mubr.bf16.gmra.mrb[0].mxu0 %v706
      %v2617 = vpop.f32.mrb[0].mxu0
      %v2618 = vadd.f32 %v992, %v2617
      %v2619 = vpop.f32.mrb[0].mxu0
      %v2620 = vadd.f32 %v996, %v2619
      %v2621 = vpop.f32.mrb[0].mxu0
      %v2622 = vadd.f32 %v992, %v2621
      %v2623 = vpop.f32.mrb[0].mxu0
      %v2624 = vadd.f32 %v996, %v2623
      %2625 = vmatprep.mubr.bf16.mxu0 %v714
      %2626 = vmatmul.mubr.bf16.gmra.mrb[0].mxu0 %v713
      %v2627 = vpop.f32.mrb[0].mxu0
      %v2628 = vadd.f32 %v992, %v2627
      %v2629 = vpop.f32.mrb[0].mxu0
      %v2630 = vadd.f32 %v996, %v2629
      %v2631 = vpop.f32.mrb[0].mxu0
      %v2632 = vadd.f32 %v992, %v2631
      %v2633 = vpop.f32.mrb[0].mxu0
      %v2634 = vadd.f32 %v996, %v2633
      %2635 = vmatprep.mubr.bf16.mxu0 %v721
      %2636 = vmatmul.mubr.bf16.gmra.mrb[0].mxu0 %v720
      %v2637 = vpop.f32.mrb[0].mxu0
      %v2638 = vadd.f32 %v992, %v2637
      %v2639 = vpop.f32.mrb[0].mxu0
      %v2640 = vadd.f32 %v996, %v2639
      %v2641 = vpop.f32.mrb[0].mxu0
      %v2642 = vadd.f32 %v992, %v2641
      %v2643 = vpop.f32.mrb[0].mxu0
      %v2644 = vadd.f32 %v996, %v2643
      %2645 = vmatprep.mubr.bf16.mxu0 %v728
      %2646 = vmatmul.mubr.bf16.gmra.mrb[0].mxu0 %v727
      %v2647 = vpop.f32.mrb[0].mxu0
      %v2648 = vadd.f32 %v992, %v2647
      %v2649 = vpop.f32.mrb[0].mxu0
      %v2650 = vadd.f32 %v996, %v2649
      %v2651 = vpop.f32.mrb[0].mxu0
      %v2652 = vadd.f32 %v992, %v2651
      %v2653 = vpop.f32.mrb[0].mxu0
      %v2654 = vadd.f32 %v996, %v2653
      %2655 = vmatprep.mubr.bf16.mxu0 %v735
      %2656 = vmatmul.mubr.bf16.gmra.mrb[0].mxu0 %v734
      %v2657 = vpop.f32.mrb[0].mxu0
      %v2658 = vadd.f32 %v992, %v2657
      %v2659 = vpop.f32.mrb[0].mxu0
      %v2660 = vadd.f32 %v996, %v2659
      %v2661 = vpop.f32.mrb[0].mxu0
      %v2662 = vadd.f32 %v992, %v2661
      %v2663 = vpop.f32.mrb[0].mxu0
      %v2664 = vadd.f32 %v996, %v2663
      %2665 = vmatprep.mubr.bf16.mxu0 %v742
      %2666 = vmatmul.mubr.bf16.gmra.mrb[0].mxu0 %v741
      %v2667 = vpop.f32.mrb[0].mxu0
      %v2668 = vadd.f32 %v992, %v2667
      %v2669 = vpop.f32.mrb[0].mxu0
      %v2670 = vadd.f32 %v996, %v2669
      %v2671 = vpop.f32.mrb[0].mxu0
      %v2672 = vadd.f32 %v992, %v2671
      %v2673 = vpop.f32.mrb[0].mxu0
      %v2674 = vadd.f32 %v996, %v2673
      %2675 = vmatprep.mubr.bf16.mxu0 %v749
      %2676 = vmatmul.mubr.bf16.gmra.mrb[0].mxu0 %v748
      %v2677 = vpop.f32.mrb[0].mxu0
      %v2678 = vadd.f32 %v992, %v2677
      %v2679 = vpop.f32.mrb[0].mxu0
      %v2680 = vadd.f32 %v996, %v2679
      %v2681 = vpop.f32.mrb[0].mxu0
      %v2682 = vadd.f32 %v992, %v2681
      %v2683 = vpop.f32.mrb[0].mxu0
      %v2684 = vadd.f32 %v996, %v2683
      %2685 = vdwg.mxu0
      %2686 = vmatprep.subr.bf16.mxu0 %v1740
      %2687 = vmatpush1.bf16.msra.mxu0 %v1739
      %2688 = vmatprep.subr.bf16.mxu0 %v1744
      %2689 = vmatpush1.bf16.msra.mxu0 %v1743
      %2690 = vmatprep.subr.bf16.mxu0 %v1748
      %2691 = vmatpush1.bf16.msra.mxu0 %v1747
      %2692 = vmatprep.subr.bf16.mxu0 %v1752
      %2693 = vmatpush1.bf16.msra.mxu0 %v1751
      %2694 = vmatprep.subr.bf16.mxu0 %v1756
      %2695 = vmatpush1.bf16.msra.mxu0 %v1755
      %2696 = vmatprep.subr.bf16.mxu0 %v1760
      %2697 = vmatpush1.bf16.msra.mxu0 %v1759
      %2698 = vmatprep.subr.bf16.mxu0 %v1764
      %2699 = vmatpush1.bf16.msra.mxu0 %v1763
      %2700 = vmatprep.subr.bf16.mxu0 %v1768
      %2701 = vmatpush1.bf16.msra.mxu0 %v1767
      %2702 = vmatprep.subr.bf16.mxu0 %v1772
      %2703 = vmatpush1.bf16.msra.mxu0 %v1771
      %2704 = vmatprep.subr.bf16.mxu0 %v1776
      %2705 = vmatpush1.bf16.msra.mxu0 %v1775
      %2706 = vmatprep.subr.bf16.mxu0 %v1780
      %2707 = vmatpush1.bf16.msra.mxu0 %v1779
      %2708 = vmatprep.subr.bf16.mxu0 %v1784
      %2709 = vmatpush1.bf16.msra.mxu0 %v1783
      %2710 = vmatprep.subr.bf16.mxu0 %v1788
      %2711 = vmatpush1.bf16.msra.mxu0 %v1787
      %2712 = vmatprep.subr.bf16.mxu0 %v1792
      %2713 = vmatpush1.bf16.msra.mxu0 %v1791
      %2714 = vmatprep.subr.bf16.mxu0 %v1796
      %2715 = vmatpush1.bf16.msra.mxu0 %v1795
      %2716 = vmatprep.subr.bf16.mxu0 %v1800
      %2717 = vmatpush1.bf16.msra.mxu0 %v1799
      %2718 = vmatprep.mubr.bf16.mxu0 %v702
      %2719 = vmatmul.mubr.bf16.gmra.mrb[0].mxu0 %v701
      %v2720 = vpop.f32.mrb[0].mxu0
      %v2721 = vadd.f32 %v2608, %v2720
      %v2722 = vpop.f32.mrb[0].mxu0
      %v2723 = vadd.f32 %v2610, %v2722
      %v2724 = vpop.f32.mrb[0].mxu0
      %v2725 = vadd.f32 %v2612, %v2724
      %v2726 = vpop.f32.mrb[0].mxu0
      %v2727 = vadd.f32 %v2614, %v2726
      %2728 = vmatprep.mubr.bf16.mxu0 %v709
      %2729 = vmatmul.mubr.bf16.gmra.mrb[0].mxu0 %v708
      %v2730 = vpop.f32.mrb[0].mxu0
      %v2731 = vadd.f32 %v2618, %v2730
      %v2732 = vpop.f32.mrb[0].mxu0
      %v2733 = vadd.f32 %v2620, %v2732
      %v2734 = vpop.f32.mrb[0].mxu0
      %v2735 = vadd.f32 %v2622, %v2734
      %v2736 = vpop.f32.mrb[0].mxu0
      %v2737 = vadd.f32 %v2624, %v2736
      %2738 = vmatprep.mubr.bf16.mxu0 %v716
      %2739 = vmatmul.mubr.bf16.gmra.mrb[0].mxu0 %v715
      %v2740 = vpop.f32.mrb[0].mxu0
      %v2741 = vadd.f32 %v2628, %v2740
      %v2742 = vpop.f32.mrb[0].mxu0
      %v2743 = vadd.f32 %v2630, %v2742
      %v2744 = vpop.f32.mrb[0].mxu0
      %v2745 = vadd.f32 %v2632, %v2744
      %v2746 = vpop.f32.mrb[0].mxu0
      %v2747 = vadd.f32 %v2634, %v2746
      %2748 = vmatprep.mubr.bf16.mxu0 %v723
      %2749 = vmatmul.mubr.bf16.gmra.mrb[0].mxu0 %v722
      %v2750 = vpop.f32.mrb[0].mxu0
      %v2751 = vadd.f32 %v2638, %v2750
      %v2752 = vpop.f32.mrb[0].mxu0
      %v2753 = vadd.f32 %v2640, %v2752
      %v2754 = vpop.f32.mrb[0].mxu0
      %v2755 = vadd.f32 %v2642, %v2754
      %v2756 = vpop.f32.mrb[0].mxu0
      %v2757 = vadd.f32 %v2644, %v2756
      %2758 = vmatprep.mubr.bf16.mxu0 %v730
      %2759 = vmatmul.mubr.bf16.gmra.mrb[0].mxu0 %v729
      %v2760 = vpop.f32.mrb[0].mxu0
      %v2761 = vadd.f32 %v2648, %v2760
      %v2762 = vpop.f32.mrb[0].mxu0
      %v2763 = vadd.f32 %v2650, %v2762
      %v2764 = vpop.f32.mrb[0].mxu0
      %v2765 = vadd.f32 %v2652, %v2764
      %v2766 = vpop.f32.mrb[0].mxu0
      %v2767 = vadd.f32 %v2654, %v2766
      %2768 = vmatprep.mubr.bf16.mxu0 %v737
      %2769 = vmatmul.mubr.bf16.gmra.mrb[0].mxu0 %v736
      %v2770 = vpop.f32.mrb[0].mxu0
      %v2771 = vadd.f32 %v2658, %v2770
      %v2772 = vpop.f32.mrb[0].mxu0
      %v2773 = vadd.f32 %v2660, %v2772
      %v2774 = vpop.f32.mrb[0].mxu0
      %v2775 = vadd.f32 %v2662, %v2774
      %v2776 = vpop.f32.mrb[0].mxu0
      %v2777 = vadd.f32 %v2664, %v2776
      %2778 = vmatprep.mubr.bf16.mxu0 %v744
      %2779 = vmatmul.mubr.bf16.gmra.mrb[0].mxu0 %v743
      %v2780 = vpop.f32.mrb[0].mxu0
      %v2781 = vadd.f32 %v2668, %v2780
      %v2782 = vpop.f32.mrb[0].mxu0
      %v2783 = vadd.f32 %v2670, %v2782
      %v2784 = vpop.f32.mrb[0].mxu0
      %v2785 = vadd.f32 %v2672, %v2784
      %v2786 = vpop.f32.mrb[0].mxu0
      %v2787 = vadd.f32 %v2674, %v2786
      %2788 = vmatprep.mubr.bf16.mxu0 %v751
      %2789 = vmatmul.mubr.bf16.gmra.mrb[0].mxu0 %v750
      %v2790 = vpop.f32.mrb[0].mxu0
      %v2791 = vadd.f32 %v2678, %v2790
      %v2792 = vpop.f32.mrb[0].mxu0
      %v2793 = vadd.f32 %v2680, %v2792
      %v2794 = vpop.f32.mrb[0].mxu0
      %v2795 = vadd.f32 %v2682, %v2794
      %v2796 = vpop.f32.mrb[0].mxu0
      %v2797 = vadd.f32 %v2684, %v2796
      %2798 = vdwg.mxu0
      %2799 = vmatprep.subr.bf16.mxu0 %v1804
      %2800 = vmatpush1.bf16.msra.mxu0 %v1803
      %2801 = vmatprep.subr.bf16.mxu0 %v1808
      %2802 = vmatpush1.bf16.msra.mxu0 %v1807
      %2803 = vmatprep.subr.bf16.mxu0 %v1812
      %2804 = vmatpush1.bf16.msra.mxu0 %v1811
      %2805 = vmatprep.subr.bf16.mxu0 %v1816
      %2806 = vmatpush1.bf16.msra.mxu0 %v1815
      %2807 = vmatprep.subr.bf16.mxu0 %v1820
      %2808 = vmatpush1.bf16.msra.mxu0 %v1819
      %2809 = vmatprep.subr.bf16.mxu0 %v1824
      %2810 = vmatpush1.bf16.msra.mxu0 %v1823
      %2811 = vmatprep.subr.bf16.mxu0 %v1828
      %2812 = vmatpush1.bf16.msra.mxu0 %v1827
      %2813 = vmatprep.subr.bf16.mxu0 %v1832
      %2814 = vmatpush1.bf16.msra.mxu0 %v1831
      %2815 = vmatprep.subr.bf16.mxu0 %v1836
      %2816 = vmatpush1.bf16.msra.mxu0 %v1835
      %2817 = vmatprep.subr.bf16.mxu0 %v1840
      %2818 = vmatpush1.bf16.msra.mxu0 %v1839
      %2819 = vmatprep.subr.bf16.mxu0 %v1844
      %2820 = vmatpush1.bf16.msra.mxu0 %v1843
      %2821 = vmatprep.subr.bf16.mxu0 %v1848
      %2822 = vmatpush1.bf16.msra.mxu0 %v1847
      %2823 = vmatprep.subr.bf16.mxu0 %v1852
      %2824 = vmatpush1.bf16.msra.mxu0 %v1851
      %2825 = vmatprep.subr.bf16.mxu0 %v1856
      %2826 = vmatpush1.bf16.msra.mxu0 %v1855
      %2827 = vmatprep.subr.bf16.mxu0 %v1860
      %2828 = vmatpush1.bf16.msra.mxu0 %v1859
      %2829 = vmatprep.subr.bf16.mxu0 %v1864
      %2830 = vmatpush1.bf16.msra.mxu0 %v1863
      %2831 = vmatprep.mubr.bf16.mxu0 %v704
      %2832 = vmatmul.mubr.bf16.gmra.mrb[0].mxu0 %v703
      %v2833 = vpop.f32.mrb[0].mxu0
      %v2834 = vadd.f32 %v2721, %v2833
      %v2835 = vpop.f32.mrb[0].mxu0
      %v2836 = vadd.f32 %v2723, %v2835
      %v2837 = vpop.f32.mrb[0].mxu0
      %v2838 = vadd.f32 %v2725, %v2837
      %v2839 = vpop.f32.mrb[0].mxu0
      %v2840 = vadd.f32 %v2727, %v2839
      %2841 = vmatprep.mubr.bf16.mxu0 %v711
      %2842 = vmatmul.mubr.bf16.gmra.mrb[0].mxu0 %v710
      %v2843 = vpop.f32.mrb[0].mxu0
      %v2844 = vadd.f32 %v2731, %v2843
      %v2845 = vpop.f32.mrb[0].mxu0
      %v2846 = vadd.f32 %v2733, %v2845
      %v2847 = vpop.f32.mrb[0].mxu0
      %v2848 = vadd.f32 %v2735, %v2847
      %v2849 = vpop.f32.mrb[0].mxu0
      %v2850 = vadd.f32 %v2737, %v2849
      %2851 = vmatprep.mubr.bf16.mxu0 %v718
      %2852 = vmatmul.mubr.bf16.gmra.mrb[0].mxu0 %v717
      %v2853 = vpop.f32.mrb[0].mxu0
      %v2854 = vadd.f32 %v2741, %v2853
      %v2855 = vpop.f32.mrb[0].mxu0
      %v2856 = vadd.f32 %v2743, %v2855
      %v2857 = vpop.f32.mrb[0].mxu0
      %v2858 = vadd.f32 %v2745, %v2857
      %v2859 = vpop.f32.mrb[0].mxu0
      %v2860 = vadd.f32 %v2747, %v2859
      %2861 = vmatprep.mubr.bf16.mxu0 %v725
      %2862 = vmatmul.mubr.bf16.gmra.mrb[0].mxu0 %v724
      %v2863 = vpop.f32.mrb[0].mxu0
      %v2864 = vadd.f32 %v2751, %v2863
      %v2865 = vpop.f32.mrb[0].mxu0
      %v2866 = vadd.f32 %v2753, %v2865
      %v2867 = vpop.f32.mrb[0].mxu0
      %v2868 = vadd.f32 %v2755, %v2867
      %v2869 = vpop.f32.mrb[0].mxu0
      %v2870 = vadd.f32 %v2757, %v2869
      %2871 = vmatprep.mubr.bf16.mxu0 %v732
      %2872 = vmatmul.mubr.bf16.gmra.mrb[0].mxu0 %v731
      %v2873 = vpop.f32.mrb[0].mxu0
      %v2874 = vadd.f32 %v2761, %v2873
      %v2875 = vpop.f32.mrb[0].mxu0
      %v2876 = vadd.f32 %v2763, %v2875
      %v2877 = vpop.f32.mrb[0].mxu0
      %v2878 = vadd.f32 %v2765, %v2877
      %v2879 = vpop.f32.mrb[0].mxu0
      %v2880 = vadd.f32 %v2767, %v2879
      %2881 = vmatprep.mubr.bf16.mxu0 %v739
      %2882 = vmatmul.mubr.bf16.gmra.mrb[0].mxu0 %v738
      %v2883 = vpop.f32.mrb[0].mxu0
      %v2884 = vadd.f32 %v2771, %v2883
      %v2885 = vpop.f32.mrb[0].mxu0
      %v2886 = vadd.f32 %v2773, %v2885
      %v2887 = vpop.f32.mrb[0].mxu0
      %v2888 = vadd.f32 %v2775, %v2887
      %v2889 = vpop.f32.mrb[0].mxu0
      %v2890 = vadd.f32 %v2777, %v2889
      %2891 = vmatprep.mubr.bf16.mxu0 %v746
      %2892 = vmatmul.mubr.bf16.gmra.mrb[0].mxu0 %v745
      %v2893 = vpop.f32.mrb[0].mxu0
      %v2894 = vadd.f32 %v2781, %v2893
      %v2895 = vpop.f32.mrb[0].mxu0
      %v2896 = vadd.f32 %v2783, %v2895
      %v2897 = vpop.f32.mrb[0].mxu0
      %v2898 = vadd.f32 %v2785, %v2897
      %v2899 = vpop.f32.mrb[0].mxu0
      %v2900 = vadd.f32 %v2787, %v2899
      %2901 = vmatprep.mubr.bf16.mxu0 %v753
      %2902 = vmatmul.mubr.bf16.gmra.mrb[0].mxu0 %v752
      %v2903 = vpop.f32.mrb[0].mxu0
      %v2904 = vadd.f32 %v2791, %v2903
      %v2905 = vpop.f32.mrb[0].mxu0
      %v2906 = vadd.f32 %v2793, %v2905
      %v2907 = vpop.f32.mrb[0].mxu0
      %v2908 = vadd.f32 %v2795, %v2907
      %v2909 = vpop.f32.mrb[0].mxu0
      %v2910 = vadd.f32 %v2797, %v2909
      %2911 = vdwg.mxu0
      %2912 = vmatprep.subr.bf16.mxu0 %v1868
      %2913 = vmatpush1.bf16.msra.mxu0 %v1867
      %2914 = vmatprep.subr.bf16.mxu0 %v1872
      %2915 = vmatpush1.bf16.msra.mxu0 %v1871
      %2916 = vmatprep.subr.bf16.mxu0 %v1876
      %2917 = vmatpush1.bf16.msra.mxu0 %v1875
      %2918 = vmatprep.subr.bf16.mxu0 %v1880
      %2919 = vmatpush1.bf16.msra.mxu0 %v1879
      %2920 = vmatprep.subr.bf16.mxu0 %v1884
      %2921 = vmatpush1.bf16.msra.mxu0 %v1883
      %2922 = vmatprep.subr.bf16.mxu0 %v1888
      %2923 = vmatpush1.bf16.msra.mxu0 %v1887
      %2924 = vmatprep.subr.bf16.mxu0 %v1892
      %2925 = vmatpush1.bf16.msra.mxu0 %v1891
      %2926 = vmatprep.subr.bf16.mxu0 %v1896
      %2927 = vmatpush1.bf16.msra.mxu0 %v1895
      %2928 = vmatprep.subr.bf16.mxu0 0
      %2929 = vmatpush1.bf16.msra.mxu0 0
      %2930 = vmatprep.subr.bf16.mxu0 0
      %2931 = vmatpush1.bf16.msra.mxu0 0
      %2932 = vmatprep.subr.bf16.mxu0 0
      %2933 = vmatpush1.bf16.msra.mxu0 0
      %2934 = vmatprep.subr.bf16.mxu0 0
      %2935 = vmatpush1.bf16.msra.mxu0 0
      %2936 = vmatprep.subr.bf16.mxu0 0
      %2937 = vmatpush1.bf16.msra.mxu0 0
      %2938 = vmatprep.subr.bf16.mxu0 0
      %2939 = vmatpush1.bf16.msra.mxu0 0
      %2940 = vmatprep.subr.bf16.mxu0 0
      %2941 = vmatpush1.bf16.msra.mxu0 0
      %2942 = vmatprep.subr.bf16.mxu0 0
      %2943 = vmatpush1.bf16.msra.mxu0 0
      %2944 = vmatprep.mubr.bf16.mxu0 0
      %2945 = vmatmul.mubr.bf16.gmra.mrb[0].mxu0 %v705
      %v2946 = vpop.f32.mrb[0].mxu0
      %v2947 = vadd.f32 %v2834, %v2946
      %v2948 = vpop.f32.mrb[0].mxu0
      %v2949 = vadd.f32 %v2836, %v2948
      %v2950 = vpop.f32.mrb[0].mxu0
      %v2951 = vadd.f32 %v2838, %v2950
      %v2952 = vpop.f32.mrb[0].mxu0
      %v2953 = vadd.f32 %v2840, %v2952
      %2954 = vmatprep.mubr.bf16.mxu0 0
      %2955 = vmatmul.mubr.bf16.gmra.mrb[0].mxu0 %v712
      %v2956 = vpop.f32.mrb[0].mxu0
      %v2957 = vadd.f32 %v2844, %v2956
      %v2958 = vpop.f32.mrb[0].mxu0
      %v2959 = vadd.f32 %v2846, %v2958
      %v2960 = vpop.f32.mrb[0].mxu0
      %v2961 = vadd.f32 %v2848, %v2960
      %v2962 = vpop.f32.mrb[0].mxu0
      %v2963 = vadd.f32 %v2850, %v2962
      %2964 = vmatprep.mubr.bf16.mxu0 0
      %2965 = vmatmul.mubr.bf16.gmra.mrb[0].mxu0 %v719
      %v2966 = vpop.f32.mrb[0].mxu0
      %v2967 = vadd.f32 %v2854, %v2966
      %v2968 = vpop.f32.mrb[0].mxu0
      %v2969 = vadd.f32 %v2856, %v2968
      %v2970 = vpop.f32.mrb[0].mxu0
      %v2971 = vadd.f32 %v2858, %v2970
      %v2972 = vpop.f32.mrb[0].mxu0
      %v2973 = vadd.f32 %v2860, %v2972
      %2974 = vmatprep.mubr.bf16.mxu0 0
      %2975 = vmatmul.mubr.bf16.gmra.mrb[0].mxu0 %v726
      %v2976 = vpop.f32.mrb[0].mxu0
      %v2977 = vadd.f32 %v2864, %v2976
      %v2978 = vpop.f32.mrb[0].mxu0
      %v2979 = vadd.f32 %v2866, %v2978
      %v2980 = vpop.f32.mrb[0].mxu0
      %v2981 = vadd.f32 %v2868, %v2980
      %v2982 = vpop.f32.mrb[0].mxu0
      %v2983 = vadd.f32 %v2870, %v2982
      %2984 = vmatprep.mubr.bf16.mxu0 0
      %2985 = vmatmul.mubr.bf16.gmra.mrb[0].mxu0 %v733
      %v2986 = vpop.f32.mrb[0].mxu0
      %v2987 = vadd.f32 %v2874, %v2986
      %v2988 = vpop.f32.mrb[0].mxu0
      %v2989 = vadd.f32 %v2876, %v2988
      %v2990 = vpop.f32.mrb[0].mxu0
      %v2991 = vadd.f32 %v2878, %v2990
      %v2992 = vpop.f32.mrb[0].mxu0
      %v2993 = vadd.f32 %v2880, %v2992
      %2994 = vmatprep.mubr.bf16.mxu0 0
      %2995 = vmatmul.mubr.bf16.gmra.mrb[0].mxu0 %v740
      %v2996 = vpop.f32.mrb[0].mxu0
      %v2997 = vadd.f32 %v2884, %v2996
      %v2998 = vpop.f32.mrb[0].mxu0
      %v2999 = vadd.f32 %v2886, %v2998
      %v3000 = vpop.f32.mrb[0].mxu0
      %v3001 = vadd.f32 %v2888, %v3000
      %v3002 = vpop.f32.mrb[0].mxu0
      %v3003 = vadd.f32 %v2890, %v3002
      %3004 = vmatprep.mubr.bf16.mxu0 0
      %3005 = vmatmul.mubr.bf16.gmra.mrb[0].mxu0 %v747
      %v3006 = vpop.f32.mrb[0].mxu0
      %v3007 = vadd.f32 %v2894, %v3006
      %v3008 = vpop.f32.mrb[0].mxu0
      %v3009 = vadd.f32 %v2896, %v3008
      %v3010 = vpop.f32.mrb[0].mxu0
      %v3011 = vadd.f32 %v2898, %v3010
      %v3012 = vpop.f32.mrb[0].mxu0
      %v3013 = vadd.f32 %v2900, %v3012
      %3014 = vmatprep.mubr.bf16.mxu0 0
      %3015 = vmatmul.mubr.bf16.gmra.mrb[0].mxu0 %v754
      %v3016 = vpop.f32.mrb[0].mxu0
      %v3017 = vadd.f32 %v2904, %v3016
      %v3018 = vpop.f32.mrb[0].mxu0
      %v3019 = vadd.f32 %v2906, %v3018
      %v3020 = vpop.f32.mrb[0].mxu0
      %v3021 = vadd.f32 %v2908, %v3020
      %v3022 = vpop.f32.mrb[0].mxu0
      %v3023 = vadd.f32 %v2910, %v3022
      %3024 = vdwg.mxu0
      %vm3025 = vcmp.gt.f32.partialorder %v2495, 0.0
      %vm3026 = vcmp.gt.f32.partialorder %v2497, 0.0
      %vm3027 = vcmp.gt.f32.partialorder %v2947, 0.0
      %vm3028 = vcmp.gt.f32.partialorder %v2949, 0.0
      %vm3029 = vcmp.gt.f32.partialorder %v2499, 0.0
      %vm3030 = vcmp.gt.f32.partialorder %v2501, 0.0
      %vm3031 = vcmp.gt.f32.partialorder %v2951, 0.0
      %vm3032 = vcmp.gt.f32.partialorder %v2953, 0.0
      %vm3033 = vcmp.gt.f32.partialorder %v2505, 0.0
      %vm3034 = vcmp.gt.f32.partialorder %v2507, 0.0
      %vm3035 = vcmp.gt.f32.partialorder %v2957, 0.0
      %vm3036 = vcmp.gt.f32.partialorder %v2959, 0.0
      %vm3037 = vcmp.gt.f32.partialorder %v2509, 0.0
      %vm3038 = vcmp.gt.f32.partialorder %v2511, 0.0
      %vm3039 = vcmp.gt.f32.partialorder %v2961, 0.0
      %vm3040 = vcmp.gt.f32.partialorder %v2963, 0.0
      %vm3041 = vcmp.gt.f32.partialorder %v2515, 0.0
      %vm3042 = vcmp.gt.f32.partialorder %v2517, 0.0
      %vm3043 = vcmp.gt.f32.partialorder %v2967, 0.0
      %vm3044 = vcmp.gt.f32.partialorder %v2969, 0.0
      %vm3045 = vcmp.gt.f32.partialorder %v2519, 0.0
      %vm3046 = vcmp.gt.f32.partialorder %v2521, 0.0
      %vm3047 = vcmp.gt.f32.partialorder %v2971, 0.0
      %vm3048 = vcmp.gt.f32.partialorder %v2973, 0.0
      %vm3049 = vcmp.gt.f32.partialorder %v2525, 0.0
      %vm3050 = vcmp.gt.f32.partialorder %v2527, 0.0
      %vm3051 = vcmp.gt.f32.partialorder %v2977, 0.0
      %vm3052 = vcmp.gt.f32.partialorder %v2979, 0.0
      %vm3053 = vcmp.gt.f32.partialorder %v2529, 0.0
      %vm3054 = vcmp.gt.f32.partialorder %v2531, 0.0
      %vm3055 = vcmp.gt.f32.partialorder %v2981, 0.0
      %vm3056 = vcmp.gt.f32.partialorder %v2983, 0.0
      %vm3057 = vcmp.gt.f32.partialorder %v2535, 0.0
      %vm3058 = vcmp.gt.f32.partialorder %v2537, 0.0
      %vm3059 = vcmp.gt.f32.partialorder %v2987, 0.0
      %vm3060 = vcmp.gt.f32.partialorder %v2989, 0.0
      %vm3061 = vcmp.gt.f32.partialorder %v2539, 0.0
      %vm3062 = vcmp.gt.f32.partialorder %v2541, 0.0
      %vm3063 = vcmp.gt.f32.partialorder %v2991, 0.0
      %vm3064 = vcmp.gt.f32.partialorder %v2993, 0.0
      %vm3065 = vcmp.gt.f32.partialorder %v2545, 0.0
      %vm3066 = vcmp.gt.f32.partialorder %v2547, 0.0
      %vm3067 = vcmp.gt.f32.partialorder %v2997, 0.0
      %vm3068 = vcmp.gt.f32.partialorder %v2999, 0.0
      %vm3069 = vcmp.gt.f32.partialorder %v2549, 0.0
      %vm3070 = vcmp.gt.f32.partialorder %v2551, 0.0
      %vm3071 = vcmp.gt.f32.partialorder %v3001, 0.0
      %vm3072 = vcmp.gt.f32.partialorder %v3003, 0.0
      %vm3073 = vcmp.gt.f32.partialorder %v2555, 0.0
      %vm3074 = vcmp.gt.f32.partialorder %v2557, 0.0
      %vm3075 = vcmp.gt.f32.partialorder %v3007, 0.0
      %vm3076 = vcmp.gt.f32.partialorder %v3009, 0.0
      %vm3077 = vcmp.gt.f32.partialorder %v2559, 0.0
      %vm3078 = vcmp.gt.f32.partialorder %v2561, 0.0
      %vm3079 = vcmp.gt.f32.partialorder %v3011, 0.0
      %vm3080 = vcmp.gt.f32.partialorder %v3013, 0.0
      %vm3081 = vcmp.gt.f32.partialorder %v2565, 0.0
      %vm3082 = vcmp.gt.f32.partialorder %v2567, 0.0
      %vm3083 = vcmp.gt.f32.partialorder %v3017, 0.0
      %vm3084 = vcmp.gt.f32.partialorder %v3019, 0.0
      %vm3085 = vcmp.gt.f32.partialorder %v2569, 0.0
      %vm3086 = vcmp.gt.f32.partialorder %v2571, 0.0
      %vm3087 = vcmp.gt.f32.partialorder %v3021, 0.0
      %vm3088 = vcmp.gt.f32.partialorder %v3023, 0.0
      %v3089 = vmul.f32 %v2495, 0.2
      %v3090 = vmul.f32 %v2497, 0.2
      %v3091 = vmul.f32 %v2947, 0.2
      %v3092 = vmul.f32 %v2949, 0.2
      %v3093 = vmul.f32 %v2499, 0.2
      %v3094 = vmul.f32 %v2501, 0.2
      %v3095 = vmul.f32 %v2951, 0.2
      %v3096 = vmul.f32 %v2953, 0.2
      %v3097 = vmul.f32 %v2505, 0.2
      %v3098 = vmul.f32 %v2507, 0.2
      %v3099 = vmul.f32 %v2957, 0.2
      %v3100 = vmul.f32 %v2959, 0.2
      %v3101 = vmul.f32 %v2509, 0.2
      %v3102 = vmul.f32 %v2511, 0.2
      %v3103 = vmul.f32 %v2961, 0.2
      %v3104 = vmul.f32 %v2963, 0.2
      %v3105 = vmul.f32 %v2515, 0.2
      %v3106 = vmul.f32 %v2517, 0.2
      %v3107 = vmul.f32 %v2967, 0.2
      %v3108 = vmul.f32 %v2969, 0.2
      %v3109 = vmul.f32 %v2519, 0.2
      %v3110 = vmul.f32 %v2521, 0.2
      %v3111 = vmul.f32 %v2971, 0.2
      %v3112 = vmul.f32 %v2973, 0.2
      %v3113 = vmul.f32 %v2525, 0.2
      %v3114 = vmul.f32 %v2527, 0.2
      %v3115 = vmul.f32 %v2977, 0.2
      %v3116 = vmul.f32 %v2979, 0.2
      %v3117 = vmul.f32 %v2529, 0.2
      %v3118 = vmul.f32 %v2531, 0.2
      %v3119 = vmul.f32 %v2981, 0.2
      %v3120 = vmul.f32 %v2983, 0.2
      %v3121 = vmul.f32 %v2535, 0.2
      %v3122 = vmul.f32 %v2537, 0.2
      %v3123 = vmul.f32 %v2987, 0.2
      %v3124 = vmul.f32 %v2989, 0.2
      %v3125 = vmul.f32 %v2539, 0.2
      %v3126 = vmul.f32 %v2541, 0.2
      %v3127 = vmul.f32 %v2991, 0.2
      %v3128 = vmul.f32 %v2993, 0.2
      %v3129 = vmul.f32 %v2545, 0.2
      %v3130 = vmul.f32 %v2547, 0.2
      %v3131 = vmul.f32 %v2997, 0.2
      %v3132 = vmul.f32 %v2999, 0.2
      %v3133 = vmul.f32 %v2549, 0.2
      %v3134 = vmul.f32 %v2551, 0.2
      %v3135 = vmul.f32 %v3001, 0.2
      %v3136 = vmul.f32 %v3003, 0.2
      %v3137 = vmul.f32 %v2555, 0.2
      %v3138 = vmul.f32 %v2557, 0.2
      %v3139 = vmul.f32 %v3007, 0.2
      %v3140 = vmul.f32 %v3009, 0.2
      %v3141 = vmul.f32 %v2559, 0.2
      %v3142 = vmul.f32 %v2561, 0.2
      %v3143 = vmul.f32 %v3011, 0.2
      %v3144 = vmul.f32 %v3013, 0.2
      %v3145 = vmul.f32 %v2565, 0.2
      %v3146 = vmul.f32 %v2567, 0.2
      %v3147 = vmul.f32 %v3017, 0.2
      %v3148 = vmul.f32 %v3019, 0.2
      %v3149 = vmul.f32 %v2569, 0.2
      %v3150 = vmul.f32 %v2571, 0.2
      %v3151 = vmul.f32 %v3021, 0.2
      %v3152 = vmul.f32 %v3023, 0.2
      %v3153 = vsel %vm3025, %v2495, %v3089
      %v3154 = vsel %vm3026, %v2497, %v3090
      %v3155 = vsel %vm3027, %v2947, %v3091
      %v3156 = vsel %vm3028, %v2949, %v3092
      %v3157 = vsel %vm3029, %v2499, %v3093
      %v3158 = vsel %vm3030, %v2501, %v3094
      %v3159 = vsel %vm3031, %v2951, %v3095
      %v3160 = vsel %vm3032, %v2953, %v3096
      %v3161 = vsel %vm3033, %v2505, %v3097
      %v3162 = vsel %vm3034, %v2507, %v3098
      %v3163 = vsel %vm3035, %v2957, %v3099
      %v3164 = vsel %vm3036, %v2959, %v3100
      %v3165 = vsel %vm3037, %v2509, %v3101
      %v3166 = vsel %vm3038, %v2511, %v3102
      %v3167 = vsel %vm3039, %v2961, %v3103
      %v3168 = vsel %vm3040, %v2963, %v3104
      %v3169 = vsel %vm3041, %v2515, %v3105
      %v3170 = vsel %vm3042, %v2517, %v3106
      %v3171 = vsel %vm3043, %v2967, %v3107
      %v3172 = vsel %vm3044, %v2969, %v3108
      %v3173 = vsel %vm3045, %v2519, %v3109
      %v3174 = vsel %vm3046, %v2521, %v3110
      %v3175 = vsel %vm3047, %v2971, %v3111
      %v3176 = vsel %vm3048, %v2973, %v3112
      %v3177 = vsel %vm3049, %v2525, %v3113
      %v3178 = vsel %vm3050, %v2527, %v3114
      %v3179 = vsel %vm3051, %v2977, %v3115
      %v3180 = vsel %vm3052, %v2979, %v3116
      %v3181 = vsel %vm3053, %v2529, %v3117
      %v3182 = vsel %vm3054, %v2531, %v3118
      %v3183 = vsel %vm3055, %v2981, %v3119
      %v3184 = vsel %vm3056, %v2983, %v3120
      %v3185 = vsel %vm3057, %v2535, %v3121
      %v3186 = vsel %vm3058, %v2537, %v3122
      %v3187 = vsel %vm3059, %v2987, %v3123
      %v3188 = vsel %vm3060, %v2989, %v3124
      %v3189 = vsel %vm3061, %v2539, %v3125
      %v3190 = vsel %vm3062, %v2541, %v3126
      %v3191 = vsel %vm3063, %v2991, %v3127
      %v3192 = vsel %vm3064, %v2993, %v3128
      %v3193 = vsel %vm3065, %v2545, %v3129
      %v3194 = vsel %vm3066, %v2547, %v3130
      %v3195 = vsel %vm3067, %v2997, %v3131
      %v3196 = vsel %vm3068, %v2999, %v3132
      %v3197 = vsel %vm3069, %v2549, %v3133
      %v3198 = vsel %vm3070, %v2551, %v3134
      %v3199 = vsel %vm3071, %v3001, %v3135
      %v3200 = vsel %vm3072, %v3003, %v3136
      %v3201 = vsel %vm3073, %v2555, %v3137
      %v3202 = vsel %vm3074, %v2557, %v3138
      %v3203 = vsel %vm3075, %v3007, %v3139
      %v3204 = vsel %vm3076, %v3009, %v3140
      %v3205 = vsel %vm3077, %v2559, %v3141
      %v3206 = vsel %vm3078, %v2561, %v3142
      %v3207 = vsel %vm3079, %v3011, %v3143
      %v3208 = vsel %vm3080, %v3013, %v3144
      %v3209 = vsel %vm3081, %v2565, %v3145
      %v3210 = vsel %vm3082, %v2567, %v3146
      %v3211 = vsel %vm3083, %v3017, %v3147
      %v3212 = vsel %vm3084, %v3019, %v3148
      %v3213 = vsel %vm3085, %v2569, %v3149
      %v3214 = vsel %vm3086, %v2571, %v3150
      %v3215 = vsel %vm3087, %v3021, %v3151
      %v3216 = vsel %vm3088, %v3023, %v3152
      %v3217 = vpack.c.bf16 %v3157, %v3153
      %v3218 = vpack.c.bf16 %v3158, %v3154
      %v3219 = vpack.c.bf16 %v3159, %v3155
      %v3220 = vpack.c.bf16 %v3160, %v3156
      %v3221 = vpack.c.bf16 %v3165, %v3161
      %v3222 = vpack.c.bf16 %v3166, %v3162
      %v3223 = vpack.c.bf16 %v3167, %v3163
      %v3224 = vpack.c.bf16 %v3168, %v3164
      %v3225 = vpack.c.bf16 %v3173, %v3169
      %v3226 = vpack.c.bf16 %v3174, %v3170
      %v3227 = vpack.c.bf16 %v3175, %v3171
      %v3228 = vpack.c.bf16 %v3176, %v3172
      %v3229 = vpack.c.bf16 %v3181, %v3177
      %v3230 = vpack.c.bf16 %v3182, %v3178
      %v3231 = vpack.c.bf16 %v3183, %v3179
      %v3232 = vpack.c.bf16 %v3184, %v3180
      %v3233 = vpack.c.bf16 %v3189, %v3185
      %v3234 = vpack.c.bf16 %v3190, %v3186
      %v3235 = vpack.c.bf16 %v3191, %v3187
      %v3236 = vpack.c.bf16 %v3192, %v3188
      %v3237 = vpack.c.bf16 %v3197, %v3193
      %v3238 = vpack.c.bf16 %v3198, %v3194
      %v3239 = vpack.c.bf16 %v3199, %v3195
      %v3240 = vpack.c.bf16 %v3200, %v3196
      %v3241 = vpack.c.bf16 %v3205, %v3201
      %v3242 = vpack.c.bf16 %v3206, %v3202
      %v3243 = vpack.c.bf16 %v3207, %v3203
      %v3244 = vpack.c.bf16 %v3208, %v3204
      %v3245 = vpack.c.bf16 %v3213, %v3209
      %v3246 = vpack.c.bf16 %v3214, %v3210
      %v3247 = vpack.c.bf16 %v3215, %v3211
      %v3248 = vpack.c.bf16 %v3216, %v3212
      %v3249 = vld [vmem:[%s4] sm:$0xff]
      %v3250 = vld [vmem:[%s4 + $0x8] sm:$0xff]
      %v3251 = vld [vmem:[%s4 + $0x10] sm:$0xff]
      %v3252 = vld [vmem:[%s4 + $0x18] sm:$0xff]
      %v3253 = vld [vmem:[%s4 + $0x20] sm:$0xff]
      %v3254 = vld [vmem:[%s4 + $0x28] sm:$0xff]
      %v3255 = vld [vmem:[%s4 + $0x30] sm:$0xff]
      %v3256 = vld [vmem:[%s4 + $0x38] sm:$0xff]
      %v3257 = vld [vmem:[%s4 + $0x40] sm:$0xff]
      %v3258 = vld [vmem:[%s4 + $0x48] sm:$0xff]
      %v3259 = vld [vmem:[%s4 + $0x50] sm:$0xff]
      %v3260 = vld [vmem:[%s4 + $0x58] sm:$0xff]
      %v3261 = vld [vmem:[%s4 + $0x60] sm:$0xff]
      %v3262 = vld [vmem:[%s4 + $0x68] sm:$0xff]
      %v3263 = vld [vmem:[%s4 + $0x70] sm:$0xff]
      %v3264 = vld [vmem:[%s4 + $0x78] sm:$0xff]
      %v3265 = vld [vmem:[%s4 + $0x80] sm:$0xff]
      %v3266 = vld [vmem:[%s4 + $0x88] sm:$0xff]
      %v3267 = vld [vmem:[%s4 + $0x90] sm:$0xff]
      %v3268 = vld [vmem:[%s4 + $0x98] sm:$0xff]
      %v3269 = vld [vmem:[%s4 + $0xa0] sm:$0xff]
      %v3270 = vld [vmem:[%s4 + $0xa8] sm:$0xff]
      %v3271 = vld [vmem:[%s4 + $0xb0] sm:$0xff]
      %v3272 = vld [vmem:[%s4 + $0xb8] sm:$0xff]
      %v3273 = vld [vmem:[%s4 + $0xc0] sm:$0xff]
      %v3274 = vld [vmem:[%s4 + $0xc8] sm:$0xff]
      %v3275 = vld [vmem:[%s4 + $0xd0] sm:$0xff]
      %v3276 = vld [vmem:[%s4 + $0xd8] sm:$0xff]
      %v3277 = vld [vmem:[%s4 + $0xe0] sm:$0xff]
      %v3278 = vld [vmem:[%s4 + $0xe8] sm:$0xff]
      %v3279 = vld [vmem:[%s4 + $0xf0] sm:$0xff]
      %v3280 = vld [vmem:[%s4 + $0xf8] sm:$0xff]
      %v3281 = vld [vmem:[%s4 + $0x100] sm:$0xff]
      %v3282 = vld [vmem:[%s4 + $0x108] sm:$0xff]
      %v3283 = vld [vmem:[%s4 + $0x110] sm:$0xff]
      %v3284 = vld [vmem:[%s4 + $0x118] sm:$0xff]
      %v3285 = vld [vmem:[%s4 + $0x120] sm:$0xff]
      %v3286 = vld [vmem:[%s4 + $0x128] sm:$0xff]
      %v3287 = vld [vmem:[%s4 + $0x130] sm:$0xff]
      %v3288 = vld [vmem:[%s4 + $0x138] sm:$0xff]
      %v3289 = vld [vmem:[%s4 + $0x140] sm:$0xff]
      %v3290 = vld [vmem:[%s4 + $0x148] sm:$0xff]
      %v3291 = vld [vmem:[%s4 + $0x150] sm:$0xff]
      %v3292 = vld [vmem:[%s4 + $0x158] sm:$0xff]
      %v3293 = vld [vmem:[%s4 + $0x160] sm:$0xff]
      %v3294 = vld [vmem:[%s4 + $0x168] sm:$0xff]
      %v3295 = vld [vmem:[%s4 + $0x170] sm:$0xff]
      %v3296 = vld [vmem:[%s4 + $0x178] sm:$0xff]
      %v3297 = vld [vmem:[%s4 + $0x180] sm:$0xff]
      %v3298 = vld [vmem:[%s4 + $0x188] sm:$0xff]
      %v3299 = vld [vmem:[%s4 + $0x190] sm:$0xff]
      %v3300 = vld [vmem:[%s4 + $0x198] sm:$0xff]
      %v3301 = vld [vmem:[%s4 + $0x1a0] sm:$0xff]
      %v3302 = vld [vmem:[%s4 + $0x1a8] sm:$0xff]
      %v3303 = vld [vmem:[%s4 + $0x1b0] sm:$0xff]
      %v3304 = vld [vmem:[%s4 + $0x1b8] sm:$0xff]
      %v3305 = vld [vmem:[%s4 + $0x1c0] sm:$0xff]
      %v3306 = vld [vmem:[%s4 + $0x1c8] sm:$0xff]
      %v3307 = vld [vmem:[%s4 + $0x1d0] sm:$0xff]
      %v3308 = vld [vmem:[%s4 + $0x1d8] sm:$0xff]
      %v3309 = vld [vmem:[%s4 + $0x1e0] sm:$0xff]
      %v3310 = vld [vmem:[%s4 + $0x1e8] sm:$0xff]
      %v3311 = vld [vmem:[%s4 + $0x1f0] sm:$0xff]
      %v3312 = vld [vmem:[%s4 + $0x1f8] sm:$0xff]
      %v3313 = vld [vmem:[%s4 + $0x200] sm:$0xff]
      %v3314 = vld [vmem:[%s4 + $0x208] sm:$0xff]
      %v3315 = vld [vmem:[%s4 + $0x210] sm:$0xff]
      %v3316 = vld [vmem:[%s4 + $0x218] sm:$0xff]
      %v3317 = vld [vmem:[%s4 + $0x220] sm:$0xff]
      %v3318 = vld [vmem:[%s4 + $0x228] sm:$0xff]
      %v3319 = vld [vmem:[%s4 + $0x230] sm:$0xff]
      %v3320 = vld [vmem:[%s4 + $0x238] sm:$0xff]
      %v3321 = vld [vmem:[%s4 + $0x240] sm:$0xff]
      %v3322 = vld [vmem:[%s4 + $0x248] sm:$0xff]
      %v3323 = vld [vmem:[%s4 + $0x250] sm:$0xff]
      %v3324 = vld [vmem:[%s4 + $0x258] sm:$0xff]
      %v3325 = vld [vmem:[%s4 + $0x260] sm:$0xff]
      %v3326 = vld [vmem:[%s4 + $0x268] sm:$0xff]
      %v3327 = vld [vmem:[%s4 + $0x270] sm:$0xff]
      %v3328 = vld [vmem:[%s4 + $0x278] sm:$0xff]
      %v3329 = vld [vmem:[%s4 + $0x280] sm:$0xff]
      %v3330 = vld [vmem:[%s4 + $0x288] sm:$0xff]
      %v3331 = vld [vmem:[%s4 + $0x290] sm:$0xff]
      %v3332 = vld [vmem:[%s4 + $0x298] sm:$0xff]
      %v3333 = vld [vmem:[%s4 + $0x2a0] sm:$0xff]
      %v3334 = vld [vmem:[%s4 + $0x2a8] sm:$0xff]
      %v3335 = vld [vmem:[%s4 + $0x2b0] sm:$0xff]
      %v3336 = vld [vmem:[%s4 + $0x2b8] sm:$0xff]
      %v3337 = vld [vmem:[%s4 + $0x2c0] sm:$0xff]
      %v3338 = vld [vmem:[%s4 + $0x2c8] sm:$0xff]
      %v3339 = vld [vmem:[%s4 + $0x2d0] sm:$0xff]
      %v3340 = vld [vmem:[%s4 + $0x2d8] sm:$0xff]
      %v3341 = vld [vmem:[%s4 + $0x2e0] sm:$0xff]
      %v3342 = vld [vmem:[%s4 + $0x2e8] sm:$0xff]
      %v3343 = vld [vmem:[%s4 + $0x2f0] sm:$0xff]
      %v3344 = vld [vmem:[%s4 + $0x2f8] sm:$0xff]
      %v3345 = vld [vmem:[%s4 + $0x300] sm:$0xff]
      %v3346 = vld [vmem:[%s4 + $0x308] sm:$0xff]
      %v3347 = vld [vmem:[%s4 + $0x310] sm:$0xff]
      %v3348 = vld [vmem:[%s4 + $0x318] sm:$0xff]
      %v3349 = vld [vmem:[%s4 + $0x320] sm:$0xff]
      %v3350 = vld [vmem:[%s4 + $0x328] sm:$0xff]
      %v3351 = vld [vmem:[%s4 + $0x330] sm:$0xff]
      %v3352 = vld [vmem:[%s4 + $0x338] sm:$0xff]
      %v3353 = vld [vmem:[%s4 + $0x340] sm:$0xff]
      %v3354 = vld [vmem:[%s4 + $0x348] sm:$0xff]
      %v3355 = vld [vmem:[%s4 + $0x350] sm:$0xff]
      %v3356 = vld [vmem:[%s4 + $0x358] sm:$0xff]
      %v3357 = vld [vmem:[%s4 + $0x360] sm:$0xff]
      %v3358 = vld [vmem:[%s4 + $0x368] sm:$0xff]
      %v3359 = vld [vmem:[%s4 + $0x370] sm:$0xff]
      %v3360 = vld [vmem:[%s4 + $0x378] sm:$0xff]
      %v3361 = vld [vmem:[%s4 + $0x380] sm:$0xff]
      %v3362 = vld [vmem:[%s4 + $0x388] sm:$0xff]
      %v3363 = vld [vmem:[%s4 + $0x390] sm:$0xff]
      %v3364 = vld [vmem:[%s4 + $0x398] sm:$0xff]
      %v3365 = vld [vmem:[%s4 + $0x3a0] sm:$0xff]
      %v3366 = vld [vmem:[%s4 + $0x3a8] sm:$0xff]
      %v3367 = vld [vmem:[%s4 + $0x3b0] sm:$0xff]
      %v3368 = vld [vmem:[%s4 + $0x3b8] sm:$0xff]
      %v3369 = vld [vmem:[%s4 + $0x3c0] sm:$0xff]
      %v3370 = vld [vmem:[%s4 + $0x3c8] sm:$0xff]
      %v3371 = vld [vmem:[%s4 + $0x3d0] sm:$0xff]
      %v3372 = vld [vmem:[%s4 + $0x3d8] sm:$0xff]
      %v3373 = vld [vmem:[%s4 + $0x3e0] sm:$0xff]
      %v3374 = vld [vmem:[%s4 + $0x3e8] sm:$0xff]
      %v3375 = vld [vmem:[%s4 + $0x3f0] sm:$0xff]
      %v3376 = vld [vmem:[%s4 + $0x3f8] sm:$0xff]
      %v3377 = vld [vmem:[%s5] sm:$0xf]
      %v3379 = vlaneseq
      %v3380 = vshrl.u32 %v3379, 7
      %v3381 = vsub.s32 0, %v3380
      %v3382 = vrot.slane %v3377, %v3381
      %v3383 = vlaneseq
      %v3384 = vshrl.u32 %v3383, 7
      %v3385 = vsub.s32 1, %v3384
      %v3386 = vrot.slane %v3377, %v3385
      %v3387 = vlaneseq
      %v3388 = vshrl.u32 %v3387, 7
      %v3389 = vsub.s32 2, %v3388
      %v3390 = vrot.slane %v3377, %v3389
      %v3391 = vlaneseq
      %v3392 = vshrl.u32 %v3391, 7
      %v3393 = vsub.s32 3, %v3392
      %v3394 = vrot.slane %v3377, %v3393
      %v3527 = vunpack.c.l.b16 %v3249
      %v3528 = vunpack.c.h.b16 %v3249
      %v3529 = vunpack.c.l.b16 %v3250
      %v3530 = vunpack.c.h.b16 %v3250
      %v3531 = vunpack.c.l.b16 %v3251
      %v3532 = vunpack.c.h.b16 %v3251
      %v3533 = vunpack.c.l.b16 %v3252
      %v3534 = vunpack.c.h.b16 %v3252
      %v3535 = vunpack.c.l.b16 %v3253
      %v3536 = vunpack.c.h.b16 %v3253
      %v3537 = vunpack.c.l.b16 %v3254
      %v3538 = vunpack.c.h.b16 %v3254
      %v3539 = vunpack.c.l.b16 %v3255
      %v3540 = vunpack.c.h.b16 %v3255
      %v3541 = vunpack.c.l.b16 %v3256
      %v3542 = vunpack.c.h.b16 %v3256
      %v3543 = vunpack.c.l.b16 %v3257
      %v3544 = vunpack.c.h.b16 %v3257
      %v3545 = vunpack.c.l.b16 %v3258
      %v3546 = vunpack.c.h.b16 %v3258
      %v3547 = vunpack.c.l.b16 %v3259
      %v3548 = vunpack.c.h.b16 %v3259
      %v3549 = vunpack.c.l.b16 %v3260
      %v3550 = vunpack.c.h.b16 %v3260
      %v3551 = vunpack.c.l.b16 %v3261
      %v3552 = vunpack.c.h.b16 %v3261
      %v3553 = vunpack.c.l.b16 %v3262
      %v3554 = vunpack.c.h.b16 %v3262
      %v3555 = vunpack.c.l.b16 %v3263
      %v3556 = vunpack.c.h.b16 %v3263
      %v3557 = vunpack.c.l.b16 %v3264
      %v3558 = vunpack.c.h.b16 %v3264
      %v3559 = vunpack.c.l.b16 %v3265
      %v3560 = vunpack.c.h.b16 %v3265
      %v3561 = vunpack.c.l.b16 %v3266
      %v3562 = vunpack.c.h.b16 %v3266
      %v3563 = vunpack.c.l.b16 %v3267
      %v3564 = vunpack.c.h.b16 %v3267
      %v3565 = vunpack.c.l.b16 %v3268
      %v3566 = vunpack.c.h.b16 %v3268
      %v3567 = vunpack.c.l.b16 %v3269
      %v3568 = vunpack.c.h.b16 %v3269
      %v3569 = vunpack.c.l.b16 %v3270
      %v3570 = vunpack.c.h.b16 %v3270
      %v3571 = vunpack.c.l.b16 %v3271
      %v3572 = vunpack.c.h.b16 %v3271
      %v3573 = vunpack.c.l.b16 %v3272
      %v3574 = vunpack.c.h.b16 %v3272
      %v3575 = vunpack.c.l.b16 %v3273
      %v3576 = vunpack.c.h.b16 %v3273
      %v3577 = vunpack.c.l.b16 %v3274
      %v3578 = vunpack.c.h.b16 %v3274
      %v3579 = vunpack.c.l.b16 %v3275
      %v3580 = vunpack.c.h.b16 %v3275
      %v3581 = vunpack.c.l.b16 %v3276
      %v3582 = vunpack.c.h.b16 %v3276
      %v3583 = vunpack.c.l.b16 %v3277
      %v3584 = vunpack.c.h.b16 %v3277
      %v3585 = vunpack.c.l.b16 %v3278
      %v3586 = vunpack.c.h.b16 %v3278
      %v3587 = vunpack.c.l.b16 %v3279
      %v3588 = vunpack.c.h.b16 %v3279
      %v3589 = vunpack.c.l.b16 %v3280
      %v3590 = vunpack.c.h.b16 %v3280
      %v3591 = vunpack.c.l.b16 %v3281
      %v3592 = vunpack.c.h.b16 %v3281
      %v3593 = vunpack.c.l.b16 %v3282
      %v3594 = vunpack.c.h.b16 %v3282
      %v3595 = vunpack.c.l.b16 %v3283
      %v3596 = vunpack.c.h.b16 %v3283
      %v3597 = vunpack.c.l.b16 %v3284
      %v3598 = vunpack.c.h.b16 %v3284
      %v3599 = vunpack.c.l.b16 %v3285
      %v3600 = vunpack.c.h.b16 %v3285
      %v3601 = vunpack.c.l.b16 %v3286
      %v3602 = vunpack.c.h.b16 %v3286
      %v3603 = vunpack.c.l.b16 %v3287
      %v3604 = vunpack.c.h.b16 %v3287
      %v3605 = vunpack.c.l.b16 %v3288
      %v3606 = vunpack.c.h.b16 %v3288
      %v3607 = vunpack.c.l.b16 %v3289
      %v3608 = vunpack.c.h.b16 %v3289
      %v3609 = vunpack.c.l.b16 %v3290
      %v3610 = vunpack.c.h.b16 %v3290
      %v3611 = vunpack.c.l.b16 %v3291
      %v3612 = vunpack.c.h.b16 %v3291
      %v3613 = vunpack.c.l.b16 %v3292
      %v3614 = vunpack.c.h.b16 %v3292
      %v3615 = vunpack.c.l.b16 %v3293
      %v3616 = vunpack.c.h.b16 %v3293
      %v3617 = vunpack.c.l.b16 %v3294
      %v3618 = vunpack.c.h.b16 %v3294
      %v3619 = vunpack.c.l.b16 %v3295
      %v3620 = vunpack.c.h.b16 %v3295
      %v3621 = vunpack.c.l.b16 %v3296
      %v3622 = vunpack.c.h.b16 %v3296
      %v3623 = vunpack.c.l.b16 %v3297
      %v3624 = vunpack.c.h.b16 %v3297
      %v3625 = vunpack.c.l.b16 %v3298
      %v3626 = vunpack.c.h.b16 %v3298
      %v3627 = vunpack.c.l.b16 %v3299
      %v3628 = vunpack.c.h.b16 %v3299
      %v3629 = vunpack.c.l.b16 %v3300
      %v3630 = vunpack.c.h.b16 %v3300
      %v3631 = vunpack.c.l.b16 %v3301
      %v3632 = vunpack.c.h.b16 %v3301
      %v3633 = vunpack.c.l.b16 %v3302
      %v3634 = vunpack.c.h.b16 %v3302
      %v3635 = vunpack.c.l.b16 %v3303
      %v3636 = vunpack.c.h.b16 %v3303
      %v3637 = vunpack.c.l.b16 %v3304
      %v3638 = vunpack.c.h.b16 %v3304
      %v3639 = vunpack.c.l.b16 %v3305
      %v3640 = vunpack.c.h.b16 %v3305
      %v3641 = vunpack.c.l.b16 %v3306
      %v3642 = vunpack.c.h.b16 %v3306
      %v3643 = vunpack.c.l.b16 %v3307
      %v3644 = vunpack.c.h.b16 %v3307
      %v3645 = vunpack.c.l.b16 %v3308
      %v3646 = vunpack.c.h.b16 %v3308
      %v3647 = vunpack.c.l.b16 %v3309
      %v3648 = vunpack.c.h.b16 %v3309
      %v3649 = vunpack.c.l.b16 %v3310
      %v3650 = vunpack.c.h.b16 %v3310
      %v3651 = vunpack.c.l.b16 %v3311
      %v3652 = vunpack.c.h.b16 %v3311
      %v3653 = vunpack.c.l.b16 %v3312
      %v3654 = vunpack.c.h.b16 %v3312
      %v3655 = vunpack.c.l.b16 %v3313
      %v3656 = vunpack.c.h.b16 %v3313
      %v3657 = vunpack.c.l.b16 %v3314
      %v3658 = vunpack.c.h.b16 %v3314
      %v3659 = vunpack.c.l.b16 %v3315
      %v3660 = vunpack.c.h.b16 %v3315
      %v3661 = vunpack.c.l.b16 %v3316
      %v3662 = vunpack.c.h.b16 %v3316
      %v3663 = vunpack.c.l.b16 %v3317
      %v3664 = vunpack.c.h.b16 %v3317
      %v3665 = vunpack.c.l.b16 %v3318
      %v3666 = vunpack.c.h.b16 %v3318
      %v3667 = vunpack.c.l.b16 %v3319
      %v3668 = vunpack.c.h.b16 %v3319
      %v3669 = vunpack.c.l.b16 %v3320
      %v3670 = vunpack.c.h.b16 %v3320
      %v3671 = vunpack.c.l.b16 %v3321
      %v3672 = vunpack.c.h.b16 %v3321
      %v3673 = vunpack.c.l.b16 %v3322
      %v3674 = vunpack.c.h.b16 %v3322
      %v3675 = vunpack.c.l.b16 %v3323
      %v3676 = vunpack.c.h.b16 %v3323
      %v3677 = vunpack.c.l.b16 %v3324
      %v3678 = vunpack.c.h.b16 %v3324
      %v3679 = vunpack.c.l.b16 %v3325
      %v3680 = vunpack.c.h.b16 %v3325
      %v3681 = vunpack.c.l.b16 %v3326
      %v3682 = vunpack.c.h.b16 %v3326
      %v3683 = vunpack.c.l.b16 %v3327
      %v3684 = vunpack.c.h.b16 %v3327
      %v3685 = vunpack.c.l.b16 %v3328
      %v3686 = vunpack.c.h.b16 %v3328
      %v3687 = vunpack.c.l.b16 %v3329
      %v3688 = vunpack.c.h.b16 %v3329
      %v3689 = vunpack.c.l.b16 %v3330
      %v3690 = vunpack.c.h.b16 %v3330
      %v3691 = vunpack.c.l.b16 %v3331
      %v3692 = vunpack.c.h.b16 %v3331
      %v3693 = vunpack.c.l.b16 %v3332
      %v3694 = vunpack.c.h.b16 %v3332
      %v3695 = vunpack.c.l.b16 %v3333
      %v3696 = vunpack.c.h.b16 %v3333
      %v3697 = vunpack.c.l.b16 %v3334
      %v3698 = vunpack.c.h.b16 %v3334
      %v3699 = vunpack.c.l.b16 %v3335
      %v3700 = vunpack.c.h.b16 %v3335
      %v3701 = vunpack.c.l.b16 %v3336
      %v3702 = vunpack.c.h.b16 %v3336
      %v3703 = vunpack.c.l.b16 %v3337
      %v3704 = vunpack.c.h.b16 %v3337
      %v3705 = vunpack.c.l.b16 %v3338
      %v3706 = vunpack.c.h.b16 %v3338
      %v3707 = vunpack.c.l.b16 %v3339
      %v3708 = vunpack.c.h.b16 %v3339
      %v3709 = vunpack.c.l.b16 %v3340
      %v3710 = vunpack.c.h.b16 %v3340
      %v3711 = vunpack.c.l.b16 %v3341
      %v3712 = vunpack.c.h.b16 %v3341
      %v3713 = vunpack.c.l.b16 %v3342
      %v3714 = vunpack.c.h.b16 %v3342
      %v3715 = vunpack.c.l.b16 %v3343
      %v3716 = vunpack.c.h.b16 %v3343
      %v3717 = vunpack.c.l.b16 %v3344
      %v3718 = vunpack.c.h.b16 %v3344
      %v3719 = vunpack.c.l.b16 %v3345
      %v3720 = vunpack.c.h.b16 %v3345
      %v3721 = vunpack.c.l.b16 %v3346
      %v3722 = vunpack.c.h.b16 %v3346
      %v3723 = vunpack.c.l.b16 %v3347
      %v3724 = vunpack.c.h.b16 %v3347
      %v3725 = vunpack.c.l.b16 %v3348
      %v3726 = vunpack.c.h.b16 %v3348
      %v3727 = vunpack.c.l.b16 %v3349
      %v3728 = vunpack.c.h.b16 %v3349
      %v3729 = vunpack.c.l.b16 %v3350
      %v3730 = vunpack.c.h.b16 %v3350
      %v3731 = vunpack.c.l.b16 %v3351
      %v3732 = vunpack.c.h.b16 %v3351
      %v3733 = vunpack.c.l.b16 %v3352
      %v3734 = vunpack.c.h.b16 %v3352
      %v3735 = vunpack.c.l.b16 %v3353
      %v3736 = vunpack.c.h.b16 %v3353
      %v3737 = vunpack.c.l.b16 %v3354
      %v3738 = vunpack.c.h.b16 %v3354
      %v3739 = vunpack.c.l.b16 %v3355
      %v3740 = vunpack.c.h.b16 %v3355
      %v3741 = vunpack.c.l.b16 %v3356
      %v3742 = vunpack.c.h.b16 %v3356
      %v3743 = vunpack.c.l.b16 %v3357
      %v3744 = vunpack.c.h.b16 %v3357
      %v3745 = vunpack.c.l.b16 %v3358
      %v3746 = vunpack.c.h.b16 %v3358
      %v3747 = vunpack.c.l.b16 %v3359
      %v3748 = vunpack.c.h.b16 %v3359
      %v3749 = vunpack.c.l.b16 %v3360
      %v3750 = vunpack.c.h.b16 %v3360
      %v3751 = vunpack.c.l.b16 %v3361
      %v3752 = vunpack.c.h.b16 %v3361
      %v3753 = vunpack.c.l.b16 %v3362
      %v3754 = vunpack.c.h.b16 %v3362
      %v3755 = vunpack.c.l.b16 %v3363
      %v3756 = vunpack.c.h.b16 %v3363
      %v3757 = vunpack.c.l.b16 %v3364
      %v3758 = vunpack.c.h.b16 %v3364
      %v3759 = vunpack.c.l.b16 %v3365
      %v3760 = vunpack.c.h.b16 %v3365
      %v3761 = vunpack.c.l.b16 %v3366
      %v3762 = vunpack.c.h.b16 %v3366
      %v3763 = vunpack.c.l.b16 %v3367
      %v3764 = vunpack.c.h.b16 %v3367
      %v3765 = vunpack.c.l.b16 %v3368
      %v3766 = vunpack.c.h.b16 %v3368
      %v3767 = vunpack.c.l.b16 %v3369
      %v3768 = vunpack.c.h.b16 %v3369
      %v3769 = vunpack.c.l.b16 %v3370
      %v3770 = vunpack.c.h.b16 %v3370
      %v3771 = vunpack.c.l.b16 %v3371
      %v3772 = vunpack.c.h.b16 %v3371
      %v3773 = vunpack.c.l.b16 %v3372
      %v3774 = vunpack.c.h.b16 %v3372
      %v3775 = vunpack.c.l.b16 %v3373
      %v3776 = vunpack.c.h.b16 %v3373
      %v3777 = vunpack.c.l.b16 %v3374
      %v3778 = vunpack.c.h.b16 %v3374
      %v3779 = vunpack.c.l.b16 %v3375
      %v3780 = vunpack.c.h.b16 %v3375
      %v3781 = vunpack.c.l.b16 %v3376
      %v3782 = vunpack.c.h.b16 %v3376
      %v3783 = vpack.c.b16 %v3531, %v3527
      %v3784 = vpack.c.b16 %v3532, %v3528
      %v3785 = vpack.c.b16 %v3533, %v3529
      %v3786 = vpack.c.b16 %v3534, %v3530
      %v3787 = vpack.c.b16 %v3539, %v3535
      %v3788 = vpack.c.b16 %v3540, %v3536
      %v3789 = vpack.c.b16 %v3541, %v3537
      %v3790 = vpack.c.b16 %v3542, %v3538
      %v3791 = vpack.c.b16 %v3547, %v3543
      %v3792 = vpack.c.b16 %v3548, %v3544
      %v3793 = vpack.c.b16 %v3549, %v3545
      %v3794 = vpack.c.b16 %v3550, %v3546
      %v3795 = vpack.c.b16 %v3555, %v3551
      %v3796 = vpack.c.b16 %v3556, %v3552
      %v3797 = vpack.c.b16 %v3557, %v3553
      %v3798 = vpack.c.b16 %v3558, %v3554
      %v3799 = vpack.c.b16 %v3563, %v3559
      %v3800 = vpack.c.b16 %v3564, %v3560
      %v3801 = vpack.c.b16 %v3565, %v3561
      %v3802 = vpack.c.b16 %v3566, %v3562
      %v3803 = vpack.c.b16 %v3571, %v3567
      %v3804 = vpack.c.b16 %v3572, %v3568
      %v3805 = vpack.c.b16 %v3573, %v3569
      %v3806 = vpack.c.b16 %v3574, %v3570
      %v3807 = vpack.c.b16 %v3579, %v3575
      %v3808 = vpack.c.b16 %v3580, %v3576
      %v3809 = vpack.c.b16 %v3581, %v3577
      %v3810 = vpack.c.b16 %v3582, %v3578
      %v3811 = vpack.c.b16 %v3587, %v3583
      %v3812 = vpack.c.b16 %v3588, %v3584
      %v3813 = vpack.c.b16 %v3589, %v3585
      %v3814 = vpack.c.b16 %v3590, %v3586
      %v3815 = vpack.c.b16 %v3595, %v3591
      %v3816 = vpack.c.b16 %v3596, %v3592
      %v3817 = vpack.c.b16 %v3597, %v3593
      %v3818 = vpack.c.b16 %v3598, %v3594
      %v3819 = vpack.c.b16 %v3603, %v3599
      %v3820 = vpack.c.b16 %v3604, %v3600
      %v3821 = vpack.c.b16 %v3605, %v3601
      %v3822 = vpack.c.b16 %v3606, %v3602
      %v3823 = vpack.c.b16 %v3611, %v3607
      %v3824 = vpack.c.b16 %v3612, %v3608
      %v3825 = vpack.c.b16 %v3613, %v3609
      %v3826 = vpack.c.b16 %v3614, %v3610
      %v3827 = vpack.c.b16 %v3619, %v3615
      %v3828 = vpack.c.b16 %v3620, %v3616
      %v3829 = vpack.c.b16 %v3621, %v3617
      %v3830 = vpack.c.b16 %v3622, %v3618
      %v3831 = vpack.c.b16 %v3627, %v3623
      %v3832 = vpack.c.b16 %v3628, %v3624
      %v3833 = vpack.c.b16 %v3629, %v3625
      %v3834 = vpack.c.b16 %v3630, %v3626
      %v3835 = vpack.c.b16 %v3635, %v3631
      %v3836 = vpack.c.b16 %v3636, %v3632
      %v3837 = vpack.c.b16 %v3637, %v3633
      %v3838 = vpack.c.b16 %v3638, %v3634
      %v3839 = vpack.c.b16 %v3643, %v3639
      %v3840 = vpack.c.b16 %v3644, %v3640
      %v3841 = vpack.c.b16 %v3645, %v3641
      %v3842 = vpack.c.b16 %v3646, %v3642
      %v3843 = vpack.c.b16 %v3651, %v3647
      %v3844 = vpack.c.b16 %v3652, %v3648
      %v3845 = vpack.c.b16 %v3653, %v3649
      %v3846 = vpack.c.b16 %v3654, %v3650
      %v3847 = vpack.c.b16 %v3659, %v3655
      %v3848 = vpack.c.b16 %v3660, %v3656
      %v3849 = vpack.c.b16 %v3661, %v3657
      %v3850 = vpack.c.b16 %v3662, %v3658
      %v3851 = vpack.c.b16 %v3667, %v3663
      %v3852 = vpack.c.b16 %v3668, %v3664
      %v3853 = vpack.c.b16 %v3669, %v3665
      %v3854 = vpack.c.b16 %v3670, %v3666
      %v3855 = vpack.c.b16 %v3675, %v3671
      %v3856 = vpack.c.b16 %v3676, %v3672
      %v3857 = vpack.c.b16 %v3677, %v3673
      %v3858 = vpack.c.b16 %v3678, %v3674
      %v3859 = vpack.c.b16 %v3683, %v3679
      %v3860 = vpack.c.b16 %v3684, %v3680
      %v3861 = vpack.c.b16 %v3685, %v3681
      %v3862 = vpack.c.b16 %v3686, %v3682
      %v3863 = vpack.c.b16 %v3691, %v3687
      %v3864 = vpack.c.b16 %v3692, %v3688
      %v3865 = vpack.c.b16 %v3693, %v3689
      %v3866 = vpack.c.b16 %v3694, %v3690
      %v3867 = vpack.c.b16 %v3699, %v3695
      %v3868 = vpack.c.b16 %v3700, %v3696
      %v3869 = vpack.c.b16 %v3701, %v3697
      %v3870 = vpack.c.b16 %v3702, %v3698
      %v3871 = vpack.c.b16 %v3707, %v3703
      %v3872 = vpack.c.b16 %v3708, %v3704
      %v3873 = vpack.c.b16 %v3709, %v3705
      %v3874 = vpack.c.b16 %v3710, %v3706
      %v3875 = vpack.c.b16 %v3715, %v3711
      %v3876 = vpack.c.b16 %v3716, %v3712
      %v3877 = vpack.c.b16 %v3717, %v3713
      %v3878 = vpack.c.b16 %v3718, %v3714
      %v3879 = vpack.c.b16 %v3723, %v3719
      %v3880 = vpack.c.b16 %v3724, %v3720
      %v3881 = vpack.c.b16 %v3725, %v3721
      %v3882 = vpack.c.b16 %v3726, %v3722
      %v3883 = vpack.c.b16 %v3731, %v3727
      %v3884 = vpack.c.b16 %v3732, %v3728
      %v3885 = vpack.c.b16 %v3733, %v3729
      %v3886 = vpack.c.b16 %v3734, %v3730
      %v3887 = vpack.c.b16 %v3739, %v3735
      %v3888 = vpack.c.b16 %v3740, %v3736
      %v3889 = vpack.c.b16 %v3741, %v3737
      %v3890 = vpack.c.b16 %v3742, %v3738
      %v3891 = vpack.c.b16 %v3747, %v3743
      %v3892 = vpack.c.b16 %v3748, %v3744
      %v3893 = vpack.c.b16 %v3749, %v3745
      %v3894 = vpack.c.b16 %v3750, %v3746
      %v3895 = vpack.c.b16 %v3755, %v3751
      %v3896 = vpack.c.b16 %v3756, %v3752
      %v3897 = vpack.c.b16 %v3757, %v3753
      %v3898 = vpack.c.b16 %v3758, %v3754
      %v3899 = vpack.c.b16 %v3763, %v3759
      %v3900 = vpack.c.b16 %v3764, %v3760
      %v3901 = vpack.c.b16 %v3765, %v3761
      %v3902 = vpack.c.b16 %v3766, %v3762
      %v3903 = vpack.c.b16 %v3771, %v3767
      %v3904 = vpack.c.b16 %v3772, %v3768
      %v3905 = vpack.c.b16 %v3773, %v3769
      %v3906 = vpack.c.b16 %v3774, %v3770
      %v3907 = vpack.c.b16 %v3779, %v3775
      %v3908 = vpack.c.b16 %v3780, %v3776
      %v3909 = vpack.c.b16 %v3781, %v3777
      %v3910 = vpack.c.b16 %v3782, %v3778
      %4039 = vmatprep.subr.bf16.mxu0 %v3784
      %4040 = vmatpush1.bf16.msra.mxu0 %v3783
      %4041 = vmatprep.subr.bf16.mxu0 %v3788
      %4042 = vmatpush1.bf16.msra.mxu0 %v3787
      %4043 = vmatprep.subr.bf16.mxu0 %v3792
      %4044 = vmatpush1.bf16.msra.mxu0 %v3791
      %4045 = vmatprep.subr.bf16.mxu0 %v3796
      %4046 = vmatpush1.bf16.msra.mxu0 %v3795
      %4047 = vmatprep.subr.bf16.mxu0 %v3800
      %4048 = vmatpush1.bf16.msra.mxu0 %v3799
      %4049 = vmatprep.subr.bf16.mxu0 %v3804
      %4050 = vmatpush1.bf16.msra.mxu0 %v3803
      %4051 = vmatprep.subr.bf16.mxu0 %v3808
      %4052 = vmatpush1.bf16.msra.mxu0 %v3807
      %4053 = vmatprep.subr.bf16.mxu0 %v3812
      %4054 = vmatpush1.bf16.msra.mxu0 %v3811
      %4055 = vmatprep.subr.bf16.mxu0 %v3816
      %4056 = vmatpush1.bf16.msra.mxu0 %v3815
      %4057 = vmatprep.subr.bf16.mxu0 %v3820
      %4058 = vmatpush1.bf16.msra.mxu0 %v3819
      %4059 = vmatprep.subr.bf16.mxu0 %v3824
      %4060 = vmatpush1.bf16.msra.mxu0 %v3823
      %4061 = vmatprep.subr.bf16.mxu0 %v3828
      %4062 = vmatpush1.bf16.msra.mxu0 %v3827
      %4063 = vmatprep.subr.bf16.mxu0 %v3832
      %4064 = vmatpush1.bf16.msra.mxu0 %v3831
      %4065 = vmatprep.subr.bf16.mxu0 %v3836
      %4066 = vmatpush1.bf16.msra.mxu0 %v3835
      %4067 = vmatprep.subr.bf16.mxu0 %v3840
      %4068 = vmatpush1.bf16.msra.mxu0 %v3839
      %4069 = vmatprep.subr.bf16.mxu0 %v3844
      %4070 = vmatpush1.bf16.msra.mxu0 %v3843
      %4071 = vmatprep.mubr.bf16.mxu0 %v3218
      %4072 = vmatmul.mubr.bf16.gmra.mrb[0].mxu0 %v3217
      %v4073 = vpop.f32.mrb[0].mxu0
      %v4074 = vadd.f32 %v3382, %v4073
      %v4075 = vpop.f32.mrb[0].mxu0
      %v4076 = vadd.f32 %v3386, %v4075
      %v4077 = vpop.f32.mrb[0].mxu0
      %v4078 = vadd.f32 %v3382, %v4077
      %v4079 = vpop.f32.mrb[0].mxu0
      %v4080 = vadd.f32 %v3386, %v4079
      %4081 = vmatprep.mubr.bf16.mxu0 %v3222
      %4082 = vmatmul.mubr.bf16.gmra.mrb[0].mxu0 %v3221
      %v4083 = vpop.f32.mrb[0].mxu0
      %v4084 = vadd.f32 %v3382, %v4083
      %v4085 = vpop.f32.mrb[0].mxu0
      %v4086 = vadd.f32 %v3386, %v4085
      %v4087 = vpop.f32.mrb[0].mxu0
      %v4088 = vadd.f32 %v3382, %v4087
      %v4089 = vpop.f32.mrb[0].mxu0
      %v4090 = vadd.f32 %v3386, %v4089
      %4091 = vmatprep.mubr.bf16.mxu0 %v3226
      %4092 = vmatmul.mubr.bf16.gmra.mrb[0].mxu0 %v3225
      %v4093 = vpop.f32.mrb[0].mxu0
      %v4094 = vadd.f32 %v3382, %v4093
      %v4095 = vpop.f32.mrb[0].mxu0
      %v4096 = vadd.f32 %v3386, %v4095
      %v4097 = vpop.f32.mrb[0].mxu0
      %v4098 = vadd.f32 %v3382, %v4097
      %v4099 = vpop.f32.mrb[0].mxu0
      %v4100 = vadd.f32 %v3386, %v4099
      %4101 = vmatprep.mubr.bf16.mxu0 %v3230
      %4102 = vmatmul.mubr.bf16.gmra.mrb[0].mxu0 %v3229
      %v4103 = vpop.f32.mrb[0].mxu0
      %v4104 = vadd.f32 %v3382, %v4103
      %v4105 = vpop.f32.mrb[0].mxu0
      %v4106 = vadd.f32 %v3386, %v4105
      %v4107 = vpop.f32.mrb[0].mxu0
      %v4108 = vadd.f32 %v3382, %v4107
      %v4109 = vpop.f32.mrb[0].mxu0
      %v4110 = vadd.f32 %v3386, %v4109
      %4111 = vmatprep.mubr.bf16.mxu0 %v3234
      %4112 = vmatmul.mubr.bf16.gmra.mrb[0].mxu0 %v3233
      %v4113 = vpop.f32.mrb[0].mxu0
      %v4114 = vadd.f32 %v3382, %v4113
      %v4115 = vpop.f32.mrb[0].mxu0
      %v4116 = vadd.f32 %v3386, %v4115
      %v4117 = vpop.f32.mrb[0].mxu0
      %v4118 = vadd.f32 %v3382, %v4117
      %v4119 = vpop.f32.mrb[0].mxu0
      %v4120 = vadd.f32 %v3386, %v4119
      %4121 = vmatprep.mubr.bf16.mxu0 %v3238
      %4122 = vmatmul.mubr.bf16.gmra.mrb[0].mxu0 %v3237
      %v4123 = vpop.f32.mrb[0].mxu0
      %v4124 = vadd.f32 %v3382, %v4123
      %v4125 = vpop.f32.mrb[0].mxu0
      %v4126 = vadd.f32 %v3386, %v4125
      %v4127 = vpop.f32.mrb[0].mxu0
      %v4128 = vadd.f32 %v3382, %v4127
      %v4129 = vpop.f32.mrb[0].mxu0
      %v4130 = vadd.f32 %v3386, %v4129
      %4131 = vmatprep.mubr.bf16.mxu0 %v3242
      %4132 = vmatmul.mubr.bf16.gmra.mrb[0].mxu0 %v3241
      %v4133 = vpop.f32.mrb[0].mxu0
      %v4134 = vadd.f32 %v3382, %v4133
      %v4135 = vpop.f32.mrb[0].mxu0
      %v4136 = vadd.f32 %v3386, %v4135
      %v4137 = vpop.f32.mrb[0].mxu0
      %v4138 = vadd.f32 %v3382, %v4137
      %v4139 = vpop.f32.mrb[0].mxu0
      %v4140 = vadd.f32 %v3386, %v4139
      %4141 = vmatprep.mubr.bf16.mxu0 %v3246
      %4142 = vmatmul.mubr.bf16.gmra.mrb[0].mxu0 %v3245
      %v4143 = vpop.f32.mrb[0].mxu0
      %v4144 = vadd.f32 %v3382, %v4143
      %v4145 = vpop.f32.mrb[0].mxu0
      %v4146 = vadd.f32 %v3386, %v4145
      %v4147 = vpop.f32.mrb[0].mxu0
      %v4148 = vadd.f32 %v3382, %v4147
      %v4149 = vpop.f32.mrb[0].mxu0
      %v4150 = vadd.f32 %v3386, %v4149
      %4151 = vdwg.mxu0
      %4152 = vmatprep.subr.bf16.mxu0 %v3848
      %4153 = vmatpush1.bf16.msra.mxu0 %v3847
      %4154 = vmatprep.subr.bf16.mxu0 %v3852
      %4155 = vmatpush1.bf16.msra.mxu0 %v3851
      %4156 = vmatprep.subr.bf16.mxu0 %v3856
      %4157 = vmatpush1.bf16.msra.mxu0 %v3855
      %4158 = vmatprep.subr.bf16.mxu0 %v3860
      %4159 = vmatpush1.bf16.msra.mxu0 %v3859
      %4160 = vmatprep.subr.bf16.mxu0 %v3864
      %4161 = vmatpush1.bf16.msra.mxu0 %v3863
      %4162 = vmatprep.subr.bf16.mxu0 %v3868
      %4163 = vmatpush1.bf16.msra.mxu0 %v3867
      %4164 = vmatprep.subr.bf16.mxu0 %v3872
      %4165 = vmatpush1.bf16.msra.mxu0 %v3871
      %4166 = vmatprep.subr.bf16.mxu0 %v3876
      %4167 = vmatpush1.bf16.msra.mxu0 %v3875
      %4168 = vmatprep.subr.bf16.mxu0 %v3880
      %4169 = vmatpush1.bf16.msra.mxu0 %v3879
      %4170 = vmatprep.subr.bf16.mxu0 %v3884
      %4171 = vmatpush1.bf16.msra.mxu0 %v3883
      %4172 = vmatprep.subr.bf16.mxu0 %v3888
      %4173 = vmatpush1.bf16.msra.mxu0 %v3887
      %4174 = vmatprep.subr.bf16.mxu0 %v3892
      %4175 = vmatpush1.bf16.msra.mxu0 %v3891
      %4176 = vmatprep.subr.bf16.mxu0 %v3896
      %4177 = vmatpush1.bf16.msra.mxu0 %v3895
      %4178 = vmatprep.subr.bf16.mxu0 %v3900
      %4179 = vmatpush1.bf16.msra.mxu0 %v3899
      %4180 = vmatprep.subr.bf16.mxu0 %v3904
      %4181 = vmatpush1.bf16.msra.mxu0 %v3903
      %4182 = vmatprep.subr.bf16.mxu0 %v3908
      %4183 = vmatpush1.bf16.msra.mxu0 %v3907
      %4184 = vmatprep.mubr.bf16.mxu0 %v3220
      %4185 = vmatmul.mubr.bf16.gmra.mrb[0].mxu0 %v3219
      %v4186 = vpop.f32.mrb[0].mxu0
      %v4187 = vadd.f32 %v4074, %v4186
      %v4188 = vpop.f32.mrb[0].mxu0
      %v4189 = vadd.f32 %v4076, %v4188
      %v4190 = vpop.f32.mrb[0].mxu0
      %v4191 = vadd.f32 %v4078, %v4190
      %v4192 = vpop.f32.mrb[0].mxu0
      %v4193 = vadd.f32 %v4080, %v4192
      %4194 = vmatprep.mubr.bf16.mxu0 %v3224
      %4195 = vmatmul.mubr.bf16.gmra.mrb[0].mxu0 %v3223
      %v4196 = vpop.f32.mrb[0].mxu0
      %v4197 = vadd.f32 %v4084, %v4196
      %v4198 = vpop.f32.mrb[0].mxu0
      %v4199 = vadd.f32 %v4086, %v4198
      %v4200 = vpop.f32.mrb[0].mxu0
      %v4201 = vadd.f32 %v4088, %v4200
      %v4202 = vpop.f32.mrb[0].mxu0
      %v4203 = vadd.f32 %v4090, %v4202
      %4204 = vmatprep.mubr.bf16.mxu0 %v3228
      %4205 = vmatmul.mubr.bf16.gmra.mrb[0].mxu0 %v3227
      %v4206 = vpop.f32.mrb[0].mxu0
      %v4207 = vadd.f32 %v4094, %v4206
      %v4208 = vpop.f32.mrb[0].mxu0
      %v4209 = vadd.f32 %v4096, %v4208
      %v4210 = vpop.f32.mrb[0].mxu0
      %v4211 = vadd.f32 %v4098, %v4210
      %v4212 = vpop.f32.mrb[0].mxu0
      %v4213 = vadd.f32 %v4100, %v4212
      %4214 = vmatprep.mubr.bf16.mxu0 %v3232
      %4215 = vmatmul.mubr.bf16.gmra.mrb[0].mxu0 %v3231
      %v4216 = vpop.f32.mrb[0].mxu0
      %v4217 = vadd.f32 %v4104, %v4216
      %v4218 = vpop.f32.mrb[0].mxu0
      %v4219 = vadd.f32 %v4106, %v4218
      %v4220 = vpop.f32.mrb[0].mxu0
      %v4221 = vadd.f32 %v4108, %v4220
      %v4222 = vpop.f32.mrb[0].mxu0
      %v4223 = vadd.f32 %v4110, %v4222
      %4224 = vmatprep.mubr.bf16.mxu0 %v3236
      %4225 = vmatmul.mubr.bf16.gmra.mrb[0].mxu0 %v3235
      %v4226 = vpop.f32.mrb[0].mxu0
      %v4227 = vadd.f32 %v4114, %v4226
      %v4228 = vpop.f32.mrb[0].mxu0
      %v4229 = vadd.f32 %v4116, %v4228
      %v4230 = vpop.f32.mrb[0].mxu0
      %v4231 = vadd.f32 %v4118, %v4230
      %v4232 = vpop.f32.mrb[0].mxu0
      %v4233 = vadd.f32 %v4120, %v4232
      %4234 = vmatprep.mubr.bf16.mxu0 %v3240
      %4235 = vmatmul.mubr.bf16.gmra.mrb[0].mxu0 %v3239
      %v4236 = vpop.f32.mrb[0].mxu0
      %v4237 = vadd.f32 %v4124, %v4236
      %v4238 = vpop.f32.mrb[0].mxu0
      %v4239 = vadd.f32 %v4126, %v4238
      %v4240 = vpop.f32.mrb[0].mxu0
      %v4241 = vadd.f32 %v4128, %v4240
      %v4242 = vpop.f32.mrb[0].mxu0
      %v4243 = vadd.f32 %v4130, %v4242
      %4244 = vmatprep.mubr.bf16.mxu0 %v3244
      %4245 = vmatmul.mubr.bf16.gmra.mrb[0].mxu0 %v3243
      %v4246 = vpop.f32.mrb[0].mxu0
      %v4247 = vadd.f32 %v4134, %v4246
      %v4248 = vpop.f32.mrb[0].mxu0
      %v4249 = vadd.f32 %v4136, %v4248
      %v4250 = vpop.f32.mrb[0].mxu0
      %v4251 = vadd.f32 %v4138, %v4250
      %v4252 = vpop.f32.mrb[0].mxu0
      %v4253 = vadd.f32 %v4140, %v4252
      %4254 = vmatprep.mubr.bf16.mxu0 %v3248
      %4255 = vmatmul.mubr.bf16.gmra.mrb[0].mxu0 %v3247
      %v4256 = vpop.f32.mrb[0].mxu0
      %v4257 = vadd.f32 %v4144, %v4256
      %v4258 = vpop.f32.mrb[0].mxu0
      %v4259 = vadd.f32 %v4146, %v4258
      %v4260 = vpop.f32.mrb[0].mxu0
      %v4261 = vadd.f32 %v4148, %v4260
      %v4262 = vpop.f32.mrb[0].mxu0
      %v4263 = vadd.f32 %v4150, %v4262
      %4264 = vdwg.mxu0
      %4265 = vmatprep.subr.bf16.mxu0 %v3786
      %4266 = vmatpush1.bf16.msra.mxu0 %v3785
      %4267 = vmatprep.subr.bf16.mxu0 %v3790
      %4268 = vmatpush1.bf16.msra.mxu0 %v3789
      %4269 = vmatprep.subr.bf16.mxu0 %v3794
      %4270 = vmatpush1.bf16.msra.mxu0 %v3793
      %4271 = vmatprep.subr.bf16.mxu0 %v3798
      %4272 = vmatpush1.bf16.msra.mxu0 %v3797
      %4273 = vmatprep.subr.bf16.mxu0 %v3802
      %4274 = vmatpush1.bf16.msra.mxu0 %v3801
      %4275 = vmatprep.subr.bf16.mxu0 %v3806
      %4276 = vmatpush1.bf16.msra.mxu0 %v3805
      %4277 = vmatprep.subr.bf16.mxu0 %v3810
      %4278 = vmatpush1.bf16.msra.mxu0 %v3809
      %4279 = vmatprep.subr.bf16.mxu0 %v3814
      %4280 = vmatpush1.bf16.msra.mxu0 %v3813
      %4281 = vmatprep.subr.bf16.mxu0 %v3818
      %4282 = vmatpush1.bf16.msra.mxu0 %v3817
      %4283 = vmatprep.subr.bf16.mxu0 %v3822
      %4284 = vmatpush1.bf16.msra.mxu0 %v3821
      %4285 = vmatprep.subr.bf16.mxu0 %v3826
      %4286 = vmatpush1.bf16.msra.mxu0 %v3825
      %4287 = vmatprep.subr.bf16.mxu0 %v3830
      %4288 = vmatpush1.bf16.msra.mxu0 %v3829
      %4289 = vmatprep.subr.bf16.mxu0 %v3834
      %4290 = vmatpush1.bf16.msra.mxu0 %v3833
      %4291 = vmatprep.subr.bf16.mxu0 %v3838
      %4292 = vmatpush1.bf16.msra.mxu0 %v3837
      %4293 = vmatprep.subr.bf16.mxu0 %v3842
      %4294 = vmatpush1.bf16.msra.mxu0 %v3841
      %4295 = vmatprep.subr.bf16.mxu0 %v3846
      %4296 = vmatpush1.bf16.msra.mxu0 %v3845
      %4297 = vmatprep.mubr.bf16.mxu0 %v3218
      %4298 = vmatmul.mubr.bf16.gmra.mrb[0].mxu0 %v3217
      %v4299 = vpop.f32.mrb[0].mxu0
      %v4300 = vadd.f32 %v3390, %v4299
      %v4301 = vpop.f32.mrb[0].mxu0
      %v4302 = vadd.f32 %v3394, %v4301
      %v4303 = vpop.f32.mrb[0].mxu0
      %v4304 = vadd.f32 %v3390, %v4303
      %v4305 = vpop.f32.mrb[0].mxu0
      %v4306 = vadd.f32 %v3394, %v4305
      %4307 = vmatprep.mubr.bf16.mxu0 %v3222
      %4308 = vmatmul.mubr.bf16.gmra.mrb[0].mxu0 %v3221
      %v4309 = vpop.f32.mrb[0].mxu0
      %v4310 = vadd.f32 %v3390, %v4309
      %v4311 = vpop.f32.mrb[0].mxu0
      %v4312 = vadd.f32 %v3394, %v4311
      %v4313 = vpop.f32.mrb[0].mxu0
      %v4314 = vadd.f32 %v3390, %v4313
      %v4315 = vpop.f32.mrb[0].mxu0
      %v4316 = vadd.f32 %v3394, %v4315
      %4317 = vmatprep.mubr.bf16.mxu0 %v3226
      %4318 = vmatmul.mubr.bf16.gmra.mrb[0].mxu0 %v3225
      %v4319 = vpop.f32.mrb[0].mxu0
      %v4320 = vadd.f32 %v3390, %v4319
      %v4321 = vpop.f32.mrb[0].mxu0
      %v4322 = vadd.f32 %v3394, %v4321
      %v4323 = vpop.f32.mrb[0].mxu0
      %v4324 = vadd.f32 %v3390, %v4323
      %v4325 = vpop.f32.mrb[0].mxu0
      %v4326 = vadd.f32 %v3394, %v4325
      %4327 = vmatprep.mubr.bf16.mxu0 %v3230
      %4328 = vmatmul.mubr.bf16.gmra.mrb[0].mxu0 %v3229
      %v4329 = vpop.f32.mrb[0].mxu0
      %v4330 = vadd.f32 %v3390, %v4329
      %v4331 = vpop.f32.mrb[0].mxu0
      %v4332 = vadd.f32 %v3394, %v4331
      %v4333 = vpop.f32.mrb[0].mxu0
      %v4334 = vadd.f32 %v3390, %v4333
      %v4335 = vpop.f32.mrb[0].mxu0
      %v4336 = vadd.f32 %v3394, %v4335
      %4337 = vmatprep.mubr.bf16.mxu0 %v3234
      %4338 = vmatmul.mubr.bf16.gmra.mrb[0].mxu0 %v3233
      %v4339 = vpop.f32.mrb[0].mxu0
      %v4340 = vadd.f32 %v3390, %v4339
      %v4341 = vpop.f32.mrb[0].mxu0
      %v4342 = vadd.f32 %v3394, %v4341
      %v4343 = vpop.f32.mrb[0].mxu0
      %v4344 = vadd.f32 %v3390, %v4343
      %v4345 = vpop.f32.mrb[0].mxu0
      %v4346 = vadd.f32 %v3394, %v4345
      %4347 = vmatprep.mubr.bf16.mxu0 %v3238
      %4348 = vmatmul.mubr.bf16.gmra.mrb[0].mxu0 %v3237
      %v4349 = vpop.f32.mrb[0].mxu0
      %v4350 = vadd.f32 %v3390, %v4349
      %v4351 = vpop.f32.mrb[0].mxu0
      %v4352 = vadd.f32 %v3394, %v4351
      %v4353 = vpop.f32.mrb[0].mxu0
      %v4354 = vadd.f32 %v3390, %v4353
      %v4355 = vpop.f32.mrb[0].mxu0
      %v4356 = vadd.f32 %v3394, %v4355
      %4357 = vmatprep.mubr.bf16.mxu0 %v3242
      %4358 = vmatmul.mubr.bf16.gmra.mrb[0].mxu0 %v3241
      %v4359 = vpop.f32.mrb[0].mxu0
      %v4360 = vadd.f32 %v3390, %v4359
      %v4361 = vpop.f32.mrb[0].mxu0
      %v4362 = vadd.f32 %v3394, %v4361
      %v4363 = vpop.f32.mrb[0].mxu0
      %v4364 = vadd.f32 %v3390, %v4363
      %v4365 = vpop.f32.mrb[0].mxu0
      %v4366 = vadd.f32 %v3394, %v4365
      %4367 = vmatprep.mubr.bf16.mxu0 %v3246
      %4368 = vmatmul.mubr.bf16.gmra.mrb[0].mxu0 %v3245
      %v4369 = vpop.f32.mrb[0].mxu0
      %v4370 = vadd.f32 %v3390, %v4369
      %v4371 = vpop.f32.mrb[0].mxu0
      %v4372 = vadd.f32 %v3394, %v4371
      %v4373 = vpop.f32.mrb[0].mxu0
      %v4374 = vadd.f32 %v3390, %v4373
      %v4375 = vpop.f32.mrb[0].mxu0
      %v4376 = vadd.f32 %v3394, %v4375
      %4377 = vdwg.mxu0
      %4378 = vmatprep.subr.bf16.mxu0 %v3850
      %4379 = vmatpush1.bf16.msra.mxu0 %v3849
      %4380 = vmatprep.subr.bf16.mxu0 %v3854
      %4381 = vmatpush1.bf16.msra.mxu0 %v3853
      %4382 = vmatprep.subr.bf16.mxu0 %v3858
      %4383 = vmatpush1.bf16.msra.mxu0 %v3857
      %4384 = vmatprep.subr.bf16.mxu0 %v3862
      %4385 = vmatpush1.bf16.msra.mxu0 %v3861
      %4386 = vmatprep.subr.bf16.mxu0 %v3866
      %4387 = vmatpush1.bf16.msra.mxu0 %v3865
      %4388 = vmatprep.subr.bf16.mxu0 %v3870
      %4389 = vmatpush1.bf16.msra.mxu0 %v3869
      %4390 = vmatprep.subr.bf16.mxu0 %v3874
      %4391 = vmatpush1.bf16.msra.mxu0 %v3873
      %4392 = vmatprep.subr.bf16.mxu0 %v3878
      %4393 = vmatpush1.bf16.msra.mxu0 %v3877
      %4394 = vmatprep.subr.bf16.mxu0 %v3882
      %4395 = vmatpush1.bf16.msra.mxu0 %v3881
      %4396 = vmatprep.subr.bf16.mxu0 %v3886
      %4397 = vmatpush1.bf16.msra.mxu0 %v3885
      %4398 = vmatprep.subr.bf16.mxu0 %v3890
      %4399 = vmatpush1.bf16.msra.mxu0 %v3889
      %4400 = vmatprep.subr.bf16.mxu0 %v3894
      %4401 = vmatpush1.bf16.msra.mxu0 %v3893
      %4402 = vmatprep.subr.bf16.mxu0 %v3898
      %4403 = vmatpush1.bf16.msra.mxu0 %v3897
      %4404 = vmatprep.subr.bf16.mxu0 %v3902
      %4405 = vmatpush1.bf16.msra.mxu0 %v3901
      %4406 = vmatprep.subr.bf16.mxu0 %v3906
      %4407 = vmatpush1.bf16.msra.mxu0 %v3905
      %4408 = vmatprep.subr.bf16.mxu0 %v3910
      %4409 = vmatpush1.bf16.msra.mxu0 %v3909
      %4410 = vmatprep.mubr.bf16.mxu0 %v3220
      %4411 = vmatmul.mubr.bf16.gmra.mrb[0].mxu0 %v3219
      %v4412 = vpop.f32.mrb[0].mxu0
      %v4413 = vadd.f32 %v4300, %v4412
      %v4414 = vpop.f32.mrb[0].mxu0
      %v4415 = vadd.f32 %v4302, %v4414
      %v4416 = vpop.f32.mrb[0].mxu0
      %v4417 = vadd.f32 %v4304, %v4416
      %v4418 = vpop.f32.mrb[0].mxu0
      %v4419 = vadd.f32 %v4306, %v4418
      %4420 = vmatprep.mubr.bf16.mxu0 %v3224
      %4421 = vmatmul.mubr.bf16.gmra.mrb[0].mxu0 %v3223
      %v4422 = vpop.f32.mrb[0].mxu0
      %v4423 = vadd.f32 %v4310, %v4422
      %v4424 = vpop.f32.mrb[0].mxu0
      %v4425 = vadd.f32 %v4312, %v4424
      %v4426 = vpop.f32.mrb[0].mxu0
      %v4427 = vadd.f32 %v4314, %v4426
      %v4428 = vpop.f32.mrb[0].mxu0
      %v4429 = vadd.f32 %v4316, %v4428
      %4430 = vmatprep.mubr.bf16.mxu0 %v3228
      %4431 = vmatmul.mubr.bf16.gmra.mrb[0].mxu0 %v3227
      %v4432 = vpop.f32.mrb[0].mxu0
      %v4433 = vadd.f32 %v4320, %v4432
      %v4434 = vpop.f32.mrb[0].mxu0
      %v4435 = vadd.f32 %v4322, %v4434
      %v4436 = vpop.f32.mrb[0].mxu0
      %v4437 = vadd.f32 %v4324, %v4436
      %v4438 = vpop.f32.mrb[0].mxu0
      %v4439 = vadd.f32 %v4326, %v4438
      %4440 = vmatprep.mubr.bf16.mxu0 %v3232
      %4441 = vmatmul.mubr.bf16.gmra.mrb[0].mxu0 %v3231
      %v4442 = vpop.f32.mrb[0].mxu0
      %v4443 = vadd.f32 %v4330, %v4442
      %v4444 = vpop.f32.mrb[0].mxu0
      %v4445 = vadd.f32 %v4332, %v4444
      %v4446 = vpop.f32.mrb[0].mxu0
      %v4447 = vadd.f32 %v4334, %v4446
      %v4448 = vpop.f32.mrb[0].mxu0
      %v4449 = vadd.f32 %v4336, %v4448
      %4450 = vmatprep.mubr.bf16.mxu0 %v3236
      %4451 = vmatmul.mubr.bf16.gmra.mrb[0].mxu0 %v3235
      %v4452 = vpop.f32.mrb[0].mxu0
      %v4453 = vadd.f32 %v4340, %v4452
      %v4454 = vpop.f32.mrb[0].mxu0
      %v4455 = vadd.f32 %v4342, %v4454
      %v4456 = vpop.f32.mrb[0].mxu0
      %v4457 = vadd.f32 %v4344, %v4456
      %v4458 = vpop.f32.mrb[0].mxu0
      %v4459 = vadd.f32 %v4346, %v4458
      %4460 = vmatprep.mubr.bf16.mxu0 %v3240
      %4461 = vmatmul.mubr.bf16.gmra.mrb[0].mxu0 %v3239
      %v4462 = vpop.f32.mrb[0].mxu0
      %v4463 = vadd.f32 %v4350, %v4462
      %v4464 = vpop.f32.mrb[0].mxu0
      %v4465 = vadd.f32 %v4352, %v4464
      %v4466 = vpop.f32.mrb[0].mxu0
      %v4467 = vadd.f32 %v4354, %v4466
      %v4468 = vpop.f32.mrb[0].mxu0
      %v4469 = vadd.f32 %v4356, %v4468
      %4470 = vmatprep.mubr.bf16.mxu0 %v3244
      %4471 = vmatmul.mubr.bf16.gmra.mrb[0].mxu0 %v3243
      %v4472 = vpop.f32.mrb[0].mxu0
      %v4473 = vadd.f32 %v4360, %v4472
      %v4474 = vpop.f32.mrb[0].mxu0
      %v4475 = vadd.f32 %v4362, %v4474
      %v4476 = vpop.f32.mrb[0].mxu0
      %v4477 = vadd.f32 %v4364, %v4476
      %v4478 = vpop.f32.mrb[0].mxu0
      %v4479 = vadd.f32 %v4366, %v4478
      %4480 = vmatprep.mubr.bf16.mxu0 %v3248
      %4481 = vmatmul.mubr.bf16.gmra.mrb[0].mxu0 %v3247
      %v4482 = vpop.f32.mrb[0].mxu0
      %v4483 = vadd.f32 %v4370, %v4482
      %v4484 = vpop.f32.mrb[0].mxu0
      %v4485 = vadd.f32 %v4372, %v4484
      %v4486 = vpop.f32.mrb[0].mxu0
      %v4487 = vadd.f32 %v4374, %v4486
      %v4488 = vpop.f32.mrb[0].mxu0
      %v4489 = vadd.f32 %v4376, %v4488
      %4490 = vdwg.mxu0
      %vm4491 = vcmp.gt.f32.partialorder %v4187, 0.0
      %vm4492 = vcmp.gt.f32.partialorder %v4189, 0.0
      %vm4493 = vcmp.gt.f32.partialorder %v4413, 0.0
      %vm4494 = vcmp.gt.f32.partialorder %v4415, 0.0
      %vm4495 = vcmp.gt.f32.partialorder %v4191, 0.0
      %vm4496 = vcmp.gt.f32.partialorder %v4193, 0.0
      %vm4497 = vcmp.gt.f32.partialorder %v4417, 0.0
      %vm4498 = vcmp.gt.f32.partialorder %v4419, 0.0
      %vm4499 = vcmp.gt.f32.partialorder %v4197, 0.0
      %vm4500 = vcmp.gt.f32.partialorder %v4199, 0.0
      %vm4501 = vcmp.gt.f32.partialorder %v4423, 0.0
      %vm4502 = vcmp.gt.f32.partialorder %v4425, 0.0
      %vm4503 = vcmp.gt.f32.partialorder %v4201, 0.0
      %vm4504 = vcmp.gt.f32.partialorder %v4203, 0.0
      %vm4505 = vcmp.gt.f32.partialorder %v4427, 0.0
      %vm4506 = vcmp.gt.f32.partialorder %v4429, 0.0
      %vm4507 = vcmp.gt.f32.partialorder %v4207, 0.0
      %vm4508 = vcmp.gt.f32.partialorder %v4209, 0.0
      %vm4509 = vcmp.gt.f32.partialorder %v4433, 0.0
      %vm4510 = vcmp.gt.f32.partialorder %v4435, 0.0
      %vm4511 = vcmp.gt.f32.partialorder %v4211, 0.0
      %vm4512 = vcmp.gt.f32.partialorder %v4213, 0.0
      %vm4513 = vcmp.gt.f32.partialorder %v4437, 0.0
      %vm4514 = vcmp.gt.f32.partialorder %v4439, 0.0
      %vm4515 = vcmp.gt.f32.partialorder %v4217, 0.0
      %vm4516 = vcmp.gt.f32.partialorder %v4219, 0.0
      %vm4517 = vcmp.gt.f32.partialorder %v4443, 0.0
      %vm4518 = vcmp.gt.f32.partialorder %v4445, 0.0
      %vm4519 = vcmp.gt.f32.partialorder %v4221, 0.0
      %vm4520 = vcmp.gt.f32.partialorder %v4223, 0.0
      %vm4521 = vcmp.gt.f32.partialorder %v4447, 0.0
      %vm4522 = vcmp.gt.f32.partialorder %v4449, 0.0
      %vm4523 = vcmp.gt.f32.partialorder %v4227, 0.0
      %vm4524 = vcmp.gt.f32.partialorder %v4229, 0.0
      %vm4525 = vcmp.gt.f32.partialorder %v4453, 0.0
      %vm4526 = vcmp.gt.f32.partialorder %v4455, 0.0
      %vm4527 = vcmp.gt.f32.partialorder %v4231, 0.0
      %vm4528 = vcmp.gt.f32.partialorder %v4233, 0.0
      %vm4529 = vcmp.gt.f32.partialorder %v4457, 0.0
      %vm4530 = vcmp.gt.f32.partialorder %v4459, 0.0
      %vm4531 = vcmp.gt.f32.partialorder %v4237, 0.0
      %vm4532 = vcmp.gt.f32.partialorder %v4239, 0.0
      %vm4533 = vcmp.gt.f32.partialorder %v4463, 0.0
      %vm4534 = vcmp.gt.f32.partialorder %v4465, 0.0
      %vm4535 = vcmp.gt.f32.partialorder %v4241, 0.0
      %vm4536 = vcmp.gt.f32.partialorder %v4243, 0.0
      %vm4537 = vcmp.gt.f32.partialorder %v4467, 0.0
      %vm4538 = vcmp.gt.f32.partialorder %v4469, 0.0
      %vm4539 = vcmp.gt.f32.partialorder %v4247, 0.0
      %vm4540 = vcmp.gt.f32.partialorder %v4249, 0.0
      %vm4541 = vcmp.gt.f32.partialorder %v4473, 0.0
      %vm4542 = vcmp.gt.f32.partialorder %v4475, 0.0
      %vm4543 = vcmp.gt.f32.partialorder %v4251, 0.0
      %vm4544 = vcmp.gt.f32.partialorder %v4253, 0.0
      %vm4545 = vcmp.gt.f32.partialorder %v4477, 0.0
      %vm4546 = vcmp.gt.f32.partialorder %v4479, 0.0
      %vm4547 = vcmp.gt.f32.partialorder %v4257, 0.0
      %vm4548 = vcmp.gt.f32.partialorder %v4259, 0.0
      %vm4549 = vcmp.gt.f32.partialorder %v4483, 0.0
      %vm4550 = vcmp.gt.f32.partialorder %v4485, 0.0
      %vm4551 = vcmp.gt.f32.partialorder %v4261, 0.0
      %vm4552 = vcmp.gt.f32.partialorder %v4263, 0.0
      %vm4553 = vcmp.gt.f32.partialorder %v4487, 0.0
      %vm4554 = vcmp.gt.f32.partialorder %v4489, 0.0
      %v4555 = vmul.f32 %v4187, 0.2
      %v4556 = vmul.f32 %v4189, 0.2
      %v4557 = vmul.f32 %v4413, 0.2
      %v4558 = vmul.f32 %v4415, 0.2
      %v4559 = vmul.f32 %v4191, 0.2
      %v4560 = vmul.f32 %v4193, 0.2
      %v4561 = vmul.f32 %v4417, 0.2
      %v4562 = vmul.f32 %v4419, 0.2
      %v4563 = vmul.f32 %v4197, 0.2
      %v4564 = vmul.f32 %v4199, 0.2
      %v4565 = vmul.f32 %v4423, 0.2
      %v4566 = vmul.f32 %v4425, 0.2
      %v4567 = vmul.f32 %v4201, 0.2
      %v4568 = vmul.f32 %v4203, 0.2
      %v4569 = vmul.f32 %v4427, 0.2
      %v4570 = vmul.f32 %v4429, 0.2
      %v4571 = vmul.f32 %v4207, 0.2
      %v4572 = vmul.f32 %v4209, 0.2
      %v4573 = vmul.f32 %v4433, 0.2
      %v4574 = vmul.f32 %v4435, 0.2
      %v4575 = vmul.f32 %v4211, 0.2
      %v4576 = vmul.f32 %v4213, 0.2
      %v4577 = vmul.f32 %v4437, 0.2
      %v4578 = vmul.f32 %v4439, 0.2
      %v4579 = vmul.f32 %v4217, 0.2
      %v4580 = vmul.f32 %v4219, 0.2
      %v4581 = vmul.f32 %v4443, 0.2
      %v4582 = vmul.f32 %v4445, 0.2
      %v4583 = vmul.f32 %v4221, 0.2
      %v4584 = vmul.f32 %v4223, 0.2
      %v4585 = vmul.f32 %v4447, 0.2
      %v4586 = vmul.f32 %v4449, 0.2
      %v4587 = vmul.f32 %v4227, 0.2
      %v4588 = vmul.f32 %v4229, 0.2
      %v4589 = vmul.f32 %v4453, 0.2
      %v4590 = vmul.f32 %v4455, 0.2
      %v4591 = vmul.f32 %v4231, 0.2
      %v4592 = vmul.f32 %v4233, 0.2
      %v4593 = vmul.f32 %v4457, 0.2
      %v4594 = vmul.f32 %v4459, 0.2
      %v4595 = vmul.f32 %v4237, 0.2
      %v4596 = vmul.f32 %v4239, 0.2
      %v4597 = vmul.f32 %v4463, 0.2
      %v4598 = vmul.f32 %v4465, 0.2
      %v4599 = vmul.f32 %v4241, 0.2
      %v4600 = vmul.f32 %v4243, 0.2
      %v4601 = vmul.f32 %v4467, 0.2
      %v4602 = vmul.f32 %v4469, 0.2
      %v4603 = vmul.f32 %v4247, 0.2
      %v4604 = vmul.f32 %v4249, 0.2
      %v4605 = vmul.f32 %v4473, 0.2
      %v4606 = vmul.f32 %v4475, 0.2
      %v4607 = vmul.f32 %v4251, 0.2
      %v4608 = vmul.f32 %v4253, 0.2
      %v4609 = vmul.f32 %v4477, 0.2
      %v4610 = vmul.f32 %v4479, 0.2
      %v4611 = vmul.f32 %v4257, 0.2
      %v4612 = vmul.f32 %v4259, 0.2
      %v4613 = vmul.f32 %v4483, 0.2
      %v4614 = vmul.f32 %v4485, 0.2
      %v4615 = vmul.f32 %v4261, 0.2
      %v4616 = vmul.f32 %v4263, 0.2
      %v4617 = vmul.f32 %v4487, 0.2
      %v4618 = vmul.f32 %v4489, 0.2
      %v4619 = vsel %vm4491, %v4187, %v4555
      %v4620 = vsel %vm4492, %v4189, %v4556
      %v4621 = vsel %vm4493, %v4413, %v4557
      %v4622 = vsel %vm4494, %v4415, %v4558
      %v4623 = vsel %vm4495, %v4191, %v4559
      %v4624 = vsel %vm4496, %v4193, %v4560
      %v4625 = vsel %vm4497, %v4417, %v4561
      %v4626 = vsel %vm4498, %v4419, %v4562
      %v4627 = vsel %vm4499, %v4197, %v4563
      %v4628 = vsel %vm4500, %v4199, %v4564
      %v4629 = vsel %vm4501, %v4423, %v4565
      %v4630 = vsel %vm4502, %v4425, %v4566
      %v4631 = vsel %vm4503, %v4201, %v4567
      %v4632 = vsel %vm4504, %v4203, %v4568
      %v4633 = vsel %vm4505, %v4427, %v4569
      %v4634 = vsel %vm4506, %v4429, %v4570
      %v4635 = vsel %vm4507, %v4207, %v4571
      %v4636 = vsel %vm4508, %v4209, %v4572
      %v4637 = vsel %vm4509, %v4433, %v4573
      %v4638 = vsel %vm4510, %v4435, %v4574
      %v4639 = vsel %vm4511, %v4211, %v4575
      %v4640 = vsel %vm4512, %v4213, %v4576
      %v4641 = vsel %vm4513, %v4437, %v4577
      %v4642 = vsel %vm4514, %v4439, %v4578
      %v4643 = vsel %vm4515, %v4217, %v4579
      %v4644 = vsel %vm4516, %v4219, %v4580
      %v4645 = vsel %vm4517, %v4443, %v4581
      %v4646 = vsel %vm4518, %v4445, %v4582
      %v4647 = vsel %vm4519, %v4221, %v4583
      %v4648 = vsel %vm4520, %v4223, %v4584
      %v4649 = vsel %vm4521, %v4447, %v4585
      %v4650 = vsel %vm4522, %v4449, %v4586
      %v4651 = vsel %vm4523, %v4227, %v4587
      %v4652 = vsel %vm4524, %v4229, %v4588
      %v4653 = vsel %vm4525, %v4453, %v4589
      %v4654 = vsel %vm4526, %v4455, %v4590
      %v4655 = vsel %vm4527, %v4231, %v4591
      %v4656 = vsel %vm4528, %v4233, %v4592
      %v4657 = vsel %vm4529, %v4457, %v4593
      %v4658 = vsel %vm4530, %v4459, %v4594
      %v4659 = vsel %vm4531, %v4237, %v4595
      %v4660 = vsel %vm4532, %v4239, %v4596
      %v4661 = vsel %vm4533, %v4463, %v4597
      %v4662 = vsel %vm4534, %v4465, %v4598
      %v4663 = vsel %vm4535, %v4241, %v4599
      %v4664 = vsel %vm4536, %v4243, %v4600
      %v4665 = vsel %vm4537, %v4467, %v4601
      %v4666 = vsel %vm4538, %v4469, %v4602
      %v4667 = vsel %vm4539, %v4247, %v4603
      %v4668 = vsel %vm4540, %v4249, %v4604
      %v4669 = vsel %vm4541, %v4473, %v4605
      %v4670 = vsel %vm4542, %v4475, %v4606
      %v4671 = vsel %vm4543, %v4251, %v4607
      %v4672 = vsel %vm4544, %v4253, %v4608
      %v4673 = vsel %vm4545, %v4477, %v4609
      %v4674 = vsel %vm4546, %v4479, %v4610
      %v4675 = vsel %vm4547, %v4257, %v4611
      %v4676 = vsel %vm4548, %v4259, %v4612
      %v4677 = vsel %vm4549, %v4483, %v4613
      %v4678 = vsel %vm4550, %v4485, %v4614
      %v4679 = vsel %vm4551, %v4261, %v4615
      %v4680 = vsel %vm4552, %v4263, %v4616
      %v4681 = vsel %vm4553, %v4487, %v4617
      %v4682 = vsel %vm4554, %v4489, %v4618
      %v4683 = vpack.c.bf16 %v4623, %v4619
      %v4684 = vpack.c.bf16 %v4624, %v4620
      %v4685 = vpack.c.bf16 %v4625, %v4621
      %v4686 = vpack.c.bf16 %v4626, %v4622
      %v4687 = vpack.c.bf16 %v4631, %v4627
      %v4688 = vpack.c.bf16 %v4632, %v4628
      %v4689 = vpack.c.bf16 %v4633, %v4629
      %v4690 = vpack.c.bf16 %v4634, %v4630
      %v4691 = vpack.c.bf16 %v4639, %v4635
      %v4692 = vpack.c.bf16 %v4640, %v4636
      %v4693 = vpack.c.bf16 %v4641, %v4637
      %v4694 = vpack.c.bf16 %v4642, %v4638
      %v4695 = vpack.c.bf16 %v4647, %v4643
      %v4696 = vpack.c.bf16 %v4648, %v4644
      %v4697 = vpack.c.bf16 %v4649, %v4645
      %v4698 = vpack.c.bf16 %v4650, %v4646
      %v4699 = vpack.c.bf16 %v4655, %v4651
      %v4700 = vpack.c.bf16 %v4656, %v4652
      %v4701 = vpack.c.bf16 %v4657, %v4653
      %v4702 = vpack.c.bf16 %v4658, %v4654
      %v4703 = vpack.c.bf16 %v4663, %v4659
      %v4704 = vpack.c.bf16 %v4664, %v4660
      %v4705 = vpack.c.bf16 %v4665, %v4661
      %v4706 = vpack.c.bf16 %v4666, %v4662
      %v4707 = vpack.c.bf16 %v4671, %v4667
      %v4708 = vpack.c.bf16 %v4672, %v4668
      %v4709 = vpack.c.bf16 %v4673, %v4669
      %v4710 = vpack.c.bf16 %v4674, %v4670
      %v4711 = vpack.c.bf16 %v4679, %v4675
      %v4712 = vpack.c.bf16 %v4680, %v4676
      %v4713 = vpack.c.bf16 %v4681, %v4677
      %v4714 = vpack.c.bf16 %v4682, %v4678
      %v4715 = vld [vmem:[%s6] sm:$0xff]
      %v4716 = vld [vmem:[%s6 + $0x8] sm:$0xff]
      %v4717 = vld [vmem:[%s6 + $0x10] sm:$0xff]
      %v4718 = vld [vmem:[%s6 + $0x18] sm:$0xff]
      %v4719 = vld [vmem:[%s6 + $0x20] sm:$0xff]
      %v4720 = vld [vmem:[%s6 + $0x28] sm:$0xff]
      %v4721 = vld [vmem:[%s6 + $0x30] sm:$0xff]
      %v4722 = vld [vmem:[%s6 + $0x38] sm:$0xff]
      %v4723 = vld [vmem:[%s6 + $0x40] sm:$0xff]
      %v4724 = vld [vmem:[%s6 + $0x48] sm:$0xff]
      %v4725 = vld [vmem:[%s6 + $0x50] sm:$0xff]
      %v4726 = vld [vmem:[%s6 + $0x58] sm:$0xff]
      %v4727 = vld [vmem:[%s6 + $0x60] sm:$0xff]
      %v4728 = vld [vmem:[%s6 + $0x68] sm:$0xff]
      %v4729 = vld [vmem:[%s6 + $0x70] sm:$0xff]
      %v4730 = vld [vmem:[%s6 + $0x78] sm:$0xff]
      %v4731 = vld [vmem:[%s6 + $0x80] sm:$0xff]
      %v4732 = vld [vmem:[%s6 + $0x88] sm:$0xff]
      %v4733 = vld [vmem:[%s6 + $0x90] sm:$0xff]
      %v4734 = vld [vmem:[%s6 + $0x98] sm:$0xff]
      %v4735 = vld [vmem:[%s6 + $0xa0] sm:$0xff]
      %v4736 = vld [vmem:[%s6 + $0xa8] sm:$0xff]
      %v4737 = vld [vmem:[%s6 + $0xb0] sm:$0xff]
      %v4738 = vld [vmem:[%s6 + $0xb8] sm:$0xff]
      %v4739 = vld [vmem:[%s6 + $0xc0] sm:$0xff]
      %v4740 = vld [vmem:[%s6 + $0xc8] sm:$0xff]
      %v4741 = vld [vmem:[%s6 + $0xd0] sm:$0xff]
      %v4742 = vld [vmem:[%s6 + $0xd8] sm:$0xff]
      %v4743 = vld [vmem:[%s6 + $0xe0] sm:$0xff]
      %v4744 = vld [vmem:[%s6 + $0xe8] sm:$0xff]
      %v4745 = vld [vmem:[%s6 + $0xf0] sm:$0xff]
      %v4746 = vld [vmem:[%s6 + $0xf8] sm:$0xff]
      %v4747 = vld [vmem:[%s6 + $0x100] sm:$0xff]
      %v4748 = vld [vmem:[%s6 + $0x108] sm:$0xff]
      %v4749 = vld [vmem:[%s6 + $0x110] sm:$0xff]
      %v4750 = vld [vmem:[%s6 + $0x118] sm:$0xff]
      %v4751 = vld [vmem:[%s6 + $0x120] sm:$0xff]
      %v4752 = vld [vmem:[%s6 + $0x128] sm:$0xff]
      %v4753 = vld [vmem:[%s6 + $0x130] sm:$0xff]
      %v4754 = vld [vmem:[%s6 + $0x138] sm:$0xff]
      %v4755 = vld [vmem:[%s6 + $0x140] sm:$0xff]
      %v4756 = vld [vmem:[%s6 + $0x148] sm:$0xff]
      %v4757 = vld [vmem:[%s6 + $0x150] sm:$0xff]
      %v4758 = vld [vmem:[%s6 + $0x158] sm:$0xff]
      %v4759 = vld [vmem:[%s6 + $0x160] sm:$0xff]
      %v4760 = vld [vmem:[%s6 + $0x168] sm:$0xff]
      %v4761 = vld [vmem:[%s6 + $0x170] sm:$0xff]
      %v4762 = vld [vmem:[%s6 + $0x178] sm:$0xff]
      %v4763 = vld [vmem:[%s6 + $0x180] sm:$0xff]
      %v4764 = vld [vmem:[%s6 + $0x188] sm:$0xff]
      %v4765 = vld [vmem:[%s6 + $0x190] sm:$0xff]
      %v4766 = vld [vmem:[%s6 + $0x198] sm:$0xff]
      %v4767 = vld [vmem:[%s6 + $0x1a0] sm:$0xff]
      %v4768 = vld [vmem:[%s6 + $0x1a8] sm:$0xff]
      %v4769 = vld [vmem:[%s6 + $0x1b0] sm:$0xff]
      %v4770 = vld [vmem:[%s6 + $0x1b8] sm:$0xff]
      %v4771 = vld [vmem:[%s6 + $0x1c0] sm:$0xff]
      %v4772 = vld [vmem:[%s6 + $0x1c8] sm:$0xff]
      %v4773 = vld [vmem:[%s6 + $0x1d0] sm:$0xff]
      %v4774 = vld [vmem:[%s6 + $0x1d8] sm:$0xff]
      %v4775 = vld [vmem:[%s6 + $0x1e0] sm:$0xff]
      %v4776 = vld [vmem:[%s6 + $0x1e8] sm:$0xff]
      %v4777 = vld [vmem:[%s6 + $0x1f0] sm:$0xff]
      %v4778 = vld [vmem:[%s6 + $0x1f8] sm:$0xff]
      %v4779 = vld [vmem:[%s6 + $0x200] sm:$0xff]
      %v4780 = vld [vmem:[%s6 + $0x208] sm:$0xff]
      %v4781 = vld [vmem:[%s6 + $0x210] sm:$0xff]
      %v4782 = vld [vmem:[%s6 + $0x218] sm:$0xff]
      %v4783 = vld [vmem:[%s6 + $0x220] sm:$0xff]
      %v4784 = vld [vmem:[%s6 + $0x228] sm:$0xff]
      %v4785 = vld [vmem:[%s6 + $0x230] sm:$0xff]
      %v4786 = vld [vmem:[%s6 + $0x238] sm:$0xff]
      %v4787 = vld [vmem:[%s6 + $0x240] sm:$0xff]
      %v4788 = vld [vmem:[%s6 + $0x248] sm:$0xff]
      %v4789 = vld [vmem:[%s6 + $0x250] sm:$0xff]
      %v4790 = vld [vmem:[%s6 + $0x258] sm:$0xff]
      %v4791 = vld [vmem:[%s6 + $0x260] sm:$0xff]
      %v4792 = vld [vmem:[%s6 + $0x268] sm:$0xff]
      %v4793 = vld [vmem:[%s6 + $0x270] sm:$0xff]
      %v4794 = vld [vmem:[%s6 + $0x278] sm:$0xff]
      %v4795 = vld [vmem:[%s6 + $0x280] sm:$0xff]
      %v4796 = vld [vmem:[%s6 + $0x288] sm:$0xff]
      %v4797 = vld [vmem:[%s6 + $0x290] sm:$0xff]
      %v4798 = vld [vmem:[%s6 + $0x298] sm:$0xff]
      %v4799 = vld [vmem:[%s6 + $0x2a0] sm:$0xff]
      %v4800 = vld [vmem:[%s6 + $0x2a8] sm:$0xff]
      %v4801 = vld [vmem:[%s6 + $0x2b0] sm:$0xff]
      %v4802 = vld [vmem:[%s6 + $0x2b8] sm:$0xff]
      %v4803 = vld [vmem:[%s6 + $0x2c0] sm:$0xff]
      %v4804 = vld [vmem:[%s6 + $0x2c8] sm:$0xff]
      %v4805 = vld [vmem:[%s6 + $0x2d0] sm:$0xff]
      %v4806 = vld [vmem:[%s6 + $0x2d8] sm:$0xff]
      %v4807 = vld [vmem:[%s6 + $0x2e0] sm:$0xff]
      %v4808 = vld [vmem:[%s6 + $0x2e8] sm:$0xff]
      %v4809 = vld [vmem:[%s6 + $0x2f0] sm:$0xff]
      %v4810 = vld [vmem:[%s6 + $0x2f8] sm:$0xff]
      %v4811 = vld [vmem:[%s6 + $0x300] sm:$0xff]
      %v4812 = vld [vmem:[%s6 + $0x308] sm:$0xff]
      %v4813 = vld [vmem:[%s6 + $0x310] sm:$0xff]
      %v4814 = vld [vmem:[%s6 + $0x318] sm:$0xff]
      %v4815 = vld [vmem:[%s6 + $0x320] sm:$0xff]
      %v4816 = vld [vmem:[%s6 + $0x328] sm:$0xff]
      %v4817 = vld [vmem:[%s6 + $0x330] sm:$0xff]
      %v4818 = vld [vmem:[%s6 + $0x338] sm:$0xff]
      %v4819 = vld [vmem:[%s6 + $0x340] sm:$0xff]
      %v4820 = vld [vmem:[%s6 + $0x348] sm:$0xff]
      %v4821 = vld [vmem:[%s6 + $0x350] sm:$0xff]
      %v4822 = vld [vmem:[%s6 + $0x358] sm:$0xff]
      %v4823 = vld [vmem:[%s6 + $0x360] sm:$0xff]
      %v4824 = vld [vmem:[%s6 + $0x368] sm:$0xff]
      %v4825 = vld [vmem:[%s6 + $0x370] sm:$0xff]
      %v4826 = vld [vmem:[%s6 + $0x378] sm:$0xff]
      %v4827 = vld [vmem:[%s6 + $0x380] sm:$0xff]
      %v4828 = vld [vmem:[%s6 + $0x388] sm:$0xff]
      %v4829 = vld [vmem:[%s6 + $0x390] sm:$0xff]
      %v4830 = vld [vmem:[%s6 + $0x398] sm:$0xff]
      %v4831 = vld [vmem:[%s6 + $0x3a0] sm:$0xff]
      %v4832 = vld [vmem:[%s6 + $0x3a8] sm:$0xff]
      %v4833 = vld [vmem:[%s6 + $0x3b0] sm:$0xff]
      %v4834 = vld [vmem:[%s6 + $0x3b8] sm:$0xff]
      %v4835 = vld [vmem:[%s6 + $0x3c0] sm:$0xff]
      %v4836 = vld [vmem:[%s6 + $0x3c8] sm:$0xff]
      %v4837 = vld [vmem:[%s6 + $0x3d0] sm:$0xff]
      %v4838 = vld [vmem:[%s6 + $0x3d8] sm:$0xff]
      %v4839 = vld [vmem:[%s6 + $0x3e0] sm:$0xff]
      %v4840 = vld [vmem:[%s6 + $0x3e8] sm:$0xff]
      %v4841 = vld [vmem:[%s6 + $0x3f0] sm:$0xff]
      %v4842 = vld [vmem:[%s6 + $0x3f8] sm:$0xff]
      %v4843 = vld [vmem:[%s7] sm:$0xf]
      %v4845 = vlaneseq
      %v4846 = vshrl.u32 %v4845, 7
      %v4847 = vsub.s32 0, %v4846
      %v4848 = vrot.slane %v4843, %v4847
      %v4849 = vlaneseq
      %v4850 = vshrl.u32 %v4849, 7
      %v4851 = vsub.s32 1, %v4850
      %v4852 = vrot.slane %v4843, %v4851
      %v4853 = vlaneseq
      %v4854 = vshrl.u32 %v4853, 7
      %v4855 = vsub.s32 2, %v4854
      %v4856 = vrot.slane %v4843, %v4855
      %v4857 = vlaneseq
      %v4858 = vshrl.u32 %v4857, 7
      %v4859 = vsub.s32 3, %v4858
      %v4860 = vrot.slane %v4843, %v4859
      %v4993 = vunpack.c.l.b16 %v4715
      %v4994 = vunpack.c.h.b16 %v4715
      %v4995 = vunpack.c.l.b16 %v4716
      %v4996 = vunpack.c.h.b16 %v4716
      %v4997 = vunpack.c.l.b16 %v4717
      %v4998 = vunpack.c.h.b16 %v4717
      %v4999 = vunpack.c.l.b16 %v4718
      %v5000 = vunpack.c.h.b16 %v4718
      %v5001 = vunpack.c.l.b16 %v4719
      %v5002 = vunpack.c.h.b16 %v4719
      %v5003 = vunpack.c.l.b16 %v4720
      %v5004 = vunpack.c.h.b16 %v4720
      %v5005 = vunpack.c.l.b16 %v4721
      %v5006 = vunpack.c.h.b16 %v4721
      %v5007 = vunpack.c.l.b16 %v4722
      %v5008 = vunpack.c.h.b16 %v4722
      %v5009 = vunpack.c.l.b16 %v4723
      %v5010 = vunpack.c.h.b16 %v4723
      %v5011 = vunpack.c.l.b16 %v4724
      %v5012 = vunpack.c.h.b16 %v4724
      %v5013 = vunpack.c.l.b16 %v4725
      %v5014 = vunpack.c.h.b16 %v4725
      %v5015 = vunpack.c.l.b16 %v4726
      %v5016 = vunpack.c.h.b16 %v4726
      %v5017 = vunpack.c.l.b16 %v4727
      %v5018 = vunpack.c.h.b16 %v4727
      %v5019 = vunpack.c.l.b16 %v4728
      %v5020 = vunpack.c.h.b16 %v4728
      %v5021 = vunpack.c.l.b16 %v4729
      %v5022 = vunpack.c.h.b16 %v4729
      %v5023 = vunpack.c.l.b16 %v4730
      %v5024 = vunpack.c.h.b16 %v4730
      %v5025 = vunpack.c.l.b16 %v4731
      %v5026 = vunpack.c.h.b16 %v4731
      %v5027 = vunpack.c.l.b16 %v4732
      %v5028 = vunpack.c.h.b16 %v4732
      %v5029 = vunpack.c.l.b16 %v4733
      %v5030 = vunpack.c.h.b16 %v4733
      %v5031 = vunpack.c.l.b16 %v4734
      %v5032 = vunpack.c.h.b16 %v4734
      %v5033 = vunpack.c.l.b16 %v4735
      %v5034 = vunpack.c.h.b16 %v4735
      %v5035 = vunpack.c.l.b16 %v4736
      %v5036 = vunpack.c.h.b16 %v4736
      %v5037 = vunpack.c.l.b16 %v4737
      %v5038 = vunpack.c.h.b16 %v4737
      %v5039 = vunpack.c.l.b16 %v4738
      %v5040 = vunpack.c.h.b16 %v4738
      %v5041 = vunpack.c.l.b16 %v4739
      %v5042 = vunpack.c.h.b16 %v4739
      %v5043 = vunpack.c.l.b16 %v4740
      %v5044 = vunpack.c.h.b16 %v4740
      %v5045 = vunpack.c.l.b16 %v4741
      %v5046 = vunpack.c.h.b16 %v4741
      %v5047 = vunpack.c.l.b16 %v4742
      %v5048 = vunpack.c.h.b16 %v4742
      %v5049 = vunpack.c.l.b16 %v4743
      %v5050 = vunpack.c.h.b16 %v4743
      %v5051 = vunpack.c.l.b16 %v4744
      %v5052 = vunpack.c.h.b16 %v4744
      %v5053 = vunpack.c.l.b16 %v4745
      %v5054 = vunpack.c.h.b16 %v4745
      %v5055 = vunpack.c.l.b16 %v4746
      %v5056 = vunpack.c.h.b16 %v4746
      %v5057 = vunpack.c.l.b16 %v4747
      %v5058 = vunpack.c.h.b16 %v4747
      %v5059 = vunpack.c.l.b16 %v4748
      %v5060 = vunpack.c.h.b16 %v4748
      %v5061 = vunpack.c.l.b16 %v4749
      %v5062 = vunpack.c.h.b16 %v4749
      %v5063 = vunpack.c.l.b16 %v4750
      %v5064 = vunpack.c.h.b16 %v4750
      %v5065 = vunpack.c.l.b16 %v4751
      %v5066 = vunpack.c.h.b16 %v4751
      %v5067 = vunpack.c.l.b16 %v4752
      %v5068 = vunpack.c.h.b16 %v4752
      %v5069 = vunpack.c.l.b16 %v4753
      %v5070 = vunpack.c.h.b16 %v4753
      %v5071 = vunpack.c.l.b16 %v4754
      %v5072 = vunpack.c.h.b16 %v4754
      %v5073 = vunpack.c.l.b16 %v4755
      %v5074 = vunpack.c.h.b16 %v4755
      %v5075 = vunpack.c.l.b16 %v4756
      %v5076 = vunpack.c.h.b16 %v4756
      %v5077 = vunpack.c.l.b16 %v4757
      %v5078 = vunpack.c.h.b16 %v4757
      %v5079 = vunpack.c.l.b16 %v4758
      %v5080 = vunpack.c.h.b16 %v4758
      %v5081 = vunpack.c.l.b16 %v4759
      %v5082 = vunpack.c.h.b16 %v4759
      %v5083 = vunpack.c.l.b16 %v4760
      %v5084 = vunpack.c.h.b16 %v4760
      %v5085 = vunpack.c.l.b16 %v4761
      %v5086 = vunpack.c.h.b16 %v4761
      %v5087 = vunpack.c.l.b16 %v4762
      %v5088 = vunpack.c.h.b16 %v4762
      %v5089 = vunpack.c.l.b16 %v4763
      %v5090 = vunpack.c.h.b16 %v4763
      %v5091 = vunpack.c.l.b16 %v4764
      %v5092 = vunpack.c.h.b16 %v4764
      %v5093 = vunpack.c.l.b16 %v4765
      %v5094 = vunpack.c.h.b16 %v4765
      %v5095 = vunpack.c.l.b16 %v4766
      %v5096 = vunpack.c.h.b16 %v4766
      %v5097 = vunpack.c.l.b16 %v4767
      %v5098 = vunpack.c.h.b16 %v4767
      %v5099 = vunpack.c.l.b16 %v4768
      %v5100 = vunpack.c.h.b16 %v4768
      %v5101 = vunpack.c.l.b16 %v4769
      %v5102 = vunpack.c.h.b16 %v4769
      %v5103 = vunpack.c.l.b16 %v4770
      %v5104 = vunpack.c.h.b16 %v4770
      %v5105 = vunpack.c.l.b16 %v4771
      %v5106 = vunpack.c.h.b16 %v4771
      %v5107 = vunpack.c.l.b16 %v4772
      %v5108 = vunpack.c.h.b16 %v4772
      %v5109 = vunpack.c.l.b16 %v4773
      %v5110 = vunpack.c.h.b16 %v4773
      %v5111 = vunpack.c.l.b16 %v4774
      %v5112 = vunpack.c.h.b16 %v4774
      %v5113 = vunpack.c.l.b16 %v4775
      %v5114 = vunpack.c.h.b16 %v4775
      %v5115 = vunpack.c.l.b16 %v4776
      %v5116 = vunpack.c.h.b16 %v4776
      %v5117 = vunpack.c.l.b16 %v4777
      %v5118 = vunpack.c.h.b16 %v4777
      %v5119 = vunpack.c.l.b16 %v4778
      %v5120 = vunpack.c.h.b16 %v4778
      %v5121 = vunpack.c.l.b16 %v4779
      %v5122 = vunpack.c.h.b16 %v4779
      %v5123 = vunpack.c.l.b16 %v4780
      %v5124 = vunpack.c.h.b16 %v4780
      %v5125 = vunpack.c.l.b16 %v4781
      %v5126 = vunpack.c.h.b16 %v4781
      %v5127 = vunpack.c.l.b16 %v4782
      %v5128 = vunpack.c.h.b16 %v4782
      %v5129 = vunpack.c.l.b16 %v4783
      %v5130 = vunpack.c.h.b16 %v4783
      %v5131 = vunpack.c.l.b16 %v4784
      %v5132 = vunpack.c.h.b16 %v4784
      %v5133 = vunpack.c.l.b16 %v4785
      %v5134 = vunpack.c.h.b16 %v4785
      %v5135 = vunpack.c.l.b16 %v4786
      %v5136 = vunpack.c.h.b16 %v4786
      %v5137 = vunpack.c.l.b16 %v4787
      %v5138 = vunpack.c.h.b16 %v4787
      %v5139 = vunpack.c.l.b16 %v4788
      %v5140 = vunpack.c.h.b16 %v4788
      %v5141 = vunpack.c.l.b16 %v4789
      %v5142 = vunpack.c.h.b16 %v4789
      %v5143 = vunpack.c.l.b16 %v4790
      %v5144 = vunpack.c.h.b16 %v4790
      %v5145 = vunpack.c.l.b16 %v4791
      %v5146 = vunpack.c.h.b16 %v4791
      %v5147 = vunpack.c.l.b16 %v4792
      %v5148 = vunpack.c.h.b16 %v4792
      %v5149 = vunpack.c.l.b16 %v4793
      %v5150 = vunpack.c.h.b16 %v4793
      %v5151 = vunpack.c.l.b16 %v4794
      %v5152 = vunpack.c.h.b16 %v4794
      %v5153 = vunpack.c.l.b16 %v4795
      %v5154 = vunpack.c.h.b16 %v4795
      %v5155 = vunpack.c.l.b16 %v4796
      %v5156 = vunpack.c.h.b16 %v4796
      %v5157 = vunpack.c.l.b16 %v4797
      %v5158 = vunpack.c.h.b16 %v4797
      %v5159 = vunpack.c.l.b16 %v4798
      %v5160 = vunpack.c.h.b16 %v4798
      %v5161 = vunpack.c.l.b16 %v4799
      %v5162 = vunpack.c.h.b16 %v4799
      %v5163 = vunpack.c.l.b16 %v4800
      %v5164 = vunpack.c.h.b16 %v4800
      %v5165 = vunpack.c.l.b16 %v4801
      %v5166 = vunpack.c.h.b16 %v4801
      %v5167 = vunpack.c.l.b16 %v4802
      %v5168 = vunpack.c.h.b16 %v4802
      %v5169 = vunpack.c.l.b16 %v4803
      %v5170 = vunpack.c.h.b16 %v4803
      %v5171 = vunpack.c.l.b16 %v4804
      %v5172 = vunpack.c.h.b16 %v4804
      %v5173 = vunpack.c.l.b16 %v4805
      %v5174 = vunpack.c.h.b16 %v4805
      %v5175 = vunpack.c.l.b16 %v4806
      %v5176 = vunpack.c.h.b16 %v4806
      %v5177 = vunpack.c.l.b16 %v4807
      %v5178 = vunpack.c.h.b16 %v4807
      %v5179 = vunpack.c.l.b16 %v4808
      %v5180 = vunpack.c.h.b16 %v4808
      %v5181 = vunpack.c.l.b16 %v4809
      %v5182 = vunpack.c.h.b16 %v4809
      %v5183 = vunpack.c.l.b16 %v4810
      %v5184 = vunpack.c.h.b16 %v4810
      %v5185 = vunpack.c.l.b16 %v4811
      %v5186 = vunpack.c.h.b16 %v4811
      %v5187 = vunpack.c.l.b16 %v4812
      %v5188 = vunpack.c.h.b16 %v4812
      %v5189 = vunpack.c.l.b16 %v4813
      %v5190 = vunpack.c.h.b16 %v4813
      %v5191 = vunpack.c.l.b16 %v4814
      %v5192 = vunpack.c.h.b16 %v4814
      %v5193 = vunpack.c.l.b16 %v4815
      %v5194 = vunpack.c.h.b16 %v4815
      %v5195 = vunpack.c.l.b16 %v4816
      %v5196 = vunpack.c.h.b16 %v4816
      %v5197 = vunpack.c.l.b16 %v4817
      %v5198 = vunpack.c.h.b16 %v4817
      %v5199 = vunpack.c.l.b16 %v4818
      %v5200 = vunpack.c.h.b16 %v4818
      %v5201 = vunpack.c.l.b16 %v4819
      %v5202 = vunpack.c.h.b16 %v4819
      %v5203 = vunpack.c.l.b16 %v4820
      %v5204 = vunpack.c.h.b16 %v4820
      %v5205 = vunpack.c.l.b16 %v4821
      %v5206 = vunpack.c.h.b16 %v4821
      %v5207 = vunpack.c.l.b16 %v4822
      %v5208 = vunpack.c.h.b16 %v4822
      %v5209 = vunpack.c.l.b16 %v4823
      %v5210 = vunpack.c.h.b16 %v4823
      %v5211 = vunpack.c.l.b16 %v4824
      %v5212 = vunpack.c.h.b16 %v4824
      %v5213 = vunpack.c.l.b16 %v4825
      %v5214 = vunpack.c.h.b16 %v4825
      %v5215 = vunpack.c.l.b16 %v4826
      %v5216 = vunpack.c.h.b16 %v4826
      %v5217 = vunpack.c.l.b16 %v4827
      %v5218 = vunpack.c.h.b16 %v4827
      %v5219 = vunpack.c.l.b16 %v4828
      %v5220 = vunpack.c.h.b16 %v4828
      %v5221 = vunpack.c.l.b16 %v4829
      %v5222 = vunpack.c.h.b16 %v4829
      %v5223 = vunpack.c.l.b16 %v4830
      %v5224 = vunpack.c.h.b16 %v4830
      %v5225 = vunpack.c.l.b16 %v4831
      %v5226 = vunpack.c.h.b16 %v4831
      %v5227 = vunpack.c.l.b16 %v4832
      %v5228 = vunpack.c.h.b16 %v4832
      %v5229 = vunpack.c.l.b16 %v4833
      %v5230 = vunpack.c.h.b16 %v4833
      %v5231 = vunpack.c.l.b16 %v4834
      %v5232 = vunpack.c.h.b16 %v4834
      %v5233 = vunpack.c.l.b16 %v4835
      %v5234 = vunpack.c.h.b16 %v4835
      %v5235 = vunpack.c.l.b16 %v4836
      %v5236 = vunpack.c.h.b16 %v4836
      %v5237 = vunpack.c.l.b16 %v4837
      %v5238 = vunpack.c.h.b16 %v4837
      %v5239 = vunpack.c.l.b16 %v4838
      %v5240 = vunpack.c.h.b16 %v4838
      %v5241 = vunpack.c.l.b16 %v4839
      %v5242 = vunpack.c.h.b16 %v4839
      %v5243 = vunpack.c.l.b16 %v4840
      %v5244 = vunpack.c.h.b16 %v4840
      %v5245 = vunpack.c.l.b16 %v4841
      %v5246 = vunpack.c.h.b16 %v4841
      %v5247 = vunpack.c.l.b16 %v4842
      %v5248 = vunpack.c.h.b16 %v4842
      %v5249 = vpack.c.b16 %v4997, %v4993
      %v5250 = vpack.c.b16 %v4998, %v4994
      %v5251 = vpack.c.b16 %v4999, %v4995
      %v5252 = vpack.c.b16 %v5000, %v4996
      %v5253 = vpack.c.b16 %v5005, %v5001
      %v5254 = vpack.c.b16 %v5006, %v5002
      %v5255 = vpack.c.b16 %v5007, %v5003
      %v5256 = vpack.c.b16 %v5008, %v5004
      %v5257 = vpack.c.b16 %v5013, %v5009
      %v5258 = vpack.c.b16 %v5014, %v5010
      %v5259 = vpack.c.b16 %v5015, %v5011
      %v5260 = vpack.c.b16 %v5016, %v5012
      %v5261 = vpack.c.b16 %v5021, %v5017
      %v5262 = vpack.c.b16 %v5022, %v5018
      %v5263 = vpack.c.b16 %v5023, %v5019
      %v5264 = vpack.c.b16 %v5024, %v5020
      %v5265 = vpack.c.b16 %v5029, %v5025
      %v5266 = vpack.c.b16 %v5030, %v5026
      %v5267 = vpack.c.b16 %v5031, %v5027
      %v5268 = vpack.c.b16 %v5032, %v5028
      %v5269 = vpack.c.b16 %v5037, %v5033
      %v5270 = vpack.c.b16 %v5038, %v5034
      %v5271 = vpack.c.b16 %v5039, %v5035
      %v5272 = vpack.c.b16 %v5040, %v5036
      %v5273 = vpack.c.b16 %v5045, %v5041
      %v5274 = vpack.c.b16 %v5046, %v5042
      %v5275 = vpack.c.b16 %v5047, %v5043
      %v5276 = vpack.c.b16 %v5048, %v5044
      %v5277 = vpack.c.b16 %v5053, %v5049
      %v5278 = vpack.c.b16 %v5054, %v5050
      %v5279 = vpack.c.b16 %v5055, %v5051
      %v5280 = vpack.c.b16 %v5056, %v5052
      %v5281 = vpack.c.b16 %v5061, %v5057
      %v5282 = vpack.c.b16 %v5062, %v5058
      %v5283 = vpack.c.b16 %v5063, %v5059
      %v5284 = vpack.c.b16 %v5064, %v5060
      %v5285 = vpack.c.b16 %v5069, %v5065
      %v5286 = vpack.c.b16 %v5070, %v5066
      %v5287 = vpack.c.b16 %v5071, %v5067
      %v5288 = vpack.c.b16 %v5072, %v5068
      %v5289 = vpack.c.b16 %v5077, %v5073
      %v5290 = vpack.c.b16 %v5078, %v5074
      %v5291 = vpack.c.b16 %v5079, %v5075
      %v5292 = vpack.c.b16 %v5080, %v5076
      %v5293 = vpack.c.b16 %v5085, %v5081
      %v5294 = vpack.c.b16 %v5086, %v5082
      %v5295 = vpack.c.b16 %v5087, %v5083
      %v5296 = vpack.c.b16 %v5088, %v5084
      %v5297 = vpack.c.b16 %v5093, %v5089
      %v5298 = vpack.c.b16 %v5094, %v5090
      %v5299 = vpack.c.b16 %v5095, %v5091
      %v5300 = vpack.c.b16 %v5096, %v5092
      %v5301 = vpack.c.b16 %v5101, %v5097
      %v5302 = vpack.c.b16 %v5102, %v5098
      %v5303 = vpack.c.b16 %v5103, %v5099
      %v5304 = vpack.c.b16 %v5104, %v5100
      %v5305 = vpack.c.b16 %v5109, %v5105
      %v5306 = vpack.c.b16 %v5110, %v5106
      %v5307 = vpack.c.b16 %v5111, %v5107
      %v5308 = vpack.c.b16 %v5112, %v5108
      %v5309 = vpack.c.b16 %v5117, %v5113
      %v5310 = vpack.c.b16 %v5118, %v5114
      %v5311 = vpack.c.b16 %v5119, %v5115
      %v5312 = vpack.c.b16 %v5120, %v5116
      %v5313 = vpack.c.b16 %v5125, %v5121
      %v5314 = vpack.c.b16 %v5126, %v5122
      %v5315 = vpack.c.b16 %v5127, %v5123
      %v5316 = vpack.c.b16 %v5128, %v5124
      %v5317 = vpack.c.b16 %v5133, %v5129
      %v5318 = vpack.c.b16 %v5134, %v5130
      %v5319 = vpack.c.b16 %v5135, %v5131
      %v5320 = vpack.c.b16 %v5136, %v5132
      %v5321 = vpack.c.b16 %v5141, %v5137
      %v5322 = vpack.c.b16 %v5142, %v5138
      %v5323 = vpack.c.b16 %v5143, %v5139
      %v5324 = vpack.c.b16 %v5144, %v5140
      %v5325 = vpack.c.b16 %v5149, %v5145
      %v5326 = vpack.c.b16 %v5150, %v5146
      %v5327 = vpack.c.b16 %v5151, %v5147
      %v5328 = vpack.c.b16 %v5152, %v5148
      %v5329 = vpack.c.b16 %v5157, %v5153
      %v5330 = vpack.c.b16 %v5158, %v5154
      %v5331 = vpack.c.b16 %v5159, %v5155
      %v5332 = vpack.c.b16 %v5160, %v5156
      %v5333 = vpack.c.b16 %v5165, %v5161
      %v5334 = vpack.c.b16 %v5166, %v5162
      %v5335 = vpack.c.b16 %v5167, %v5163
      %v5336 = vpack.c.b16 %v5168, %v5164
      %v5337 = vpack.c.b16 %v5173, %v5169
      %v5338 = vpack.c.b16 %v5174, %v5170
      %v5339 = vpack.c.b16 %v5175, %v5171
      %v5340 = vpack.c.b16 %v5176, %v5172
      %v5341 = vpack.c.b16 %v5181, %v5177
      %v5342 = vpack.c.b16 %v5182, %v5178
      %v5343 = vpack.c.b16 %v5183, %v5179
      %v5344 = vpack.c.b16 %v5184, %v5180
      %v5345 = vpack.c.b16 %v5189, %v5185
      %v5346 = vpack.c.b16 %v5190, %v5186
      %v5347 = vpack.c.b16 %v5191, %v5187
      %v5348 = vpack.c.b16 %v5192, %v5188
      %v5349 = vpack.c.b16 %v5197, %v5193
      %v5350 = vpack.c.b16 %v5198, %v5194
      %v5351 = vpack.c.b16 %v5199, %v5195
      %v5352 = vpack.c.b16 %v5200, %v5196
      %v5353 = vpack.c.b16 %v5205, %v5201
      %v5354 = vpack.c.b16 %v5206, %v5202
      %v5355 = vpack.c.b16 %v5207, %v5203
      %v5356 = vpack.c.b16 %v5208, %v5204
      %v5357 = vpack.c.b16 %v5213, %v5209
      %v5358 = vpack.c.b16 %v5214, %v5210
      %v5359 = vpack.c.b16 %v5215, %v5211
      %v5360 = vpack.c.b16 %v5216, %v5212
      %v5361 = vpack.c.b16 %v5221, %v5217
      %v5362 = vpack.c.b16 %v5222, %v5218
      %v5363 = vpack.c.b16 %v5223, %v5219
      %v5364 = vpack.c.b16 %v5224, %v5220
      %v5365 = vpack.c.b16 %v5229, %v5225
      %v5366 = vpack.c.b16 %v5230, %v5226
      %v5367 = vpack.c.b16 %v5231, %v5227
      %v5368 = vpack.c.b16 %v5232, %v5228
      %v5369 = vpack.c.b16 %v5237, %v5233
      %v5370 = vpack.c.b16 %v5238, %v5234
      %v5371 = vpack.c.b16 %v5239, %v5235
      %v5372 = vpack.c.b16 %v5240, %v5236
      %v5373 = vpack.c.b16 %v5245, %v5241
      %v5374 = vpack.c.b16 %v5246, %v5242
      %v5375 = vpack.c.b16 %v5247, %v5243
      %v5376 = vpack.c.b16 %v5248, %v5244
      %5505 = vmatprep.subr.bf16.mxu0 %v5250
      %5506 = vmatpush1.bf16.msra.mxu0 %v5249
      %5507 = vmatprep.subr.bf16.mxu0 %v5254
      %5508 = vmatpush1.bf16.msra.mxu0 %v5253
      %5509 = vmatprep.subr.bf16.mxu0 %v5258
      %5510 = vmatpush1.bf16.msra.mxu0 %v5257
      %5511 = vmatprep.subr.bf16.mxu0 %v5262
      %5512 = vmatpush1.bf16.msra.mxu0 %v5261
      %5513 = vmatprep.subr.bf16.mxu0 %v5266
      %5514 = vmatpush1.bf16.msra.mxu0 %v5265
      %5515 = vmatprep.subr.bf16.mxu0 %v5270
      %5516 = vmatpush1.bf16.msra.mxu0 %v5269
      %5517 = vmatprep.subr.bf16.mxu0 %v5274
      %5518 = vmatpush1.bf16.msra.mxu0 %v5273
      %5519 = vmatprep.subr.bf16.mxu0 %v5278
      %5520 = vmatpush1.bf16.msra.mxu0 %v5277
      %5521 = vmatprep.subr.bf16.mxu0 %v5282
      %5522 = vmatpush1.bf16.msra.mxu0 %v5281
      %5523 = vmatprep.subr.bf16.mxu0 %v5286
      %5524 = vmatpush1.bf16.msra.mxu0 %v5285
      %5525 = vmatprep.subr.bf16.mxu0 %v5290
      %5526 = vmatpush1.bf16.msra.mxu0 %v5289
      %5527 = vmatprep.subr.bf16.mxu0 %v5294
      %5528 = vmatpush1.bf16.msra.mxu0 %v5293
      %5529 = vmatprep.subr.bf16.mxu0 %v5298
      %5530 = vmatpush1.bf16.msra.mxu0 %v5297
      %5531 = vmatprep.subr.bf16.mxu0 %v5302
      %5532 = vmatpush1.bf16.msra.mxu0 %v5301
      %5533 = vmatprep.subr.bf16.mxu0 %v5306
      %5534 = vmatpush1.bf16.msra.mxu0 %v5305
      %5535 = vmatprep.subr.bf16.mxu0 %v5310
      %5536 = vmatpush1.bf16.msra.mxu0 %v5309
      %5537 = vmatprep.mubr.bf16.mxu0 %v4684
      %5538 = vmatmul.mubr.bf16.gmra.mrb[0].mxu0 %v4683
      %v5539 = vpop.f32.mrb[0].mxu0
      %v5540 = vadd.f32 %v4848, %v5539
      %v5541 = vpop.f32.mrb[0].mxu0
      %v5542 = vadd.f32 %v4852, %v5541
      %v5543 = vpop.f32.mrb[0].mxu0
      %v5544 = vadd.f32 %v4848, %v5543
      %v5545 = vpop.f32.mrb[0].mxu0
      %v5546 = vadd.f32 %v4852, %v5545
      %5547 = vmatprep.mubr.bf16.mxu0 %v4688
      %5548 = vmatmul.mubr.bf16.gmra.mrb[0].mxu0 %v4687
      %v5549 = vpop.f32.mrb[0].mxu0
      %v5550 = vadd.f32 %v4848, %v5549
      %v5551 = vpop.f32.mrb[0].mxu0
      %v5552 = vadd.f32 %v4852, %v5551
      %v5553 = vpop.f32.mrb[0].mxu0
      %v5554 = vadd.f32 %v4848, %v5553
      %v5555 = vpop.f32.mrb[0].mxu0
      %v5556 = vadd.f32 %v4852, %v5555
      %5557 = vmatprep.mubr.bf16.mxu0 %v4692
      %5558 = vmatmul.mubr.bf16.gmra.mrb[0].mxu0 %v4691
      %v5559 = vpop.f32.mrb[0].mxu0
      %v5560 = vadd.f32 %v4848, %v5559
      %v5561 = vpop.f32.mrb[0].mxu0
      %v5562 = vadd.f32 %v4852, %v5561
      %v5563 = vpop.f32.mrb[0].mxu0
      %v5564 = vadd.f32 %v4848, %v5563
      %v5565 = vpop.f32.mrb[0].mxu0
      %v5566 = vadd.f32 %v4852, %v5565
      %5567 = vmatprep.mubr.bf16.mxu0 %v4696
      %5568 = vmatmul.mubr.bf16.gmra.mrb[0].mxu0 %v4695
      %v5569 = vpop.f32.mrb[0].mxu0
      %v5570 = vadd.f32 %v4848, %v5569
      %v5571 = vpop.f32.mrb[0].mxu0
      %v5572 = vadd.f32 %v4852, %v5571
      %v5573 = vpop.f32.mrb[0].mxu0
      %v5574 = vadd.f32 %v4848, %v5573
      %v5575 = vpop.f32.mrb[0].mxu0
      %v5576 = vadd.f32 %v4852, %v5575
      %5577 = vmatprep.mubr.bf16.mxu0 %v4700
      %5578 = vmatmul.mubr.bf16.gmra.mrb[0].mxu0 %v4699
      %v5579 = vpop.f32.mrb[0].mxu0
      %v5580 = vadd.f32 %v4848, %v5579
      %v5581 = vpop.f32.mrb[0].mxu0
      %v5582 = vadd.f32 %v4852, %v5581
      %v5583 = vpop.f32.mrb[0].mxu0
      %v5584 = vadd.f32 %v4848, %v5583
      %v5585 = vpop.f32.mrb[0].mxu0
      %v5586 = vadd.f32 %v4852, %v5585
      %5587 = vmatprep.mubr.bf16.mxu0 %v4704
      %5588 = vmatmul.mubr.bf16.gmra.mrb[0].mxu0 %v4703
      %v5589 = vpop.f32.mrb[0].mxu0
      %v5590 = vadd.f32 %v4848, %v5589
      %v5591 = vpop.f32.mrb[0].mxu0
      %v5592 = vadd.f32 %v4852, %v5591
      %v5593 = vpop.f32.mrb[0].mxu0
      %v5594 = vadd.f32 %v4848, %v5593
      %v5595 = vpop.f32.mrb[0].mxu0
      %v5596 = vadd.f32 %v4852, %v5595
      %5597 = vmatprep.mubr.bf16.mxu0 %v4708
      %5598 = vmatmul.mubr.bf16.gmra.mrb[0].mxu0 %v4707
      %v5599 = vpop.f32.mrb[0].mxu0
      %v5600 = vadd.f32 %v4848, %v5599
      %v5601 = vpop.f32.mrb[0].mxu0
      %v5602 = vadd.f32 %v4852, %v5601
      %v5603 = vpop.f32.mrb[0].mxu0
      %v5604 = vadd.f32 %v4848, %v5603
      %v5605 = vpop.f32.mrb[0].mxu0
      %v5606 = vadd.f32 %v4852, %v5605
      %5607 = vmatprep.mubr.bf16.mxu0 %v4712
      %5608 = vmatmul.mubr.bf16.gmra.mrb[0].mxu0 %v4711
      %v5609 = vpop.f32.mrb[0].mxu0
      %v5610 = vadd.f32 %v4848, %v5609
      %v5611 = vpop.f32.mrb[0].mxu0
      %v5612 = vadd.f32 %v4852, %v5611
      %v5613 = vpop.f32.mrb[0].mxu0
      %v5614 = vadd.f32 %v4848, %v5613
      %v5615 = vpop.f32.mrb[0].mxu0
      %v5616 = vadd.f32 %v4852, %v5615
      %5617 = vdwg.mxu0
      %5618 = vmatprep.subr.bf16.mxu0 %v5314
      %5619 = vmatpush1.bf16.msra.mxu0 %v5313
      %5620 = vmatprep.subr.bf16.mxu0 %v5318
      %5621 = vmatpush1.bf16.msra.mxu0 %v5317
      %5622 = vmatprep.subr.bf16.mxu0 %v5322
      %5623 = vmatpush1.bf16.msra.mxu0 %v5321
      %5624 = vmatprep.subr.bf16.mxu0 %v5326
      %5625 = vmatpush1.bf16.msra.mxu0 %v5325
      %5626 = vmatprep.subr.bf16.mxu0 %v5330
      %5627 = vmatpush1.bf16.msra.mxu0 %v5329
      %5628 = vmatprep.subr.bf16.mxu0 %v5334
      %5629 = vmatpush1.bf16.msra.mxu0 %v5333
      %5630 = vmatprep.subr.bf16.mxu0 %v5338
      %5631 = vmatpush1.bf16.msra.mxu0 %v5337
      %5632 = vmatprep.subr.bf16.mxu0 %v5342
      %5633 = vmatpush1.bf16.msra.mxu0 %v5341
      %5634 = vmatprep.subr.bf16.mxu0 %v5346
      %5635 = vmatpush1.bf16.msra.mxu0 %v5345
      %5636 = vmatprep.subr.bf16.mxu0 %v5350
      %5637 = vmatpush1.bf16.msra.mxu0 %v5349
      %5638 = vmatprep.subr.bf16.mxu0 %v5354
      %5639 = vmatpush1.bf16.msra.mxu0 %v5353
      %5640 = vmatprep.subr.bf16.mxu0 %v5358
      %5641 = vmatpush1.bf16.msra.mxu0 %v5357
      %5642 = vmatprep.subr.bf16.mxu0 %v5362
      %5643 = vmatpush1.bf16.msra.mxu0 %v5361
      %5644 = vmatprep.subr.bf16.mxu0 %v5366
      %5645 = vmatpush1.bf16.msra.mxu0 %v5365
      %5646 = vmatprep.subr.bf16.mxu0 %v5370
      %5647 = vmatpush1.bf16.msra.mxu0 %v5369
      %5648 = vmatprep.subr.bf16.mxu0 %v5374
      %5649 = vmatpush1.bf16.msra.mxu0 %v5373
      %5650 = vmatprep.mubr.bf16.mxu0 %v4686
      %5651 = vmatmul.mubr.bf16.gmra.mrb[0].mxu0 %v4685
      %v5652 = vpop.f32.mrb[0].mxu0
      %v5653 = vadd.f32 %v5540, %v5652
      %v5654 = vpop.f32.mrb[0].mxu0
      %v5655 = vadd.f32 %v5542, %v5654
      %v5656 = vpop.f32.mrb[0].mxu0
      %v5657 = vadd.f32 %v5544, %v5656
      %v5658 = vpop.f32.mrb[0].mxu0
      %v5659 = vadd.f32 %v5546, %v5658
      %5660 = vmatprep.mubr.bf16.mxu0 %v4690
      %5661 = vmatmul.mubr.bf16.gmra.mrb[0].mxu0 %v4689
      %v5662 = vpop.f32.mrb[0].mxu0
      %v5663 = vadd.f32 %v5550, %v5662
      %v5664 = vpop.f32.mrb[0].mxu0
      %v5665 = vadd.f32 %v5552, %v5664
      %v5666 = vpop.f32.mrb[0].mxu0
      %v5667 = vadd.f32 %v5554, %v5666
      %v5668 = vpop.f32.mrb[0].mxu0
      %v5669 = vadd.f32 %v5556, %v5668
      %5670 = vmatprep.mubr.bf16.mxu0 %v4694
      %5671 = vmatmul.mubr.bf16.gmra.mrb[0].mxu0 %v4693
      %v5672 = vpop.f32.mrb[0].mxu0
      %v5673 = vadd.f32 %v5560, %v5672
      %v5674 = vpop.f32.mrb[0].mxu0
      %v5675 = vadd.f32 %v5562, %v5674
      %v5676 = vpop.f32.mrb[0].mxu0
      %v5677 = vadd.f32 %v5564, %v5676
      %v5678 = vpop.f32.mrb[0].mxu0
      %v5679 = vadd.f32 %v5566, %v5678
      %5680 = vmatprep.mubr.bf16.mxu0 %v4698
      %5681 = vmatmul.mubr.bf16.gmra.mrb[0].mxu0 %v4697
      %v5682 = vpop.f32.mrb[0].mxu0
      %v5683 = vadd.f32 %v5570, %v5682
      %v5684 = vpop.f32.mrb[0].mxu0
      %v5685 = vadd.f32 %v5572, %v5684
      %v5686 = vpop.f32.mrb[0].mxu0
      %v5687 = vadd.f32 %v5574, %v5686
      %v5688 = vpop.f32.mrb[0].mxu0
      %v5689 = vadd.f32 %v5576, %v5688
      %5690 = vmatprep.mubr.bf16.mxu0 %v4702
      %5691 = vmatmul.mubr.bf16.gmra.mrb[0].mxu0 %v4701
      %v5692 = vpop.f32.mrb[0].mxu0
      %v5693 = vadd.f32 %v5580, %v5692
      %v5694 = vpop.f32.mrb[0].mxu0
      %v5695 = vadd.f32 %v5582, %v5694
      %v5696 = vpop.f32.mrb[0].mxu0
      %v5697 = vadd.f32 %v5584, %v5696
      %v5698 = vpop.f32.mrb[0].mxu0
      %v5699 = vadd.f32 %v5586, %v5698
      %5700 = vmatprep.mubr.bf16.mxu0 %v4706
      %5701 = vmatmul.mubr.bf16.gmra.mrb[0].mxu0 %v4705
      %v5702 = vpop.f32.mrb[0].mxu0
      %v5703 = vadd.f32 %v5590, %v5702
      %v5704 = vpop.f32.mrb[0].mxu0
      %v5705 = vadd.f32 %v5592, %v5704
      %v5706 = vpop.f32.mrb[0].mxu0
      %v5707 = vadd.f32 %v5594, %v5706
      %v5708 = vpop.f32.mrb[0].mxu0
      %v5709 = vadd.f32 %v5596, %v5708
      %5710 = vmatprep.mubr.bf16.mxu0 %v4710
      %5711 = vmatmul.mubr.bf16.gmra.mrb[0].mxu0 %v4709
      %v5712 = vpop.f32.mrb[0].mxu0
      %v5713 = vadd.f32 %v5600, %v5712
      %v5714 = vpop.f32.mrb[0].mxu0
      %v5715 = vadd.f32 %v5602, %v5714
      %v5716 = vpop.f32.mrb[0].mxu0
      %v5717 = vadd.f32 %v5604, %v5716
      %v5718 = vpop.f32.mrb[0].mxu0
      %v5719 = vadd.f32 %v5606, %v5718
      %5720 = vmatprep.mubr.bf16.mxu0 %v4714
      %5721 = vmatmul.mubr.bf16.gmra.mrb[0].mxu0 %v4713
      %v5722 = vpop.f32.mrb[0].mxu0
      %v5723 = vadd.f32 %v5610, %v5722
      %v5724 = vpop.f32.mrb[0].mxu0
      %v5725 = vadd.f32 %v5612, %v5724
      %v5726 = vpop.f32.mrb[0].mxu0
      %v5727 = vadd.f32 %v5614, %v5726
      %v5728 = vpop.f32.mrb[0].mxu0
      %v5729 = vadd.f32 %v5616, %v5728
      %5730 = vdwg.mxu0
      %5731 = vmatprep.subr.bf16.mxu0 %v5252
      %5732 = vmatpush1.bf16.msra.mxu0 %v5251
      %5733 = vmatprep.subr.bf16.mxu0 %v5256
      %5734 = vmatpush1.bf16.msra.mxu0 %v5255
      %5735 = vmatprep.subr.bf16.mxu0 %v5260
      %5736 = vmatpush1.bf16.msra.mxu0 %v5259
      %5737 = vmatprep.subr.bf16.mxu0 %v5264
      %5738 = vmatpush1.bf16.msra.mxu0 %v5263
      %5739 = vmatprep.subr.bf16.mxu0 %v5268
      %5740 = vmatpush1.bf16.msra.mxu0 %v5267
      %5741 = vmatprep.subr.bf16.mxu0 %v5272
      %5742 = vmatpush1.bf16.msra.mxu0 %v5271
      %5743 = vmatprep.subr.bf16.mxu0 %v5276
      %5744 = vmatpush1.bf16.msra.mxu0 %v5275
      %5745 = vmatprep.subr.bf16.mxu0 %v5280
      %5746 = vmatpush1.bf16.msra.mxu0 %v5279
      %5747 = vmatprep.subr.bf16.mxu0 %v5284
      %5748 = vmatpush1.bf16.msra.mxu0 %v5283
      %5749 = vmatprep.subr.bf16.mxu0 %v5288
      %5750 = vmatpush1.bf16.msra.mxu0 %v5287
      %5751 = vmatprep.subr.bf16.mxu0 %v5292
      %5752 = vmatpush1.bf16.msra.mxu0 %v5291
      %5753 = vmatprep.subr.bf16.mxu0 %v5296
      %5754 = vmatpush1.bf16.msra.mxu0 %v5295
      %5755 = vmatprep.subr.bf16.mxu0 %v5300
      %5756 = vmatpush1.bf16.msra.mxu0 %v5299
      %5757 = vmatprep.subr.bf16.mxu0 %v5304
      %5758 = vmatpush1.bf16.msra.mxu0 %v5303
      %5759 = vmatprep.subr.bf16.mxu0 %v5308
      %5760 = vmatpush1.bf16.msra.mxu0 %v5307
      %5761 = vmatprep.subr.bf16.mxu0 %v5312
      %5762 = vmatpush1.bf16.msra.mxu0 %v5311
      %5763 = vmatprep.mubr.bf16.mxu0 %v4684
      %5764 = vmatmul.mubr.bf16.gmra.mrb[0].mxu0 %v4683
      %v5765 = vpop.f32.mrb[0].mxu0
      %v5766 = vadd.f32 %v4856, %v5765
      %v5767 = vpop.f32.mrb[0].mxu0
      %v5768 = vadd.f32 %v4860, %v5767
      %v5769 = vpop.f32.mrb[0].mxu0
      %v5770 = vadd.f32 %v4856, %v5769
      %v5771 = vpop.f32.mrb[0].mxu0
      %v5772 = vadd.f32 %v4860, %v5771
      %5773 = vmatprep.mubr.bf16.mxu0 %v4688
      %5774 = vmatmul.mubr.bf16.gmra.mrb[0].mxu0 %v4687
      %v5775 = vpop.f32.mrb[0].mxu0
      %v5776 = vadd.f32 %v4856, %v5775
      %v5777 = vpop.f32.mrb[0].mxu0
      %v5778 = vadd.f32 %v4860, %v5777
      %v5779 = vpop.f32.mrb[0].mxu0
      %v5780 = vadd.f32 %v4856, %v5779
      %v5781 = vpop.f32.mrb[0].mxu0
      %v5782 = vadd.f32 %v4860, %v5781
      %5783 = vmatprep.mubr.bf16.mxu0 %v4692
      %5784 = vmatmul.mubr.bf16.gmra.mrb[0].mxu0 %v4691
      %v5785 = vpop.f32.mrb[0].mxu0
      %v5786 = vadd.f32 %v4856, %v5785
      %v5787 = vpop.f32.mrb[0].mxu0
      %v5788 = vadd.f32 %v4860, %v5787
      %v5789 = vpop.f32.mrb[0].mxu0
      %v5790 = vadd.f32 %v4856, %v5789
      %v5791 = vpop.f32.mrb[0].mxu0
      %v5792 = vadd.f32 %v4860, %v5791
      %5793 = vmatprep.mubr.bf16.mxu0 %v4696
      %5794 = vmatmul.mubr.bf16.gmra.mrb[0].mxu0 %v4695
      %v5795 = vpop.f32.mrb[0].mxu0
      %v5796 = vadd.f32 %v4856, %v5795
      %v5797 = vpop.f32.mrb[0].mxu0
      %v5798 = vadd.f32 %v4860, %v5797
      %v5799 = vpop.f32.mrb[0].mxu0
      %v5800 = vadd.f32 %v4856, %v5799
      %v5801 = vpop.f32.mrb[0].mxu0
      %v5802 = vadd.f32 %v4860, %v5801
      %5803 = vmatprep.mubr.bf16.mxu0 %v4700
      %5804 = vmatmul.mubr.bf16.gmra.mrb[0].mxu0 %v4699
      %v5805 = vpop.f32.mrb[0].mxu0
      %v5806 = vadd.f32 %v4856, %v5805
      %v5807 = vpop.f32.mrb[0].mxu0
      %v5808 = vadd.f32 %v4860, %v5807
      %v5809 = vpop.f32.mrb[0].mxu0
      %v5810 = vadd.f32 %v4856, %v5809
      %v5811 = vpop.f32.mrb[0].mxu0
      %v5812 = vadd.f32 %v4860, %v5811
      %5813 = vmatprep.mubr.bf16.mxu0 %v4704
      %5814 = vmatmul.mubr.bf16.gmra.mrb[0].mxu0 %v4703
      %v5815 = vpop.f32.mrb[0].mxu0
      %v5816 = vadd.f32 %v4856, %v5815
      %v5817 = vpop.f32.mrb[0].mxu0
      %v5818 = vadd.f32 %v4860, %v5817
      %v5819 = vpop.f32.mrb[0].mxu0
      %v5820 = vadd.f32 %v4856, %v5819
      %v5821 = vpop.f32.mrb[0].mxu0
      %v5822 = vadd.f32 %v4860, %v5821
      %5823 = vmatprep.mubr.bf16.mxu0 %v4708
      %5824 = vmatmul.mubr.bf16.gmra.mrb[0].mxu0 %v4707
      %v5825 = vpop.f32.mrb[0].mxu0
      %v5826 = vadd.f32 %v4856, %v5825
      %v5827 = vpop.f32.mrb[0].mxu0
      %v5828 = vadd.f32 %v4860, %v5827
      %v5829 = vpop.f32.mrb[0].mxu0
      %v5830 = vadd.f32 %v4856, %v5829
      %v5831 = vpop.f32.mrb[0].mxu0
      %v5832 = vadd.f32 %v4860, %v5831
      %5833 = vmatprep.mubr.bf16.mxu0 %v4712
      %5834 = vmatmul.mubr.bf16.gmra.mrb[0].mxu0 %v4711
      %v5835 = vpop.f32.mrb[0].mxu0
      %v5836 = vadd.f32 %v4856, %v5835
      %v5837 = vpop.f32.mrb[0].mxu0
      %v5838 = vadd.f32 %v4860, %v5837
      %v5839 = vpop.f32.mrb[0].mxu0
      %v5840 = vadd.f32 %v4856, %v5839
      %v5841 = vpop.f32.mrb[0].mxu0
      %v5842 = vadd.f32 %v4860, %v5841
      %5843 = vdwg.mxu0
      %5844 = vmatprep.subr.bf16.mxu0 %v5316
      %5845 = vmatpush1.bf16.msra.mxu0 %v5315
      %5846 = vmatprep.subr.bf16.mxu0 %v5320
      %5847 = vmatpush1.bf16.msra.mxu0 %v5319
      %5848 = vmatprep.subr.bf16.mxu0 %v5324
      %5849 = vmatpush1.bf16.msra.mxu0 %v5323
      %5850 = vmatprep.subr.bf16.mxu0 %v5328
      %5851 = vmatpush1.bf16.msra.mxu0 %v5327
      %5852 = vmatprep.subr.bf16.mxu0 %v5332
      %5853 = vmatpush1.bf16.msra.mxu0 %v5331
      %5854 = vmatprep.subr.bf16.mxu0 %v5336
      %5855 = vmatpush1.bf16.msra.mxu0 %v5335
      %5856 = vmatprep.subr.bf16.mxu0 %v5340
      %5857 = vmatpush1.bf16.msra.mxu0 %v5339
      %5858 = vmatprep.subr.bf16.mxu0 %v5344
      %5859 = vmatpush1.bf16.msra.mxu0 %v5343
      %5860 = vmatprep.subr.bf16.mxu0 %v5348
      %5861 = vmatpush1.bf16.msra.mxu0 %v5347
      %5862 = vmatprep.subr.bf16.mxu0 %v5352
      %5863 = vmatpush1.bf16.msra.mxu0 %v5351
      %5864 = vmatprep.subr.bf16.mxu0 %v5356
      %5865 = vmatpush1.bf16.msra.mxu0 %v5355
      %5866 = vmatprep.subr.bf16.mxu0 %v5360
      %5867 = vmatpush1.bf16.msra.mxu0 %v5359
      %5868 = vmatprep.subr.bf16.mxu0 %v5364
      %5869 = vmatpush1.bf16.msra.mxu0 %v5363
      %5870 = vmatprep.subr.bf16.mxu0 %v5368
      %5871 = vmatpush1.bf16.msra.mxu0 %v5367
      %5872 = vmatprep.subr.bf16.mxu0 %v5372
      %5873 = vmatpush1.bf16.msra.mxu0 %v5371
      %5874 = vmatprep.subr.bf16.mxu0 %v5376
      %5875 = vmatpush1.bf16.msra.mxu0 %v5375
      %5876 = vmatprep.mubr.bf16.mxu0 %v4686
      %5877 = vmatmul.mubr.bf16.gmra.mrb[0].mxu0 %v4685
      %v5878 = vpop.f32.mrb[0].mxu0
      %v5879 = vadd.f32 %v5766, %v5878
      %v5880 = vpop.f32.mrb[0].mxu0
      %v5881 = vadd.f32 %v5768, %v5880
      %v5882 = vpop.f32.mrb[0].mxu0
      %v5883 = vadd.f32 %v5770, %v5882
      %v5884 = vpop.f32.mrb[0].mxu0
      %v5885 = vadd.f32 %v5772, %v5884
      %5886 = vmatprep.mubr.bf16.mxu0 %v4690
      %5887 = vmatmul.mubr.bf16.gmra.mrb[0].mxu0 %v4689
      %v5888 = vpop.f32.mrb[0].mxu0
      %v5889 = vadd.f32 %v5776, %v5888
      %v5890 = vpop.f32.mrb[0].mxu0
      %v5891 = vadd.f32 %v5778, %v5890
      %v5892 = vpop.f32.mrb[0].mxu0
      %v5893 = vadd.f32 %v5780, %v5892
      %v5894 = vpop.f32.mrb[0].mxu0
      %v5895 = vadd.f32 %v5782, %v5894
      %5896 = vmatprep.mubr.bf16.mxu0 %v4694
      %5897 = vmatmul.mubr.bf16.gmra.mrb[0].mxu0 %v4693
      %v5898 = vpop.f32.mrb[0].mxu0
      %v5899 = vadd.f32 %v5786, %v5898
      %v5900 = vpop.f32.mrb[0].mxu0
      %v5901 = vadd.f32 %v5788, %v5900
      %v5902 = vpop.f32.mrb[0].mxu0
      %v5903 = vadd.f32 %v5790, %v5902
      %v5904 = vpop.f32.mrb[0].mxu0
      %v5905 = vadd.f32 %v5792, %v5904
      %5906 = vmatprep.mubr.bf16.mxu0 %v4698
      %5907 = vmatmul.mubr.bf16.gmra.mrb[0].mxu0 %v4697
      %v5908 = vpop.f32.mrb[0].mxu0
      %v5909 = vadd.f32 %v5796, %v5908
      %v5910 = vpop.f32.mrb[0].mxu0
      %v5911 = vadd.f32 %v5798, %v5910
      %v5912 = vpop.f32.mrb[0].mxu0
      %v5913 = vadd.f32 %v5800, %v5912
      %v5914 = vpop.f32.mrb[0].mxu0
      %v5915 = vadd.f32 %v5802, %v5914
      %5916 = vmatprep.mubr.bf16.mxu0 %v4702
      %5917 = vmatmul.mubr.bf16.gmra.mrb[0].mxu0 %v4701
      %v5918 = vpop.f32.mrb[0].mxu0
      %v5919 = vadd.f32 %v5806, %v5918
      %v5920 = vpop.f32.mrb[0].mxu0
      %v5921 = vadd.f32 %v5808, %v5920
      %v5922 = vpop.f32.mrb[0].mxu0
      %v5923 = vadd.f32 %v5810, %v5922
      %v5924 = vpop.f32.mrb[0].mxu0
      %v5925 = vadd.f32 %v5812, %v5924
      %5926 = vmatprep.mubr.bf16.mxu0 %v4706
      %5927 = vmatmul.mubr.bf16.gmra.mrb[0].mxu0 %v4705
      %v5928 = vpop.f32.mrb[0].mxu0
      %v5929 = vadd.f32 %v5816, %v5928
      %v5930 = vpop.f32.mrb[0].mxu0
      %v5931 = vadd.f32 %v5818, %v5930
      %v5932 = vpop.f32.mrb[0].mxu0
      %v5933 = vadd.f32 %v5820, %v5932
      %v5934 = vpop.f32.mrb[0].mxu0
      %v5935 = vadd.f32 %v5822, %v5934
      %5936 = vmatprep.mubr.bf16.mxu0 %v4710
      %5937 = vmatmul.mubr.bf16.gmra.mrb[0].mxu0 %v4709
      %v5938 = vpop.f32.mrb[0].mxu0
      %v5939 = vadd.f32 %v5826, %v5938
      %v5940 = vpop.f32.mrb[0].mxu0
      %v5941 = vadd.f32 %v5828, %v5940
      %v5942 = vpop.f32.mrb[0].mxu0
      %v5943 = vadd.f32 %v5830, %v5942
      %v5944 = vpop.f32.mrb[0].mxu0
      %v5945 = vadd.f32 %v5832, %v5944
      %5946 = vmatprep.mubr.bf16.mxu0 %v4714
      %5947 = vmatmul.mubr.bf16.gmra.mrb[0].mxu0 %v4713
      %v5948 = vpop.f32.mrb[0].mxu0
      %v5949 = vadd.f32 %v5836, %v5948
      %v5950 = vpop.f32.mrb[0].mxu0
      %v5951 = vadd.f32 %v5838, %v5950
      %v5952 = vpop.f32.mrb[0].mxu0
      %v5953 = vadd.f32 %v5840, %v5952
      %v5954 = vpop.f32.mrb[0].mxu0
      %v5955 = vadd.f32 %v5842, %v5954
      %5956 = vdwg.mxu0
      %v5957 = vmul.f32 %v5879, 0.5
      %v5958 = vmul.f32 %v5881, 0.5
      %v5959 = vmul.f32 %v5883, 0.5
      %v5960 = vmul.f32 %v5885, 0.5
      %v5961 = vmul.f32 %v5889, 0.5
      %v5962 = vmul.f32 %v5891, 0.5
      %v5963 = vmul.f32 %v5893, 0.5
      %v5964 = vmul.f32 %v5895, 0.5
      %v5965 = vmul.f32 %v5899, 0.5
      %v5966 = vmul.f32 %v5901, 0.5
      %v5967 = vmul.f32 %v5903, 0.5
      %v5968 = vmul.f32 %v5905, 0.5
      %v5969 = vmul.f32 %v5909, 0.5
      %v5970 = vmul.f32 %v5911, 0.5
      %v5971 = vmul.f32 %v5913, 0.5
      %v5972 = vmul.f32 %v5915, 0.5
      %v5973 = vmul.f32 %v5919, 0.5
      %v5974 = vmul.f32 %v5921, 0.5
      %v5975 = vmul.f32 %v5923, 0.5
      %v5976 = vmul.f32 %v5925, 0.5
      %v5977 = vmul.f32 %v5929, 0.5
      %v5978 = vmul.f32 %v5931, 0.5
      %v5979 = vmul.f32 %v5933, 0.5
      %v5980 = vmul.f32 %v5935, 0.5
      %v5981 = vmul.f32 %v5939, 0.5
      %v5982 = vmul.f32 %v5941, 0.5
      %v5983 = vmul.f32 %v5943, 0.5
      %v5984 = vmul.f32 %v5945, 0.5
      %v5985 = vmul.f32 %v5949, 0.5
      %v5986 = vmul.f32 %v5951, 0.5
      %v5987 = vmul.f32 %v5953, 0.5
      %v5988 = vmul.f32 %v5955, 0.5
      %v5989 = vmul.f32 %v5957, 1.442695
      %v5990 = vpow.pop %v5989
      %v5991 = vmul.f32 %v5958, 1.442695
      %v5992 = vpow.pop %v5991
      %v5993 = vmul.f32 %v5959, 1.442695
      %v5994 = vpow.pop %v5993
      %v5995 = vmul.f32 %v5960, 1.442695
      %v5996 = vpow.pop %v5995
      %v5997 = vmul.f32 %v5961, 1.442695
      %v5998 = vpow.pop %v5997
      %v5999 = vmul.f32 %v5962, 1.442695
      %v6000 = vpow.pop %v5999
      %v6001 = vmul.f32 %v5963, 1.442695
      %v6002 = vpow.pop %v6001
      %v6003 = vmul.f32 %v5964, 1.442695
      %v6004 = vpow.pop %v6003
      %v6005 = vmul.f32 %v5965, 1.442695
      %v6006 = vpow.pop %v6005
      %v6007 = vmul.f32 %v5966, 1.442695
      %v6008 = vpow.pop %v6007
      %v6009 = vmul.f32 %v5967, 1.442695
      %v6010 = vpow.pop %v6009
      %v6011 = vmul.f32 %v5968, 1.442695
      %v6012 = vpow.pop %v6011
      %v6013 = vmul.f32 %v5969, 1.442695
      %v6014 = vpow.pop %v6013
      %v6015 = vmul.f32 %v5970, 1.442695
      %v6016 = vpow.pop %v6015
      %v6017 = vmul.f32 %v5971, 1.442695
      %v6018 = vpow.pop %v6017
      %v6019 = vmul.f32 %v5972, 1.442695
      %v6020 = vpow.pop %v6019
      %v6021 = vmul.f32 %v5973, 1.442695
      %v6022 = vpow.pop %v6021
      %v6023 = vmul.f32 %v5974, 1.442695
      %v6024 = vpow.pop %v6023
      %v6025 = vmul.f32 %v5975, 1.442695
      %v6026 = vpow.pop %v6025
      %v6027 = vmul.f32 %v5976, 1.442695
      %v6028 = vpow.pop %v6027
      %v6029 = vmul.f32 %v5977, 1.442695
      %v6030 = vpow.pop %v6029
      %v6031 = vmul.f32 %v5978, 1.442695
      %v6032 = vpow.pop %v6031
      %v6033 = vmul.f32 %v5979, 1.442695
      %v6034 = vpow.pop %v6033
      %v6035 = vmul.f32 %v5980, 1.442695
      %v6036 = vpow.pop %v6035
      %v6037 = vmul.f32 %v5981, 1.442695
      %v6038 = vpow.pop %v6037
      %v6039 = vmul.f32 %v5982, 1.442695
      %v6040 = vpow.pop %v6039
      %v6041 = vmul.f32 %v5983, 1.442695
      %v6042 = vpow.pop %v6041
      %v6043 = vmul.f32 %v5984, 1.442695
      %v6044 = vpow.pop %v6043
      %v6045 = vmul.f32 %v5985, 1.442695
      %v6046 = vpow.pop %v6045
      %v6047 = vmul.f32 %v5986, 1.442695
      %v6048 = vpow.pop %v6047
      %v6049 = vmul.f32 %v5987, 1.442695
      %v6050 = vpow.pop %v6049
      %v6051 = vmul.f32 %v5988, 1.442695
      %v6052 = vpow.pop %v6051
      %v6053 = vld [vmem:[%s563] sm:$0xff]
      %v6054 = vld [vmem:[%s563 + $0x8] sm:$0xff]
      %v6055 = vld [vmem:[%s563 + $0x10] sm:$0xff]
      %v6056 = vld [vmem:[%s563 + $0x18] sm:$0xff]
      %v6057 = vld [vmem:[%s563 + $0x20] sm:$0xff]
      %v6058 = vld [vmem:[%s563 + $0x28] sm:$0xff]
      %v6059 = vld [vmem:[%s563 + $0x30] sm:$0xff]
      %v6060 = vld [vmem:[%s563 + $0x38] sm:$0xff]
      %v6061 = vld [vmem:[%s563 + $0x40] sm:$0xff]
      %v6062 = vld [vmem:[%s563 + $0x48] sm:$0xff]
      %v6063 = vld [vmem:[%s563 + $0x50] sm:$0xff]
      %v6064 = vld [vmem:[%s563 + $0x58] sm:$0xff]
      %v6065 = vld [vmem:[%s563 + $0x60] sm:$0xff]
      %v6066 = vld [vmem:[%s563 + $0x68] sm:$0xff]
      %v6067 = vld [vmem:[%s563 + $0x70] sm:$0xff]
      %v6068 = vld [vmem:[%s563 + $0x78] sm:$0xff]
      %v6069 = vld [vmem:[%s563 + $0x80] sm:$0xff]
      %v6070 = vld [vmem:[%s563 + $0x88] sm:$0xff]
      %v6071 = vld [vmem:[%s563 + $0x90] sm:$0xff]
      %v6072 = vld [vmem:[%s563 + $0x98] sm:$0xff]
      %v6073 = vld [vmem:[%s563 + $0xa0] sm:$0xff]
      %v6074 = vld [vmem:[%s563 + $0xa8] sm:$0xff]
      %v6075 = vld [vmem:[%s563 + $0xb0] sm:$0xff]
      %v6076 = vld [vmem:[%s563 + $0xb8] sm:$0xff]
      %v6077 = vld [vmem:[%s563 + $0xc0] sm:$0xff]
      %v6078 = vld [vmem:[%s563 + $0xc8] sm:$0xff]
      %v6079 = vld [vmem:[%s563 + $0xd0] sm:$0xff]
      %v6080 = vld [vmem:[%s563 + $0xd8] sm:$0xff]
      %v6081 = vld [vmem:[%s563 + $0xe0] sm:$0xff]
      %v6082 = vld [vmem:[%s563 + $0xe8] sm:$0xff]
      %v6083 = vld [vmem:[%s563 + $0xf0] sm:$0xff]
      %v6084 = vld [vmem:[%s563 + $0xf8] sm:$0xff]
      %v6085 = vmul.f32 %v5990, %v6053
      %v6086 = vmul.f32 %v5992, %v6054
      %v6087 = vmul.f32 %v5994, %v6055
      %v6088 = vmul.f32 %v5996, %v6056
      %v6089 = vmul.f32 %v5998, %v6057
      %v6090 = vmul.f32 %v6000, %v6058
      %v6091 = vmul.f32 %v6002, %v6059
      %v6092 = vmul.f32 %v6004, %v6060
      %v6093 = vmul.f32 %v6006, %v6061
      %v6094 = vmul.f32 %v6008, %v6062
      %v6095 = vmul.f32 %v6010, %v6063
      %v6096 = vmul.f32 %v6012, %v6064
      %v6097 = vmul.f32 %v6014, %v6065
      %v6098 = vmul.f32 %v6016, %v6066
      %v6099 = vmul.f32 %v6018, %v6067
      %v6100 = vmul.f32 %v6020, %v6068
      %v6101 = vmul.f32 %v6022, %v6069
      %v6102 = vmul.f32 %v6024, %v6070
      %v6103 = vmul.f32 %v6026, %v6071
      %v6104 = vmul.f32 %v6028, %v6072
      %v6105 = vmul.f32 %v6030, %v6073
      %v6106 = vmul.f32 %v6032, %v6074
      %v6107 = vmul.f32 %v6034, %v6075
      %v6108 = vmul.f32 %v6036, %v6076
      %v6109 = vmul.f32 %v6038, %v6077
      %v6110 = vmul.f32 %v6040, %v6078
      %v6111 = vmul.f32 %v6042, %v6079
      %v6112 = vmul.f32 %v6044, %v6080
      %v6113 = vmul.f32 %v6046, %v6081
      %v6114 = vmul.f32 %v6048, %v6082
      %v6115 = vmul.f32 %v6050, %v6083
      %v6116 = vmul.f32 %v6052, %v6084
      %v6117 = vadd.f32 %v5653, %v6085
      %v6118 = vadd.f32 %v5655, %v6086
      %v6119 = vadd.f32 %v5657, %v6087
      %v6120 = vadd.f32 %v5659, %v6088
      %v6121 = vadd.f32 %v5663, %v6089
      %v6122 = vadd.f32 %v5665, %v6090
      %v6123 = vadd.f32 %v5667, %v6091
      %v6124 = vadd.f32 %v5669, %v6092
      %v6125 = vadd.f32 %v5673, %v6093
      %v6126 = vadd.f32 %v5675, %v6094
      %v6127 = vadd.f32 %v5677, %v6095
      %v6128 = vadd.f32 %v5679, %v6096
      %v6129 = vadd.f32 %v5683, %v6097
      %v6130 = vadd.f32 %v5685, %v6098
      %v6131 = vadd.f32 %v5687, %v6099
      %v6132 = vadd.f32 %v5689, %v6100
      %v6133 = vadd.f32 %v5693, %v6101
      %v6134 = vadd.f32 %v5695, %v6102
      %v6135 = vadd.f32 %v5697, %v6103
      %v6136 = vadd.f32 %v5699, %v6104
      %v6137 = vadd.f32 %v5703, %v6105
      %v6138 = vadd.f32 %v5705, %v6106
      %v6139 = vadd.f32 %v5707, %v6107
      %v6140 = vadd.f32 %v5709, %v6108
      %v6141 = vadd.f32 %v5713, %v6109
      %v6142 = vadd.f32 %v5715, %v6110
      %v6143 = vadd.f32 %v5717, %v6111
      %v6144 = vadd.f32 %v5719, %v6112
      %v6145 = vadd.f32 %v5723, %v6113
      %v6146 = vadd.f32 %v5725, %v6114
      %v6147 = vadd.f32 %v5727, %v6115
      %v6148 = vadd.f32 %v5729, %v6116
      %v6149 = vpack.c.bf16 %v6119, %v6117
      %v6150 = vpack.c.bf16 %v6120, %v6118
      %v6151 = vpack.c.bf16 %v6123, %v6121
      %v6152 = vpack.c.bf16 %v6124, %v6122
      %v6153 = vpack.c.bf16 %v6127, %v6125
      %v6154 = vpack.c.bf16 %v6128, %v6126
      %v6155 = vpack.c.bf16 %v6131, %v6129
      %v6156 = vpack.c.bf16 %v6132, %v6130
      %v6157 = vpack.c.bf16 %v6135, %v6133
      %v6158 = vpack.c.bf16 %v6136, %v6134
      %v6159 = vpack.c.bf16 %v6139, %v6137
      %v6160 = vpack.c.bf16 %v6140, %v6138
      %v6161 = vpack.c.bf16 %v6143, %v6141
      %v6162 = vpack.c.bf16 %v6144, %v6142
      %v6163 = vpack.c.bf16 %v6147, %v6145
      %v6164 = vpack.c.bf16 %v6148, %v6146
      %v6165 = vld [vmem:[%s8] sm:$0xff]
      %v6166 = vld [vmem:[%s8 + $0x8] sm:$0xff]
      %v6167 = vld [vmem:[%s8 + $0x10] sm:$0xff]
      %v6168 = vld [vmem:[%s8 + $0x18] sm:$0xff]
      %v6169 = vld [vmem:[%s8 + $0x20] sm:$0xff]
      %v6170 = vld [vmem:[%s8 + $0x28] sm:$0xff]
      %v6171 = vld [vmem:[%s8 + $0x30] sm:$0xff]
      %v6172 = vld [vmem:[%s8 + $0x38] sm:$0xff]
      %v6173 = vld [vmem:[%s8 + $0x40] sm:$0xff]
      %v6174 = vld [vmem:[%s8 + $0x48] sm:$0xff]
      %v6175 = vld [vmem:[%s8 + $0x50] sm:$0xff]
      %v6176 = vld [vmem:[%s8 + $0x58] sm:$0xff]
      %v6177 = vld [vmem:[%s8 + $0x60] sm:$0xff]
      %v6178 = vld [vmem:[%s8 + $0x68] sm:$0xff]
      %v6179 = vld [vmem:[%s8 + $0x70] sm:$0xff]
      %v6180 = vld [vmem:[%s8 + $0x78] sm:$0xff]
      %v6181 = vld [vmem:[%s8 + $0x80] sm:$0xff]
      %v6182 = vld [vmem:[%s8 + $0x88] sm:$0xff]
      %v6183 = vld [vmem:[%s8 + $0x90] sm:$0xff]
      %v6184 = vld [vmem:[%s8 + $0x98] sm:$0xff]
      %v6185 = vld [vmem:[%s8 + $0xa0] sm:$0xff]
      %v6186 = vld [vmem:[%s8 + $0xa8] sm:$0xff]
      %v6187 = vld [vmem:[%s8 + $0xb0] sm:$0xff]
      %v6188 = vld [vmem:[%s8 + $0xb8] sm:$0xff]
      %v6189 = vld [vmem:[%s8 + $0xc0] sm:$0xff]
      %v6190 = vld [vmem:[%s8 + $0xc8] sm:$0xff]
      %v6191 = vld [vmem:[%s8 + $0xd0] sm:$0xff]
      %v6192 = vld [vmem:[%s8 + $0xd8] sm:$0xff]
      %v6193 = vld [vmem:[%s8 + $0xe0] sm:$0xff]
      %v6194 = vld [vmem:[%s8 + $0xe8] sm:$0xff]
      %v6195 = vld [vmem:[%s8 + $0xf0] sm:$0xff]
      %v6196 = vld [vmem:[%s8 + $0xf8] sm:$0xff]
      %v6197 = vld [vmem:[%s8 + $0x100] sm:$0xff]
      %v6198 = vld [vmem:[%s8 + $0x108] sm:$0xff]
      %v6199 = vld [vmem:[%s8 + $0x110] sm:$0xff]
      %v6200 = vld [vmem:[%s8 + $0x118] sm:$0xff]
      %v6201 = vld [vmem:[%s8 + $0x120] sm:$0xff]
      %v6202 = vld [vmem:[%s8 + $0x128] sm:$0xff]
      %v6203 = vld [vmem:[%s8 + $0x130] sm:$0xff]
      %v6204 = vld [vmem:[%s8 + $0x138] sm:$0xff]
      %v6205 = vld [vmem:[%s8 + $0x140] sm:$0xff]
      %v6206 = vld [vmem:[%s8 + $0x148] sm:$0xff]
      %v6207 = vld [vmem:[%s8 + $0x150] sm:$0xff]
      %v6208 = vld [vmem:[%s8 + $0x158] sm:$0xff]
      %v6209 = vld [vmem:[%s8 + $0x160] sm:$0xff]
      %v6210 = vld [vmem:[%s8 + $0x168] sm:$0xff]
      %v6211 = vld [vmem:[%s8 + $0x170] sm:$0xff]
      %v6212 = vld [vmem:[%s8 + $0x178] sm:$0xff]
      %v6213 = vld [vmem:[%s8 + $0x180] sm:$0xff]
      %v6214 = vld [vmem:[%s8 + $0x188] sm:$0xff]
      %v6215 = vld [vmem:[%s8 + $0x190] sm:$0xff]
      %v6216 = vld [vmem:[%s8 + $0x198] sm:$0xff]
      %v6217 = vld [vmem:[%s8 + $0x1a0] sm:$0xff]
      %v6218 = vld [vmem:[%s8 + $0x1a8] sm:$0xff]
      %v6219 = vld [vmem:[%s8 + $0x1b0] sm:$0xff]
      %v6220 = vld [vmem:[%s8 + $0x1b8] sm:$0xff]
      %v6221 = vld [vmem:[%s8 + $0x1c0] sm:$0xff]
      %v6222 = vld [vmem:[%s8 + $0x1c8] sm:$0xff]
      %v6223 = vld [vmem:[%s8 + $0x1d0] sm:$0xff]
      %v6224 = vld [vmem:[%s8 + $0x1d8] sm:$0xff]
      %v6225 = vld [vmem:[%s8 + $0x1e0] sm:$0xff]
      %v6226 = vld [vmem:[%s8 + $0x1e8] sm:$0xff]
      %v6227 = vld [vmem:[%s8 + $0x1f0] sm:$0xff]
      %v6228 = vld [vmem:[%s8 + $0x1f8] sm:$0xff]
      %v6229 = vld [vmem:[%s9] sm:$0xf]
      %v6231 = vlaneseq
      %v6232 = vshrl.u32 %v6231, 7
      %v6233 = vsub.s32 0, %v6232
      %v6234 = vrot.slane %v6229, %v6233
      %v6235 = vlaneseq
      %v6236 = vshrl.u32 %v6235, 7
      %v6237 = vsub.s32 1, %v6236
      %v6238 = vrot.slane %v6229, %v6237
      %v6239 = vlaneseq
      %v6240 = vshrl.u32 %v6239, 7
      %v6241 = vsub.s32 2, %v6240
      %v6242 = vrot.slane %v6229, %v6241
      %v6243 = vlaneseq
      %v6244 = vshrl.u32 %v6243, 7
      %v6245 = vsub.s32 3, %v6244
      %v6246 = vrot.slane %v6229, %v6245
      %v6315 = vunpack.c.l.b16 %v6165
      %v6316 = vunpack.c.h.b16 %v6165
      %v6317 = vunpack.c.l.b16 %v6166
      %v6318 = vunpack.c.h.b16 %v6166
      %v6319 = vunpack.c.l.b16 %v6167
      %v6320 = vunpack.c.h.b16 %v6167
      %v6321 = vunpack.c.l.b16 %v6168
      %v6322 = vunpack.c.h.b16 %v6168
      %v6323 = vunpack.c.l.b16 %v6169
      %v6324 = vunpack.c.h.b16 %v6169
      %v6325 = vunpack.c.l.b16 %v6170
      %v6326 = vunpack.c.h.b16 %v6170
      %v6327 = vunpack.c.l.b16 %v6171
      %v6328 = vunpack.c.h.b16 %v6171
      %v6329 = vunpack.c.l.b16 %v6172
      %v6330 = vunpack.c.h.b16 %v6172
      %v6331 = vunpack.c.l.b16 %v6173
      %v6332 = vunpack.c.h.b16 %v6173
      %v6333 = vunpack.c.l.b16 %v6174
      %v6334 = vunpack.c.h.b16 %v6174
      %v6335 = vunpack.c.l.b16 %v6175
      %v6336 = vunpack.c.h.b16 %v6175
      %v6337 = vunpack.c.l.b16 %v6176
      %v6338 = vunpack.c.h.b16 %v6176
      %v6339 = vunpack.c.l.b16 %v6177
      %v6340 = vunpack.c.h.b16 %v6177
      %v6341 = vunpack.c.l.b16 %v6178
      %v6342 = vunpack.c.h.b16 %v6178
      %v6343 = vunpack.c.l.b16 %v6179
      %v6344 = vunpack.c.h.b16 %v6179
      %v6345 = vunpack.c.l.b16 %v6180
      %v6346 = vunpack.c.h.b16 %v6180
      %v6347 = vunpack.c.l.b16 %v6181
      %v6348 = vunpack.c.h.b16 %v6181
      %v6349 = vunpack.c.l.b16 %v6182
      %v6350 = vunpack.c.h.b16 %v6182
      %v6351 = vunpack.c.l.b16 %v6183
      %v6352 = vunpack.c.h.b16 %v6183
      %v6353 = vunpack.c.l.b16 %v6184
      %v6354 = vunpack.c.h.b16 %v6184
      %v6355 = vunpack.c.l.b16 %v6185
      %v6356 = vunpack.c.h.b16 %v6185
      %v6357 = vunpack.c.l.b16 %v6186
      %v6358 = vunpack.c.h.b16 %v6186
      %v6359 = vunpack.c.l.b16 %v6187
      %v6360 = vunpack.c.h.b16 %v6187
      %v6361 = vunpack.c.l.b16 %v6188
      %v6362 = vunpack.c.h.b16 %v6188
      %v6363 = vunpack.c.l.b16 %v6189
      %v6364 = vunpack.c.h.b16 %v6189
      %v6365 = vunpack.c.l.b16 %v6190
      %v6366 = vunpack.c.h.b16 %v6190
      %v6367 = vunpack.c.l.b16 %v6191
      %v6368 = vunpack.c.h.b16 %v6191
      %v6369 = vunpack.c.l.b16 %v6192
      %v6370 = vunpack.c.h.b16 %v6192
      %v6371 = vunpack.c.l.b16 %v6193
      %v6372 = vunpack.c.h.b16 %v6193
      %v6373 = vunpack.c.l.b16 %v6194
      %v6374 = vunpack.c.h.b16 %v6194
      %v6375 = vunpack.c.l.b16 %v6195
      %v6376 = vunpack.c.h.b16 %v6195
      %v6377 = vunpack.c.l.b16 %v6196
      %v6378 = vunpack.c.h.b16 %v6196
      %v6379 = vunpack.c.l.b16 %v6197
      %v6380 = vunpack.c.h.b16 %v6197
      %v6381 = vunpack.c.l.b16 %v6198
      %v6382 = vunpack.c.h.b16 %v6198
      %v6383 = vunpack.c.l.b16 %v6199
      %v6384 = vunpack.c.h.b16 %v6199
      %v6385 = vunpack.c.l.b16 %v6200
      %v6386 = vunpack.c.h.b16 %v6200
      %v6387 = vunpack.c.l.b16 %v6201
      %v6388 = vunpack.c.h.b16 %v6201
      %v6389 = vunpack.c.l.b16 %v6202
      %v6390 = vunpack.c.h.b16 %v6202
      %v6391 = vunpack.c.l.b16 %v6203
      %v6392 = vunpack.c.h.b16 %v6203
      %v6393 = vunpack.c.l.b16 %v6204
      %v6394 = vunpack.c.h.b16 %v6204
      %v6395 = vunpack.c.l.b16 %v6205
      %v6396 = vunpack.c.h.b16 %v6205
      %v6397 = vunpack.c.l.b16 %v6206
      %v6398 = vunpack.c.h.b16 %v6206
      %v6399 = vunpack.c.l.b16 %v6207
      %v6400 = vunpack.c.h.b16 %v6207
      %v6401 = vunpack.c.l.b16 %v6208
      %v6402 = vunpack.c.h.b16 %v6208
      %v6403 = vunpack.c.l.b16 %v6209
      %v6404 = vunpack.c.h.b16 %v6209
      %v6405 = vunpack.c.l.b16 %v6210
      %v6406 = vunpack.c.h.b16 %v6210
      %v6407 = vunpack.c.l.b16 %v6211
      %v6408 = vunpack.c.h.b16 %v6211
      %v6409 = vunpack.c.l.b16 %v6212
      %v6410 = vunpack.c.h.b16 %v6212
      %v6411 = vunpack.c.l.b16 %v6213
      %v6412 = vunpack.c.h.b16 %v6213
      %v6413 = vunpack.c.l.b16 %v6214
      %v6414 = vunpack.c.h.b16 %v6214
      %v6415 = vunpack.c.l.b16 %v6215
      %v6416 = vunpack.c.h.b16 %v6215
      %v6417 = vunpack.c.l.b16 %v6216
      %v6418 = vunpack.c.h.b16 %v6216
      %v6419 = vunpack.c.l.b16 %v6217
      %v6420 = vunpack.c.h.b16 %v6217
      %v6421 = vunpack.c.l.b16 %v6218
      %v6422 = vunpack.c.h.b16 %v6218
      %v6423 = vunpack.c.l.b16 %v6219
      %v6424 = vunpack.c.h.b16 %v6219
      %v6425 = vunpack.c.l.b16 %v6220
      %v6426 = vunpack.c.h.b16 %v6220
      %v6427 = vunpack.c.l.b16 %v6221
      %v6428 = vunpack.c.h.b16 %v6221
      %v6429 = vunpack.c.l.b16 %v6222
      %v6430 = vunpack.c.h.b16 %v6222
      %v6431 = vunpack.c.l.b16 %v6223
      %v6432 = vunpack.c.h.b16 %v6223
      %v6433 = vunpack.c.l.b16 %v6224
      %v6434 = vunpack.c.h.b16 %v6224
      %v6435 = vunpack.c.l.b16 %v6225
      %v6436 = vunpack.c.h.b16 %v6225
      %v6437 = vunpack.c.l.b16 %v6226
      %v6438 = vunpack.c.h.b16 %v6226
      %v6439 = vunpack.c.l.b16 %v6227
      %v6440 = vunpack.c.h.b16 %v6227
      %v6441 = vunpack.c.l.b16 %v6228
      %v6442 = vunpack.c.h.b16 %v6228
      %v6443 = vpack.c.b16 %v6319, %v6315
      %v6444 = vpack.c.b16 %v6320, %v6316
      %v6445 = vpack.c.b16 %v6321, %v6317
      %v6446 = vpack.c.b16 %v6322, %v6318
      %v6447 = vpack.c.b16 %v6327, %v6323
      %v6448 = vpack.c.b16 %v6328, %v6324
      %v6449 = vpack.c.b16 %v6329, %v6325
      %v6450 = vpack.c.b16 %v6330, %v6326
      %v6451 = vpack.c.b16 %v6335, %v6331
      %v6452 = vpack.c.b16 %v6336, %v6332
      %v6453 = vpack.c.b16 %v6337, %v6333
      %v6454 = vpack.c.b16 %v6338, %v6334
      %v6455 = vpack.c.b16 %v6343, %v6339
      %v6456 = vpack.c.b16 %v6344, %v6340
      %v6457 = vpack.c.b16 %v6345, %v6341
      %v6458 = vpack.c.b16 %v6346, %v6342
      %v6459 = vpack.c.b16 %v6351, %v6347
      %v6460 = vpack.c.b16 %v6352, %v6348
      %v6461 = vpack.c.b16 %v6353, %v6349
      %v6462 = vpack.c.b16 %v6354, %v6350
      %v6463 = vpack.c.b16 %v6359, %v6355
      %v6464 = vpack.c.b16 %v6360, %v6356
      %v6465 = vpack.c.b16 %v6361, %v6357
      %v6466 = vpack.c.b16 %v6362, %v6358
      %v6467 = vpack.c.b16 %v6367, %v6363
      %v6468 = vpack.c.b16 %v6368, %v6364
      %v6469 = vpack.c.b16 %v6369, %v6365
      %v6470 = vpack.c.b16 %v6370, %v6366
      %v6471 = vpack.c.b16 %v6375, %v6371
      %v6472 = vpack.c.b16 %v6376, %v6372
      %v6473 = vpack.c.b16 %v6377, %v6373
      %v6474 = vpack.c.b16 %v6378, %v6374
      %v6475 = vpack.c.b16 %v6383, %v6379
      %v6476 = vpack.c.b16 %v6384, %v6380
      %v6477 = vpack.c.b16 %v6385, %v6381
      %v6478 = vpack.c.b16 %v6386, %v6382
      %v6479 = vpack.c.b16 %v6391, %v6387
      %v6480 = vpack.c.b16 %v6392, %v6388
      %v6481 = vpack.c.b16 %v6393, %v6389
      %v6482 = vpack.c.b16 %v6394, %v6390
      %v6483 = vpack.c.b16 %v6399, %v6395
      %v6484 = vpack.c.b16 %v6400, %v6396
      %v6485 = vpack.c.b16 %v6401, %v6397
      %v6486 = vpack.c.b16 %v6402, %v6398
      %v6487 = vpack.c.b16 %v6407, %v6403
      %v6488 = vpack.c.b16 %v6408, %v6404
      %v6489 = vpack.c.b16 %v6409, %v6405
      %v6490 = vpack.c.b16 %v6410, %v6406
      %v6491 = vpack.c.b16 %v6415, %v6411
      %v6492 = vpack.c.b16 %v6416, %v6412
      %v6493 = vpack.c.b16 %v6417, %v6413
      %v6494 = vpack.c.b16 %v6418, %v6414
      %v6495 = vpack.c.b16 %v6423, %v6419
      %v6496 = vpack.c.b16 %v6424, %v6420
      %v6497 = vpack.c.b16 %v6425, %v6421
      %v6498 = vpack.c.b16 %v6426, %v6422
      %v6499 = vpack.c.b16 %v6431, %v6427
      %v6500 = vpack.c.b16 %v6432, %v6428
      %v6501 = vpack.c.b16 %v6433, %v6429
      %v6502 = vpack.c.b16 %v6434, %v6430
      %v6503 = vpack.c.b16 %v6439, %v6435
      %v6504 = vpack.c.b16 %v6440, %v6436
      %v6505 = vpack.c.b16 %v6441, %v6437
      %v6506 = vpack.c.b16 %v6442, %v6438
      %6571 = vmatprep.subr.bf16.mxu0 %v6444
      %6572 = vmatpush1.bf16.msra.mxu0 %v6443
      %6573 = vmatprep.subr.bf16.mxu0 %v6448
      %6574 = vmatpush1.bf16.msra.mxu0 %v6447
      %6575 = vmatprep.subr.bf16.mxu0 %v6452
      %6576 = vmatpush1.bf16.msra.mxu0 %v6451
      %6577 = vmatprep.subr.bf16.mxu0 %v6456
      %6578 = vmatpush1.bf16.msra.mxu0 %v6455
      %6579 = vmatprep.subr.bf16.mxu0 %v6460
      %6580 = vmatpush1.bf16.msra.mxu0 %v6459
      %6581 = vmatprep.subr.bf16.mxu0 %v6464
      %6582 = vmatpush1.bf16.msra.mxu0 %v6463
      %6583 = vmatprep.subr.bf16.mxu0 %v6468
      %6584 = vmatpush1.bf16.msra.mxu0 %v6467
      %6585 = vmatprep.subr.bf16.mxu0 %v6472
      %6586 = vmatpush1.bf16.msra.mxu0 %v6471
      %6587 = vmatprep.subr.bf16.mxu0 %v6476
      %6588 = vmatpush1.bf16.msra.mxu0 %v6475
      %6589 = vmatprep.subr.bf16.mxu0 %v6480
      %6590 = vmatpush1.bf16.msra.mxu0 %v6479
      %6591 = vmatprep.subr.bf16.mxu0 %v6484
      %6592 = vmatpush1.bf16.msra.mxu0 %v6483
      %6593 = vmatprep.subr.bf16.mxu0 %v6488
      %6594 = vmatpush1.bf16.msra.mxu0 %v6487
      %6595 = vmatprep.subr.bf16.mxu0 %v6492
      %6596 = vmatpush1.bf16.msra.mxu0 %v6491
      %6597 = vmatprep.subr.bf16.mxu0 %v6496
      %6598 = vmatpush1.bf16.msra.mxu0 %v6495
      %6599 = vmatprep.subr.bf16.mxu0 %v6500
      %6600 = vmatpush1.bf16.msra.mxu0 %v6499
      %6601 = vmatprep.subr.bf16.mxu0 %v6504
      %6602 = vmatpush1.bf16.msra.mxu0 %v6503
      %6603 = vmatprep.mubr.bf16.mxu0 %v6150
      %6604 = vmatmul.mubr.bf16.gmra.mrb[0].mxu0 %v6149
      %v6605 = vpop.f32.mrb[0].mxu0
      %v6606 = vadd.f32 %v6234, %v6605
      %v6607 = vpop.f32.mrb[0].mxu0
      %v6608 = vadd.f32 %v6238, %v6607
      %v6609 = vpop.f32.mrb[0].mxu0
      %v6610 = vadd.f32 %v6234, %v6609
      %v6611 = vpop.f32.mrb[0].mxu0
      %v6612 = vadd.f32 %v6238, %v6611
      %6613 = vmatprep.mubr.bf16.mxu0 %v6152
      %6614 = vmatmul.mubr.bf16.gmra.mrb[0].mxu0 %v6151
      %v6615 = vpop.f32.mrb[0].mxu0
      %v6616 = vadd.f32 %v6234, %v6615
      %v6617 = vpop.f32.mrb[0].mxu0
      %v6618 = vadd.f32 %v6238, %v6617
      %v6619 = vpop.f32.mrb[0].mxu0
      %v6620 = vadd.f32 %v6234, %v6619
      %v6621 = vpop.f32.mrb[0].mxu0
      %v6622 = vadd.f32 %v6238, %v6621
      %6623 = vmatprep.mubr.bf16.mxu0 %v6154
      %6624 = vmatmul.mubr.bf16.gmra.mrb[0].mxu0 %v6153
      %v6625 = vpop.f32.mrb[0].mxu0
      %v6626 = vadd.f32 %v6234, %v6625
      %v6627 = vpop.f32.mrb[0].mxu0
      %v6628 = vadd.f32 %v6238, %v6627
      %v6629 = vpop.f32.mrb[0].mxu0
      %v6630 = vadd.f32 %v6234, %v6629
      %v6631 = vpop.f32.mrb[0].mxu0
      %v6632 = vadd.f32 %v6238, %v6631
      %6633 = vmatprep.mubr.bf16.mxu0 %v6156
      %6634 = vmatmul.mubr.bf16.gmra.mrb[0].mxu0 %v6155
      %v6635 = vpop.f32.mrb[0].mxu0
      %v6636 = vadd.f32 %v6234, %v6635
      %v6637 = vpop.f32.mrb[0].mxu0
      %v6638 = vadd.f32 %v6238, %v6637
      %v6639 = vpop.f32.mrb[0].mxu0
      %v6640 = vadd.f32 %v6234, %v6639
      %v6641 = vpop.f32.mrb[0].mxu0
      %v6642 = vadd.f32 %v6238, %v6641
      %6643 = vmatprep.mubr.bf16.mxu0 %v6158
      %6644 = vmatmul.mubr.bf16.gmra.mrb[0].mxu0 %v6157
      %v6645 = vpop.f32.mrb[0].mxu0
      %v6646 = vadd.f32 %v6234, %v6645
      %v6647 = vpop.f32.mrb[0].mxu0
      %v6648 = vadd.f32 %v6238, %v6647
      %v6649 = vpop.f32.mrb[0].mxu0
      %v6650 = vadd.f32 %v6234, %v6649
      %v6651 = vpop.f32.mrb[0].mxu0
      %v6652 = vadd.f32 %v6238, %v6651
      %6653 = vmatprep.mubr.bf16.mxu0 %v6160
      %6654 = vmatmul.mubr.bf16.gmra.mrb[0].mxu0 %v6159
      %v6655 = vpop.f32.mrb[0].mxu0
      %v6656 = vadd.f32 %v6234, %v6655
      %v6657 = vpop.f32.mrb[0].mxu0
      %v6658 = vadd.f32 %v6238, %v6657
      %v6659 = vpop.f32.mrb[0].mxu0
      %v6660 = vadd.f32 %v6234, %v6659
      %v6661 = vpop.f32.mrb[0].mxu0
      %v6662 = vadd.f32 %v6238, %v6661
      %6663 = vmatprep.mubr.bf16.mxu0 %v6162
      %6664 = vmatmul.mubr.bf16.gmra.mrb[0].mxu0 %v6161
      %v6665 = vpop.f32.mrb[0].mxu0
      %v6666 = vadd.f32 %v6234, %v6665
      %v6667 = vpop.f32.mrb[0].mxu0
      %v6668 = vadd.f32 %v6238, %v6667
      %v6669 = vpop.f32.mrb[0].mxu0
      %v6670 = vadd.f32 %v6234, %v6669
      %v6671 = vpop.f32.mrb[0].mxu0
      %v6672 = vadd.f32 %v6238, %v6671
      %6673 = vmatprep.mubr.bf16.mxu0 %v6164
      %6674 = vmatmul.mubr.bf16.gmra.mrb[0].mxu0 %v6163
      %v6675 = vpop.f32.mrb[0].mxu0
      %v6676 = vadd.f32 %v6234, %v6675
      %v6677 = vpop.f32.mrb[0].mxu0
      %v6678 = vadd.f32 %v6238, %v6677
      %v6679 = vpop.f32.mrb[0].mxu0
      %v6680 = vadd.f32 %v6234, %v6679
      %v6681 = vpop.f32.mrb[0].mxu0
      %v6682 = vadd.f32 %v6238, %v6681
      %6683 = vdwg.mxu0
      %6684 = vmatprep.subr.bf16.mxu0 %v6446
      %6685 = vmatpush1.bf16.msra.mxu0 %v6445
      %6686 = vmatprep.subr.bf16.mxu0 %v6450
      %6687 = vmatpush1.bf16.msra.mxu0 %v6449
      %6688 = vmatprep.subr.bf16.mxu0 %v6454
      %6689 = vmatpush1.bf16.msra.mxu0 %v6453
      %6690 = vmatprep.subr.bf16.mxu0 %v6458
      %6691 = vmatpush1.bf16.msra.mxu0 %v6457
      %6692 = vmatprep.subr.bf16.mxu0 %v6462
      %6693 = vmatpush1.bf16.msra.mxu0 %v6461
      %6694 = vmatprep.subr.bf16.mxu0 %v6466
      %6695 = vmatpush1.bf16.msra.mxu0 %v6465
      %6696 = vmatprep.subr.bf16.mxu0 %v6470
      %6697 = vmatpush1.bf16.msra.mxu0 %v6469
      %6698 = vmatprep.subr.bf16.mxu0 %v6474
      %6699 = vmatpush1.bf16.msra.mxu0 %v6473
      %6700 = vmatprep.subr.bf16.mxu0 %v6478
      %6701 = vmatpush1.bf16.msra.mxu0 %v6477
      %6702 = vmatprep.subr.bf16.mxu0 %v6482
      %6703 = vmatpush1.bf16.msra.mxu0 %v6481
      %6704 = vmatprep.subr.bf16.mxu0 %v6486
      %6705 = vmatpush1.bf16.msra.mxu0 %v6485
      %6706 = vmatprep.subr.bf16.mxu0 %v6490
      %6707 = vmatpush1.bf16.msra.mxu0 %v6489
      %6708 = vmatprep.subr.bf16.mxu0 %v6494
      %6709 = vmatpush1.bf16.msra.mxu0 %v6493
      %6710 = vmatprep.subr.bf16.mxu0 %v6498
      %6711 = vmatpush1.bf16.msra.mxu0 %v6497
      %6712 = vmatprep.subr.bf16.mxu0 %v6502
      %6713 = vmatpush1.bf16.msra.mxu0 %v6501
      %6714 = vmatprep.subr.bf16.mxu0 %v6506
      %6715 = vmatpush1.bf16.msra.mxu0 %v6505
      %6716 = vmatprep.mubr.bf16.mxu0 %v6150
      %6717 = vmatmul.mubr.bf16.gmra.mrb[0].mxu0 %v6149
      %v6718 = vpop.f32.mrb[0].mxu0
      %v6719 = vadd.f32 %v6242, %v6718
      %v6720 = vpop.f32.mrb[0].mxu0
      %v6721 = vadd.f32 %v6246, %v6720
      %v6722 = vpop.f32.mrb[0].mxu0
      %v6723 = vadd.f32 %v6242, %v6722
      %v6724 = vpop.f32.mrb[0].mxu0
      %v6725 = vadd.f32 %v6246, %v6724
      %6726 = vmatprep.mubr.bf16.mxu0 %v6152
      %6727 = vmatmul.mubr.bf16.gmra.mrb[0].mxu0 %v6151
      %v6728 = vpop.f32.mrb[0].mxu0
      %v6729 = vadd.f32 %v6242, %v6728
      %v6730 = vpop.f32.mrb[0].mxu0
      %v6731 = vadd.f32 %v6246, %v6730
      %v6732 = vpop.f32.mrb[0].mxu0
      %v6733 = vadd.f32 %v6242, %v6732
      %v6734 = vpop.f32.mrb[0].mxu0
      %v6735 = vadd.f32 %v6246, %v6734
      %6736 = vmatprep.mubr.bf16.mxu0 %v6154
      %6737 = vmatmul.mubr.bf16.gmra.mrb[0].mxu0 %v6153
      %v6738 = vpop.f32.mrb[0].mxu0
      %v6739 = vadd.f32 %v6242, %v6738
      %v6740 = vpop.f32.mrb[0].mxu0
      %v6741 = vadd.f32 %v6246, %v6740
      %v6742 = vpop.f32.mrb[0].mxu0
      %v6743 = vadd.f32 %v6242, %v6742
      %v6744 = vpop.f32.mrb[0].mxu0
      %v6745 = vadd.f32 %v6246, %v6744
      %6746 = vmatprep.mubr.bf16.mxu0 %v6156
      %6747 = vmatmul.mubr.bf16.gmra.mrb[0].mxu0 %v6155
      %v6748 = vpop.f32.mrb[0].mxu0
      %v6749 = vadd.f32 %v6242, %v6748
      %v6750 = vpop.f32.mrb[0].mxu0
      %v6751 = vadd.f32 %v6246, %v6750
      %v6752 = vpop.f32.mrb[0].mxu0
      %v6753 = vadd.f32 %v6242, %v6752
      %v6754 = vpop.f32.mrb[0].mxu0
      %v6755 = vadd.f32 %v6246, %v6754
      %6756 = vmatprep.mubr.bf16.mxu0 %v6158
      %6757 = vmatmul.mubr.bf16.gmra.mrb[0].mxu0 %v6157
      %v6758 = vpop.f32.mrb[0].mxu0
      %v6759 = vadd.f32 %v6242, %v6758
      %v6760 = vpop.f32.mrb[0].mxu0
      %v6761 = vadd.f32 %v6246, %v6760
      %v6762 = vpop.f32.mrb[0].mxu0
      %v6763 = vadd.f32 %v6242, %v6762
      %v6764 = vpop.f32.mrb[0].mxu0
      %v6765 = vadd.f32 %v6246, %v6764
      %6766 = vmatprep.mubr.bf16.mxu0 %v6160
      %6767 = vmatmul.mubr.bf16.gmra.mrb[0].mxu0 %v6159
      %v6768 = vpop.f32.mrb[0].mxu0
      %v6769 = vadd.f32 %v6242, %v6768
      %v6770 = vpop.f32.mrb[0].mxu0
      %v6771 = vadd.f32 %v6246, %v6770
      %v6772 = vpop.f32.mrb[0].mxu0
      %v6773 = vadd.f32 %v6242, %v6772
      %v6774 = vpop.f32.mrb[0].mxu0
      %v6775 = vadd.f32 %v6246, %v6774
      %6776 = vmatprep.mubr.bf16.mxu0 %v6162
      %6777 = vmatmul.mubr.bf16.gmra.mrb[0].mxu0 %v6161
      %v6778 = vpop.f32.mrb[0].mxu0
      %v6779 = vadd.f32 %v6242, %v6778
      %v6780 = vpop.f32.mrb[0].mxu0
      %v6781 = vadd.f32 %v6246, %v6780
      %v6782 = vpop.f32.mrb[0].mxu0
      %v6783 = vadd.f32 %v6242, %v6782
      %v6784 = vpop.f32.mrb[0].mxu0
      %v6785 = vadd.f32 %v6246, %v6784
      %6786 = vmatprep.mubr.bf16.mxu0 %v6164
      %6787 = vmatmul.mubr.bf16.gmra.mrb[0].mxu0 %v6163
      %v6788 = vpop.f32.mrb[0].mxu0
      %v6789 = vadd.f32 %v6242, %v6788
      %v6790 = vpop.f32.mrb[0].mxu0
      %v6791 = vadd.f32 %v6246, %v6790
      %v6792 = vpop.f32.mrb[0].mxu0
      %v6793 = vadd.f32 %v6242, %v6792
      %v6794 = vpop.f32.mrb[0].mxu0
      %v6795 = vadd.f32 %v6246, %v6794
      %6796 = vdwg.mxu0
      %vm6797 = vcmp.gt.f32.partialorder %v6606, 0.0
      %vm6798 = vcmp.gt.f32.partialorder %v6608, 0.0
      %vm6799 = vcmp.gt.f32.partialorder %v6719, 0.0
      %vm6800 = vcmp.gt.f32.partialorder %v6721, 0.0
      %vm6801 = vcmp.gt.f32.partialorder %v6610, 0.0
      %vm6802 = vcmp.gt.f32.partialorder %v6612, 0.0
      %vm6803 = vcmp.gt.f32.partialorder %v6723, 0.0
      %vm6804 = vcmp.gt.f32.partialorder %v6725, 0.0
      %vm6805 = vcmp.gt.f32.partialorder %v6616, 0.0
      %vm6806 = vcmp.gt.f32.partialorder %v6618, 0.0
      %vm6807 = vcmp.gt.f32.partialorder %v6729, 0.0
      %vm6808 = vcmp.gt.f32.partialorder %v6731, 0.0
      %vm6809 = vcmp.gt.f32.partialorder %v6620, 0.0
      %vm6810 = vcmp.gt.f32.partialorder %v6622, 0.0
      %vm6811 = vcmp.gt.f32.partialorder %v6733, 0.0
      %vm6812 = vcmp.gt.f32.partialorder %v6735, 0.0
      %vm6813 = vcmp.gt.f32.partialorder %v6626, 0.0
      %vm6814 = vcmp.gt.f32.partialorder %v6628, 0.0
      %vm6815 = vcmp.gt.f32.partialorder %v6739, 0.0
      %vm6816 = vcmp.gt.f32.partialorder %v6741, 0.0
      %vm6817 = vcmp.gt.f32.partialorder %v6630, 0.0
      %vm6818 = vcmp.gt.f32.partialorder %v6632, 0.0
      %vm6819 = vcmp.gt.f32.partialorder %v6743, 0.0
      %vm6820 = vcmp.gt.f32.partialorder %v6745, 0.0
      %vm6821 = vcmp.gt.f32.partialorder %v6636, 0.0
      %vm6822 = vcmp.gt.f32.partialorder %v6638, 0.0
      %vm6823 = vcmp.gt.f32.partialorder %v6749, 0.0
      %vm6824 = vcmp.gt.f32.partialorder %v6751, 0.0
      %vm6825 = vcmp.gt.f32.partialorder %v6640, 0.0
      %vm6826 = vcmp.gt.f32.partialorder %v6642, 0.0
      %vm6827 = vcmp.gt.f32.partialorder %v6753, 0.0
      %vm6828 = vcmp.gt.f32.partialorder %v6755, 0.0
      %vm6829 = vcmp.gt.f32.partialorder %v6646, 0.0
      %vm6830 = vcmp.gt.f32.partialorder %v6648, 0.0
      %vm6831 = vcmp.gt.f32.partialorder %v6759, 0.0
      %vm6832 = vcmp.gt.f32.partialorder %v6761, 0.0
      %vm6833 = vcmp.gt.f32.partialorder %v6650, 0.0
      %vm6834 = vcmp.gt.f32.partialorder %v6652, 0.0
      %vm6835 = vcmp.gt.f32.partialorder %v6763, 0.0
      %vm6836 = vcmp.gt.f32.partialorder %v6765, 0.0
      %vm6837 = vcmp.gt.f32.partialorder %v6656, 0.0
      %vm6838 = vcmp.gt.f32.partialorder %v6658, 0.0
      %vm6839 = vcmp.gt.f32.partialorder %v6769, 0.0
      %vm6840 = vcmp.gt.f32.partialorder %v6771, 0.0
      %vm6841 = vcmp.gt.f32.partialorder %v6660, 0.0
      %vm6842 = vcmp.gt.f32.partialorder %v6662, 0.0
      %vm6843 = vcmp.gt.f32.partialorder %v6773, 0.0
      %vm6844 = vcmp.gt.f32.partialorder %v6775, 0.0
      %vm6845 = vcmp.gt.f32.partialorder %v6666, 0.0
      %vm6846 = vcmp.gt.f32.partialorder %v6668, 0.0
      %vm6847 = vcmp.gt.f32.partialorder %v6779, 0.0
      %vm6848 = vcmp.gt.f32.partialorder %v6781, 0.0
      %vm6849 = vcmp.gt.f32.partialorder %v6670, 0.0
      %vm6850 = vcmp.gt.f32.partialorder %v6672, 0.0
      %vm6851 = vcmp.gt.f32.partialorder %v6783, 0.0
      %vm6852 = vcmp.gt.f32.partialorder %v6785, 0.0
      %vm6853 = vcmp.gt.f32.partialorder %v6676, 0.0
      %vm6854 = vcmp.gt.f32.partialorder %v6678, 0.0
      %vm6855 = vcmp.gt.f32.partialorder %v6789, 0.0
      %vm6856 = vcmp.gt.f32.partialorder %v6791, 0.0
      %vm6857 = vcmp.gt.f32.partialorder %v6680, 0.0
      %vm6858 = vcmp.gt.f32.partialorder %v6682, 0.0
      %vm6859 = vcmp.gt.f32.partialorder %v6793, 0.0
      %vm6860 = vcmp.gt.f32.partialorder %v6795, 0.0
      %v6861 = vmul.f32 %v6606, 0.2
      %v6862 = vmul.f32 %v6608, 0.2
      %v6863 = vmul.f32 %v6719, 0.2
      %v6864 = vmul.f32 %v6721, 0.2
      %v6865 = vmul.f32 %v6610, 0.2
      %v6866 = vmul.f32 %v6612, 0.2
      %v6867 = vmul.f32 %v6723, 0.2
      %v6868 = vmul.f32 %v6725, 0.2
      %v6869 = vmul.f32 %v6616, 0.2
      %v6870 = vmul.f32 %v6618, 0.2
      %v6871 = vmul.f32 %v6729, 0.2
      %v6872 = vmul.f32 %v6731, 0.2
      %v6873 = vmul.f32 %v6620, 0.2
      %v6874 = vmul.f32 %v6622, 0.2
      %v6875 = vmul.f32 %v6733, 0.2
      %v6876 = vmul.f32 %v6735, 0.2
      %v6877 = vmul.f32 %v6626, 0.2
      %v6878 = vmul.f32 %v6628, 0.2
      %v6879 = vmul.f32 %v6739, 0.2
      %v6880 = vmul.f32 %v6741, 0.2
      %v6881 = vmul.f32 %v6630, 0.2
      %v6882 = vmul.f32 %v6632, 0.2
      %v6883 = vmul.f32 %v6743, 0.2
      %v6884 = vmul.f32 %v6745, 0.2
      %v6885 = vmul.f32 %v6636, 0.2
      %v6886 = vmul.f32 %v6638, 0.2
      %v6887 = vmul.f32 %v6749, 0.2
      %v6888 = vmul.f32 %v6751, 0.2
      %v6889 = vmul.f32 %v6640, 0.2
      %v6890 = vmul.f32 %v6642, 0.2
      %v6891 = vmul.f32 %v6753, 0.2
      %v6892 = vmul.f32 %v6755, 0.2
      %v6893 = vmul.f32 %v6646, 0.2
      %v6894 = vmul.f32 %v6648, 0.2
      %v6895 = vmul.f32 %v6759, 0.2
      %v6896 = vmul.f32 %v6761, 0.2
      %v6897 = vmul.f32 %v6650, 0.2
      %v6898 = vmul.f32 %v6652, 0.2
      %v6899 = vmul.f32 %v6763, 0.2
      %v6900 = vmul.f32 %v6765, 0.2
      %v6901 = vmul.f32 %v6656, 0.2
      %v6902 = vmul.f32 %v6658, 0.2
      %v6903 = vmul.f32 %v6769, 0.2
      %v6904 = vmul.f32 %v6771, 0.2
      %v6905 = vmul.f32 %v6660, 0.2
      %v6906 = vmul.f32 %v6662, 0.2
      %v6907 = vmul.f32 %v6773, 0.2
      %v6908 = vmul.f32 %v6775, 0.2
      %v6909 = vmul.f32 %v6666, 0.2
      %v6910 = vmul.f32 %v6668, 0.2
      %v6911 = vmul.f32 %v6779, 0.2
      %v6912 = vmul.f32 %v6781, 0.2
      %v6913 = vmul.f32 %v6670, 0.2
      %v6914 = vmul.f32 %v6672, 0.2
      %v6915 = vmul.f32 %v6783, 0.2
      %v6916 = vmul.f32 %v6785, 0.2
      %v6917 = vmul.f32 %v6676, 0.2
      %v6918 = vmul.f32 %v6678, 0.2
      %v6919 = vmul.f32 %v6789, 0.2
      %v6920 = vmul.f32 %v6791, 0.2
      %v6921 = vmul.f32 %v6680, 0.2
      %v6922 = vmul.f32 %v6682, 0.2
      %v6923 = vmul.f32 %v6793, 0.2
      %v6924 = vmul.f32 %v6795, 0.2
      %v6925 = vsel %vm6797, %v6606, %v6861
      %v6926 = vsel %vm6798, %v6608, %v6862
      %v6927 = vsel %vm6799, %v6719, %v6863
      %v6928 = vsel %vm6800, %v6721, %v6864
      %v6929 = vsel %vm6801, %v6610, %v6865
      %v6930 = vsel %vm6802, %v6612, %v6866
      %v6931 = vsel %vm6803, %v6723, %v6867
      %v6932 = vsel %vm6804, %v6725, %v6868
      %v6933 = vsel %vm6805, %v6616, %v6869
      %v6934 = vsel %vm6806, %v6618, %v6870
      %v6935 = vsel %vm6807, %v6729, %v6871
      %v6936 = vsel %vm6808, %v6731, %v6872
      %v6937 = vsel %vm6809, %v6620, %v6873
      %v6938 = vsel %vm6810, %v6622, %v6874
      %v6939 = vsel %vm6811, %v6733, %v6875
      %v6940 = vsel %vm6812, %v6735, %v6876
      %v6941 = vsel %vm6813, %v6626, %v6877
      %v6942 = vsel %vm6814, %v6628, %v6878
      %v6943 = vsel %vm6815, %v6739, %v6879
      %v6944 = vsel %vm6816, %v6741, %v6880
      %v6945 = vsel %vm6817, %v6630, %v6881
      %v6946 = vsel %vm6818, %v6632, %v6882
      %v6947 = vsel %vm6819, %v6743, %v6883
      %v6948 = vsel %vm6820, %v6745, %v6884
      %v6949 = vsel %vm6821, %v6636, %v6885
      %v6950 = vsel %vm6822, %v6638, %v6886
      %v6951 = vsel %vm6823, %v6749, %v6887
      %v6952 = vsel %vm6824, %v6751, %v6888
      %v6953 = vsel %vm6825, %v6640, %v6889
      %v6954 = vsel %vm6826, %v6642, %v6890
      %v6955 = vsel %vm6827, %v6753, %v6891
      %v6956 = vsel %vm6828, %v6755, %v6892
      %v6957 = vsel %vm6829, %v6646, %v6893
      %v6958 = vsel %vm6830, %v6648, %v6894
      %v6959 = vsel %vm6831, %v6759, %v6895
      %v6960 = vsel %vm6832, %v6761, %v6896
      %v6961 = vsel %vm6833, %v6650, %v6897
      %v6962 = vsel %vm6834, %v6652, %v6898
      %v6963 = vsel %vm6835, %v6763, %v6899
      %v6964 = vsel %vm6836, %v6765, %v6900
      %v6965 = vsel %vm6837, %v6656, %v6901
      %v6966 = vsel %vm6838, %v6658, %v6902
      %v6967 = vsel %vm6839, %v6769, %v6903
      %v6968 = vsel %vm6840, %v6771, %v6904
      %v6969 = vsel %vm6841, %v6660, %v6905
      %v6970 = vsel %vm6842, %v6662, %v6906
      %v6971 = vsel %vm6843, %v6773, %v6907
      %v6972 = vsel %vm6844, %v6775, %v6908
      %v6973 = vsel %vm6845, %v6666, %v6909
      %v6974 = vsel %vm6846, %v6668, %v6910
      %v6975 = vsel %vm6847, %v6779, %v6911
      %v6976 = vsel %vm6848, %v6781, %v6912
      %v6977 = vsel %vm6849, %v6670, %v6913
      %v6978 = vsel %vm6850, %v6672, %v6914
      %v6979 = vsel %vm6851, %v6783, %v6915
      %v6980 = vsel %vm6852, %v6785, %v6916
      %v6981 = vsel %vm6853, %v6676, %v6917
      %v6982 = vsel %vm6854, %v6678, %v6918
      %v6983 = vsel %vm6855, %v6789, %v6919
      %v6984 = vsel %vm6856, %v6791, %v6920
      %v6985 = vsel %vm6857, %v6680, %v6921
      %v6986 = vsel %vm6858, %v6682, %v6922
      %v6987 = vsel %vm6859, %v6793, %v6923
      %v6988 = vsel %vm6860, %v6795, %v6924
      %v6989 = vpack.c.bf16 %v6929, %v6925
      %v6990 = vpack.c.bf16 %v6930, %v6926
      %v6991 = vpack.c.bf16 %v6931, %v6927
      %v6992 = vpack.c.bf16 %v6932, %v6928
      %v6993 = vpack.c.bf16 %v6937, %v6933
      %v6994 = vpack.c.bf16 %v6938, %v6934
      %v6995 = vpack.c.bf16 %v6939, %v6935
      %v6996 = vpack.c.bf16 %v6940, %v6936
      %v6997 = vpack.c.bf16 %v6945, %v6941
      %v6998 = vpack.c.bf16 %v6946, %v6942
      %v6999 = vpack.c.bf16 %v6947, %v6943
      %v7000 = vpack.c.bf16 %v6948, %v6944
      %v7001 = vpack.c.bf16 %v6953, %v6949
      %v7002 = vpack.c.bf16 %v6954, %v6950
      %v7003 = vpack.c.bf16 %v6955, %v6951
      %v7004 = vpack.c.bf16 %v6956, %v6952
      %v7005 = vpack.c.bf16 %v6961, %v6957
      %v7006 = vpack.c.bf16 %v6962, %v6958
      %v7007 = vpack.c.bf16 %v6963, %v6959
      %v7008 = vpack.c.bf16 %v6964, %v6960
      %v7009 = vpack.c.bf16 %v6969, %v6965
      %v7010 = vpack.c.bf16 %v6970, %v6966
      %v7011 = vpack.c.bf16 %v6971, %v6967
      %v7012 = vpack.c.bf16 %v6972, %v6968
      %v7013 = vpack.c.bf16 %v6977, %v6973
      %v7014 = vpack.c.bf16 %v6978, %v6974
      %v7015 = vpack.c.bf16 %v6979, %v6975
      %v7016 = vpack.c.bf16 %v6980, %v6976
      %v7017 = vpack.c.bf16 %v6985, %v6981
      %v7018 = vpack.c.bf16 %v6986, %v6982
      %v7019 = vpack.c.bf16 %v6987, %v6983
      %v7020 = vpack.c.bf16 %v6988, %v6984
      %v7021 = vld [vmem:[%s10] sm:$0xff]
      %v7022 = vld [vmem:[%s10 + $0x8] sm:$0xff]
      %v7023 = vld [vmem:[%s10 + $0x10] sm:$0xff]
      %v7024 = vld [vmem:[%s10 + $0x18] sm:$0xff]
      %v7025 = vld [vmem:[%s10 + $0x20] sm:$0xff]
      %v7026 = vld [vmem:[%s10 + $0x28] sm:$0xff]
      %v7027 = vld [vmem:[%s10 + $0x30] sm:$0xff]
      %v7028 = vld [vmem:[%s10 + $0x38] sm:$0xff]
      %v7029 = vld [vmem:[%s10 + $0x40] sm:$0xff]
      %v7030 = vld [vmem:[%s10 + $0x48] sm:$0xff]
      %v7031 = vld [vmem:[%s10 + $0x50] sm:$0xff]
      %v7032 = vld [vmem:[%s10 + $0x58] sm:$0xff]
      %v7033 = vld [vmem:[%s10 + $0x60] sm:$0xff]
      %v7034 = vld [vmem:[%s10 + $0x68] sm:$0xff]
      %v7035 = vld [vmem:[%s10 + $0x70] sm:$0xff]
      %v7036 = vld [vmem:[%s10 + $0x78] sm:$0xff]
      %v7037 = vld [vmem:[%s10 + $0x80] sm:$0xff]
      %v7038 = vld [vmem:[%s10 + $0x88] sm:$0xff]
      %v7039 = vld [vmem:[%s10 + $0x90] sm:$0xff]
      %v7040 = vld [vmem:[%s10 + $0x98] sm:$0xff]
      %v7041 = vld [vmem:[%s10 + $0xa0] sm:$0xff]
      %v7042 = vld [vmem:[%s10 + $0xa8] sm:$0xff]
      %v7043 = vld [vmem:[%s10 + $0xb0] sm:$0xff]
      %v7044 = vld [vmem:[%s10 + $0xb8] sm:$0xff]
      %v7045 = vld [vmem:[%s10 + $0xc0] sm:$0xff]
      %v7046 = vld [vmem:[%s10 + $0xc8] sm:$0xff]
      %v7047 = vld [vmem:[%s10 + $0xd0] sm:$0xff]
      %v7048 = vld [vmem:[%s10 + $0xd8] sm:$0xff]
      %v7049 = vld [vmem:[%s10 + $0xe0] sm:$0xff]
      %v7050 = vld [vmem:[%s10 + $0xe8] sm:$0xff]
      %v7051 = vld [vmem:[%s10 + $0xf0] sm:$0xff]
      %v7052 = vld [vmem:[%s10 + $0xf8] sm:$0xff]
      %v7053 = vld [vmem:[%s10 + $0x100] sm:$0xff]
      %v7054 = vld [vmem:[%s10 + $0x108] sm:$0xff]
      %v7055 = vld [vmem:[%s10 + $0x110] sm:$0xff]
      %v7056 = vld [vmem:[%s10 + $0x118] sm:$0xff]
      %v7057 = vld [vmem:[%s10 + $0x120] sm:$0xff]
      %v7058 = vld [vmem:[%s10 + $0x128] sm:$0xff]
      %v7059 = vld [vmem:[%s10 + $0x130] sm:$0xff]
      %v7060 = vld [vmem:[%s10 + $0x138] sm:$0xff]
      %v7061 = vld [vmem:[%s10 + $0x140] sm:$0xff]
      %v7062 = vld [vmem:[%s10 + $0x148] sm:$0xff]
      %v7063 = vld [vmem:[%s10 + $0x150] sm:$0xff]
      %v7064 = vld [vmem:[%s10 + $0x158] sm:$0xff]
      %v7065 = vld [vmem:[%s10 + $0x160] sm:$0xff]
      %v7066 = vld [vmem:[%s10 + $0x168] sm:$0xff]
      %v7067 = vld [vmem:[%s10 + $0x170] sm:$0xff]
      %v7068 = vld [vmem:[%s10 + $0x178] sm:$0xff]
      %v7069 = vld [vmem:[%s10 + $0x180] sm:$0xff]
      %v7070 = vld [vmem:[%s10 + $0x188] sm:$0xff]
      %v7071 = vld [vmem:[%s10 + $0x190] sm:$0xff]
      %v7072 = vld [vmem:[%s10 + $0x198] sm:$0xff]
      %v7073 = vld [vmem:[%s10 + $0x1a0] sm:$0xff]
      %v7074 = vld [vmem:[%s10 + $0x1a8] sm:$0xff]
      %v7075 = vld [vmem:[%s10 + $0x1b0] sm:$0xff]
      %v7076 = vld [vmem:[%s10 + $0x1b8] sm:$0xff]
      %v7077 = vld [vmem:[%s10 + $0x1c0] sm:$0xff]
      %v7078 = vld [vmem:[%s10 + $0x1c8] sm:$0xff]
      %v7079 = vld [vmem:[%s10 + $0x1d0] sm:$0xff]
      %v7080 = vld [vmem:[%s10 + $0x1d8] sm:$0xff]
      %v7081 = vld [vmem:[%s10 + $0x1e0] sm:$0xff]
      %v7082 = vld [vmem:[%s10 + $0x1e8] sm:$0xff]
      %v7083 = vld [vmem:[%s10 + $0x1f0] sm:$0xff]
      %v7084 = vld [vmem:[%s10 + $0x1f8] sm:$0xff]
      %v7085 = vld [vmem:[%s10 + $0x200] sm:$0xff]
      %v7086 = vld [vmem:[%s10 + $0x208] sm:$0xff]
      %v7087 = vld [vmem:[%s10 + $0x210] sm:$0xff]
      %v7088 = vld [vmem:[%s10 + $0x218] sm:$0xff]
      %v7089 = vld [vmem:[%s10 + $0x220] sm:$0xff]
      %v7090 = vld [vmem:[%s10 + $0x228] sm:$0xff]
      %v7091 = vld [vmem:[%s10 + $0x230] sm:$0xff]
      %v7092 = vld [vmem:[%s10 + $0x238] sm:$0xff]
      %v7093 = vld [vmem:[%s10 + $0x240] sm:$0xff]
      %v7094 = vld [vmem:[%s10 + $0x248] sm:$0xff]
      %v7095 = vld [vmem:[%s10 + $0x250] sm:$0xff]
      %v7096 = vld [vmem:[%s10 + $0x258] sm:$0xff]
      %v7097 = vld [vmem:[%s10 + $0x260] sm:$0xff]
      %v7098 = vld [vmem:[%s10 + $0x268] sm:$0xff]
      %v7099 = vld [vmem:[%s10 + $0x270] sm:$0xff]
      %v7100 = vld [vmem:[%s10 + $0x278] sm:$0xff]
      %v7101 = vld [vmem:[%s10 + $0x280] sm:$0xff]
      %v7102 = vld [vmem:[%s10 + $0x288] sm:$0xff]
      %v7103 = vld [vmem:[%s10 + $0x290] sm:$0xff]
      %v7104 = vld [vmem:[%s10 + $0x298] sm:$0xff]
      %v7105 = vld [vmem:[%s10 + $0x2a0] sm:$0xff]
      %v7106 = vld [vmem:[%s10 + $0x2a8] sm:$0xff]
      %v7107 = vld [vmem:[%s10 + $0x2b0] sm:$0xff]
      %v7108 = vld [vmem:[%s10 + $0x2b8] sm:$0xff]
      %v7109 = vld [vmem:[%s10 + $0x2c0] sm:$0xff]
      %v7110 = vld [vmem:[%s10 + $0x2c8] sm:$0xff]
      %v7111 = vld [vmem:[%s10 + $0x2d0] sm:$0xff]
      %v7112 = vld [vmem:[%s10 + $0x2d8] sm:$0xff]
      %v7113 = vld [vmem:[%s10 + $0x2e0] sm:$0xff]
      %v7114 = vld [vmem:[%s10 + $0x2e8] sm:$0xff]
      %v7115 = vld [vmem:[%s10 + $0x2f0] sm:$0xff]
      %v7116 = vld [vmem:[%s10 + $0x2f8] sm:$0xff]
      %v7117 = vld [vmem:[%s10 + $0x300] sm:$0xff]
      %v7118 = vld [vmem:[%s10 + $0x308] sm:$0xff]
      %v7119 = vld [vmem:[%s10 + $0x310] sm:$0xff]
      %v7120 = vld [vmem:[%s10 + $0x318] sm:$0xff]
      %v7121 = vld [vmem:[%s10 + $0x320] sm:$0xff]
      %v7122 = vld [vmem:[%s10 + $0x328] sm:$0xff]
      %v7123 = vld [vmem:[%s10 + $0x330] sm:$0xff]
      %v7124 = vld [vmem:[%s10 + $0x338] sm:$0xff]
      %v7125 = vld [vmem:[%s10 + $0x340] sm:$0xff]
      %v7126 = vld [vmem:[%s10 + $0x348] sm:$0xff]
      %v7127 = vld [vmem:[%s10 + $0x350] sm:$0xff]
      %v7128 = vld [vmem:[%s10 + $0x358] sm:$0xff]
      %v7129 = vld [vmem:[%s10 + $0x360] sm:$0xff]
      %v7130 = vld [vmem:[%s10 + $0x368] sm:$0xff]
      %v7131 = vld [vmem:[%s10 + $0x370] sm:$0xff]
      %v7132 = vld [vmem:[%s10 + $0x378] sm:$0xff]
      %v7133 = vld [vmem:[%s10 + $0x380] sm:$0xff]
      %v7134 = vld [vmem:[%s10 + $0x388] sm:$0xff]
      %v7135 = vld [vmem:[%s10 + $0x390] sm:$0xff]
      %v7136 = vld [vmem:[%s10 + $0x398] sm:$0xff]
      %v7137 = vld [vmem:[%s10 + $0x3a0] sm:$0xff]
      %v7138 = vld [vmem:[%s10 + $0x3a8] sm:$0xff]
      %v7139 = vld [vmem:[%s10 + $0x3b0] sm:$0xff]
      %v7140 = vld [vmem:[%s10 + $0x3b8] sm:$0xff]
      %v7141 = vld [vmem:[%s10 + $0x3c0] sm:$0xff]
      %v7142 = vld [vmem:[%s10 + $0x3c8] sm:$0xff]
      %v7143 = vld [vmem:[%s10 + $0x3d0] sm:$0xff]
      %v7144 = vld [vmem:[%s10 + $0x3d8] sm:$0xff]
      %v7145 = vld [vmem:[%s10 + $0x3e0] sm:$0xff]
      %v7146 = vld [vmem:[%s10 + $0x3e8] sm:$0xff]
      %v7147 = vld [vmem:[%s10 + $0x3f0] sm:$0xff]
      %v7148 = vld [vmem:[%s10 + $0x3f8] sm:$0xff]
      %v7149 = vld [vmem:[%s11] sm:$0xf]
      %v7151 = vlaneseq
      %v7152 = vshrl.u32 %v7151, 7
      %v7153 = vsub.s32 0, %v7152
      %v7154 = vrot.slane %v7149, %v7153
      %v7155 = vlaneseq
      %v7156 = vshrl.u32 %v7155, 7
      %v7157 = vsub.s32 1, %v7156
      %v7158 = vrot.slane %v7149, %v7157
      %v7159 = vlaneseq
      %v7160 = vshrl.u32 %v7159, 7
      %v7161 = vsub.s32 2, %v7160
      %v7162 = vrot.slane %v7149, %v7161
      %v7163 = vlaneseq
      %v7164 = vshrl.u32 %v7163, 7
      %v7165 = vsub.s32 3, %v7164
      %v7166 = vrot.slane %v7149, %v7165
      %v7299 = vunpack.c.l.b16 %v7021
      %v7300 = vunpack.c.h.b16 %v7021
      %v7301 = vunpack.c.l.b16 %v7022
      %v7302 = vunpack.c.h.b16 %v7022
      %v7303 = vunpack.c.l.b16 %v7023
      %v7304 = vunpack.c.h.b16 %v7023
      %v7305 = vunpack.c.l.b16 %v7024
      %v7306 = vunpack.c.h.b16 %v7024
      %v7307 = vunpack.c.l.b16 %v7025
      %v7308 = vunpack.c.h.b16 %v7025
      %v7309 = vunpack.c.l.b16 %v7026
      %v7310 = vunpack.c.h.b16 %v7026
      %v7311 = vunpack.c.l.b16 %v7027
      %v7312 = vunpack.c.h.b16 %v7027
      %v7313 = vunpack.c.l.b16 %v7028
      %v7314 = vunpack.c.h.b16 %v7028
      %v7315 = vunpack.c.l.b16 %v7029
      %v7316 = vunpack.c.h.b16 %v7029
      %v7317 = vunpack.c.l.b16 %v7030
      %v7318 = vunpack.c.h.b16 %v7030
      %v7319 = vunpack.c.l.b16 %v7031
      %v7320 = vunpack.c.h.b16 %v7031
      %v7321 = vunpack.c.l.b16 %v7032
      %v7322 = vunpack.c.h.b16 %v7032
      %v7323 = vunpack.c.l.b16 %v7033
      %v7324 = vunpack.c.h.b16 %v7033
      %v7325 = vunpack.c.l.b16 %v7034
      %v7326 = vunpack.c.h.b16 %v7034
      %v7327 = vunpack.c.l.b16 %v7035
      %v7328 = vunpack.c.h.b16 %v7035
      %v7329 = vunpack.c.l.b16 %v7036
      %v7330 = vunpack.c.h.b16 %v7036
      %v7331 = vunpack.c.l.b16 %v7037
      %v7332 = vunpack.c.h.b16 %v7037
      %v7333 = vunpack.c.l.b16 %v7038
      %v7334 = vunpack.c.h.b16 %v7038
      %v7335 = vunpack.c.l.b16 %v7039
      %v7336 = vunpack.c.h.b16 %v7039
      %v7337 = vunpack.c.l.b16 %v7040
      %v7338 = vunpack.c.h.b16 %v7040
      %v7339 = vunpack.c.l.b16 %v7041
      %v7340 = vunpack.c.h.b16 %v7041
      %v7341 = vunpack.c.l.b16 %v7042
      %v7342 = vunpack.c.h.b16 %v7042
      %v7343 = vunpack.c.l.b16 %v7043
      %v7344 = vunpack.c.h.b16 %v7043
      %v7345 = vunpack.c.l.b16 %v7044
      %v7346 = vunpack.c.h.b16 %v7044
      %v7347 = vunpack.c.l.b16 %v7045
      %v7348 = vunpack.c.h.b16 %v7045
      %v7349 = vunpack.c.l.b16 %v7046
      %v7350 = vunpack.c.h.b16 %v7046
      %v7351 = vunpack.c.l.b16 %v7047
      %v7352 = vunpack.c.h.b16 %v7047
      %v7353 = vunpack.c.l.b16 %v7048
      %v7354 = vunpack.c.h.b16 %v7048
      %v7355 = vunpack.c.l.b16 %v7049
      %v7356 = vunpack.c.h.b16 %v7049
      %v7357 = vunpack.c.l.b16 %v7050
      %v7358 = vunpack.c.h.b16 %v7050
      %v7359 = vunpack.c.l.b16 %v7051
      %v7360 = vunpack.c.h.b16 %v7051
      %v7361 = vunpack.c.l.b16 %v7052
      %v7362 = vunpack.c.h.b16 %v7052
      %v7363 = vunpack.c.l.b16 %v7053
      %v7364 = vunpack.c.h.b16 %v7053
      %v7365 = vunpack.c.l.b16 %v7054
      %v7366 = vunpack.c.h.b16 %v7054
      %v7367 = vunpack.c.l.b16 %v7055
      %v7368 = vunpack.c.h.b16 %v7055
      %v7369 = vunpack.c.l.b16 %v7056
      %v7370 = vunpack.c.h.b16 %v7056
      %v7371 = vunpack.c.l.b16 %v7057
      %v7372 = vunpack.c.h.b16 %v7057
      %v7373 = vunpack.c.l.b16 %v7058
      %v7374 = vunpack.c.h.b16 %v7058
      %v7375 = vunpack.c.l.b16 %v7059
      %v7376 = vunpack.c.h.b16 %v7059
      %v7377 = vunpack.c.l.b16 %v7060
      %v7378 = vunpack.c.h.b16 %v7060
      %v7379 = vunpack.c.l.b16 %v7061
      %v7380 = vunpack.c.h.b16 %v7061
      %v7381 = vunpack.c.l.b16 %v7062
      %v7382 = vunpack.c.h.b16 %v7062
      %v7383 = vunpack.c.l.b16 %v7063
      %v7384 = vunpack.c.h.b16 %v7063
      %v7385 = vunpack.c.l.b16 %v7064
      %v7386 = vunpack.c.h.b16 %v7064
      %v7387 = vunpack.c.l.b16 %v7065
      %v7388 = vunpack.c.h.b16 %v7065
      %v7389 = vunpack.c.l.b16 %v7066
      %v7390 = vunpack.c.h.b16 %v7066
      %v7391 = vunpack.c.l.b16 %v7067
      %v7392 = vunpack.c.h.b16 %v7067
      %v7393 = vunpack.c.l.b16 %v7068
      %v7394 = vunpack.c.h.b16 %v7068
      %v7395 = vunpack.c.l.b16 %v7069
      %v7396 = vunpack.c.h.b16 %v7069
      %v7397 = vunpack.c.l.b16 %v7070
      %v7398 = vunpack.c.h.b16 %v7070
      %v7399 = vunpack.c.l.b16 %v7071
      %v7400 = vunpack.c.h.b16 %v7071
      %v7401 = vunpack.c.l.b16 %v7072
      %v7402 = vunpack.c.h.b16 %v7072
      %v7403 = vunpack.c.l.b16 %v7073
      %v7404 = vunpack.c.h.b16 %v7073
      %v7405 = vunpack.c.l.b16 %v7074
      %v7406 = vunpack.c.h.b16 %v7074
      %v7407 = vunpack.c.l.b16 %v7075
      %v7408 = vunpack.c.h.b16 %v7075
      %v7409 = vunpack.c.l.b16 %v7076
      %v7410 = vunpack.c.h.b16 %v7076
      %v7411 = vunpack.c.l.b16 %v7077
      %v7412 = vunpack.c.h.b16 %v7077
      %v7413 = vunpack.c.l.b16 %v7078
      %v7414 = vunpack.c.h.b16 %v7078
      %v7415 = vunpack.c.l.b16 %v7079
      %v7416 = vunpack.c.h.b16 %v7079
      %v7417 = vunpack.c.l.b16 %v7080
      %v7418 = vunpack.c.h.b16 %v7080
      %v7419 = vunpack.c.l.b16 %v7081
      %v7420 = vunpack.c.h.b16 %v7081
      %v7421 = vunpack.c.l.b16 %v7082
      %v7422 = vunpack.c.h.b16 %v7082
      %v7423 = vunpack.c.l.b16 %v7083
      %v7424 = vunpack.c.h.b16 %v7083
      %v7425 = vunpack.c.l.b16 %v7084
      %v7426 = vunpack.c.h.b16 %v7084
      %v7427 = vunpack.c.l.b16 %v7085
      %v7428 = vunpack.c.h.b16 %v7085
      %v7429 = vunpack.c.l.b16 %v7086
      %v7430 = vunpack.c.h.b16 %v7086
      %v7431 = vunpack.c.l.b16 %v7087
      %v7432 = vunpack.c.h.b16 %v7087
      %v7433 = vunpack.c.l.b16 %v7088
      %v7434 = vunpack.c.h.b16 %v7088
      %v7435 = vunpack.c.l.b16 %v7089
      %v7436 = vunpack.c.h.b16 %v7089
      %v7437 = vunpack.c.l.b16 %v7090
      %v7438 = vunpack.c.h.b16 %v7090
      %v7439 = vunpack.c.l.b16 %v7091
      %v7440 = vunpack.c.h.b16 %v7091
      %v7441 = vunpack.c.l.b16 %v7092
      %v7442 = vunpack.c.h.b16 %v7092
      %v7443 = vunpack.c.l.b16 %v7093
      %v7444 = vunpack.c.h.b16 %v7093
      %v7445 = vunpack.c.l.b16 %v7094
      %v7446 = vunpack.c.h.b16 %v7094
      %v7447 = vunpack.c.l.b16 %v7095
      %v7448 = vunpack.c.h.b16 %v7095
      %v7449 = vunpack.c.l.b16 %v7096
      %v7450 = vunpack.c.h.b16 %v7096
      %v7451 = vunpack.c.l.b16 %v7097
      %v7452 = vunpack.c.h.b16 %v7097
      %v7453 = vunpack.c.l.b16 %v7098
      %v7454 = vunpack.c.h.b16 %v7098
      %v7455 = vunpack.c.l.b16 %v7099
      %v7456 = vunpack.c.h.b16 %v7099
      %v7457 = vunpack.c.l.b16 %v7100
      %v7458 = vunpack.c.h.b16 %v7100
      %v7459 = vunpack.c.l.b16 %v7101
      %v7460 = vunpack.c.h.b16 %v7101
      %v7461 = vunpack.c.l.b16 %v7102
      %v7462 = vunpack.c.h.b16 %v7102
      %v7463 = vunpack.c.l.b16 %v7103
      %v7464 = vunpack.c.h.b16 %v7103
      %v7465 = vunpack.c.l.b16 %v7104
      %v7466 = vunpack.c.h.b16 %v7104
      %v7467 = vunpack.c.l.b16 %v7105
      %v7468 = vunpack.c.h.b16 %v7105
      %v7469 = vunpack.c.l.b16 %v7106
      %v7470 = vunpack.c.h.b16 %v7106
      %v7471 = vunpack.c.l.b16 %v7107
      %v7472 = vunpack.c.h.b16 %v7107
      %v7473 = vunpack.c.l.b16 %v7108
      %v7474 = vunpack.c.h.b16 %v7108
      %v7475 = vunpack.c.l.b16 %v7109
      %v7476 = vunpack.c.h.b16 %v7109
      %v7477 = vunpack.c.l.b16 %v7110
      %v7478 = vunpack.c.h.b16 %v7110
      %v7479 = vunpack.c.l.b16 %v7111
      %v7480 = vunpack.c.h.b16 %v7111
      %v7481 = vunpack.c.l.b16 %v7112
      %v7482 = vunpack.c.h.b16 %v7112
      %v7483 = vunpack.c.l.b16 %v7113
      %v7484 = vunpack.c.h.b16 %v7113
      %v7485 = vunpack.c.l.b16 %v7114
      %v7486 = vunpack.c.h.b16 %v7114
      %v7487 = vunpack.c.l.b16 %v7115
      %v7488 = vunpack.c.h.b16 %v7115
      %v7489 = vunpack.c.l.b16 %v7116
      %v7490 = vunpack.c.h.b16 %v7116
      %v7491 = vunpack.c.l.b16 %v7117
      %v7492 = vunpack.c.h.b16 %v7117
      %v7493 = vunpack.c.l.b16 %v7118
      %v7494 = vunpack.c.h.b16 %v7118
      %v7495 = vunpack.c.l.b16 %v7119
      %v7496 = vunpack.c.h.b16 %v7119
      %v7497 = vunpack.c.l.b16 %v7120
      %v7498 = vunpack.c.h.b16 %v7120
      %v7499 = vunpack.c.l.b16 %v7121
      %v7500 = vunpack.c.h.b16 %v7121
      %v7501 = vunpack.c.l.b16 %v7122
      %v7502 = vunpack.c.h.b16 %v7122
      %v7503 = vunpack.c.l.b16 %v7123
      %v7504 = vunpack.c.h.b16 %v7123
      %v7505 = vunpack.c.l.b16 %v7124
      %v7506 = vunpack.c.h.b16 %v7124
      %v7507 = vunpack.c.l.b16 %v7125
      %v7508 = vunpack.c.h.b16 %v7125
      %v7509 = vunpack.c.l.b16 %v7126
      %v7510 = vunpack.c.h.b16 %v7126
      %v7511 = vunpack.c.l.b16 %v7127
      %v7512 = vunpack.c.h.b16 %v7127
      %v7513 = vunpack.c.l.b16 %v7128
      %v7514 = vunpack.c.h.b16 %v7128
      %v7515 = vunpack.c.l.b16 %v7129
      %v7516 = vunpack.c.h.b16 %v7129
      %v7517 = vunpack.c.l.b16 %v7130
      %v7518 = vunpack.c.h.b16 %v7130
      %v7519 = vunpack.c.l.b16 %v7131
      %v7520 = vunpack.c.h.b16 %v7131
      %v7521 = vunpack.c.l.b16 %v7132
      %v7522 = vunpack.c.h.b16 %v7132
      %v7523 = vunpack.c.l.b16 %v7133
      %v7524 = vunpack.c.h.b16 %v7133
      %v7525 = vunpack.c.l.b16 %v7134
      %v7526 = vunpack.c.h.b16 %v7134
      %v7527 = vunpack.c.l.b16 %v7135
      %v7528 = vunpack.c.h.b16 %v7135
      %v7529 = vunpack.c.l.b16 %v7136
      %v7530 = vunpack.c.h.b16 %v7136
      %v7531 = vunpack.c.l.b16 %v7137
      %v7532 = vunpack.c.h.b16 %v7137
      %v7533 = vunpack.c.l.b16 %v7138
      %v7534 = vunpack.c.h.b16 %v7138
      %v7535 = vunpack.c.l.b16 %v7139
      %v7536 = vunpack.c.h.b16 %v7139
      %v7537 = vunpack.c.l.b16 %v7140
      %v7538 = vunpack.c.h.b16 %v7140
      %v7539 = vunpack.c.l.b16 %v7141
      %v7540 = vunpack.c.h.b16 %v7141
      %v7541 = vunpack.c.l.b16 %v7142
      %v7542 = vunpack.c.h.b16 %v7142
      %v7543 = vunpack.c.l.b16 %v7143
      %v7544 = vunpack.c.h.b16 %v7143
      %v7545 = vunpack.c.l.b16 %v7144
      %v7546 = vunpack.c.h.b16 %v7144
      %v7547 = vunpack.c.l.b16 %v7145
      %v7548 = vunpack.c.h.b16 %v7145
      %v7549 = vunpack.c.l.b16 %v7146
      %v7550 = vunpack.c.h.b16 %v7146
      %v7551 = vunpack.c.l.b16 %v7147
      %v7552 = vunpack.c.h.b16 %v7147
      %v7553 = vunpack.c.l.b16 %v7148
      %v7554 = vunpack.c.h.b16 %v7148
      %v7555 = vpack.c.b16 %v7303, %v7299
      %v7556 = vpack.c.b16 %v7304, %v7300
      %v7557 = vpack.c.b16 %v7305, %v7301
      %v7558 = vpack.c.b16 %v7306, %v7302
      %v7559 = vpack.c.b16 %v7311, %v7307
      %v7560 = vpack.c.b16 %v7312, %v7308
      %v7561 = vpack.c.b16 %v7313, %v7309
      %v7562 = vpack.c.b16 %v7314, %v7310
      %v7563 = vpack.c.b16 %v7319, %v7315
      %v7564 = vpack.c.b16 %v7320, %v7316
      %v7565 = vpack.c.b16 %v7321, %v7317
      %v7566 = vpack.c.b16 %v7322, %v7318
      %v7567 = vpack.c.b16 %v7327, %v7323
      %v7568 = vpack.c.b16 %v7328, %v7324
      %v7569 = vpack.c.b16 %v7329, %v7325
      %v7570 = vpack.c.b16 %v7330, %v7326
      %v7571 = vpack.c.b16 %v7335, %v7331
      %v7572 = vpack.c.b16 %v7336, %v7332
      %v7573 = vpack.c.b16 %v7337, %v7333
      %v7574 = vpack.c.b16 %v7338, %v7334
      %v7575 = vpack.c.b16 %v7343, %v7339
      %v7576 = vpack.c.b16 %v7344, %v7340
      %v7577 = vpack.c.b16 %v7345, %v7341
      %v7578 = vpack.c.b16 %v7346, %v7342
      %v7579 = vpack.c.b16 %v7351, %v7347
      %v7580 = vpack.c.b16 %v7352, %v7348
      %v7581 = vpack.c.b16 %v7353, %v7349
      %v7582 = vpack.c.b16 %v7354, %v7350
      %v7583 = vpack.c.b16 %v7359, %v7355
      %v7584 = vpack.c.b16 %v7360, %v7356
      %v7585 = vpack.c.b16 %v7361, %v7357
      %v7586 = vpack.c.b16 %v7362, %v7358
      %v7587 = vpack.c.b16 %v7367, %v7363
      %v7588 = vpack.c.b16 %v7368, %v7364
      %v7589 = vpack.c.b16 %v7369, %v7365
      %v7590 = vpack.c.b16 %v7370, %v7366
      %v7591 = vpack.c.b16 %v7375, %v7371
      %v7592 = vpack.c.b16 %v7376, %v7372
      %v7593 = vpack.c.b16 %v7377, %v7373
      %v7594 = vpack.c.b16 %v7378, %v7374
      %v7595 = vpack.c.b16 %v7383, %v7379
      %v7596 = vpack.c.b16 %v7384, %v7380
      %v7597 = vpack.c.b16 %v7385, %v7381
      %v7598 = vpack.c.b16 %v7386, %v7382
      %v7599 = vpack.c.b16 %v7391, %v7387
      %v7600 = vpack.c.b16 %v7392, %v7388
      %v7601 = vpack.c.b16 %v7393, %v7389
      %v7602 = vpack.c.b16 %v7394, %v7390
      %v7603 = vpack.c.b16 %v7399, %v7395
      %v7604 = vpack.c.b16 %v7400, %v7396
      %v7605 = vpack.c.b16 %v7401, %v7397
      %v7606 = vpack.c.b16 %v7402, %v7398
      %v7607 = vpack.c.b16 %v7407, %v7403
      %v7608 = vpack.c.b16 %v7408, %v7404
      %v7609 = vpack.c.b16 %v7409, %v7405
      %v7610 = vpack.c.b16 %v7410, %v7406
      %v7611 = vpack.c.b16 %v7415, %v7411
      %v7612 = vpack.c.b16 %v7416, %v7412
      %v7613 = vpack.c.b16 %v7417, %v7413
      %v7614 = vpack.c.b16 %v7418, %v7414
      %v7615 = vpack.c.b16 %v7423, %v7419
      %v7616 = vpack.c.b16 %v7424, %v7420
      %v7617 = vpack.c.b16 %v7425, %v7421
      %v7618 = vpack.c.b16 %v7426, %v7422
      %v7619 = vpack.c.b16 %v7431, %v7427
      %v7620 = vpack.c.b16 %v7432, %v7428
      %v7621 = vpack.c.b16 %v7433, %v7429
      %v7622 = vpack.c.b16 %v7434, %v7430
      %v7623 = vpack.c.b16 %v7439, %v7435
      %v7624 = vpack.c.b16 %v7440, %v7436
      %v7625 = vpack.c.b16 %v7441, %v7437
      %v7626 = vpack.c.b16 %v7442, %v7438
      %v7627 = vpack.c.b16 %v7447, %v7443
      %v7628 = vpack.c.b16 %v7448, %v7444
      %v7629 = vpack.c.b16 %v7449, %v7445
      %v7630 = vpack.c.b16 %v7450, %v7446
      %v7631 = vpack.c.b16 %v7455, %v7451
      %v7632 = vpack.c.b16 %v7456, %v7452
      %v7633 = vpack.c.b16 %v7457, %v7453
      %v7634 = vpack.c.b16 %v7458, %v7454
      %v7635 = vpack.c.b16 %v7463, %v7459
      %v7636 = vpack.c.b16 %v7464, %v7460
      %v7637 = vpack.c.b16 %v7465, %v7461
      %v7638 = vpack.c.b16 %v7466, %v7462
      %v7639 = vpack.c.b16 %v7471, %v7467
      %v7640 = vpack.c.b16 %v7472, %v7468
      %v7641 = vpack.c.b16 %v7473, %v7469
      %v7642 = vpack.c.b16 %v7474, %v7470
      %v7643 = vpack.c.b16 %v7479, %v7475
      %v7644 = vpack.c.b16 %v7480, %v7476
      %v7645 = vpack.c.b16 %v7481, %v7477
      %v7646 = vpack.c.b16 %v7482, %v7478
      %v7647 = vpack.c.b16 %v7487, %v7483
      %v7648 = vpack.c.b16 %v7488, %v7484
      %v7649 = vpack.c.b16 %v7489, %v7485
      %v7650 = vpack.c.b16 %v7490, %v7486
      %v7651 = vpack.c.b16 %v7495, %v7491
      %v7652 = vpack.c.b16 %v7496, %v7492
      %v7653 = vpack.c.b16 %v7497, %v7493
      %v7654 = vpack.c.b16 %v7498, %v7494
      %v7655 = vpack.c.b16 %v7503, %v7499
      %v7656 = vpack.c.b16 %v7504, %v7500
      %v7657 = vpack.c.b16 %v7505, %v7501
      %v7658 = vpack.c.b16 %v7506, %v7502
      %v7659 = vpack.c.b16 %v7511, %v7507
      %v7660 = vpack.c.b16 %v7512, %v7508
      %v7661 = vpack.c.b16 %v7513, %v7509
      %v7662 = vpack.c.b16 %v7514, %v7510
      %v7663 = vpack.c.b16 %v7519, %v7515
      %v7664 = vpack.c.b16 %v7520, %v7516
      %v7665 = vpack.c.b16 %v7521, %v7517
      %v7666 = vpack.c.b16 %v7522, %v7518
      %v7667 = vpack.c.b16 %v7527, %v7523
      %v7668 = vpack.c.b16 %v7528, %v7524
      %v7669 = vpack.c.b16 %v7529, %v7525
      %v7670 = vpack.c.b16 %v7530, %v7526
      %v7671 = vpack.c.b16 %v7535, %v7531
      %v7672 = vpack.c.b16 %v7536, %v7532
      %v7673 = vpack.c.b16 %v7537, %v7533
      %v7674 = vpack.c.b16 %v7538, %v7534
      %v7675 = vpack.c.b16 %v7543, %v7539
      %v7676 = vpack.c.b16 %v7544, %v7540
      %v7677 = vpack.c.b16 %v7545, %v7541
      %v7678 = vpack.c.b16 %v7546, %v7542
      %v7679 = vpack.c.b16 %v7551, %v7547
      %v7680 = vpack.c.b16 %v7552, %v7548
      %v7681 = vpack.c.b16 %v7553, %v7549
      %v7682 = vpack.c.b16 %v7554, %v7550
      %7811 = vmatprep.subr.bf16.mxu0 %v7556
      %7812 = vmatpush1.bf16.msra.mxu0 %v7555
      %7813 = vmatprep.subr.bf16.mxu0 %v7560
      %7814 = vmatpush1.bf16.msra.mxu0 %v7559
      %7815 = vmatprep.subr.bf16.mxu0 %v7564
      %7816 = vmatpush1.bf16.msra.mxu0 %v7563
      %7817 = vmatprep.subr.bf16.mxu0 %v7568
      %7818 = vmatpush1.bf16.msra.mxu0 %v7567
      %7819 = vmatprep.subr.bf16.mxu0 %v7572
      %7820 = vmatpush1.bf16.msra.mxu0 %v7571
      %7821 = vmatprep.subr.bf16.mxu0 %v7576
      %7822 = vmatpush1.bf16.msra.mxu0 %v7575
      %7823 = vmatprep.subr.bf16.mxu0 %v7580
      %7824 = vmatpush1.bf16.msra.mxu0 %v7579
      %7825 = vmatprep.subr.bf16.mxu0 %v7584
      %7826 = vmatpush1.bf16.msra.mxu0 %v7583
      %7827 = vmatprep.subr.bf16.mxu0 %v7588
      %7828 = vmatpush1.bf16.msra.mxu0 %v7587
      %7829 = vmatprep.subr.bf16.mxu0 %v7592
      %7830 = vmatpush1.bf16.msra.mxu0 %v7591
      %7831 = vmatprep.subr.bf16.mxu0 %v7596
      %7832 = vmatpush1.bf16.msra.mxu0 %v7595
      %7833 = vmatprep.subr.bf16.mxu0 %v7600
      %7834 = vmatpush1.bf16.msra.mxu0 %v7599
      %7835 = vmatprep.subr.bf16.mxu0 %v7604
      %7836 = vmatpush1.bf16.msra.mxu0 %v7603
      %7837 = vmatprep.subr.bf16.mxu0 %v7608
      %7838 = vmatpush1.bf16.msra.mxu0 %v7607
      %7839 = vmatprep.subr.bf16.mxu0 %v7612
      %7840 = vmatpush1.bf16.msra.mxu0 %v7611
      %7841 = vmatprep.subr.bf16.mxu0 %v7616
      %7842 = vmatpush1.bf16.msra.mxu0 %v7615
      %7843 = vmatprep.mubr.bf16.mxu0 %v6990
      %7844 = vmatmul.mubr.bf16.gmra.mrb[0].mxu0 %v6989
      %v7845 = vpop.f32.mrb[0].mxu0
      %v7846 = vadd.f32 %v7154, %v7845
      %v7847 = vpop.f32.mrb[0].mxu0
      %v7848 = vadd.f32 %v7158, %v7847
      %v7849 = vpop.f32.mrb[0].mxu0
      %v7850 = vadd.f32 %v7154, %v7849
      %v7851 = vpop.f32.mrb[0].mxu0
      %v7852 = vadd.f32 %v7158, %v7851
      %7853 = vmatprep.mubr.bf16.mxu0 %v6994
      %7854 = vmatmul.mubr.bf16.gmra.mrb[0].mxu0 %v6993
      %v7855 = vpop.f32.mrb[0].mxu0
      %v7856 = vadd.f32 %v7154, %v7855
      %v7857 = vpop.f32.mrb[0].mxu0
      %v7858 = vadd.f32 %v7158, %v7857
      %v7859 = vpop.f32.mrb[0].mxu0
      %v7860 = vadd.f32 %v7154, %v7859
      %v7861 = vpop.f32.mrb[0].mxu0
      %v7862 = vadd.f32 %v7158, %v7861
      %7863 = vmatprep.mubr.bf16.mxu0 %v6998
      %7864 = vmatmul.mubr.bf16.gmra.mrb[0].mxu0 %v6997
      %v7865 = vpop.f32.mrb[0].mxu0
      %v7866 = vadd.f32 %v7154, %v7865
      %v7867 = vpop.f32.mrb[0].mxu0
      %v7868 = vadd.f32 %v7158, %v7867
      %v7869 = vpop.f32.mrb[0].mxu0
      %v7870 = vadd.f32 %v7154, %v7869
      %v7871 = vpop.f32.mrb[0].mxu0
      %v7872 = vadd.f32 %v7158, %v7871
      %7873 = vmatprep.mubr.bf16.mxu0 %v7002
      %7874 = vmatmul.mubr.bf16.gmra.mrb[0].mxu0 %v7001
      %v7875 = vpop.f32.mrb[0].mxu0
      %v7876 = vadd.f32 %v7154, %v7875
      %v7877 = vpop.f32.mrb[0].mxu0
      %v7878 = vadd.f32 %v7158, %v7877
      %v7879 = vpop.f32.mrb[0].mxu0
      %v7880 = vadd.f32 %v7154, %v7879
      %v7881 = vpop.f32.mrb[0].mxu0
      %v7882 = vadd.f32 %v7158, %v7881
      %7883 = vmatprep.mubr.bf16.mxu0 %v7006
      %7884 = vmatmul.mubr.bf16.gmra.mrb[0].mxu0 %v7005
      %v7885 = vpop.f32.mrb[0].mxu0
      %v7886 = vadd.f32 %v7154, %v7885
      %v7887 = vpop.f32.mrb[0].mxu0
      %v7888 = vadd.f32 %v7158, %v7887
      %v7889 = vpop.f32.mrb[0].mxu0
      %v7890 = vadd.f32 %v7154, %v7889
      %v7891 = vpop.f32.mrb[0].mxu0
      %v7892 = vadd.f32 %v7158, %v7891
      %7893 = vmatprep.mubr.bf16.mxu0 %v7010
      %7894 = vmatmul.mubr.bf16.gmra.mrb[0].mxu0 %v7009
      %v7895 = vpop.f32.mrb[0].mxu0
      %v7896 = vadd.f32 %v7154, %v7895
      %v7897 = vpop.f32.mrb[0].mxu0
      %v7898 = vadd.f32 %v7158, %v7897
      %v7899 = vpop.f32.mrb[0].mxu0
      %v7900 = vadd.f32 %v7154, %v7899
      %v7901 = vpop.f32.mrb[0].mxu0
      %v7902 = vadd.f32 %v7158, %v7901
      %7903 = vmatprep.mubr.bf16.mxu0 %v7014
      %7904 = vmatmul.mubr.bf16.gmra.mrb[0].mxu0 %v7013
      %v7905 = vpop.f32.mrb[0].mxu0
      %v7906 = vadd.f32 %v7154, %v7905
      %v7907 = vpop.f32.mrb[0].mxu0
      %v7908 = vadd.f32 %v7158, %v7907
      %v7909 = vpop.f32.mrb[0].mxu0
      %v7910 = vadd.f32 %v7154, %v7909
      %v7911 = vpop.f32.mrb[0].mxu0
      %v7912 = vadd.f32 %v7158, %v7911
      %7913 = vmatprep.mubr.bf16.mxu0 %v7018
      %7914 = vmatmul.mubr.bf16.gmra.mrb[0].mxu0 %v7017
      %v7915 = vpop.f32.mrb[0].mxu0
      %v7916 = vadd.f32 %v7154, %v7915
      %v7917 = vpop.f32.mrb[0].mxu0
      %v7918 = vadd.f32 %v7158, %v7917
      %v7919 = vpop.f32.mrb[0].mxu0
      %v7920 = vadd.f32 %v7154, %v7919
      %v7921 = vpop.f32.mrb[0].mxu0
      %v7922 = vadd.f32 %v7158, %v7921
      %7923 = vdwg.mxu0
      %7924 = vmatprep.subr.bf16.mxu0 %v7620
      %7925 = vmatpush1.bf16.msra.mxu0 %v7619
      %7926 = vmatprep.subr.bf16.mxu0 %v7624
      %7927 = vmatpush1.bf16.msra.mxu0 %v7623
      %7928 = vmatprep.subr.bf16.mxu0 %v7628
      %7929 = vmatpush1.bf16.msra.mxu0 %v7627
      %7930 = vmatprep.subr.bf16.mxu0 %v7632
      %7931 = vmatpush1.bf16.msra.mxu0 %v7631
      %7932 = vmatprep.subr.bf16.mxu0 %v7636
      %7933 = vmatpush1.bf16.msra.mxu0 %v7635
      %7934 = vmatprep.subr.bf16.mxu0 %v7640
      %7935 = vmatpush1.bf16.msra.mxu0 %v7639
      %7936 = vmatprep.subr.bf16.mxu0 %v7644
      %7937 = vmatpush1.bf16.msra.mxu0 %v7643
      %7938 = vmatprep.subr.bf16.mxu0 %v7648
      %7939 = vmatpush1.bf16.msra.mxu0 %v7647
      %7940 = vmatprep.subr.bf16.mxu0 %v7652
      %7941 = vmatpush1.bf16.msra.mxu0 %v7651
      %7942 = vmatprep.subr.bf16.mxu0 %v7656
      %7943 = vmatpush1.bf16.msra.mxu0 %v7655
      %7944 = vmatprep.subr.bf16.mxu0 %v7660
      %7945 = vmatpush1.bf16.msra.mxu0 %v7659
      %7946 = vmatprep.subr.bf16.mxu0 %v7664
      %7947 = vmatpush1.bf16.msra.mxu0 %v7663
      %7948 = vmatprep.subr.bf16.mxu0 %v7668
      %7949 = vmatpush1.bf16.msra.mxu0 %v7667
      %7950 = vmatprep.subr.bf16.mxu0 %v7672
      %7951 = vmatpush1.bf16.msra.mxu0 %v7671
      %7952 = vmatprep.subr.bf16.mxu0 %v7676
      %7953 = vmatpush1.bf16.msra.mxu0 %v7675
      %7954 = vmatprep.subr.bf16.mxu0 %v7680
      %7955 = vmatpush1.bf16.msra.mxu0 %v7679
      %7956 = vmatprep.mubr.bf16.mxu0 %v6992
      %7957 = vmatmul.mubr.bf16.gmra.mrb[0].mxu0 %v6991
      %v7958 = vpop.f32.mrb[0].mxu0
      %v7959 = vadd.f32 %v7846, %v7958
      %v7960 = vpop.f32.mrb[0].mxu0
      %v7961 = vadd.f32 %v7848, %v7960
      %v7962 = vpop.f32.mrb[0].mxu0
      %v7963 = vadd.f32 %v7850, %v7962
      %v7964 = vpop.f32.mrb[0].mxu0
      %v7965 = vadd.f32 %v7852, %v7964
      %7966 = vmatprep.mubr.bf16.mxu0 %v6996
      %7967 = vmatmul.mubr.bf16.gmra.mrb[0].mxu0 %v6995
      %v7968 = vpop.f32.mrb[0].mxu0
      %v7969 = vadd.f32 %v7856, %v7968
      %v7970 = vpop.f32.mrb[0].mxu0
      %v7971 = vadd.f32 %v7858, %v7970
      %v7972 = vpop.f32.mrb[0].mxu0
      %v7973 = vadd.f32 %v7860, %v7972
      %v7974 = vpop.f32.mrb[0].mxu0
      %v7975 = vadd.f32 %v7862, %v7974
      %7976 = vmatprep.mubr.bf16.mxu0 %v7000
      %7977 = vmatmul.mubr.bf16.gmra.mrb[0].mxu0 %v6999
      %v7978 = vpop.f32.mrb[0].mxu0
      %v7979 = vadd.f32 %v7866, %v7978
      %v7980 = vpop.f32.mrb[0].mxu0
      %v7981 = vadd.f32 %v7868, %v7980
      %v7982 = vpop.f32.mrb[0].mxu0
      %v7983 = vadd.f32 %v7870, %v7982
      %v7984 = vpop.f32.mrb[0].mxu0
      %v7985 = vadd.f32 %v7872, %v7984
      %7986 = vmatprep.mubr.bf16.mxu0 %v7004
      %7987 = vmatmul.mubr.bf16.gmra.mrb[0].mxu0 %v7003
      %v7988 = vpop.f32.mrb[0].mxu0
      %v7989 = vadd.f32 %v7876, %v7988
      %v7990 = vpop.f32.mrb[0].mxu0
      %v7991 = vadd.f32 %v7878, %v7990
      %v7992 = vpop.f32.mrb[0].mxu0
      %v7993 = vadd.f32 %v7880, %v7992
      %v7994 = vpop.f32.mrb[0].mxu0
      %v7995 = vadd.f32 %v7882, %v7994
      %7996 = vmatprep.mubr.bf16.mxu0 %v7008
      %7997 = vmatmul.mubr.bf16.gmra.mrb[0].mxu0 %v7007
      %v7998 = vpop.f32.mrb[0].mxu0
      %v7999 = vadd.f32 %v7886, %v7998
      %v8000 = vpop.f32.mrb[0].mxu0
      %v8001 = vadd.f32 %v7888, %v8000
      %v8002 = vpop.f32.mrb[0].mxu0
      %v8003 = vadd.f32 %v7890, %v8002
      %v8004 = vpop.f32.mrb[0].mxu0
      %v8005 = vadd.f32 %v7892, %v8004
      %8006 = vmatprep.mubr.bf16.mxu0 %v7012
      %8007 = vmatmul.mubr.bf16.gmra.mrb[0].mxu0 %v7011
      %v8008 = vpop.f32.mrb[0].mxu0
      %v8009 = vadd.f32 %v7896, %v8008
      %v8010 = vpop.f32.mrb[0].mxu0
      %v8011 = vadd.f32 %v7898, %v8010
      %v8012 = vpop.f32.mrb[0].mxu0
      %v8013 = vadd.f32 %v7900, %v8012
      %v8014 = vpop.f32.mrb[0].mxu0
      %v8015 = vadd.f32 %v7902, %v8014
      %8016 = vmatprep.mubr.bf16.mxu0 %v7016
      %8017 = vmatmul.mubr.bf16.gmra.mrb[0].mxu0 %v7015
      %v8018 = vpop.f32.mrb[0].mxu0
      %v8019 = vadd.f32 %v7906, %v8018
      %v8020 = vpop.f32.mrb[0].mxu0
      %v8021 = vadd.f32 %v7908, %v8020
      %v8022 = vpop.f32.mrb[0].mxu0
      %v8023 = vadd.f32 %v7910, %v8022
      %v8024 = vpop.f32.mrb[0].mxu0
      %v8025 = vadd.f32 %v7912, %v8024
      %8026 = vmatprep.mubr.bf16.mxu0 %v7020
      %8027 = vmatmul.mubr.bf16.gmra.mrb[0].mxu0 %v7019
      %v8028 = vpop.f32.mrb[0].mxu0
      %v8029 = vadd.f32 %v7916, %v8028
      %v8030 = vpop.f32.mrb[0].mxu0
      %v8031 = vadd.f32 %v7918, %v8030
      %v8032 = vpop.f32.mrb[0].mxu0
      %v8033 = vadd.f32 %v7920, %v8032
      %v8034 = vpop.f32.mrb[0].mxu0
      %v8035 = vadd.f32 %v7922, %v8034
      %8036 = vdwg.mxu0
      %8037 = vmatprep.subr.bf16.mxu0 %v7558
      %8038 = vmatpush1.bf16.msra.mxu0 %v7557
      %8039 = vmatprep.subr.bf16.mxu0 %v7562
      %8040 = vmatpush1.bf16.msra.mxu0 %v7561
      %8041 = vmatprep.subr.bf16.mxu0 %v7566
      %8042 = vmatpush1.bf16.msra.mxu0 %v7565
      %8043 = vmatprep.subr.bf16.mxu0 %v7570
      %8044 = vmatpush1.bf16.msra.mxu0 %v7569
      %8045 = vmatprep.subr.bf16.mxu0 %v7574
      %8046 = vmatpush1.bf16.msra.mxu0 %v7573
      %8047 = vmatprep.subr.bf16.mxu0 %v7578
      %8048 = vmatpush1.bf16.msra.mxu0 %v7577
      %8049 = vmatprep.subr.bf16.mxu0 %v7582
      %8050 = vmatpush1.bf16.msra.mxu0 %v7581
      %8051 = vmatprep.subr.bf16.mxu0 %v7586
      %8052 = vmatpush1.bf16.msra.mxu0 %v7585
      %8053 = vmatprep.subr.bf16.mxu0 %v7590
      %8054 = vmatpush1.bf16.msra.mxu0 %v7589
      %8055 = vmatprep.subr.bf16.mxu0 %v7594
      %8056 = vmatpush1.bf16.msra.mxu0 %v7593
      %8057 = vmatprep.subr.bf16.mxu0 %v7598
      %8058 = vmatpush1.bf16.msra.mxu0 %v7597
      %8059 = vmatprep.subr.bf16.mxu0 %v7602
      %8060 = vmatpush1.bf16.msra.mxu0 %v7601
      %8061 = vmatprep.subr.bf16.mxu0 %v7606
      %8062 = vmatpush1.bf16.msra.mxu0 %v7605
      %8063 = vmatprep.subr.bf16.mxu0 %v7610
      %8064 = vmatpush1.bf16.msra.mxu0 %v7609
      %8065 = vmatprep.subr.bf16.mxu0 %v7614
      %8066 = vmatpush1.bf16.msra.mxu0 %v7613
      %8067 = vmatprep.subr.bf16.mxu0 %v7618
      %8068 = vmatpush1.bf16.msra.mxu0 %v7617
      %8069 = vmatprep.mubr.bf16.mxu0 %v6990
      %8070 = vmatmul.mubr.bf16.gmra.mrb[0].mxu0 %v6989
      %v8071 = vpop.f32.mrb[0].mxu0
      %v8072 = vadd.f32 %v7162, %v8071
      %v8073 = vpop.f32.mrb[0].mxu0
      %v8074 = vadd.f32 %v7166, %v8073
      %v8075 = vpop.f32.mrb[0].mxu0
      %v8076 = vadd.f32 %v7162, %v8075
      %v8077 = vpop.f32.mrb[0].mxu0
      %v8078 = vadd.f32 %v7166, %v8077
      %8079 = vmatprep.mubr.bf16.mxu0 %v6994
      %8080 = vmatmul.mubr.bf16.gmra.mrb[0].mxu0 %v6993
      %v8081 = vpop.f32.mrb[0].mxu0
      %v8082 = vadd.f32 %v7162, %v8081
      %v8083 = vpop.f32.mrb[0].mxu0
      %v8084 = vadd.f32 %v7166, %v8083
      %v8085 = vpop.f32.mrb[0].mxu0
      %v8086 = vadd.f32 %v7162, %v8085
      %v8087 = vpop.f32.mrb[0].mxu0
      %v8088 = vadd.f32 %v7166, %v8087
      %8089 = vmatprep.mubr.bf16.mxu0 %v6998
      %8090 = vmatmul.mubr.bf16.gmra.mrb[0].mxu0 %v6997
      %v8091 = vpop.f32.mrb[0].mxu0
      %v8092 = vadd.f32 %v7162, %v8091
      %v8093 = vpop.f32.mrb[0].mxu0
      %v8094 = vadd.f32 %v7166, %v8093
      %v8095 = vpop.f32.mrb[0].mxu0
      %v8096 = vadd.f32 %v7162, %v8095
      %v8097 = vpop.f32.mrb[0].mxu0
      %v8098 = vadd.f32 %v7166, %v8097
      %8099 = vmatprep.mubr.bf16.mxu0 %v7002
      %8100 = vmatmul.mubr.bf16.gmra.mrb[0].mxu0 %v7001
      %v8101 = vpop.f32.mrb[0].mxu0
      %v8102 = vadd.f32 %v7162, %v8101
      %v8103 = vpop.f32.mrb[0].mxu0
      %v8104 = vadd.f32 %v7166, %v8103
      %v8105 = vpop.f32.mrb[0].mxu0
      %v8106 = vadd.f32 %v7162, %v8105
      %v8107 = vpop.f32.mrb[0].mxu0
      %v8108 = vadd.f32 %v7166, %v8107
      %8109 = vmatprep.mubr.bf16.mxu0 %v7006
      %8110 = vmatmul.mubr.bf16.gmra.mrb[0].mxu0 %v7005
      %v8111 = vpop.f32.mrb[0].mxu0
      %v8112 = vadd.f32 %v7162, %v8111
      %v8113 = vpop.f32.mrb[0].mxu0
      %v8114 = vadd.f32 %v7166, %v8113
      %v8115 = vpop.f32.mrb[0].mxu0
      %v8116 = vadd.f32 %v7162, %v8115
      %v8117 = vpop.f32.mrb[0].mxu0
      %v8118 = vadd.f32 %v7166, %v8117
      %8119 = vmatprep.mubr.bf16.mxu0 %v7010
      %8120 = vmatmul.mubr.bf16.gmra.mrb[0].mxu0 %v7009
      %v8121 = vpop.f32.mrb[0].mxu0
      %v8122 = vadd.f32 %v7162, %v8121
      %v8123 = vpop.f32.mrb[0].mxu0
      %v8124 = vadd.f32 %v7166, %v8123
      %v8125 = vpop.f32.mrb[0].mxu0
      %v8126 = vadd.f32 %v7162, %v8125
      %v8127 = vpop.f32.mrb[0].mxu0
      %v8128 = vadd.f32 %v7166, %v8127
      %8129 = vmatprep.mubr.bf16.mxu0 %v7014
      %8130 = vmatmul.mubr.bf16.gmra.mrb[0].mxu0 %v7013
      %v8131 = vpop.f32.mrb[0].mxu0
      %v8132 = vadd.f32 %v7162, %v8131
      %v8133 = vpop.f32.mrb[0].mxu0
      %v8134 = vadd.f32 %v7166, %v8133
      %v8135 = vpop.f32.mrb[0].mxu0
      %v8136 = vadd.f32 %v7162, %v8135
      %v8137 = vpop.f32.mrb[0].mxu0
      %v8138 = vadd.f32 %v7166, %v8137
      %8139 = vmatprep.mubr.bf16.mxu0 %v7018
      %8140 = vmatmul.mubr.bf16.gmra.mrb[0].mxu0 %v7017
      %v8141 = vpop.f32.mrb[0].mxu0
      %v8142 = vadd.f32 %v7162, %v8141
      %v8143 = vpop.f32.mrb[0].mxu0
      %v8144 = vadd.f32 %v7166, %v8143
      %v8145 = vpop.f32.mrb[0].mxu0
      %v8146 = vadd.f32 %v7162, %v8145
      %v8147 = vpop.f32.mrb[0].mxu0
      %v8148 = vadd.f32 %v7166, %v8147
      %8149 = vdwg.mxu0
      %8150 = vmatprep.subr.bf16.mxu0 %v7622
      %8151 = vmatpush1.bf16.msra.mxu0 %v7621
      %8152 = vmatprep.subr.bf16.mxu0 %v7626
      %8153 = vmatpush1.bf16.msra.mxu0 %v7625
      %8154 = vmatprep.subr.bf16.mxu0 %v7630
      %8155 = vmatpush1.bf16.msra.mxu0 %v7629
      %8156 = vmatprep.subr.bf16.mxu0 %v7634
      %8157 = vmatpush1.bf16.msra.mxu0 %v7633
      %8158 = vmatprep.subr.bf16.mxu0 %v7638
      %8159 = vmatpush1.bf16.msra.mxu0 %v7637
      %8160 = vmatprep.subr.bf16.mxu0 %v7642
      %8161 = vmatpush1.bf16.msra.mxu0 %v7641
      %8162 = vmatprep.subr.bf16.mxu0 %v7646
      %8163 = vmatpush1.bf16.msra.mxu0 %v7645
      %8164 = vmatprep.subr.bf16.mxu0 %v7650
      %8165 = vmatpush1.bf16.msra.mxu0 %v7649
      %8166 = vmatprep.subr.bf16.mxu0 %v7654
      %8167 = vmatpush1.bf16.msra.mxu0 %v7653
      %8168 = vmatprep.subr.bf16.mxu0 %v7658
      %8169 = vmatpush1.bf16.msra.mxu0 %v7657
      %8170 = vmatprep.subr.bf16.mxu0 %v7662
      %8171 = vmatpush1.bf16.msra.mxu0 %v7661
      %8172 = vmatprep.subr.bf16.mxu0 %v7666
      %8173 = vmatpush1.bf16.msra.mxu0 %v7665
      %8174 = vmatprep.subr.bf16.mxu0 %v7670
      %8175 = vmatpush1.bf16.msra.mxu0 %v7669
      %8176 = vmatprep.subr.bf16.mxu0 %v7674
      %8177 = vmatpush1.bf16.msra.mxu0 %v7673
      %8178 = vmatprep.subr.bf16.mxu0 %v7678
      %8179 = vmatpush1.bf16.msra.mxu0 %v7677
      %8180 = vmatprep.subr.bf16.mxu0 %v7682
      %8181 = vmatpush1.bf16.msra.mxu0 %v7681
      %8182 = vmatprep.mubr.bf16.mxu0 %v6992
      %8183 = vmatmul.mubr.bf16.gmra.mrb[0].mxu0 %v6991
      %v8184 = vpop.f32.mrb[0].mxu0
      %v8185 = vadd.f32 %v8072, %v8184
      %v8186 = vpop.f32.mrb[0].mxu0
      %v8187 = vadd.f32 %v8074, %v8186
      %v8188 = vpop.f32.mrb[0].mxu0
      %v8189 = vadd.f32 %v8076, %v8188
      %v8190 = vpop.f32.mrb[0].mxu0
      %v8191 = vadd.f32 %v8078, %v8190
      %8192 = vmatprep.mubr.bf16.mxu0 %v6996
      %8193 = vmatmul.mubr.bf16.gmra.mrb[0].mxu0 %v6995
      %v8194 = vpop.f32.mrb[0].mxu0
      %v8195 = vadd.f32 %v8082, %v8194
      %v8196 = vpop.f32.mrb[0].mxu0
      %v8197 = vadd.f32 %v8084, %v8196
      %v8198 = vpop.f32.mrb[0].mxu0
      %v8199 = vadd.f32 %v8086, %v8198
      %v8200 = vpop.f32.mrb[0].mxu0
      %v8201 = vadd.f32 %v8088, %v8200
      %8202 = vmatprep.mubr.bf16.mxu0 %v7000
      %8203 = vmatmul.mubr.bf16.gmra.mrb[0].mxu0 %v6999
      %v8204 = vpop.f32.mrb[0].mxu0
      %v8205 = vadd.f32 %v8092, %v8204
      %v8206 = vpop.f32.mrb[0].mxu0
      %v8207 = vadd.f32 %v8094, %v8206
      %v8208 = vpop.f32.mrb[0].mxu0
      %v8209 = vadd.f32 %v8096, %v8208
      %v8210 = vpop.f32.mrb[0].mxu0
      %v8211 = vadd.f32 %v8098, %v8210
      %8212 = vmatprep.mubr.bf16.mxu0 %v7004
      %8213 = vmatmul.mubr.bf16.gmra.mrb[0].mxu0 %v7003
      %v8214 = vpop.f32.mrb[0].mxu0
      %v8215 = vadd.f32 %v8102, %v8214
      %v8216 = vpop.f32.mrb[0].mxu0
      %v8217 = vadd.f32 %v8104, %v8216
      %v8218 = vpop.f32.mrb[0].mxu0
      %v8219 = vadd.f32 %v8106, %v8218
      %v8220 = vpop.f32.mrb[0].mxu0
      %v8221 = vadd.f32 %v8108, %v8220
      %8222 = vmatprep.mubr.bf16.mxu0 %v7008
      %8223 = vmatmul.mubr.bf16.gmra.mrb[0].mxu0 %v7007
      %v8224 = vpop.f32.mrb[0].mxu0
      %v8225 = vadd.f32 %v8112, %v8224
      %v8226 = vpop.f32.mrb[0].mxu0
      %v8227 = vadd.f32 %v8114, %v8226
      %v8228 = vpop.f32.mrb[0].mxu0
      %v8229 = vadd.f32 %v8116, %v8228
      %v8230 = vpop.f32.mrb[0].mxu0
      %v8231 = vadd.f32 %v8118, %v8230
      %8232 = vmatprep.mubr.bf16.mxu0 %v7012
      %8233 = vmatmul.mubr.bf16.gmra.mrb[0].mxu0 %v7011
      %v8234 = vpop.f32.mrb[0].mxu0
      %v8235 = vadd.f32 %v8122, %v8234
      %v8236 = vpop.f32.mrb[0].mxu0
      %v8237 = vadd.f32 %v8124, %v8236
      %v8238 = vpop.f32.mrb[0].mxu0
      %v8239 = vadd.f32 %v8126, %v8238
      %v8240 = vpop.f32.mrb[0].mxu0
      %v8241 = vadd.f32 %v8128, %v8240
      %8242 = vmatprep.mubr.bf16.mxu0 %v7016
      %8243 = vmatmul.mubr.bf16.gmra.mrb[0].mxu0 %v7015
      %v8244 = vpop.f32.mrb[0].mxu0
      %v8245 = vadd.f32 %v8132, %v8244
      %v8246 = vpop.f32.mrb[0].mxu0
      %v8247 = vadd.f32 %v8134, %v8246
      %v8248 = vpop.f32.mrb[0].mxu0
      %v8249 = vadd.f32 %v8136, %v8248
      %v8250 = vpop.f32.mrb[0].mxu0
      %v8251 = vadd.f32 %v8138, %v8250
      %8252 = vmatprep.mubr.bf16.mxu0 %v7020
      %8253 = vmatmul.mubr.bf16.gmra.mrb[0].mxu0 %v7019
      %v8254 = vpop.f32.mrb[0].mxu0
      %v8255 = vadd.f32 %v8142, %v8254
      %v8256 = vpop.f32.mrb[0].mxu0
      %v8257 = vadd.f32 %v8144, %v8256
      %v8258 = vpop.f32.mrb[0].mxu0
      %v8259 = vadd.f32 %v8146, %v8258
      %v8260 = vpop.f32.mrb[0].mxu0
      %v8261 = vadd.f32 %v8148, %v8260
      %8262 = vdwg.mxu0
      %vm8263 = vcmp.gt.f32.partialorder %v7959, 0.0
      %vm8264 = vcmp.gt.f32.partialorder %v7961, 0.0
      %vm8265 = vcmp.gt.f32.partialorder %v8185, 0.0
      %vm8266 = vcmp.gt.f32.partialorder %v8187, 0.0
      %vm8267 = vcmp.gt.f32.partialorder %v7963, 0.0
      %vm8268 = vcmp.gt.f32.partialorder %v7965, 0.0
      %vm8269 = vcmp.gt.f32.partialorder %v8189, 0.0
      %vm8270 = vcmp.gt.f32.partialorder %v8191, 0.0
      %vm8271 = vcmp.gt.f32.partialorder %v7969, 0.0
      %vm8272 = vcmp.gt.f32.partialorder %v7971, 0.0
      %vm8273 = vcmp.gt.f32.partialorder %v8195, 0.0
      %vm8274 = vcmp.gt.f32.partialorder %v8197, 0.0
      %vm8275 = vcmp.gt.f32.partialorder %v7973, 0.0
      %vm8276 = vcmp.gt.f32.partialorder %v7975, 0.0
      %vm8277 = vcmp.gt.f32.partialorder %v8199, 0.0
      %vm8278 = vcmp.gt.f32.partialorder %v8201, 0.0
      %vm8279 = vcmp.gt.f32.partialorder %v7979, 0.0
      %vm8280 = vcmp.gt.f32.partialorder %v7981, 0.0
      %vm8281 = vcmp.gt.f32.partialorder %v8205, 0.0
      %vm8282 = vcmp.gt.f32.partialorder %v8207, 0.0
      %vm8283 = vcmp.gt.f32.partialorder %v7983, 0.0
      %vm8284 = vcmp.gt.f32.partialorder %v7985, 0.0
      %vm8285 = vcmp.gt.f32.partialorder %v8209, 0.0
      %vm8286 = vcmp.gt.f32.partialorder %v8211, 0.0
      %vm8287 = vcmp.gt.f32.partialorder %v7989, 0.0
      %vm8288 = vcmp.gt.f32.partialorder %v7991, 0.0
      %vm8289 = vcmp.gt.f32.partialorder %v8215, 0.0
      %vm8290 = vcmp.gt.f32.partialorder %v8217, 0.0
      %vm8291 = vcmp.gt.f32.partialorder %v7993, 0.0
      %vm8292 = vcmp.gt.f32.partialorder %v7995, 0.0
      %vm8293 = vcmp.gt.f32.partialorder %v8219, 0.0
      %vm8294 = vcmp.gt.f32.partialorder %v8221, 0.0
      %vm8295 = vcmp.gt.f32.partialorder %v7999, 0.0
      %vm8296 = vcmp.gt.f32.partialorder %v8001, 0.0
      %vm8297 = vcmp.gt.f32.partialorder %v8225, 0.0
      %vm8298 = vcmp.gt.f32.partialorder %v8227, 0.0
      %vm8299 = vcmp.gt.f32.partialorder %v8003, 0.0
      %vm8300 = vcmp.gt.f32.partialorder %v8005, 0.0
      %vm8301 = vcmp.gt.f32.partialorder %v8229, 0.0
      %vm8302 = vcmp.gt.f32.partialorder %v8231, 0.0
      %vm8303 = vcmp.gt.f32.partialorder %v8009, 0.0
      %vm8304 = vcmp.gt.f32.partialorder %v8011, 0.0
      %vm8305 = vcmp.gt.f32.partialorder %v8235, 0.0
      %vm8306 = vcmp.gt.f32.partialorder %v8237, 0.0
      %vm8307 = vcmp.gt.f32.partialorder %v8013, 0.0
      %vm8308 = vcmp.gt.f32.partialorder %v8015, 0.0
      %vm8309 = vcmp.gt.f32.partialorder %v8239, 0.0
      %vm8310 = vcmp.gt.f32.partialorder %v8241, 0.0
      %vm8311 = vcmp.gt.f32.partialorder %v8019, 0.0
      %vm8312 = vcmp.gt.f32.partialorder %v8021, 0.0
      %vm8313 = vcmp.gt.f32.partialorder %v8245, 0.0
      %vm8314 = vcmp.gt.f32.partialorder %v8247, 0.0
      %vm8315 = vcmp.gt.f32.partialorder %v8023, 0.0
      %vm8316 = vcmp.gt.f32.partialorder %v8025, 0.0
      %vm8317 = vcmp.gt.f32.partialorder %v8249, 0.0
      %vm8318 = vcmp.gt.f32.partialorder %v8251, 0.0
      %vm8319 = vcmp.gt.f32.partialorder %v8029, 0.0
      %vm8320 = vcmp.gt.f32.partialorder %v8031, 0.0
      %vm8321 = vcmp.gt.f32.partialorder %v8255, 0.0
      %vm8322 = vcmp.gt.f32.partialorder %v8257, 0.0
      %vm8323 = vcmp.gt.f32.partialorder %v8033, 0.0
      %vm8324 = vcmp.gt.f32.partialorder %v8035, 0.0
      %vm8325 = vcmp.gt.f32.partialorder %v8259, 0.0
      %vm8326 = vcmp.gt.f32.partialorder %v8261, 0.0
      %v8327 = vmul.f32 %v7959, 0.2
      %v8328 = vmul.f32 %v7961, 0.2
      %v8329 = vmul.f32 %v8185, 0.2
      %v8330 = vmul.f32 %v8187, 0.2
      %v8331 = vmul.f32 %v7963, 0.2
      %v8332 = vmul.f32 %v7965, 0.2
      %v8333 = vmul.f32 %v8189, 0.2
      %v8334 = vmul.f32 %v8191, 0.2
      %v8335 = vmul.f32 %v7969, 0.2
      %v8336 = vmul.f32 %v7971, 0.2
      %v8337 = vmul.f32 %v8195, 0.2
      %v8338 = vmul.f32 %v8197, 0.2
      %v8339 = vmul.f32 %v7973, 0.2
      %v8340 = vmul.f32 %v7975, 0.2
      %v8341 = vmul.f32 %v8199, 0.2
      %v8342 = vmul.f32 %v8201, 0.2
      %v8343 = vmul.f32 %v7979, 0.2
      %v8344 = vmul.f32 %v7981, 0.2
      %v8345 = vmul.f32 %v8205, 0.2
      %v8346 = vmul.f32 %v8207, 0.2
      %v8347 = vmul.f32 %v7983, 0.2
      %v8348 = vmul.f32 %v7985, 0.2
      %v8349 = vmul.f32 %v8209, 0.2
      %v8350 = vmul.f32 %v8211, 0.2
      %v8351 = vmul.f32 %v7989, 0.2
      %v8352 = vmul.f32 %v7991, 0.2
      %v8353 = vmul.f32 %v8215, 0.2
      %v8354 = vmul.f32 %v8217, 0.2
      %v8355 = vmul.f32 %v7993, 0.2
      %v8356 = vmul.f32 %v7995, 0.2
      %v8357 = vmul.f32 %v8219, 0.2
      %v8358 = vmul.f32 %v8221, 0.2
      %v8359 = vmul.f32 %v7999, 0.2
      %v8360 = vmul.f32 %v8001, 0.2
      %v8361 = vmul.f32 %v8225, 0.2
      %v8362 = vmul.f32 %v8227, 0.2
      %v8363 = vmul.f32 %v8003, 0.2
      %v8364 = vmul.f32 %v8005, 0.2
      %v8365 = vmul.f32 %v8229, 0.2
      %v8366 = vmul.f32 %v8231, 0.2
      %v8367 = vmul.f32 %v8009, 0.2
      %v8368 = vmul.f32 %v8011, 0.2
      %v8369 = vmul.f32 %v8235, 0.2
      %v8370 = vmul.f32 %v8237, 0.2
      %v8371 = vmul.f32 %v8013, 0.2
      %v8372 = vmul.f32 %v8015, 0.2
      %v8373 = vmul.f32 %v8239, 0.2
      %v8374 = vmul.f32 %v8241, 0.2
      %v8375 = vmul.f32 %v8019, 0.2
      %v8376 = vmul.f32 %v8021, 0.2
      %v8377 = vmul.f32 %v8245, 0.2
      %v8378 = vmul.f32 %v8247, 0.2
      %v8379 = vmul.f32 %v8023, 0.2
      %v8380 = vmul.f32 %v8025, 0.2
      %v8381 = vmul.f32 %v8249, 0.2
      %v8382 = vmul.f32 %v8251, 0.2
      %v8383 = vmul.f32 %v8029, 0.2
      %v8384 = vmul.f32 %v8031, 0.2
      %v8385 = vmul.f32 %v8255, 0.2
      %v8386 = vmul.f32 %v8257, 0.2
      %v8387 = vmul.f32 %v8033, 0.2
      %v8388 = vmul.f32 %v8035, 0.2
      %v8389 = vmul.f32 %v8259, 0.2
      %v8390 = vmul.f32 %v8261, 0.2
      %v8391 = vsel %vm8263, %v7959, %v8327
      %v8392 = vsel %vm8264, %v7961, %v8328
      %v8393 = vsel %vm8265, %v8185, %v8329
      %v8394 = vsel %vm8266, %v8187, %v8330
      %v8395 = vsel %vm8267, %v7963, %v8331
      %v8396 = vsel %vm8268, %v7965, %v8332
      %v8397 = vsel %vm8269, %v8189, %v8333
      %v8398 = vsel %vm8270, %v8191, %v8334
      %v8399 = vsel %vm8271, %v7969, %v8335
      %v8400 = vsel %vm8272, %v7971, %v8336
      %v8401 = vsel %vm8273, %v8195, %v8337
      %v8402 = vsel %vm8274, %v8197, %v8338
      %v8403 = vsel %vm8275, %v7973, %v8339
      %v8404 = vsel %vm8276, %v7975, %v8340
      %v8405 = vsel %vm8277, %v8199, %v8341
      %v8406 = vsel %vm8278, %v8201, %v8342
      %v8407 = vsel %vm8279, %v7979, %v8343
      %v8408 = vsel %vm8280, %v7981, %v8344
      %v8409 = vsel %vm8281, %v8205, %v8345
      %v8410 = vsel %vm8282, %v8207, %v8346
      %v8411 = vsel %vm8283, %v7983, %v8347
      %v8412 = vsel %vm8284, %v7985, %v8348
      %v8413 = vsel %vm8285, %v8209, %v8349
      %v8414 = vsel %vm8286, %v8211, %v8350
      %v8415 = vsel %vm8287, %v7989, %v8351
      %v8416 = vsel %vm8288, %v7991, %v8352
      %v8417 = vsel %vm8289, %v8215, %v8353
      %v8418 = vsel %vm8290, %v8217, %v8354
      %v8419 = vsel %vm8291, %v7993, %v8355
      %v8420 = vsel %vm8292, %v7995, %v8356
      %v8421 = vsel %vm8293, %v8219, %v8357
      %v8422 = vsel %vm8294, %v8221, %v8358
      %v8423 = vsel %vm8295, %v7999, %v8359
      %v8424 = vsel %vm8296, %v8001, %v8360
      %v8425 = vsel %vm8297, %v8225, %v8361
      %v8426 = vsel %vm8298, %v8227, %v8362
      %v8427 = vsel %vm8299, %v8003, %v8363
      %v8428 = vsel %vm8300, %v8005, %v8364
      %v8429 = vsel %vm8301, %v8229, %v8365
      %v8430 = vsel %vm8302, %v8231, %v8366
      %v8431 = vsel %vm8303, %v8009, %v8367
      %v8432 = vsel %vm8304, %v8011, %v8368
      %v8433 = vsel %vm8305, %v8235, %v8369
      %v8434 = vsel %vm8306, %v8237, %v8370
      %v8435 = vsel %vm8307, %v8013, %v8371
      %v8436 = vsel %vm8308, %v8015, %v8372
      %v8437 = vsel %vm8309, %v8239, %v8373
      %v8438 = vsel %vm8310, %v8241, %v8374
      %v8439 = vsel %vm8311, %v8019, %v8375
      %v8440 = vsel %vm8312, %v8021, %v8376
      %v8441 = vsel %vm8313, %v8245, %v8377
      %v8442 = vsel %vm8314, %v8247, %v8378
      %v8443 = vsel %vm8315, %v8023, %v8379
      %v8444 = vsel %vm8316, %v8025, %v8380
      %v8445 = vsel %vm8317, %v8249, %v8381
      %v8446 = vsel %vm8318, %v8251, %v8382
      %v8447 = vsel %vm8319, %v8029, %v8383
      %v8448 = vsel %vm8320, %v8031, %v8384
      %v8449 = vsel %vm8321, %v8255, %v8385
      %v8450 = vsel %vm8322, %v8257, %v8386
      %v8451 = vsel %vm8323, %v8033, %v8387
      %v8452 = vsel %vm8324, %v8035, %v8388
      %v8453 = vsel %vm8325, %v8259, %v8389
      %v8454 = vsel %vm8326, %v8261, %v8390
      %v8455 = vpack.c.bf16 %v8395, %v8391
      %v8456 = vpack.c.bf16 %v8396, %v8392
      %v8457 = vpack.c.bf16 %v8397, %v8393
      %v8458 = vpack.c.bf16 %v8398, %v8394
      %v8459 = vpack.c.bf16 %v8403, %v8399
      %v8460 = vpack.c.bf16 %v8404, %v8400
      %v8461 = vpack.c.bf16 %v8405, %v8401
      %v8462 = vpack.c.bf16 %v8406, %v8402
      %v8463 = vpack.c.bf16 %v8411, %v8407
      %v8464 = vpack.c.bf16 %v8412, %v8408
      %v8465 = vpack.c.bf16 %v8413, %v8409
      %v8466 = vpack.c.bf16 %v8414, %v8410
      %v8467 = vpack.c.bf16 %v8419, %v8415
      %v8468 = vpack.c.bf16 %v8420, %v8416
      %v8469 = vpack.c.bf16 %v8421, %v8417
      %v8470 = vpack.c.bf16 %v8422, %v8418
      %v8471 = vpack.c.bf16 %v8427, %v8423
      %v8472 = vpack.c.bf16 %v8428, %v8424
      %v8473 = vpack.c.bf16 %v8429, %v8425
      %v8474 = vpack.c.bf16 %v8430, %v8426
      %v8475 = vpack.c.bf16 %v8435, %v8431
      %v8476 = vpack.c.bf16 %v8436, %v8432
      %v8477 = vpack.c.bf16 %v8437, %v8433
      %v8478 = vpack.c.bf16 %v8438, %v8434
      %v8479 = vpack.c.bf16 %v8443, %v8439
      %v8480 = vpack.c.bf16 %v8444, %v8440
      %v8481 = vpack.c.bf16 %v8445, %v8441
      %v8482 = vpack.c.bf16 %v8446, %v8442
      %v8483 = vpack.c.bf16 %v8451, %v8447
      %v8484 = vpack.c.bf16 %v8452, %v8448
      %v8485 = vpack.c.bf16 %v8453, %v8449
      %v8486 = vpack.c.bf16 %v8454, %v8450
      %v8487 = vld [vmem:[%s12] sm:$0xff]
      %v8488 = vld [vmem:[%s12 + $0x8] sm:$0xff]
      %v8489 = vld [vmem:[%s12 + $0x10] sm:$0xff]
      %v8490 = vld [vmem:[%s12 + $0x18] sm:$0xf]
      %v8491 = vld [vmem:[%s12 + $0x1c] sm:$0xff]
      %v8492 = vld [vmem:[%s12 + $0x24] sm:$0xff]
      %v8493 = vld [vmem:[%s12 + $0x2c] sm:$0xff]
      %v8494 = vld [vmem:[%s12 + $0x34] sm:$0xf]
      %v8495 = vld [vmem:[%s12 + $0x38] sm:$0xff]
      %v8496 = vld [vmem:[%s12 + $0x40] sm:$0xff]
      %v8497 = vld [vmem:[%s12 + $0x48] sm:$0xff]
      %v8498 = vld [vmem:[%s12 + $0x50] sm:$0xf]
      %v8499 = vld [vmem:[%s12 + $0x54] sm:$0xff]
      %v8500 = vld [vmem:[%s12 + $0x5c] sm:$0xff]
      %v8501 = vld [vmem:[%s12 + $0x64] sm:$0xff]
      %v8502 = vld [vmem:[%s12 + $0x6c] sm:$0xf]
      %v8503 = vld [vmem:[%s12 + $0x70] sm:$0xff]
      %v8504 = vld [vmem:[%s12 + $0x78] sm:$0xff]
      %v8505 = vld [vmem:[%s12 + $0x80] sm:$0xff]
      %v8506 = vld [vmem:[%s12 + $0x88] sm:$0xf]
      %v8507 = vld [vmem:[%s12 + $0x8c] sm:$0xff]
      %v8508 = vld [vmem:[%s12 + $0x94] sm:$0xff]
      %v8509 = vld [vmem:[%s12 + $0x9c] sm:$0xff]
      %v8510 = vld [vmem:[%s12 + $0xa4] sm:$0xf]
      %v8511 = vld [vmem:[%s12 + $0xa8] sm:$0xff]
      %v8512 = vld [vmem:[%s12 + $0xb0] sm:$0xff]
      %v8513 = vld [vmem:[%s12 + $0xb8] sm:$0xff]
      %v8514 = vld [vmem:[%s12 + $0xc0] sm:$0xf]
      %v8515 = vld [vmem:[%s12 + $0xc4] sm:$0xff]
      %v8516 = vld [vmem:[%s12 + $0xcc] sm:$0xff]
      %v8517 = vld [vmem:[%s12 + $0xd4] sm:$0xff]
      %v8518 = vld [vmem:[%s12 + $0xdc] sm:$0xf]
      %v8519 = vld [vmem:[%s12 + $0xe0] sm:$0xff]
      %v8520 = vld [vmem:[%s12 + $0xe8] sm:$0xff]
      %v8521 = vld [vmem:[%s12 + $0xf0] sm:$0xff]
      %v8522 = vld [vmem:[%s12 + $0xf8] sm:$0xf]
      %v8523 = vld [vmem:[%s12 + $0xfc] sm:$0xff]
      %v8524 = vld [vmem:[%s12 + $0x104] sm:$0xff]
      %v8525 = vld [vmem:[%s12 + $0x10c] sm:$0xff]
      %v8526 = vld [vmem:[%s12 + $0x114] sm:$0xf]
      %v8527 = vld [vmem:[%s12 + $0x118] sm:$0xff]
      %v8528 = vld [vmem:[%s12 + $0x120] sm:$0xff]
      %v8529 = vld [vmem:[%s12 + $0x128] sm:$0xff]
      %v8530 = vld [vmem:[%s12 + $0x130] sm:$0xf]
      %v8531 = vld [vmem:[%s12 + $0x134] sm:$0xff]
      %v8532 = vld [vmem:[%s12 + $0x13c] sm:$0xff]
      %v8533 = vld [vmem:[%s12 + $0x144] sm:$0xff]
      %v8534 = vld [vmem:[%s12 + $0x14c] sm:$0xf]
      %v8535 = vld [vmem:[%s12 + $0x150] sm:$0xff]
      %v8536 = vld [vmem:[%s12 + $0x158] sm:$0xff]
      %v8537 = vld [vmem:[%s12 + $0x160] sm:$0xff]
      %v8538 = vld [vmem:[%s12 + $0x168] sm:$0xf]
      %v8539 = vld [vmem:[%s12 + $0x16c] sm:$0xff]
      %v8540 = vld [vmem:[%s12 + $0x174] sm:$0xff]
      %v8541 = vld [vmem:[%s12 + $0x17c] sm:$0xff]
      %v8542 = vld [vmem:[%s12 + $0x184] sm:$0xf]
      %v8543 = vld [vmem:[%s12 + $0x188] sm:$0xff]
      %v8544 = vld [vmem:[%s12 + $0x190] sm:$0xff]
      %v8545 = vld [vmem:[%s12 + $0x198] sm:$0xff]
      %v8546 = vld [vmem:[%s12 + $0x1a0] sm:$0xf]
      %v8547 = vld [vmem:[%s12 + $0x1a4] sm:$0xff]
      %v8548 = vld [vmem:[%s12 + $0x1ac] sm:$0xff]
      %v8549 = vld [vmem:[%s12 + $0x1b4] sm:$0xff]
      %v8550 = vld [vmem:[%s12 + $0x1bc] sm:$0xf]
      %v8551 = vld [vmem:[%s12 + $0x1c0] sm:$0xff]
      %v8552 = vld [vmem:[%s12 + $0x1c8] sm:$0xff]
      %v8553 = vld [vmem:[%s12 + $0x1d0] sm:$0xff]
      %v8554 = vld [vmem:[%s12 + $0x1d8] sm:$0xf]
      %v8555 = vld [vmem:[%s12 + $0x1dc] sm:$0xff]
      %v8556 = vld [vmem:[%s12 + $0x1e4] sm:$0xff]
      %v8557 = vld [vmem:[%s12 + $0x1ec] sm:$0xff]
      %v8558 = vld [vmem:[%s12 + $0x1f4] sm:$0xf]
      %v8559 = vld [vmem:[%s12 + $0x1f8] sm:$0xff]
      %v8560 = vld [vmem:[%s12 + $0x200] sm:$0xff]
      %v8561 = vld [vmem:[%s12 + $0x208] sm:$0xff]
      %v8562 = vld [vmem:[%s12 + $0x210] sm:$0xf]
      %v8563 = vld [vmem:[%s12 + $0x214] sm:$0xff]
      %v8564 = vld [vmem:[%s12 + $0x21c] sm:$0xff]
      %v8565 = vld [vmem:[%s12 + $0x224] sm:$0xff]
      %v8566 = vld [vmem:[%s12 + $0x22c] sm:$0xf]
      %v8567 = vld [vmem:[%s12 + $0x230] sm:$0xff]
      %v8568 = vld [vmem:[%s12 + $0x238] sm:$0xff]
      %v8569 = vld [vmem:[%s12 + $0x240] sm:$0xff]
      %v8570 = vld [vmem:[%s12 + $0x248] sm:$0xf]
      %v8571 = vld [vmem:[%s12 + $0x24c] sm:$0xff]
      %v8572 = vld [vmem:[%s12 + $0x254] sm:$0xff]
      %v8573 = vld [vmem:[%s12 + $0x25c] sm:$0xff]
      %v8574 = vld [vmem:[%s12 + $0x264] sm:$0xf]
      %v8575 = vld [vmem:[%s12 + $0x268] sm:$0xff]
      %v8576 = vld [vmem:[%s12 + $0x270] sm:$0xff]
      %v8577 = vld [vmem:[%s12 + $0x278] sm:$0xff]
      %v8578 = vld [vmem:[%s12 + $0x280] sm:$0xf]
      %v8579 = vld [vmem:[%s12 + $0x284] sm:$0xff]
      %v8580 = vld [vmem:[%s12 + $0x28c] sm:$0xff]
      %v8581 = vld [vmem:[%s12 + $0x294] sm:$0xff]
      %v8582 = vld [vmem:[%s12 + $0x29c] sm:$0xf]
      %v8583 = vld [vmem:[%s12 + $0x2a0] sm:$0xff]
      %v8584 = vld [vmem:[%s12 + $0x2a8] sm:$0xff]
      %v8585 = vld [vmem:[%s12 + $0x2b0] sm:$0xff]
      %v8586 = vld [vmem:[%s12 + $0x2b8] sm:$0xf]
      %v8587 = vld [vmem:[%s12 + $0x2bc] sm:$0xff]
      %v8588 = vld [vmem:[%s12 + $0x2c4] sm:$0xff]
      %v8589 = vld [vmem:[%s12 + $0x2cc] sm:$0xff]
      %v8590 = vld [vmem:[%s12 + $0x2d4] sm:$0xf]
      %v8591 = vld [vmem:[%s12 + $0x2d8] sm:$0xff]
      %v8592 = vld [vmem:[%s12 + $0x2e0] sm:$0xff]
      %v8593 = vld [vmem:[%s12 + $0x2e8] sm:$0xff]
      %v8594 = vld [vmem:[%s12 + $0x2f0] sm:$0xf]
      %v8595 = vld [vmem:[%s12 + $0x2f4] sm:$0xff]
      %v8596 = vld [vmem:[%s12 + $0x2fc] sm:$0xff]
      %v8597 = vld [vmem:[%s12 + $0x304] sm:$0xff]
      %v8598 = vld [vmem:[%s12 + $0x30c] sm:$0xf]
      %v8599 = vld [vmem:[%s12 + $0x310] sm:$0xff]
      %v8600 = vld [vmem:[%s12 + $0x318] sm:$0xff]
      %v8601 = vld [vmem:[%s12 + $0x320] sm:$0xff]
      %v8602 = vld [vmem:[%s12 + $0x328] sm:$0xf]
      %v8603 = vld [vmem:[%s12 + $0x32c] sm:$0xff]
      %v8604 = vld [vmem:[%s12 + $0x334] sm:$0xff]
      %v8605 = vld [vmem:[%s12 + $0x33c] sm:$0xff]
      %v8606 = vld [vmem:[%s12 + $0x344] sm:$0xf]
      %v8607 = vld [vmem:[%s12 + $0x348] sm:$0xff]
      %v8608 = vld [vmem:[%s12 + $0x350] sm:$0xff]
      %v8609 = vld [vmem:[%s12 + $0x358] sm:$0xff]
      %v8610 = vld [vmem:[%s12 + $0x360] sm:$0xf]
      %v8611 = vld [vmem:[%s12 + $0x364] sm:$0xff]
      %v8612 = vld [vmem:[%s12 + $0x36c] sm:$0xff]
      %v8613 = vld [vmem:[%s12 + $0x374] sm:$0xff]
      %v8614 = vld [vmem:[%s12 + $0x37c] sm:$0xf]
      %v8615 = vld [vmem:[%s12 + $0x380] sm:$0xff]
      %v8616 = vld [vmem:[%s12 + $0x388] sm:$0xff]
      %v8617 = vld [vmem:[%s12 + $0x390] sm:$0xff]
      %v8618 = vld [vmem:[%s12 + $0x398] sm:$0xf]
      %v8619 = vld [vmem:[%s12 + $0x39c] sm:$0xff]
      %v8620 = vld [vmem:[%s12 + $0x3a4] sm:$0xff]
      %v8621 = vld [vmem:[%s12 + $0x3ac] sm:$0xff]
      %v8622 = vld [vmem:[%s12 + $0x3b4] sm:$0xf]
      %v8623 = vld [vmem:[%s12 + $0x3b8] sm:$0xff]
      %v8624 = vld [vmem:[%s12 + $0x3c0] sm:$0xff]
      %v8625 = vld [vmem:[%s12 + $0x3c8] sm:$0xff]
      %v8626 = vld [vmem:[%s12 + $0x3d0] sm:$0xf]
      %v8627 = vld [vmem:[%s12 + $0x3d4] sm:$0xff]
      %v8628 = vld [vmem:[%s12 + $0x3dc] sm:$0xff]
      %v8629 = vld [vmem:[%s12 + $0x3e4] sm:$0xff]
      %v8630 = vld [vmem:[%s12 + $0x3ec] sm:$0xf]
      %v8631 = vld [vmem:[%s12 + $0x3f0] sm:$0xff]
      %v8632 = vld [vmem:[%s12 + $0x3f8] sm:$0xff]
      %v8633 = vld [vmem:[%s12 + $0x400] sm:$0xff]
      %v8634 = vld [vmem:[%s12 + $0x408] sm:$0xf]
      %v8635 = vld [vmem:[%s12 + $0x40c] sm:$0xff]
      %v8636 = vld [vmem:[%s12 + $0x414] sm:$0xff]
      %v8637 = vld [vmem:[%s12 + $0x41c] sm:$0xff]
      %v8638 = vld [vmem:[%s12 + $0x424] sm:$0xf]
      %v8639 = vld [vmem:[%s12 + $0x428] sm:$0xff]
      %v8640 = vld [vmem:[%s12 + $0x430] sm:$0xff]
      %v8641 = vld [vmem:[%s12 + $0x438] sm:$0xff]
      %v8642 = vld [vmem:[%s12 + $0x440] sm:$0xf]
      %v8643 = vld [vmem:[%s12 + $0x444] sm:$0xff]
      %v8644 = vld [vmem:[%s12 + $0x44c] sm:$0xff]
      %v8645 = vld [vmem:[%s12 + $0x454] sm:$0xff]
      %v8646 = vld [vmem:[%s12 + $0x45c] sm:$0xf]
      %v8647 = vld [vmem:[%s12 + $0x460] sm:$0xff]
      %v8648 = vld [vmem:[%s12 + $0x468] sm:$0xff]
      %v8649 = vld [vmem:[%s12 + $0x470] sm:$0xff]
      %v8650 = vld [vmem:[%s12 + $0x478] sm:$0xf]
      %v8651 = vld [vmem:[%s12 + $0x47c] sm:$0xff]
      %v8652 = vld [vmem:[%s12 + $0x484] sm:$0xff]
      %v8653 = vld [vmem:[%s12 + $0x48c] sm:$0xff]
      %v8654 = vld [vmem:[%s12 + $0x494] sm:$0xf]
      %v8655 = vld [vmem:[%s12 + $0x498] sm:$0xff]
      %v8656 = vld [vmem:[%s12 + $0x4a0] sm:$0xff]
      %v8657 = vld [vmem:[%s12 + $0x4a8] sm:$0xff]
      %v8658 = vld [vmem:[%s12 + $0x4b0] sm:$0xf]
      %v8659 = vld [vmem:[%s12 + $0x4b4] sm:$0xff]
      %v8660 = vld [vmem:[%s12 + $0x4bc] sm:$0xff]
      %v8661 = vld [vmem:[%s12 + $0x4c4] sm:$0xff]
      %v8662 = vld [vmem:[%s12 + $0x4cc] sm:$0xf]
      %v8663 = vld [vmem:[%s12 + $0x4d0] sm:$0xff]
      %v8664 = vld [vmem:[%s12 + $0x4d8] sm:$0xff]
      %v8665 = vld [vmem:[%s12 + $0x4e0] sm:$0xff]
      %v8666 = vld [vmem:[%s12 + $0x4e8] sm:$0xf]
      %v8667 = vld [vmem:[%s12 + $0x4ec] sm:$0xff]
      %v8668 = vld [vmem:[%s12 + $0x4f4] sm:$0xff]
      %v8669 = vld [vmem:[%s12 + $0x4fc] sm:$0xff]
      %v8670 = vld [vmem:[%s12 + $0x504] sm:$0xf]
      %v8671 = vld [vmem:[%s12 + $0x508] sm:$0xff]
      %v8672 = vld [vmem:[%s12 + $0x510] sm:$0xff]
      %v8673 = vld [vmem:[%s12 + $0x518] sm:$0xff]
      %v8674 = vld [vmem:[%s12 + $0x520] sm:$0xf]
      %v8675 = vld [vmem:[%s12 + $0x524] sm:$0xff]
      %v8676 = vld [vmem:[%s12 + $0x52c] sm:$0xff]
      %v8677 = vld [vmem:[%s12 + $0x534] sm:$0xff]
      %v8678 = vld [vmem:[%s12 + $0x53c] sm:$0xf]
      %v8679 = vld [vmem:[%s12 + $0x540] sm:$0xff]
      %v8680 = vld [vmem:[%s12 + $0x548] sm:$0xff]
      %v8681 = vld [vmem:[%s12 + $0x550] sm:$0xff]
      %v8682 = vld [vmem:[%s12 + $0x558] sm:$0xf]
      %v8683 = vld [vmem:[%s12 + $0x55c] sm:$0xff]
      %v8684 = vld [vmem:[%s12 + $0x564] sm:$0xff]
      %v8685 = vld [vmem:[%s12 + $0x56c] sm:$0xff]
      %v8686 = vld [vmem:[%s12 + $0x574] sm:$0xf]
      %v8687 = vld [vmem:[%s12 + $0x578] sm:$0xff]
      %v8688 = vld [vmem:[%s12 + $0x580] sm:$0xff]
      %v8689 = vld [vmem:[%s12 + $0x588] sm:$0xff]
      %v8690 = vld [vmem:[%s12 + $0x590] sm:$0xf]
      %v8691 = vld [vmem:[%s12 + $0x594] sm:$0xff]
      %v8692 = vld [vmem:[%s12 + $0x59c] sm:$0xff]
      %v8693 = vld [vmem:[%s12 + $0x5a4] sm:$0xff]
      %v8694 = vld [vmem:[%s12 + $0x5ac] sm:$0xf]
      %v8695 = vld [vmem:[%s12 + $0x5b0] sm:$0xff]
      %v8696 = vld [vmem:[%s12 + $0x5b8] sm:$0xff]
      %v8697 = vld [vmem:[%s12 + $0x5c0] sm:$0xff]
      %v8698 = vld [vmem:[%s12 + $0x5c8] sm:$0xf]
      %v8699 = vld [vmem:[%s12 + $0x5cc] sm:$0xff]
      %v8700 = vld [vmem:[%s12 + $0x5d4] sm:$0xff]
      %v8701 = vld [vmem:[%s12 + $0x5dc] sm:$0xff]
      %v8702 = vld [vmem:[%s12 + $0x5e4] sm:$0xf]
      %v8703 = vld [vmem:[%s12 + $0x5e8] sm:$0xff]
      %v8704 = vld [vmem:[%s12 + $0x5f0] sm:$0xff]
      %v8705 = vld [vmem:[%s12 + $0x5f8] sm:$0xff]
      %v8706 = vld [vmem:[%s12 + $0x600] sm:$0xf]
      %v8707 = vld [vmem:[%s12 + $0x604] sm:$0xff]
      %v8708 = vld [vmem:[%s12 + $0x60c] sm:$0xff]
      %v8709 = vld [vmem:[%s12 + $0x614] sm:$0xff]
      %v8710 = vld [vmem:[%s12 + $0x61c] sm:$0xf]
      %v8711 = vld [vmem:[%s12 + $0x620] sm:$0xff]
      %v8712 = vld [vmem:[%s12 + $0x628] sm:$0xff]
      %v8713 = vld [vmem:[%s12 + $0x630] sm:$0xff]
      %v8714 = vld [vmem:[%s12 + $0x638] sm:$0xf]
      %v8715 = vld [vmem:[%s12 + $0x63c] sm:$0xff]
      %v8716 = vld [vmem:[%s12 + $0x644] sm:$0xff]
      %v8717 = vld [vmem:[%s12 + $0x64c] sm:$0xff]
      %v8718 = vld [vmem:[%s12 + $0x654] sm:$0xf]
      %v8719 = vld [vmem:[%s12 + $0x658] sm:$0xff]
      %v8720 = vld [vmem:[%s12 + $0x660] sm:$0xff]
      %v8721 = vld [vmem:[%s12 + $0x668] sm:$0xff]
      %v8722 = vld [vmem:[%s12 + $0x670] sm:$0xf]
      %v8723 = vld [vmem:[%s12 + $0x674] sm:$0xff]
      %v8724 = vld [vmem:[%s12 + $0x67c] sm:$0xff]
      %v8725 = vld [vmem:[%s12 + $0x684] sm:$0xff]
      %v8726 = vld [vmem:[%s12 + $0x68c] sm:$0xf]
      %v8727 = vld [vmem:[%s12 + $0x690] sm:$0xff]
      %v8728 = vld [vmem:[%s12 + $0x698] sm:$0xff]
      %v8729 = vld [vmem:[%s12 + $0x6a0] sm:$0xff]
      %v8730 = vld [vmem:[%s12 + $0x6a8] sm:$0xf]
      %v8731 = vld [vmem:[%s12 + $0x6ac] sm:$0xff]
      %v8732 = vld [vmem:[%s12 + $0x6b4] sm:$0xff]
      %v8733 = vld [vmem:[%s12 + $0x6bc] sm:$0xff]
      %v8734 = vld [vmem:[%s12 + $0x6c4] sm:$0xf]
      %v8735 = vld [vmem:[%s12 + $0x6c8] sm:$0xff]
      %v8736 = vld [vmem:[%s12 + $0x6d0] sm:$0xff]
      %v8737 = vld [vmem:[%s12 + $0x6d8] sm:$0xff]
      %v8738 = vld [vmem:[%s12 + $0x6e0] sm:$0xf]
      %v8739 = vld [vmem:[%s12 + $0x6e4] sm:$0xff]
      %v8740 = vld [vmem:[%s12 + $0x6ec] sm:$0xff]
      %v8741 = vld [vmem:[%s12 + $0x6f4] sm:$0xff]
      %v8742 = vld [vmem:[%s12 + $0x6fc] sm:$0xf]
      %v8743 = vld [vmem:[%s13] sm:$0xff]
      %v8745 = vlaneseq
      %v8746 = vshrl.u32 %v8745, 7
      %v8747 = vsub.s32 0, %v8746
      %v8748 = vrot.slane %v8743, %v8747
      %v8749 = vlaneseq
      %v8750 = vshrl.u32 %v8749, 7
      %v8751 = vsub.s32 1, %v8750
      %v8752 = vrot.slane %v8743, %v8751
      %v8753 = vlaneseq
      %v8754 = vshrl.u32 %v8753, 7
      %v8755 = vsub.s32 2, %v8754
      %v8756 = vrot.slane %v8743, %v8755
      %v8757 = vlaneseq
      %v8758 = vshrl.u32 %v8757, 7
      %v8759 = vsub.s32 3, %v8758
      %v8760 = vrot.slane %v8743, %v8759
      %v8761 = vlaneseq
      %v8762 = vshrl.u32 %v8761, 7
      %v8763 = vsub.s32 4, %v8762
      %v8764 = vrot.slane %v8743, %v8763
      %v8765 = vlaneseq
      %v8766 = vshrl.u32 %v8765, 7
      %v8767 = vsub.s32 5, %v8766
      %v8768 = vrot.slane %v8743, %v8767
      %v8769 = vlaneseq
      %v8770 = vshrl.u32 %v8769, 7
      %v8771 = vsub.s32 6, %v8770
      %v8772 = vrot.slane %v8743, %v8771
      %v9036 = vunpack.c.l.b16 %v8487
      %v9037 = vunpack.c.h.b16 %v8487
      %v9038 = vunpack.c.l.b16 %v8488
      %v9039 = vunpack.c.h.b16 %v8488
      %v9040 = vunpack.c.l.b16 %v8489
      %v9041 = vunpack.c.h.b16 %v8489
      %v9042 = vunpack.c.l.b16 %v8490
      %v9043 = vunpack.c.l.b16 %v8491
      %v9044 = vunpack.c.h.b16 %v8491
      %v9045 = vunpack.c.l.b16 %v8492
      %v9046 = vunpack.c.h.b16 %v8492
      %v9047 = vunpack.c.l.b16 %v8493
      %v9048 = vunpack.c.h.b16 %v8493
      %v9049 = vunpack.c.l.b16 %v8494
      %v9050 = vunpack.c.l.b16 %v8495
      %v9051 = vunpack.c.h.b16 %v8495
      %v9052 = vunpack.c.l.b16 %v8496
      %v9053 = vunpack.c.h.b16 %v8496
      %v9054 = vunpack.c.l.b16 %v8497
      %v9055 = vunpack.c.h.b16 %v8497
      %v9056 = vunpack.c.l.b16 %v8498
      %v9057 = vunpack.c.l.b16 %v8499
      %v9058 = vunpack.c.h.b16 %v8499
      %v9059 = vunpack.c.l.b16 %v8500
      %v9060 = vunpack.c.h.b16 %v8500
      %v9061 = vunpack.c.l.b16 %v8501
      %v9062 = vunpack.c.h.b16 %v8501
      %v9063 = vunpack.c.l.b16 %v8502
      %v9064 = vunpack.c.l.b16 %v8503
      %v9065 = vunpack.c.h.b16 %v8503
      %v9066 = vunpack.c.l.b16 %v8504
      %v9067 = vunpack.c.h.b16 %v8504
      %v9068 = vunpack.c.l.b16 %v8505
      %v9069 = vunpack.c.h.b16 %v8505
      %v9070 = vunpack.c.l.b16 %v8506
      %v9071 = vunpack.c.l.b16 %v8507
      %v9072 = vunpack.c.h.b16 %v8507
      %v9073 = vunpack.c.l.b16 %v8508
      %v9074 = vunpack.c.h.b16 %v8508
      %v9075 = vunpack.c.l.b16 %v8509
      %v9076 = vunpack.c.h.b16 %v8509
      %v9077 = vunpack.c.l.b16 %v8510
      %v9078 = vunpack.c.l.b16 %v8511
      %v9079 = vunpack.c.h.b16 %v8511
      %v9080 = vunpack.c.l.b16 %v8512
      %v9081 = vunpack.c.h.b16 %v8512
      %v9082 = vunpack.c.l.b16 %v8513
      %v9083 = vunpack.c.h.b16 %v8513
      %v9084 = vunpack.c.l.b16 %v8514
      %v9085 = vunpack.c.l.b16 %v8515
      %v9086 = vunpack.c.h.b16 %v8515
      %v9087 = vunpack.c.l.b16 %v8516
      %v9088 = vunpack.c.h.b16 %v8516
      %v9089 = vunpack.c.l.b16 %v8517
      %v9090 = vunpack.c.h.b16 %v8517
      %v9091 = vunpack.c.l.b16 %v8518
      %v9092 = vunpack.c.l.b16 %v8519
      %v9093 = vunpack.c.h.b16 %v8519
      %v9094 = vunpack.c.l.b16 %v8520
      %v9095 = vunpack.c.h.b16 %v8520
      %v9096 = vunpack.c.l.b16 %v8521
      %v9097 = vunpack.c.h.b16 %v8521
      %v9098 = vunpack.c.l.b16 %v8522
      %v9099 = vunpack.c.l.b16 %v8523
      %v9100 = vunpack.c.h.b16 %v8523
      %v9101 = vunpack.c.l.b16 %v8524
      %v9102 = vunpack.c.h.b16 %v8524
      %v9103 = vunpack.c.l.b16 %v8525
      %v9104 = vunpack.c.h.b16 %v8525
      %v9105 = vunpack.c.l.b16 %v8526
      %v9106 = vunpack.c.l.b16 %v8527
      %v9107 = vunpack.c.h.b16 %v8527
      %v9108 = vunpack.c.l.b16 %v8528
      %v9109 = vunpack.c.h.b16 %v8528
      %v9110 = vunpack.c.l.b16 %v8529
      %v9111 = vunpack.c.h.b16 %v8529
      %v9112 = vunpack.c.l.b16 %v8530
      %v9113 = vunpack.c.l.b16 %v8531
      %v9114 = vunpack.c.h.b16 %v8531
      %v9115 = vunpack.c.l.b16 %v8532
      %v9116 = vunpack.c.h.b16 %v8532
      %v9117 = vunpack.c.l.b16 %v8533
      %v9118 = vunpack.c.h.b16 %v8533
      %v9119 = vunpack.c.l.b16 %v8534
      %v9120 = vunpack.c.l.b16 %v8535
      %v9121 = vunpack.c.h.b16 %v8535
      %v9122 = vunpack.c.l.b16 %v8536
      %v9123 = vunpack.c.h.b16 %v8536
      %v9124 = vunpack.c.l.b16 %v8537
      %v9125 = vunpack.c.h.b16 %v8537
      %v9126 = vunpack.c.l.b16 %v8538
      %v9127 = vunpack.c.l.b16 %v8539
      %v9128 = vunpack.c.h.b16 %v8539
      %v9129 = vunpack.c.l.b16 %v8540
      %v9130 = vunpack.c.h.b16 %v8540
      %v9131 = vunpack.c.l.b16 %v8541
      %v9132 = vunpack.c.h.b16 %v8541
      %v9133 = vunpack.c.l.b16 %v8542
      %v9134 = vunpack.c.l.b16 %v8543
      %v9135 = vunpack.c.h.b16 %v8543
      %v9136 = vunpack.c.l.b16 %v8544
      %v9137 = vunpack.c.h.b16 %v8544
      %v9138 = vunpack.c.l.b16 %v8545
      %v9139 = vunpack.c.h.b16 %v8545
      %v9140 = vunpack.c.l.b16 %v8546
      %v9141 = vunpack.c.l.b16 %v8547
      %v9142 = vunpack.c.h.b16 %v8547
      %v9143 = vunpack.c.l.b16 %v8548
      %v9144 = vunpack.c.h.b16 %v8548
      %v9145 = vunpack.c.l.b16 %v8549
      %v9146 = vunpack.c.h.b16 %v8549
      %v9147 = vunpack.c.l.b16 %v8550
      %v9148 = vunpack.c.l.b16 %v8551
      %v9149 = vunpack.c.h.b16 %v8551
      %v9150 = vunpack.c.l.b16 %v8552
      %v9151 = vunpack.c.h.b16 %v8552
      %v9152 = vunpack.c.l.b16 %v8553
      %v9153 = vunpack.c.h.b16 %v8553
      %v9154 = vunpack.c.l.b16 %v8554
      %v9155 = vunpack.c.l.b16 %v8555
      %v9156 = vunpack.c.h.b16 %v8555
      %v9157 = vunpack.c.l.b16 %v8556
      %v9158 = vunpack.c.h.b16 %v8556
      %v9159 = vunpack.c.l.b16 %v8557
      %v9160 = vunpack.c.h.b16 %v8557
      %v9161 = vunpack.c.l.b16 %v8558
      %v9162 = vunpack.c.l.b16 %v8559
      %v9163 = vunpack.c.h.b16 %v8559
      %v9164 = vunpack.c.l.b16 %v8560
      %v9165 = vunpack.c.h.b16 %v8560
      %v9166 = vunpack.c.l.b16 %v8561
      %v9167 = vunpack.c.h.b16 %v8561
      %v9168 = vunpack.c.l.b16 %v8562
      %v9169 = vunpack.c.l.b16 %v8563
      %v9170 = vunpack.c.h.b16 %v8563
      %v9171 = vunpack.c.l.b16 %v8564
      %v9172 = vunpack.c.h.b16 %v8564
      %v9173 = vunpack.c.l.b16 %v8565
      %v9174 = vunpack.c.h.b16 %v8565
      %v9175 = vunpack.c.l.b16 %v8566
      %v9176 = vunpack.c.l.b16 %v8567
      %v9177 = vunpack.c.h.b16 %v8567
      %v9178 = vunpack.c.l.b16 %v8568
      %v9179 = vunpack.c.h.b16 %v8568
      %v9180 = vunpack.c.l.b16 %v8569
      %v9181 = vunpack.c.h.b16 %v8569
      %v9182 = vunpack.c.l.b16 %v8570
      %v9183 = vunpack.c.l.b16 %v8571
      %v9184 = vunpack.c.h.b16 %v8571
      %v9185 = vunpack.c.l.b16 %v8572
      %v9186 = vunpack.c.h.b16 %v8572
      %v9187 = vunpack.c.l.b16 %v8573
      %v9188 = vunpack.c.h.b16 %v8573
      %v9189 = vunpack.c.l.b16 %v8574
      %v9190 = vunpack.c.l.b16 %v8575
      %v9191 = vunpack.c.h.b16 %v8575
      %v9192 = vunpack.c.l.b16 %v8576
      %v9193 = vunpack.c.h.b16 %v8576
      %v9194 = vunpack.c.l.b16 %v8577
      %v9195 = vunpack.c.h.b16 %v8577
      %v9196 = vunpack.c.l.b16 %v8578
      %v9197 = vunpack.c.l.b16 %v8579
      %v9198 = vunpack.c.h.b16 %v8579
      %v9199 = vunpack.c.l.b16 %v8580
      %v9200 = vunpack.c.h.b16 %v8580
      %v9201 = vunpack.c.l.b16 %v8581
      %v9202 = vunpack.c.h.b16 %v8581
      %v9203 = vunpack.c.l.b16 %v8582
      %v9204 = vunpack.c.l.b16 %v8583
      %v9205 = vunpack.c.h.b16 %v8583
      %v9206 = vunpack.c.l.b16 %v8584
      %v9207 = vunpack.c.h.b16 %v8584
      %v9208 = vunpack.c.l.b16 %v8585
      %v9209 = vunpack.c.h.b16 %v8585
      %v9210 = vunpack.c.l.b16 %v8586
      %v9211 = vunpack.c.l.b16 %v8587
      %v9212 = vunpack.c.h.b16 %v8587
      %v9213 = vunpack.c.l.b16 %v8588
      %v9214 = vunpack.c.h.b16 %v8588
      %v9215 = vunpack.c.l.b16 %v8589
      %v9216 = vunpack.c.h.b16 %v8589
      %v9217 = vunpack.c.l.b16 %v8590
      %v9218 = vunpack.c.l.b16 %v8591
      %v9219 = vunpack.c.h.b16 %v8591
      %v9220 = vunpack.c.l.b16 %v8592
      %v9221 = vunpack.c.h.b16 %v8592
      %v9222 = vunpack.c.l.b16 %v8593
      %v9223 = vunpack.c.h.b16 %v8593
      %v9224 = vunpack.c.l.b16 %v8594
      %v9225 = vunpack.c.l.b16 %v8595
      %v9226 = vunpack.c.h.b16 %v8595
      %v9227 = vunpack.c.l.b16 %v8596
      %v9228 = vunpack.c.h.b16 %v8596
      %v9229 = vunpack.c.l.b16 %v8597
      %v9230 = vunpack.c.h.b16 %v8597
      %v9231 = vunpack.c.l.b16 %v8598
      %v9232 = vunpack.c.l.b16 %v8599
      %v9233 = vunpack.c.h.b16 %v8599
      %v9234 = vunpack.c.l.b16 %v8600
      %v9235 = vunpack.c.h.b16 %v8600
      %v9236 = vunpack.c.l.b16 %v8601
      %v9237 = vunpack.c.h.b16 %v8601
      %v9238 = vunpack.c.l.b16 %v8602
      %v9239 = vunpack.c.l.b16 %v8603
      %v9240 = vunpack.c.h.b16 %v8603
      %v9241 = vunpack.c.l.b16 %v8604
      %v9242 = vunpack.c.h.b16 %v8604
      %v9243 = vunpack.c.l.b16 %v8605
      %v9244 = vunpack.c.h.b16 %v8605
      %v9245 = vunpack.c.l.b16 %v8606
      %v9246 = vunpack.c.l.b16 %v8607
      %v9247 = vunpack.c.h.b16 %v8607
      %v9248 = vunpack.c.l.b16 %v8608
      %v9249 = vunpack.c.h.b16 %v8608
      %v9250 = vunpack.c.l.b16 %v8609
      %v9251 = vunpack.c.h.b16 %v8609
      %v9252 = vunpack.c.l.b16 %v8610
      %v9253 = vunpack.c.l.b16 %v8611
      %v9254 = vunpack.c.h.b16 %v8611
      %v9255 = vunpack.c.l.b16 %v8612
      %v9256 = vunpack.c.h.b16 %v8612
      %v9257 = vunpack.c.l.b16 %v8613
      %v9258 = vunpack.c.h.b16 %v8613
      %v9259 = vunpack.c.l.b16 %v8614
      %v9260 = vunpack.c.l.b16 %v8615
      %v9261 = vunpack.c.h.b16 %v8615
      %v9262 = vunpack.c.l.b16 %v8616
      %v9263 = vunpack.c.h.b16 %v8616
      %v9264 = vunpack.c.l.b16 %v8617
      %v9265 = vunpack.c.h.b16 %v8617
      %v9266 = vunpack.c.l.b16 %v8618
      %v9267 = vunpack.c.l.b16 %v8619
      %v9268 = vunpack.c.h.b16 %v8619
      %v9269 = vunpack.c.l.b16 %v8620
      %v9270 = vunpack.c.h.b16 %v8620
      %v9271 = vunpack.c.l.b16 %v8621
      %v9272 = vunpack.c.h.b16 %v8621
      %v9273 = vunpack.c.l.b16 %v8622
      %v9274 = vunpack.c.l.b16 %v8623
      %v9275 = vunpack.c.h.b16 %v8623
      %v9276 = vunpack.c.l.b16 %v8624
      %v9277 = vunpack.c.h.b16 %v8624
      %v9278 = vunpack.c.l.b16 %v8625
      %v9279 = vunpack.c.h.b16 %v8625
      %v9280 = vunpack.c.l.b16 %v8626
      %v9281 = vunpack.c.l.b16 %v8627
      %v9282 = vunpack.c.h.b16 %v8627
      %v9283 = vunpack.c.l.b16 %v8628
      %v9284 = vunpack.c.h.b16 %v8628
      %v9285 = vunpack.c.l.b16 %v8629
      %v9286 = vunpack.c.h.b16 %v8629
      %v9287 = vunpack.c.l.b16 %v8630
      %v9288 = vunpack.c.l.b16 %v8631
      %v9289 = vunpack.c.h.b16 %v8631
      %v9290 = vunpack.c.l.b16 %v8632
      %v9291 = vunpack.c.h.b16 %v8632
      %v9292 = vunpack.c.l.b16 %v8633
      %v9293 = vunpack.c.h.b16 %v8633
      %v9294 = vunpack.c.l.b16 %v8634
      %v9295 = vunpack.c.l.b16 %v8635
      %v9296 = vunpack.c.h.b16 %v8635
      %v9297 = vunpack.c.l.b16 %v8636
      %v9298 = vunpack.c.h.b16 %v8636
      %v9299 = vunpack.c.l.b16 %v8637
      %v9300 = vunpack.c.h.b16 %v8637
      %v9301 = vunpack.c.l.b16 %v8638
      %v9302 = vunpack.c.l.b16 %v8639
      %v9303 = vunpack.c.h.b16 %v8639
      %v9304 = vunpack.c.l.b16 %v8640
      %v9305 = vunpack.c.h.b16 %v8640
      %v9306 = vunpack.c.l.b16 %v8641
      %v9307 = vunpack.c.h.b16 %v8641
      %v9308 = vunpack.c.l.b16 %v8642
      %v9309 = vunpack.c.l.b16 %v8643
      %v9310 = vunpack.c.h.b16 %v8643
      %v9311 = vunpack.c.l.b16 %v8644
      %v9312 = vunpack.c.h.b16 %v8644
      %v9313 = vunpack.c.l.b16 %v8645
      %v9314 = vunpack.c.h.b16 %v8645
      %v9315 = vunpack.c.l.b16 %v8646
      %v9316 = vunpack.c.l.b16 %v8647
      %v9317 = vunpack.c.h.b16 %v8647
      %v9318 = vunpack.c.l.b16 %v8648
      %v9319 = vunpack.c.h.b16 %v8648
      %v9320 = vunpack.c.l.b16 %v8649
      %v9321 = vunpack.c.h.b16 %v8649
      %v9322 = vunpack.c.l.b16 %v8650
      %v9323 = vunpack.c.l.b16 %v8651
      %v9324 = vunpack.c.h.b16 %v8651
      %v9325 = vunpack.c.l.b16 %v8652
      %v9326 = vunpack.c.h.b16 %v8652
      %v9327 = vunpack.c.l.b16 %v8653
      %v9328 = vunpack.c.h.b16 %v8653
      %v9329 = vunpack.c.l.b16 %v8654
      %v9330 = vunpack.c.l.b16 %v8655
      %v9331 = vunpack.c.h.b16 %v8655
      %v9332 = vunpack.c.l.b16 %v8656
      %v9333 = vunpack.c.h.b16 %v8656
      %v9334 = vunpack.c.l.b16 %v8657
      %v9335 = vunpack.c.h.b16 %v8657
      %v9336 = vunpack.c.l.b16 %v8658
      %v9337 = vunpack.c.l.b16 %v8659
      %v9338 = vunpack.c.h.b16 %v8659
      %v9339 = vunpack.c.l.b16 %v8660
      %v9340 = vunpack.c.h.b16 %v8660
      %v9341 = vunpack.c.l.b16 %v8661
      %v9342 = vunpack.c.h.b16 %v8661
      %v9343 = vunpack.c.l.b16 %v8662
      %v9344 = vunpack.c.l.b16 %v8663
      %v9345 = vunpack.c.h.b16 %v8663
      %v9346 = vunpack.c.l.b16 %v8664
      %v9347 = vunpack.c.h.b16 %v8664
      %v9348 = vunpack.c.l.b16 %v8665
      %v9349 = vunpack.c.h.b16 %v8665
      %v9350 = vunpack.c.l.b16 %v8666
      %v9351 = vunpack.c.l.b16 %v8667
      %v9352 = vunpack.c.h.b16 %v8667
      %v9353 = vunpack.c.l.b16 %v8668
      %v9354 = vunpack.c.h.b16 %v8668
      %v9355 = vunpack.c.l.b16 %v8669
      %v9356 = vunpack.c.h.b16 %v8669
      %v9357 = vunpack.c.l.b16 %v8670
      %v9358 = vunpack.c.l.b16 %v8671
      %v9359 = vunpack.c.h.b16 %v8671
      %v9360 = vunpack.c.l.b16 %v8672
      %v9361 = vunpack.c.h.b16 %v8672
      %v9362 = vunpack.c.l.b16 %v8673
      %v9363 = vunpack.c.h.b16 %v8673
      %v9364 = vunpack.c.l.b16 %v8674
      %v9365 = vunpack.c.l.b16 %v8675
      %v9366 = vunpack.c.h.b16 %v8675
      %v9367 = vunpack.c.l.b16 %v8676
      %v9368 = vunpack.c.h.b16 %v8676
      %v9369 = vunpack.c.l.b16 %v8677
      %v9370 = vunpack.c.h.b16 %v8677
      %v9371 = vunpack.c.l.b16 %v8678
      %v9372 = vunpack.c.l.b16 %v8679
      %v9373 = vunpack.c.h.b16 %v8679
      %v9374 = vunpack.c.l.b16 %v8680
      %v9375 = vunpack.c.h.b16 %v8680
      %v9376 = vunpack.c.l.b16 %v8681
      %v9377 = vunpack.c.h.b16 %v8681
      %v9378 = vunpack.c.l.b16 %v8682
      %v9379 = vunpack.c.l.b16 %v8683
      %v9380 = vunpack.c.h.b16 %v8683
      %v9381 = vunpack.c.l.b16 %v8684
      %v9382 = vunpack.c.h.b16 %v8684
      %v9383 = vunpack.c.l.b16 %v8685
      %v9384 = vunpack.c.h.b16 %v8685
      %v9385 = vunpack.c.l.b16 %v8686
      %v9386 = vunpack.c.l.b16 %v8687
      %v9387 = vunpack.c.h.b16 %v8687
      %v9388 = vunpack.c.l.b16 %v8688
      %v9389 = vunpack.c.h.b16 %v8688
      %v9390 = vunpack.c.l.b16 %v8689
      %v9391 = vunpack.c.h.b16 %v8689
      %v9392 = vunpack.c.l.b16 %v8690
      %v9393 = vunpack.c.l.b16 %v8691
      %v9394 = vunpack.c.h.b16 %v8691
      %v9395 = vunpack.c.l.b16 %v8692
      %v9396 = vunpack.c.h.b16 %v8692
      %v9397 = vunpack.c.l.b16 %v8693
      %v9398 = vunpack.c.h.b16 %v8693
      %v9399 = vunpack.c.l.b16 %v8694
      %v9400 = vunpack.c.l.b16 %v8695
      %v9401 = vunpack.c.h.b16 %v8695
      %v9402 = vunpack.c.l.b16 %v8696
      %v9403 = vunpack.c.h.b16 %v8696
      %v9404 = vunpack.c.l.b16 %v8697
      %v9405 = vunpack.c.h.b16 %v8697
      %v9406 = vunpack.c.l.b16 %v8698
      %v9407 = vunpack.c.l.b16 %v8699
      %v9408 = vunpack.c.h.b16 %v8699
      %v9409 = vunpack.c.l.b16 %v8700
      %v9410 = vunpack.c.h.b16 %v8700
      %v9411 = vunpack.c.l.b16 %v8701
      %v9412 = vunpack.c.h.b16 %v8701
      %v9413 = vunpack.c.l.b16 %v8702
      %v9414 = vunpack.c.l.b16 %v8703
      %v9415 = vunpack.c.h.b16 %v8703
      %v9416 = vunpack.c.l.b16 %v8704
      %v9417 = vunpack.c.h.b16 %v8704
      %v9418 = vunpack.c.l.b16 %v8705
      %v9419 = vunpack.c.h.b16 %v8705
      %v9420 = vunpack.c.l.b16 %v8706
      %v9421 = vunpack.c.l.b16 %v8707
      %v9422 = vunpack.c.h.b16 %v8707
      %v9423 = vunpack.c.l.b16 %v8708
      %v9424 = vunpack.c.h.b16 %v8708
      %v9425 = vunpack.c.l.b16 %v8709
      %v9426 = vunpack.c.h.b16 %v8709
      %v9427 = vunpack.c.l.b16 %v8710
      %v9428 = vunpack.c.l.b16 %v8711
      %v9429 = vunpack.c.h.b16 %v8711
      %v9430 = vunpack.c.l.b16 %v8712
      %v9431 = vunpack.c.h.b16 %v8712
      %v9432 = vunpack.c.l.b16 %v8713
      %v9433 = vunpack.c.h.b16 %v8713
      %v9434 = vunpack.c.l.b16 %v8714
      %v9435 = vunpack.c.l.b16 %v8715
      %v9436 = vunpack.c.h.b16 %v8715
      %v9437 = vunpack.c.l.b16 %v8716
      %v9438 = vunpack.c.h.b16 %v8716
      %v9439 = vunpack.c.l.b16 %v8717
      %v9440 = vunpack.c.h.b16 %v8717
      %v9441 = vunpack.c.l.b16 %v8718
      %v9442 = vunpack.c.l.b16 %v8719
      %v9443 = vunpack.c.h.b16 %v8719
      %v9444 = vunpack.c.l.b16 %v8720
      %v9445 = vunpack.c.h.b16 %v8720
      %v9446 = vunpack.c.l.b16 %v8721
      %v9447 = vunpack.c.h.b16 %v8721
      %v9448 = vunpack.c.l.b16 %v8722
      %v9449 = vunpack.c.l.b16 %v8723
      %v9450 = vunpack.c.h.b16 %v8723
      %v9451 = vunpack.c.l.b16 %v8724
      %v9452 = vunpack.c.h.b16 %v8724
      %v9453 = vunpack.c.l.b16 %v8725
      %v9454 = vunpack.c.h.b16 %v8725
      %v9455 = vunpack.c.l.b16 %v8726
      %v9456 = vunpack.c.l.b16 %v8727
      %v9457 = vunpack.c.h.b16 %v8727
      %v9458 = vunpack.c.l.b16 %v8728
      %v9459 = vunpack.c.h.b16 %v8728
      %v9460 = vunpack.c.l.b16 %v8729
      %v9461 = vunpack.c.h.b16 %v8729
      %v9462 = vunpack.c.l.b16 %v8730
      %v9463 = vunpack.c.l.b16 %v8731
      %v9464 = vunpack.c.h.b16 %v8731
      %v9465 = vunpack.c.l.b16 %v8732
      %v9466 = vunpack.c.h.b16 %v8732
      %v9467 = vunpack.c.l.b16 %v8733
      %v9468 = vunpack.c.h.b16 %v8733
      %v9469 = vunpack.c.l.b16 %v8734
      %v9470 = vunpack.c.l.b16 %v8735
      %v9471 = vunpack.c.h.b16 %v8735
      %v9472 = vunpack.c.l.b16 %v8736
      %v9473 = vunpack.c.h.b16 %v8736
      %v9474 = vunpack.c.l.b16 %v8737
      %v9475 = vunpack.c.h.b16 %v8737
      %v9476 = vunpack.c.l.b16 %v8738
      %v9477 = vunpack.c.l.b16 %v8739
      %v9478 = vunpack.c.h.b16 %v8739
      %v9479 = vunpack.c.l.b16 %v8740
      %v9480 = vunpack.c.h.b16 %v8740
      %v9481 = vunpack.c.l.b16 %v8741
      %v9482 = vunpack.c.h.b16 %v8741
      %v9483 = vunpack.c.l.b16 %v8742
      %v9484 = vpack.c.b16 %v9043, %v9036
      %v9485 = vpack.c.b16 %v9044, %v9037
      %v9486 = vpack.c.b16 %v9045, %v9038
      %v9487 = vpack.c.b16 %v9046, %v9039
      %v9488 = vpack.c.b16 %v9047, %v9040
      %v9489 = vpack.c.b16 %v9048, %v9041
      %v9490 = vpack.c.b16 %v9049, %v9042
      %v9491 = vpack.c.b16 %v9057, %v9050
      %v9492 = vpack.c.b16 %v9058, %v9051
      %v9493 = vpack.c.b16 %v9059, %v9052
      %v9494 = vpack.c.b16 %v9060, %v9053
      %v9495 = vpack.c.b16 %v9061, %v9054
      %v9496 = vpack.c.b16 %v9062, %v9055
      %v9497 = vpack.c.b16 %v9063, %v9056
      %v9498 = vpack.c.b16 %v9071, %v9064
      %v9499 = vpack.c.b16 %v9072, %v9065
      %v9500 = vpack.c.b16 %v9073, %v9066
      %v9501 = vpack.c.b16 %v9074, %v9067
      %v9502 = vpack.c.b16 %v9075, %v9068
      %v9503 = vpack.c.b16 %v9076, %v9069
      %v9504 = vpack.c.b16 %v9077, %v9070
      %v9505 = vpack.c.b16 %v9085, %v9078
      %v9506 = vpack.c.b16 %v9086, %v9079
      %v9507 = vpack.c.b16 %v9087, %v9080
      %v9508 = vpack.c.b16 %v9088, %v9081
      %v9509 = vpack.c.b16 %v9089, %v9082
      %v9510 = vpack.c.b16 %v9090, %v9083
      %v9511 = vpack.c.b16 %v9091, %v9084
      %v9512 = vpack.c.b16 %v9099, %v9092
      %v9513 = vpack.c.b16 %v9100, %v9093
      %v9514 = vpack.c.b16 %v9101, %v9094
      %v9515 = vpack.c.b16 %v9102, %v9095
      %v9516 = vpack.c.b16 %v9103, %v9096
      %v9517 = vpack.c.b16 %v9104, %v9097
      %v9518 = vpack.c.b16 %v9105, %v9098
      %v9519 = vpack.c.b16 %v9113, %v9106
      %v9520 = vpack.c.b16 %v9114, %v9107
      %v9521 = vpack.c.b16 %v9115, %v9108
      %v9522 = vpack.c.b16 %v9116, %v9109
      %v9523 = vpack.c.b16 %v9117, %v9110
      %v9524 = vpack.c.b16 %v9118, %v9111
      %v9525 = vpack.c.b16 %v9119, %v9112
      %v9526 = vpack.c.b16 %v9127, %v9120
      %v9527 = vpack.c.b16 %v9128, %v9121
      %v9528 = vpack.c.b16 %v9129, %v9122
      %v9529 = vpack.c.b16 %v9130, %v9123
      %v9530 = vpack.c.b16 %v9131, %v9124
      %v9531 = vpack.c.b16 %v9132, %v9125
      %v9532 = vpack.c.b16 %v9133, %v9126
      %v9533 = vpack.c.b16 %v9141, %v9134
      %v9534 = vpack.c.b16 %v9142, %v9135
      %v9535 = vpack.c.b16 %v9143, %v9136
      %v9536 = vpack.c.b16 %v9144, %v9137
      %v9537 = vpack.c.b16 %v9145, %v9138
      %v9538 = vpack.c.b16 %v9146, %v9139
      %v9539 = vpack.c.b16 %v9147, %v9140
      %v9540 = vpack.c.b16 %v9155, %v9148
      %v9541 = vpack.c.b16 %v9156, %v9149
      %v9542 = vpack.c.b16 %v9157, %v9150
      %v9543 = vpack.c.b16 %v9158, %v9151
      %v9544 = vpack.c.b16 %v9159, %v9152
      %v9545 = vpack.c.b16 %v9160, %v9153
      %v9546 = vpack.c.b16 %v9161, %v9154
      %v9547 = vpack.c.b16 %v9169, %v9162
      %v9548 = vpack.c.b16 %v9170, %v9163
      %v9549 = vpack.c.b16 %v9171, %v9164
      %v9550 = vpack.c.b16 %v9172, %v9165
      %v9551 = vpack.c.b16 %v9173, %v9166
      %v9552 = vpack.c.b16 %v9174, %v9167
      %v9553 = vpack.c.b16 %v9175, %v9168
      %v9554 = vpack.c.b16 %v9183, %v9176
      %v9555 = vpack.c.b16 %v9184, %v9177
      %v9556 = vpack.c.b16 %v9185, %v9178
      %v9557 = vpack.c.b16 %v9186, %v9179
      %v9558 = vpack.c.b16 %v9187, %v9180
      %v9559 = vpack.c.b16 %v9188, %v9181
      %v9560 = vpack.c.b16 %v9189, %v9182
      %v9561 = vpack.c.b16 %v9197, %v9190
      %v9562 = vpack.c.b16 %v9198, %v9191
      %v9563 = vpack.c.b16 %v9199, %v9192
      %v9564 = vpack.c.b16 %v9200, %v9193
      %v9565 = vpack.c.b16 %v9201, %v9194
      %v9566 = vpack.c.b16 %v9202, %v9195
      %v9567 = vpack.c.b16 %v9203, %v9196
      %v9568 = vpack.c.b16 %v9211, %v9204
      %v9569 = vpack.c.b16 %v9212, %v9205
      %v9570 = vpack.c.b16 %v9213, %v9206
      %v9571 = vpack.c.b16 %v9214, %v9207
      %v9572 = vpack.c.b16 %v9215, %v9208
      %v9573 = vpack.c.b16 %v9216, %v9209
      %v9574 = vpack.c.b16 %v9217, %v9210
      %v9575 = vpack.c.b16 %v9225, %v9218
      %v9576 = vpack.c.b16 %v9226, %v9219
      %v9577 = vpack.c.b16 %v9227, %v9220
      %v9578 = vpack.c.b16 %v9228, %v9221
      %v9579 = vpack.c.b16 %v9229, %v9222
      %v9580 = vpack.c.b16 %v9230, %v9223
      %v9581 = vpack.c.b16 %v9231, %v9224
      %v9582 = vpack.c.b16 %v9239, %v9232
      %v9583 = vpack.c.b16 %v9240, %v9233
      %v9584 = vpack.c.b16 %v9241, %v9234
      %v9585 = vpack.c.b16 %v9242, %v9235
      %v9586 = vpack.c.b16 %v9243, %v9236
      %v9587 = vpack.c.b16 %v9244, %v9237
      %v9588 = vpack.c.b16 %v9245, %v9238
      %v9589 = vpack.c.b16 %v9253, %v9246
      %v9590 = vpack.c.b16 %v9254, %v9247
      %v9591 = vpack.c.b16 %v9255, %v9248
      %v9592 = vpack.c.b16 %v9256, %v9249
      %v9593 = vpack.c.b16 %v9257, %v9250
      %v9594 = vpack.c.b16 %v9258, %v9251
      %v9595 = vpack.c.b16 %v9259, %v9252
      %v9596 = vpack.c.b16 %v9267, %v9260
      %v9597 = vpack.c.b16 %v9268, %v9261
      %v9598 = vpack.c.b16 %v9269, %v9262
      %v9599 = vpack.c.b16 %v9270, %v9263
      %v9600 = vpack.c.b16 %v9271, %v9264
      %v9601 = vpack.c.b16 %v9272, %v9265
      %v9602 = vpack.c.b16 %v9273, %v9266
      %v9603 = vpack.c.b16 %v9281, %v9274
      %v9604 = vpack.c.b16 %v9282, %v9275
      %v9605 = vpack.c.b16 %v9283, %v9276
      %v9606 = vpack.c.b16 %v9284, %v9277
      %v9607 = vpack.c.b16 %v9285, %v9278
      %v9608 = vpack.c.b16 %v9286, %v9279
      %v9609 = vpack.c.b16 %v9287, %v9280
      %v9610 = vpack.c.b16 %v9295, %v9288
      %v9611 = vpack.c.b16 %v9296, %v9289
      %v9612 = vpack.c.b16 %v9297, %v9290
      %v9613 = vpack.c.b16 %v9298, %v9291
      %v9614 = vpack.c.b16 %v9299, %v9292
      %v9615 = vpack.c.b16 %v9300, %v9293
      %v9616 = vpack.c.b16 %v9301, %v9294
      %v9617 = vpack.c.b16 %v9309, %v9302
      %v9618 = vpack.c.b16 %v9310, %v9303
      %v9619 = vpack.c.b16 %v9311, %v9304
      %v9620 = vpack.c.b16 %v9312, %v9305
      %v9621 = vpack.c.b16 %v9313, %v9306
      %v9622 = vpack.c.b16 %v9314, %v9307
      %v9623 = vpack.c.b16 %v9315, %v9308
      %v9624 = vpack.c.b16 %v9323, %v9316
      %v9625 = vpack.c.b16 %v9324, %v9317
      %v9626 = vpack.c.b16 %v9325, %v9318
      %v9627 = vpack.c.b16 %v9326, %v9319
      %v9628 = vpack.c.b16 %v9327, %v9320
      %v9629 = vpack.c.b16 %v9328, %v9321
      %v9630 = vpack.c.b16 %v9329, %v9322
      %v9631 = vpack.c.b16 %v9337, %v9330
      %v9632 = vpack.c.b16 %v9338, %v9331
      %v9633 = vpack.c.b16 %v9339, %v9332
      %v9634 = vpack.c.b16 %v9340, %v9333
      %v9635 = vpack.c.b16 %v9341, %v9334
      %v9636 = vpack.c.b16 %v9342, %v9335
      %v9637 = vpack.c.b16 %v9343, %v9336
      %v9638 = vpack.c.b16 %v9351, %v9344
      %v9639 = vpack.c.b16 %v9352, %v9345
      %v9640 = vpack.c.b16 %v9353, %v9346
      %v9641 = vpack.c.b16 %v9354, %v9347
      %v9642 = vpack.c.b16 %v9355, %v9348
      %v9643 = vpack.c.b16 %v9356, %v9349
      %v9644 = vpack.c.b16 %v9357, %v9350
      %v9645 = vpack.c.b16 %v9365, %v9358
      %v9646 = vpack.c.b16 %v9366, %v9359
      %v9647 = vpack.c.b16 %v9367, %v9360
      %v9648 = vpack.c.b16 %v9368, %v9361
      %v9649 = vpack.c.b16 %v9369, %v9362
      %v9650 = vpack.c.b16 %v9370, %v9363
      %v9651 = vpack.c.b16 %v9371, %v9364
      %v9652 = vpack.c.b16 %v9379, %v9372
      %v9653 = vpack.c.b16 %v9380, %v9373
      %v9654 = vpack.c.b16 %v9381, %v9374
      %v9655 = vpack.c.b16 %v9382, %v9375
      %v9656 = vpack.c.b16 %v9383, %v9376
      %v9657 = vpack.c.b16 %v9384, %v9377
      %v9658 = vpack.c.b16 %v9385, %v9378
      %v9659 = vpack.c.b16 %v9393, %v9386
      %v9660 = vpack.c.b16 %v9394, %v9387
      %v9661 = vpack.c.b16 %v9395, %v9388
      %v9662 = vpack.c.b16 %v9396, %v9389
      %v9663 = vpack.c.b16 %v9397, %v9390
      %v9664 = vpack.c.b16 %v9398, %v9391
      %v9665 = vpack.c.b16 %v9399, %v9392
      %v9666 = vpack.c.b16 %v9407, %v9400
      %v9667 = vpack.c.b16 %v9408, %v9401
      %v9668 = vpack.c.b16 %v9409, %v9402
      %v9669 = vpack.c.b16 %v9410, %v9403
      %v9670 = vpack.c.b16 %v9411, %v9404
      %v9671 = vpack.c.b16 %v9412, %v9405
      %v9672 = vpack.c.b16 %v9413, %v9406
      %v9673 = vpack.c.b16 %v9421, %v9414
      %v9674 = vpack.c.b16 %v9422, %v9415
      %v9675 = vpack.c.b16 %v9423, %v9416
      %v9676 = vpack.c.b16 %v9424, %v9417
      %v9677 = vpack.c.b16 %v9425, %v9418
      %v9678 = vpack.c.b16 %v9426, %v9419
      %v9679 = vpack.c.b16 %v9427, %v9420
      %v9680 = vpack.c.b16 %v9435, %v9428
      %v9681 = vpack.c.b16 %v9436, %v9429
      %v9682 = vpack.c.b16 %v9437, %v9430
      %v9683 = vpack.c.b16 %v9438, %v9431
      %v9684 = vpack.c.b16 %v9439, %v9432
      %v9685 = vpack.c.b16 %v9440, %v9433
      %v9686 = vpack.c.b16 %v9441, %v9434
      %v9687 = vpack.c.b16 %v9449, %v9442
      %v9688 = vpack.c.b16 %v9450, %v9443
      %v9689 = vpack.c.b16 %v9451, %v9444
      %v9690 = vpack.c.b16 %v9452, %v9445
      %v9691 = vpack.c.b16 %v9453, %v9446
      %v9692 = vpack.c.b16 %v9454, %v9447
      %v9693 = vpack.c.b16 %v9455, %v9448
      %v9694 = vpack.c.b16 %v9463, %v9456
      %v9695 = vpack.c.b16 %v9464, %v9457
      %v9696 = vpack.c.b16 %v9465, %v9458
      %v9697 = vpack.c.b16 %v9466, %v9459
      %v9698 = vpack.c.b16 %v9467, %v9460
      %v9699 = vpack.c.b16 %v9468, %v9461
      %v9700 = vpack.c.b16 %v9469, %v9462
      %v9701 = vpack.c.b16 %v9477, %v9470
      %v9702 = vpack.c.b16 %v9478, %v9471
      %v9703 = vpack.c.b16 %v9479, %v9472
      %v9704 = vpack.c.b16 %v9480, %v9473
      %v9705 = vpack.c.b16 %v9481, %v9474
      %v9706 = vpack.c.b16 %v9482, %v9475
      %v9707 = vpack.c.b16 %v9483, %v9476
      %9932 = vmatprep.subr.bf16.mxu0 %v9485
      %9933 = vmatpush1.bf16.msra.mxu0 %v9484
      %9934 = vmatprep.subr.bf16.mxu0 %v9492
      %9935 = vmatpush1.bf16.msra.mxu0 %v9491
      %9936 = vmatprep.subr.bf16.mxu0 %v9499
      %9937 = vmatpush1.bf16.msra.mxu0 %v9498
      %9938 = vmatprep.subr.bf16.mxu0 %v9506
      %9939 = vmatpush1.bf16.msra.mxu0 %v9505
      %9940 = vmatprep.subr.bf16.mxu0 %v9513
      %9941 = vmatpush1.bf16.msra.mxu0 %v9512
      %9942 = vmatprep.subr.bf16.mxu0 %v9520
      %9943 = vmatpush1.bf16.msra.mxu0 %v9519
      %9944 = vmatprep.subr.bf16.mxu0 %v9527
      %9945 = vmatpush1.bf16.msra.mxu0 %v9526
      %9946 = vmatprep.subr.bf16.mxu0 %v9534
      %9947 = vmatpush1.bf16.msra.mxu0 %v9533
      %9948 = vmatprep.subr.bf16.mxu0 %v9541
      %9949 = vmatpush1.bf16.msra.mxu0 %v9540
      %9950 = vmatprep.subr.bf16.mxu0 %v9548
      %9951 = vmatpush1.bf16.msra.mxu0 %v9547
      %9952 = vmatprep.subr.bf16.mxu0 %v9555
      %9953 = vmatpush1.bf16.msra.mxu0 %v9554
      %9954 = vmatprep.subr.bf16.mxu0 %v9562
      %9955 = vmatpush1.bf16.msra.mxu0 %v9561
      %9956 = vmatprep.subr.bf16.mxu0 %v9569
      %9957 = vmatpush1.bf16.msra.mxu0 %v9568
      %9958 = vmatprep.subr.bf16.mxu0 %v9576
      %9959 = vmatpush1.bf16.msra.mxu0 %v9575
      %9960 = vmatprep.subr.bf16.mxu0 %v9583
      %9961 = vmatpush1.bf16.msra.mxu0 %v9582
      %9962 = vmatprep.subr.bf16.mxu0 %v9590
      %9963 = vmatpush1.bf16.msra.mxu0 %v9589
      %9964 = vmatprep.mubr.bf16.mxu0 %v8456
      %9965 = vmatmul.mubr.bf16.gmra.mrb[0].mxu0 %v8455
      %v9966 = vpop.f32.mrb[0].mxu0
      %v9967 = vadd.f32 %v8748, %v9966
      %v9968 = vpop.f32.mrb[0].mxu0
      %v9969 = vadd.f32 %v8752, %v9968
      %v9970 = vpop.f32.mrb[0].mxu0
      %v9971 = vadd.f32 %v8748, %v9970
      %v9972 = vpop.f32.mrb[0].mxu0
      %v9973 = vadd.f32 %v8752, %v9972
      %9974 = vmatprep.mubr.bf16.mxu0 %v8460
      %9975 = vmatmul.mubr.bf16.gmra.mrb[0].mxu0 %v8459
      %v9976 = vpop.f32.mrb[0].mxu0
      %v9977 = vadd.f32 %v8748, %v9976
      %v9978 = vpop.f32.mrb[0].mxu0
      %v9979 = vadd.f32 %v8752, %v9978
      %v9980 = vpop.f32.mrb[0].mxu0
      %v9981 = vadd.f32 %v8748, %v9980
      %v9982 = vpop.f32.mrb[0].mxu0
      %v9983 = vadd.f32 %v8752, %v9982
      %9984 = vmatprep.mubr.bf16.mxu0 %v8464
      %9985 = vmatmul.mubr.bf16.gmra.mrb[0].mxu0 %v8463
      %v9986 = vpop.f32.mrb[0].mxu0
      %v9987 = vadd.f32 %v8748, %v9986
      %v9988 = vpop.f32.mrb[0].mxu0
      %v9989 = vadd.f32 %v8752, %v9988
      %v9990 = vpop.f32.mrb[0].mxu0
      %v9991 = vadd.f32 %v8748, %v9990
      %v9992 = vpop.f32.mrb[0].mxu0
      %v9993 = vadd.f32 %v8752, %v9992
      %9994 = vmatprep.mubr.bf16.mxu0 %v8468
      %9995 = vmatmul.mubr.bf16.gmra.mrb[0].mxu0 %v8467
      %v9996 = vpop.f32.mrb[0].mxu0
      %v9997 = vadd.f32 %v8748, %v9996
      %v9998 = vpop.f32.mrb[0].mxu0
      %v9999 = vadd.f32 %v8752, %v9998
      %v10000 = vpop.f32.mrb[0].mxu0
      %v10001 = vadd.f32 %v8748, %v10000
      %v10002 = vpop.f32.mrb[0].mxu0
      %v10003 = vadd.f32 %v8752, %v10002
      %10004 = vmatprep.mubr.bf16.mxu0 %v8472
      %10005 = vmatmul.mubr.bf16.gmra.mrb[0].mxu0 %v8471
      %v10006 = vpop.f32.mrb[0].mxu0
      %v10007 = vadd.f32 %v8748, %v10006
      %v10008 = vpop.f32.mrb[0].mxu0
      %v10009 = vadd.f32 %v8752, %v10008
      %v10010 = vpop.f32.mrb[0].mxu0
      %v10011 = vadd.f32 %v8748, %v10010
      %v10012 = vpop.f32.mrb[0].mxu0
      %v10013 = vadd.f32 %v8752, %v10012
      %10014 = vmatprep.mubr.bf16.mxu0 %v8476
      %10015 = vmatmul.mubr.bf16.gmra.mrb[0].mxu0 %v8475
      %v10016 = vpop.f32.mrb[0].mxu0
      %v10017 = vadd.f32 %v8748, %v10016
      %v10018 = vpop.f32.mrb[0].mxu0
      %v10019 = vadd.f32 %v8752, %v10018
      %v10020 = vpop.f32.mrb[0].mxu0
      %v10021 = vadd.f32 %v8748, %v10020
      %v10022 = vpop.f32.mrb[0].mxu0
      %v10023 = vadd.f32 %v8752, %v10022
      %10024 = vmatprep.mubr.bf16.mxu0 %v8480
      %10025 = vmatmul.mubr.bf16.gmra.mrb[0].mxu0 %v8479
      %v10026 = vpop.f32.mrb[0].mxu0
      %v10027 = vadd.f32 %v8748, %v10026
      %v10028 = vpop.f32.mrb[0].mxu0
      %v10029 = vadd.f32 %v8752, %v10028
      %v10030 = vpop.f32.mrb[0].mxu0
      %v10031 = vadd.f32 %v8748, %v10030
      %v10032 = vpop.f32.mrb[0].mxu0
      %v10033 = vadd.f32 %v8752, %v10032
      %10034 = vmatprep.mubr.bf16.mxu0 %v8484
      %10035 = vmatmul.mubr.bf16.gmra.mrb[0].mxu0 %v8483
      %v10036 = vpop.f32.mrb[0].mxu0
      %v10037 = vadd.f32 %v8748, %v10036
      %v10038 = vpop.f32.mrb[0].mxu0
      %v10039 = vadd.f32 %v8752, %v10038
      %v10040 = vpop.f32.mrb[0].mxu0
      %v10041 = vadd.f32 %v8748, %v10040
      %v10042 = vpop.f32.mrb[0].mxu0
      %v10043 = vadd.f32 %v8752, %v10042
      %10044 = vdwg.mxu0
      %10045 = vmatprep.subr.bf16.mxu0 %v9597
      %10046 = vmatpush1.bf16.msra.mxu0 %v9596
      %10047 = vmatprep.subr.bf16.mxu0 %v9604
      %10048 = vmatpush1.bf16.msra.mxu0 %v9603
      %10049 = vmatprep.subr.bf16.mxu0 %v9611
      %10050 = vmatpush1.bf16.msra.mxu0 %v9610
      %10051 = vmatprep.subr.bf16.mxu0 %v9618
      %10052 = vmatpush1.bf16.msra.mxu0 %v9617
      %10053 = vmatprep.subr.bf16.mxu0 %v9625
      %10054 = vmatpush1.bf16.msra.mxu0 %v9624
      %10055 = vmatprep.subr.bf16.mxu0 %v9632
      %10056 = vmatpush1.bf16.msra.mxu0 %v9631
      %10057 = vmatprep.subr.bf16.mxu0 %v9639
      %10058 = vmatpush1.bf16.msra.mxu0 %v9638
      %10059 = vmatprep.subr.bf16.mxu0 %v9646
      %10060 = vmatpush1.bf16.msra.mxu0 %v9645
      %10061 = vmatprep.subr.bf16.mxu0 %v9653
      %10062 = vmatpush1.bf16.msra.mxu0 %v9652
      %10063 = vmatprep.subr.bf16.mxu0 %v9660
      %10064 = vmatpush1.bf16.msra.mxu0 %v9659
      %10065 = vmatprep.subr.bf16.mxu0 %v9667
      %10066 = vmatpush1.bf16.msra.mxu0 %v9666
      %10067 = vmatprep.subr.bf16.mxu0 %v9674
      %10068 = vmatpush1.bf16.msra.mxu0 %v9673
      %10069 = vmatprep.subr.bf16.mxu0 %v9681
      %10070 = vmatpush1.bf16.msra.mxu0 %v9680
      %10071 = vmatprep.subr.bf16.mxu0 %v9688
      %10072 = vmatpush1.bf16.msra.mxu0 %v9687
      %10073 = vmatprep.subr.bf16.mxu0 %v9695
      %10074 = vmatpush1.bf16.msra.mxu0 %v9694
      %10075 = vmatprep.subr.bf16.mxu0 %v9702
      %10076 = vmatpush1.bf16.msra.mxu0 %v9701
      %10077 = vmatprep.mubr.bf16.mxu0 %v8458
      %10078 = vmatmul.mubr.bf16.gmra.mrb[0].mxu0 %v8457
      %v10079 = vpop.f32.mrb[0].mxu0
      %v10080 = vadd.f32 %v9967, %v10079
      %v10081 = vpop.f32.mrb[0].mxu0
      %v10082 = vadd.f32 %v9969, %v10081
      %v10083 = vpop.f32.mrb[0].mxu0
      %v10084 = vadd.f32 %v9971, %v10083
      %v10085 = vpop.f32.mrb[0].mxu0
      %v10086 = vadd.f32 %v9973, %v10085
      %10087 = vmatprep.mubr.bf16.mxu0 %v8462
      %10088 = vmatmul.mubr.bf16.gmra.mrb[0].mxu0 %v8461
      %v10089 = vpop.f32.mrb[0].mxu0
      %v10090 = vadd.f32 %v9977, %v10089
      %v10091 = vpop.f32.mrb[0].mxu0
      %v10092 = vadd.f32 %v9979, %v10091
      %v10093 = vpop.f32.mrb[0].mxu0
      %v10094 = vadd.f32 %v9981, %v10093
      %v10095 = vpop.f32.mrb[0].mxu0
      %v10096 = vadd.f32 %v9983, %v10095
      %10097 = vmatprep.mubr.bf16.mxu0 %v8466
      %10098 = vmatmul.mubr.bf16.gmra.mrb[0].mxu0 %v8465
      %v10099 = vpop.f32.mrb[0].mxu0
      %v10100 = vadd.f32 %v9987, %v10099
      %v10101 = vpop.f32.mrb[0].mxu0
      %v10102 = vadd.f32 %v9989, %v10101
      %v10103 = vpop.f32.mrb[0].mxu0
      %v10104 = vadd.f32 %v9991, %v10103
      %v10105 = vpop.f32.mrb[0].mxu0
      %v10106 = vadd.f32 %v9993, %v10105
      %10107 = vmatprep.mubr.bf16.mxu0 %v8470
      %10108 = vmatmul.mubr.bf16.gmra.mrb[0].mxu0 %v8469
      %v10109 = vpop.f32.mrb[0].mxu0
      %v10110 = vadd.f32 %v9997, %v10109
      %v10111 = vpop.f32.mrb[0].mxu0
      %v10112 = vadd.f32 %v9999, %v10111
      %v10113 = vpop.f32.mrb[0].mxu0
      %v10114 = vadd.f32 %v10001, %v10113
      %v10115 = vpop.f32.mrb[0].mxu0
      %v10116 = vadd.f32 %v10003, %v10115
      %10117 = vmatprep.mubr.bf16.mxu0 %v8474
      %10118 = vmatmul.mubr.bf16.gmra.mrb[0].mxu0 %v8473
      %v10119 = vpop.f32.mrb[0].mxu0
      %v10120 = vadd.f32 %v10007, %v10119
      %v10121 = vpop.f32.mrb[0].mxu0
      %v10122 = vadd.f32 %v10009, %v10121
      %v10123 = vpop.f32.mrb[0].mxu0
      %v10124 = vadd.f32 %v10011, %v10123
      %v10125 = vpop.f32.mrb[0].mxu0
      %v10126 = vadd.f32 %v10013, %v10125
      %10127 = vmatprep.mubr.bf16.mxu0 %v8478
      %10128 = vmatmul.mubr.bf16.gmra.mrb[0].mxu0 %v8477
      %v10129 = vpop.f32.mrb[0].mxu0
      %v10130 = vadd.f32 %v10017, %v10129
      %v10131 = vpop.f32.mrb[0].mxu0
      %v10132 = vadd.f32 %v10019, %v10131
      %v10133 = vpop.f32.mrb[0].mxu0
      %v10134 = vadd.f32 %v10021, %v10133
      %v10135 = vpop.f32.mrb[0].mxu0
      %v10136 = vadd.f32 %v10023, %v10135
      %10137 = vmatprep.mubr.bf16.mxu0 %v8482
      %10138 = vmatmul.mubr.bf16.gmra.mrb[0].mxu0 %v8481
      %v10139 = vpop.f32.mrb[0].mxu0
      %v10140 = vadd.f32 %v10027, %v10139
      %v10141 = vpop.f32.mrb[0].mxu0
      %v10142 = vadd.f32 %v10029, %v10141
      %v10143 = vpop.f32.mrb[0].mxu0
      %v10144 = vadd.f32 %v10031, %v10143
      %v10145 = vpop.f32.mrb[0].mxu0
      %v10146 = vadd.f32 %v10033, %v10145
      %10147 = vmatprep.mubr.bf16.mxu0 %v8486
      %10148 = vmatmul.mubr.bf16.gmra.mrb[0].mxu0 %v8485
      %v10149 = vpop.f32.mrb[0].mxu0
      %v10150 = vadd.f32 %v10037, %v10149
      %v10151 = vpop.f32.mrb[0].mxu0
      %v10152 = vadd.f32 %v10039, %v10151
      %v10153 = vpop.f32.mrb[0].mxu0
      %v10154 = vadd.f32 %v10041, %v10153
      %v10155 = vpop.f32.mrb[0].mxu0
      %v10156 = vadd.f32 %v10043, %v10155
      %10157 = vdwg.mxu0
      %10158 = vmatprep.subr.bf16.mxu0 %v9487
      %10159 = vmatpush1.bf16.msra.mxu0 %v9486
      %10160 = vmatprep.subr.bf16.mxu0 %v9494
      %10161 = vmatpush1.bf16.msra.mxu0 %v9493
      %10162 = vmatprep.subr.bf16.mxu0 %v9501
      %10163 = vmatpush1.bf16.msra.mxu0 %v9500
      %10164 = vmatprep.subr.bf16.mxu0 %v9508
      %10165 = vmatpush1.bf16.msra.mxu0 %v9507
      %10166 = vmatprep.subr.bf16.mxu0 %v9515
      %10167 = vmatpush1.bf16.msra.mxu0 %v9514
      %10168 = vmatprep.subr.bf16.mxu0 %v9522
      %10169 = vmatpush1.bf16.msra.mxu0 %v9521
      %10170 = vmatprep.subr.bf16.mxu0 %v9529
      %10171 = vmatpush1.bf16.msra.mxu0 %v9528
      %10172 = vmatprep.subr.bf16.mxu0 %v9536
      %10173 = vmatpush1.bf16.msra.mxu0 %v9535
      %10174 = vmatprep.subr.bf16.mxu0 %v9543
      %10175 = vmatpush1.bf16.msra.mxu0 %v9542
      %10176 = vmatprep.subr.bf16.mxu0 %v9550
      %10177 = vmatpush1.bf16.msra.mxu0 %v9549
      %10178 = vmatprep.subr.bf16.mxu0 %v9557
      %10179 = vmatpush1.bf16.msra.mxu0 %v9556
      %10180 = vmatprep.subr.bf16.mxu0 %v9564
      %10181 = vmatpush1.bf16.msra.mxu0 %v9563
      %10182 = vmatprep.subr.bf16.mxu0 %v9571
      %10183 = vmatpush1.bf16.msra.mxu0 %v9570
      %10184 = vmatprep.subr.bf16.mxu0 %v9578
      %10185 = vmatpush1.bf16.msra.mxu0 %v9577
      %10186 = vmatprep.subr.bf16.mxu0 %v9585
      %10187 = vmatpush1.bf16.msra.mxu0 %v9584
      %10188 = vmatprep.subr.bf16.mxu0 %v9592
      %10189 = vmatpush1.bf16.msra.mxu0 %v9591
      %10190 = vmatprep.mubr.bf16.mxu0 %v8456
      %10191 = vmatmul.mubr.bf16.gmra.mrb[0].mxu0 %v8455
      %v10192 = vpop.f32.mrb[0].mxu0
      %v10193 = vadd.f32 %v8756, %v10192
      %v10194 = vpop.f32.mrb[0].mxu0
      %v10195 = vadd.f32 %v8760, %v10194
      %v10196 = vpop.f32.mrb[0].mxu0
      %v10197 = vadd.f32 %v8756, %v10196
      %v10198 = vpop.f32.mrb[0].mxu0
      %v10199 = vadd.f32 %v8760, %v10198
      %10200 = vmatprep.mubr.bf16.mxu0 %v8460
      %10201 = vmatmul.mubr.bf16.gmra.mrb[0].mxu0 %v8459
      %v10202 = vpop.f32.mrb[0].mxu0
      %v10203 = vadd.f32 %v8756, %v10202
      %v10204 = vpop.f32.mrb[0].mxu0
      %v10205 = vadd.f32 %v8760, %v10204
      %v10206 = vpop.f32.mrb[0].mxu0
      %v10207 = vadd.f32 %v8756, %v10206
      %v10208 = vpop.f32.mrb[0].mxu0
      %v10209 = vadd.f32 %v8760, %v10208
      %10210 = vmatprep.mubr.bf16.mxu0 %v8464
      %10211 = vmatmul.mubr.bf16.gmra.mrb[0].mxu0 %v8463
      %v10212 = vpop.f32.mrb[0].mxu0
      %v10213 = vadd.f32 %v8756, %v10212
      %v10214 = vpop.f32.mrb[0].mxu0
      %v10215 = vadd.f32 %v8760, %v10214
      %v10216 = vpop.f32.mrb[0].mxu0
      %v10217 = vadd.f32 %v8756, %v10216
      %v10218 = vpop.f32.mrb[0].mxu0
      %v10219 = vadd.f32 %v8760, %v10218
      %10220 = vmatprep.mubr.bf16.mxu0 %v8468
      %10221 = vmatmul.mubr.bf16.gmra.mrb[0].mxu0 %v8467
      %v10222 = vpop.f32.mrb[0].mxu0
      %v10223 = vadd.f32 %v8756, %v10222
      %v10224 = vpop.f32.mrb[0].mxu0
      %v10225 = vadd.f32 %v8760, %v10224
      %v10226 = vpop.f32.mrb[0].mxu0
      %v10227 = vadd.f32 %v8756, %v10226
      %v10228 = vpop.f32.mrb[0].mxu0
      %v10229 = vadd.f32 %v8760, %v10228
      %10230 = vmatprep.mubr.bf16.mxu0 %v8472
      %10231 = vmatmul.mubr.bf16.gmra.mrb[0].mxu0 %v8471
      %v10232 = vpop.f32.mrb[0].mxu0
      %v10233 = vadd.f32 %v8756, %v10232
      %v10234 = vpop.f32.mrb[0].mxu0
      %v10235 = vadd.f32 %v8760, %v10234
      %v10236 = vpop.f32.mrb[0].mxu0
      %v10237 = vadd.f32 %v8756, %v10236
      %v10238 = vpop.f32.mrb[0].mxu0
      %v10239 = vadd.f32 %v8760, %v10238
      %10240 = vmatprep.mubr.bf16.mxu0 %v8476
      %10241 = vmatmul.mubr.bf16.gmra.mrb[0].mxu0 %v8475
      %v10242 = vpop.f32.mrb[0].mxu0
      %v10243 = vadd.f32 %v8756, %v10242
      %v10244 = vpop.f32.mrb[0].mxu0
      %v10245 = vadd.f32 %v8760, %v10244
      %v10246 = vpop.f32.mrb[0].mxu0
      %v10247 = vadd.f32 %v8756, %v10246
      %v10248 = vpop.f32.mrb[0].mxu0
      %v10249 = vadd.f32 %v8760, %v10248
      %10250 = vmatprep.mubr.bf16.mxu0 %v8480
      %10251 = vmatmul.mubr.bf16.gmra.mrb[0].mxu0 %v8479
      %v10252 = vpop.f32.mrb[0].mxu0
      %v10253 = vadd.f32 %v8756, %v10252
      %v10254 = vpop.f32.mrb[0].mxu0
      %v10255 = vadd.f32 %v8760, %v10254
      %v10256 = vpop.f32.mrb[0].mxu0
      %v10257 = vadd.f32 %v8756, %v10256
      %v10258 = vpop.f32.mrb[0].mxu0
      %v10259 = vadd.f32 %v8760, %v10258
      %10260 = vmatprep.mubr.bf16.mxu0 %v8484
      %10261 = vmatmul.mubr.bf16.gmra.mrb[0].mxu0 %v8483
      %v10262 = vpop.f32.mrb[0].mxu0
      %v10263 = vadd.f32 %v8756, %v10262
      %v10264 = vpop.f32.mrb[0].mxu0
      %v10265 = vadd.f32 %v8760, %v10264
      %v10266 = vpop.f32.mrb[0].mxu0
      %v10267 = vadd.f32 %v8756, %v10266
      %v10268 = vpop.f32.mrb[0].mxu0
      %v10269 = vadd.f32 %v8760, %v10268
      %10270 = vdwg.mxu0
      %10271 = vmatprep.subr.bf16.mxu0 %v9599
      %10272 = vmatpush1.bf16.msra.mxu0 %v9598
      %10273 = vmatprep.subr.bf16.mxu0 %v9606
      %10274 = vmatpush1.bf16.msra.mxu0 %v9605
      %10275 = vmatprep.subr.bf16.mxu0 %v9613
      %10276 = vmatpush1.bf16.msra.mxu0 %v9612
      %10277 = vmatprep.subr.bf16.mxu0 %v9620
      %10278 = vmatpush1.bf16.msra.mxu0 %v9619
      %10279 = vmatprep.subr.bf16.mxu0 %v9627
      %10280 = vmatpush1.bf16.msra.mxu0 %v9626
      %10281 = vmatprep.subr.bf16.mxu0 %v9634
      %10282 = vmatpush1.bf16.msra.mxu0 %v9633
      %10283 = vmatprep.subr.bf16.mxu0 %v9641
      %10284 = vmatpush1.bf16.msra.mxu0 %v9640
      %10285 = vmatprep.subr.bf16.mxu0 %v9648
      %10286 = vmatpush1.bf16.msra.mxu0 %v9647
      %10287 = vmatprep.subr.bf16.mxu0 %v9655
      %10288 = vmatpush1.bf16.msra.mxu0 %v9654
      %10289 = vmatprep.subr.bf16.mxu0 %v9662
      %10290 = vmatpush1.bf16.msra.mxu0 %v9661
      %10291 = vmatprep.subr.bf16.mxu0 %v9669
      %10292 = vmatpush1.bf16.msra.mxu0 %v9668
      %10293 = vmatprep.subr.bf16.mxu0 %v9676
      %10294 = vmatpush1.bf16.msra.mxu0 %v9675
      %10295 = vmatprep.subr.bf16.mxu0 %v9683
      %10296 = vmatpush1.bf16.msra.mxu0 %v9682
      %10297 = vmatprep.subr.bf16.mxu0 %v9690
      %10298 = vmatpush1.bf16.msra.mxu0 %v9689
      %10299 = vmatprep.subr.bf16.mxu0 %v9697
      %10300 = vmatpush1.bf16.msra.mxu0 %v9696
      %10301 = vmatprep.subr.bf16.mxu0 %v9704
      %10302 = vmatpush1.bf16.msra.mxu0 %v9703
      %10303 = vmatprep.mubr.bf16.mxu0 %v8458
      %10304 = vmatmul.mubr.bf16.gmra.mrb[0].mxu0 %v8457
      %v10305 = vpop.f32.mrb[0].mxu0
      %v10306 = vadd.f32 %v10193, %v10305
      %v10307 = vpop.f32.mrb[0].mxu0
      %v10308 = vadd.f32 %v10195, %v10307
      %v10309 = vpop.f32.mrb[0].mxu0
      %v10310 = vadd.f32 %v10197, %v10309
      %v10311 = vpop.f32.mrb[0].mxu0
      %v10312 = vadd.f32 %v10199, %v10311
      %10313 = vmatprep.mubr.bf16.mxu0 %v8462
      %10314 = vmatmul.mubr.bf16.gmra.mrb[0].mxu0 %v8461
      %v10315 = vpop.f32.mrb[0].mxu0
      %v10316 = vadd.f32 %v10203, %v10315
      %v10317 = vpop.f32.mrb[0].mxu0
      %v10318 = vadd.f32 %v10205, %v10317
      %v10319 = vpop.f32.mrb[0].mxu0
      %v10320 = vadd.f32 %v10207, %v10319
      %v10321 = vpop.f32.mrb[0].mxu0
      %v10322 = vadd.f32 %v10209, %v10321
      %10323 = vmatprep.mubr.bf16.mxu0 %v8466
      %10324 = vmatmul.mubr.bf16.gmra.mrb[0].mxu0 %v8465
      %v10325 = vpop.f32.mrb[0].mxu0
      %v10326 = vadd.f32 %v10213, %v10325
      %v10327 = vpop.f32.mrb[0].mxu0
      %v10328 = vadd.f32 %v10215, %v10327
      %v10329 = vpop.f32.mrb[0].mxu0
      %v10330 = vadd.f32 %v10217, %v10329
      %v10331 = vpop.f32.mrb[0].mxu0
      %v10332 = vadd.f32 %v10219, %v10331
      %10333 = vmatprep.mubr.bf16.mxu0 %v8470
      %10334 = vmatmul.mubr.bf16.gmra.mrb[0].mxu0 %v8469
      %v10335 = vpop.f32.mrb[0].mxu0
      %v10336 = vadd.f32 %v10223, %v10335
      %v10337 = vpop.f32.mrb[0].mxu0
      %v10338 = vadd.f32 %v10225, %v10337
      %v10339 = vpop.f32.mrb[0].mxu0
      %v10340 = vadd.f32 %v10227, %v10339
      %v10341 = vpop.f32.mrb[0].mxu0
      %v10342 = vadd.f32 %v10229, %v10341
      %10343 = vmatprep.mubr.bf16.mxu0 %v8474
      %10344 = vmatmul.mubr.bf16.gmra.mrb[0].mxu0 %v8473
      %v10345 = vpop.f32.mrb[0].mxu0
      %v10346 = vadd.f32 %v10233, %v10345
      %v10347 = vpop.f32.mrb[0].mxu0
      %v10348 = vadd.f32 %v10235, %v10347
      %v10349 = vpop.f32.mrb[0].mxu0
      %v10350 = vadd.f32 %v10237, %v10349
      %v10351 = vpop.f32.mrb[0].mxu0
      %v10352 = vadd.f32 %v10239, %v10351
      %10353 = vmatprep.mubr.bf16.mxu0 %v8478
      %10354 = vmatmul.mubr.bf16.gmra.mrb[0].mxu0 %v8477
      %v10355 = vpop.f32.mrb[0].mxu0
      %v10356 = vadd.f32 %v10243, %v10355
      %v10357 = vpop.f32.mrb[0].mxu0
      %v10358 = vadd.f32 %v10245, %v10357
      %v10359 = vpop.f32.mrb[0].mxu0
      %v10360 = vadd.f32 %v10247, %v10359
      %v10361 = vpop.f32.mrb[0].mxu0
      %v10362 = vadd.f32 %v10249, %v10361
      %10363 = vmatprep.mubr.bf16.mxu0 %v8482
      %10364 = vmatmul.mubr.bf16.gmra.mrb[0].mxu0 %v8481
      %v10365 = vpop.f32.mrb[0].mxu0
      %v10366 = vadd.f32 %v10253, %v10365
      %v10367 = vpop.f32.mrb[0].mxu0
      %v10368 = vadd.f32 %v10255, %v10367
      %v10369 = vpop.f32.mrb[0].mxu0
      %v10370 = vadd.f32 %v10257, %v10369
      %v10371 = vpop.f32.mrb[0].mxu0
      %v10372 = vadd.f32 %v10259, %v10371
      %10373 = vmatprep.mubr.bf16.mxu0 %v8486
      %10374 = vmatmul.mubr.bf16.gmra.mrb[0].mxu0 %v8485
      %v10375 = vpop.f32.mrb[0].mxu0
      %v10376 = vadd.f32 %v10263, %v10375
      %v10377 = vpop.f32.mrb[0].mxu0
      %v10378 = vadd.f32 %v10265, %v10377
      %v10379 = vpop.f32.mrb[0].mxu0
      %v10380 = vadd.f32 %v10267, %v10379
      %v10381 = vpop.f32.mrb[0].mxu0
      %v10382 = vadd.f32 %v10269, %v10381
      %10383 = vdwg.mxu0
      %10384 = vmatprep.subr.bf16.mxu0 %v9489
      %10385 = vmatpush1.bf16.msra.mxu0 %v9488
      %10386 = vmatprep.subr.bf16.mxu0 %v9496
      %10387 = vmatpush1.bf16.msra.mxu0 %v9495
      %10388 = vmatprep.subr.bf16.mxu0 %v9503
      %10389 = vmatpush1.bf16.msra.mxu0 %v9502
      %10390 = vmatprep.subr.bf16.mxu0 %v9510
      %10391 = vmatpush1.bf16.msra.mxu0 %v9509
      %10392 = vmatprep.subr.bf16.mxu0 %v9517
      %10393 = vmatpush1.bf16.msra.mxu0 %v9516
      %10394 = vmatprep.subr.bf16.mxu0 %v9524
      %10395 = vmatpush1.bf16.msra.mxu0 %v9523
      %10396 = vmatprep.subr.bf16.mxu0 %v9531
      %10397 = vmatpush1.bf16.msra.mxu0 %v9530
      %10398 = vmatprep.subr.bf16.mxu0 %v9538
      %10399 = vmatpush1.bf16.msra.mxu0 %v9537
      %10400 = vmatprep.subr.bf16.mxu0 %v9545
      %10401 = vmatpush1.bf16.msra.mxu0 %v9544
      %10402 = vmatprep.subr.bf16.mxu0 %v9552
      %10403 = vmatpush1.bf16.msra.mxu0 %v9551
      %10404 = vmatprep.subr.bf16.mxu0 %v9559
      %10405 = vmatpush1.bf16.msra.mxu0 %v9558
      %10406 = vmatprep.subr.bf16.mxu0 %v9566
      %10407 = vmatpush1.bf16.msra.mxu0 %v9565
      %10408 = vmatprep.subr.bf16.mxu0 %v9573
      %10409 = vmatpush1.bf16.msra.mxu0 %v9572
      %10410 = vmatprep.subr.bf16.mxu0 %v9580
      %10411 = vmatpush1.bf16.msra.mxu0 %v9579
      %10412 = vmatprep.subr.bf16.mxu0 %v9587
      %10413 = vmatpush1.bf16.msra.mxu0 %v9586
      %10414 = vmatprep.subr.bf16.mxu0 %v9594
      %10415 = vmatpush1.bf16.msra.mxu0 %v9593
      %10416 = vmatprep.mubr.bf16.mxu0 %v8456
      %10417 = vmatmul.mubr.bf16.gmra.mrb[0].mxu0 %v8455
      %v10418 = vpop.f32.mrb[0].mxu0
      %v10419 = vadd.f32 %v8764, %v10418
      %v10420 = vpop.f32.mrb[0].mxu0
      %v10421 = vadd.f32 %v8768, %v10420
      %v10422 = vpop.f32.mrb[0].mxu0
      %v10423 = vadd.f32 %v8764, %v10422
      %v10424 = vpop.f32.mrb[0].mxu0
      %v10425 = vadd.f32 %v8768, %v10424
      %10426 = vmatprep.mubr.bf16.mxu0 %v8460
      %10427 = vmatmul.mubr.bf16.gmra.mrb[0].mxu0 %v8459
      %v10428 = vpop.f32.mrb[0].mxu0
      %v10429 = vadd.f32 %v8764, %v10428
      %v10430 = vpop.f32.mrb[0].mxu0
      %v10431 = vadd.f32 %v8768, %v10430
      %v10432 = vpop.f32.mrb[0].mxu0
      %v10433 = vadd.f32 %v8764, %v10432
      %v10434 = vpop.f32.mrb[0].mxu0
      %v10435 = vadd.f32 %v8768, %v10434
      %10436 = vmatprep.mubr.bf16.mxu0 %v8464
      %10437 = vmatmul.mubr.bf16.gmra.mrb[0].mxu0 %v8463
      %v10438 = vpop.f32.mrb[0].mxu0
      %v10439 = vadd.f32 %v8764, %v10438
      %v10440 = vpop.f32.mrb[0].mxu0
      %v10441 = vadd.f32 %v8768, %v10440
      %v10442 = vpop.f32.mrb[0].mxu0
      %v10443 = vadd.f32 %v8764, %v10442
      %v10444 = vpop.f32.mrb[0].mxu0
      %v10445 = vadd.f32 %v8768, %v10444
      %10446 = vmatprep.mubr.bf16.mxu0 %v8468
      %10447 = vmatmul.mubr.bf16.gmra.mrb[0].mxu0 %v8467
      %v10448 = vpop.f32.mrb[0].mxu0
      %v10449 = vadd.f32 %v8764, %v10448
      %v10450 = vpop.f32.mrb[0].mxu0
      %v10451 = vadd.f32 %v8768, %v10450
      %v10452 = vpop.f32.mrb[0].mxu0
      %v10453 = vadd.f32 %v8764, %v10452
      %v10454 = vpop.f32.mrb[0].mxu0
      %v10455 = vadd.f32 %v8768, %v10454
      %10456 = vmatprep.mubr.bf16.mxu0 %v8472
      %10457 = vmatmul.mubr.bf16.gmra.mrb[0].mxu0 %v8471
      %v10458 = vpop.f32.mrb[0].mxu0
      %v10459 = vadd.f32 %v8764, %v10458
      %v10460 = vpop.f32.mrb[0].mxu0
      %v10461 = vadd.f32 %v8768, %v10460
      %v10462 = vpop.f32.mrb[0].mxu0
      %v10463 = vadd.f32 %v8764, %v10462
      %v10464 = vpop.f32.mrb[0].mxu0
      %v10465 = vadd.f32 %v8768, %v10464
      %10466 = vmatprep.mubr.bf16.mxu0 %v8476
      %10467 = vmatmul.mubr.bf16.gmra.mrb[0].mxu0 %v8475
      %v10468 = vpop.f32.mrb[0].mxu0
      %v10469 = vadd.f32 %v8764, %v10468
      %v10470 = vpop.f32.mrb[0].mxu0
      %v10471 = vadd.f32 %v8768, %v10470
      %v10472 = vpop.f32.mrb[0].mxu0
      %v10473 = vadd.f32 %v8764, %v10472
      %v10474 = vpop.f32.mrb[0].mxu0
      %v10475 = vadd.f32 %v8768, %v10474
      %10476 = vmatprep.mubr.bf16.mxu0 %v8480
      %10477 = vmatmul.mubr.bf16.gmra.mrb[0].mxu0 %v8479
      %v10478 = vpop.f32.mrb[0].mxu0
      %v10479 = vadd.f32 %v8764, %v10478
      %v10480 = vpop.f32.mrb[0].mxu0
      %v10481 = vadd.f32 %v8768, %v10480
      %v10482 = vpop.f32.mrb[0].mxu0
      %v10483 = vadd.f32 %v8764, %v10482
      %v10484 = vpop.f32.mrb[0].mxu0
      %v10485 = vadd.f32 %v8768, %v10484
      %10486 = vmatprep.mubr.bf16.mxu0 %v8484
      %10487 = vmatmul.mubr.bf16.gmra.mrb[0].mxu0 %v8483
      %v10488 = vpop.f32.mrb[0].mxu0
      %v10489 = vadd.f32 %v8764, %v10488
      %v10490 = vpop.f32.mrb[0].mxu0
      %v10491 = vadd.f32 %v8768, %v10490
      %v10492 = vpop.f32.mrb[0].mxu0
      %v10493 = vadd.f32 %v8764, %v10492
      %v10494 = vpop.f32.mrb[0].mxu0
      %v10495 = vadd.f32 %v8768, %v10494
      %10496 = vdwg.mxu0
      %10497 = vmatprep.subr.bf16.mxu0 %v9601
      %10498 = vmatpush1.bf16.msra.mxu0 %v9600
      %10499 = vmatprep.subr.bf16.mxu0 %v9608
      %10500 = vmatpush1.bf16.msra.mxu0 %v9607
      %10501 = vmatprep.subr.bf16.mxu0 %v9615
      %10502 = vmatpush1.bf16.msra.mxu0 %v9614
      %10503 = vmatprep.subr.bf16.mxu0 %v9622
      %10504 = vmatpush1.bf16.msra.mxu0 %v9621
      %10505 = vmatprep.subr.bf16.mxu0 %v9629
      %10506 = vmatpush1.bf16.msra.mxu0 %v9628
      %10507 = vmatprep.subr.bf16.mxu0 %v9636
      %10508 = vmatpush1.bf16.msra.mxu0 %v9635
      %10509 = vmatprep.subr.bf16.mxu0 %v9643
      %10510 = vmatpush1.bf16.msra.mxu0 %v9642
      %10511 = vmatprep.subr.bf16.mxu0 %v9650
      %10512 = vmatpush1.bf16.msra.mxu0 %v9649
      %10513 = vmatprep.subr.bf16.mxu0 %v9657
      %10514 = vmatpush1.bf16.msra.mxu0 %v9656
      %10515 = vmatprep.subr.bf16.mxu0 %v9664
      %10516 = vmatpush1.bf16.msra.mxu0 %v9663
      %10517 = vmatprep.subr.bf16.mxu0 %v9671
      %10518 = vmatpush1.bf16.msra.mxu0 %v9670
      %10519 = vmatprep.subr.bf16.mxu0 %v9678
      %10520 = vmatpush1.bf16.msra.mxu0 %v9677
      %10521 = vmatprep.subr.bf16.mxu0 %v9685
      %10522 = vmatpush1.bf16.msra.mxu0 %v9684
      %10523 = vmatprep.subr.bf16.mxu0 %v9692
      %10524 = vmatpush1.bf16.msra.mxu0 %v9691
      %10525 = vmatprep.subr.bf16.mxu0 %v9699
      %10526 = vmatpush1.bf16.msra.mxu0 %v9698
      %10527 = vmatprep.subr.bf16.mxu0 %v9706
      %10528 = vmatpush1.bf16.msra.mxu0 %v9705
      %10529 = vmatprep.mubr.bf16.mxu0 %v8458
      %10530 = vmatmul.mubr.bf16.gmra.mrb[0].mxu0 %v8457
      %v10531 = vpop.f32.mrb[0].mxu0
      %v10532 = vadd.f32 %v10419, %v10531
      %v10533 = vpop.f32.mrb[0].mxu0
      %v10534 = vadd.f32 %v10421, %v10533
      %v10535 = vpop.f32.mrb[0].mxu0
      %v10536 = vadd.f32 %v10423, %v10535
      %v10537 = vpop.f32.mrb[0].mxu0
      %v10538 = vadd.f32 %v10425, %v10537
      %10539 = vmatprep.mubr.bf16.mxu0 %v8462
      %10540 = vmatmul.mubr.bf16.gmra.mrb[0].mxu0 %v8461
      %v10541 = vpop.f32.mrb[0].mxu0
      %v10542 = vadd.f32 %v10429, %v10541
      %v10543 = vpop.f32.mrb[0].mxu0
      %v10544 = vadd.f32 %v10431, %v10543
      %v10545 = vpop.f32.mrb[0].mxu0
      %v10546 = vadd.f32 %v10433, %v10545
      %v10547 = vpop.f32.mrb[0].mxu0
      %v10548 = vadd.f32 %v10435, %v10547
      %10549 = vmatprep.mubr.bf16.mxu0 %v8466
      %10550 = vmatmul.mubr.bf16.gmra.mrb[0].mxu0 %v8465
      %v10551 = vpop.f32.mrb[0].mxu0
      %v10552 = vadd.f32 %v10439, %v10551
      %v10553 = vpop.f32.mrb[0].mxu0
      %v10554 = vadd.f32 %v10441, %v10553
      %v10555 = vpop.f32.mrb[0].mxu0
      %v10556 = vadd.f32 %v10443, %v10555
      %v10557 = vpop.f32.mrb[0].mxu0
      %v10558 = vadd.f32 %v10445, %v10557
      %10559 = vmatprep.mubr.bf16.mxu0 %v8470
      %10560 = vmatmul.mubr.bf16.gmra.mrb[0].mxu0 %v8469
      %v10561 = vpop.f32.mrb[0].mxu0
      %v10562 = vadd.f32 %v10449, %v10561
      %v10563 = vpop.f32.mrb[0].mxu0
      %v10564 = vadd.f32 %v10451, %v10563
      %v10565 = vpop.f32.mrb[0].mxu0
      %v10566 = vadd.f32 %v10453, %v10565
      %v10567 = vpop.f32.mrb[0].mxu0
      %v10568 = vadd.f32 %v10455, %v10567
      %10569 = vmatprep.mubr.bf16.mxu0 %v8474
      %10570 = vmatmul.mubr.bf16.gmra.mrb[0].mxu0 %v8473
      %v10571 = vpop.f32.mrb[0].mxu0
      %v10572 = vadd.f32 %v10459, %v10571
      %v10573 = vpop.f32.mrb[0].mxu0
      %v10574 = vadd.f32 %v10461, %v10573
      %v10575 = vpop.f32.mrb[0].mxu0
      %v10576 = vadd.f32 %v10463, %v10575
      %v10577 = vpop.f32.mrb[0].mxu0
      %v10578 = vadd.f32 %v10465, %v10577
      %10579 = vmatprep.mubr.bf16.mxu0 %v8478
      %10580 = vmatmul.mubr.bf16.gmra.mrb[0].mxu0 %v8477
      %v10581 = vpop.f32.mrb[0].mxu0
      %v10582 = vadd.f32 %v10469, %v10581
      %v10583 = vpop.f32.mrb[0].mxu0
      %v10584 = vadd.f32 %v10471, %v10583
      %v10585 = vpop.f32.mrb[0].mxu0
      %v10586 = vadd.f32 %v10473, %v10585
      %v10587 = vpop.f32.mrb[0].mxu0
      %v10588 = vadd.f32 %v10475, %v10587
      %10589 = vmatprep.mubr.bf16.mxu0 %v8482
      %10590 = vmatmul.mubr.bf16.gmra.mrb[0].mxu0 %v8481
      %v10591 = vpop.f32.mrb[0].mxu0
      %v10592 = vadd.f32 %v10479, %v10591
      %v10593 = vpop.f32.mrb[0].mxu0
      %v10594 = vadd.f32 %v10481, %v10593
      %v10595 = vpop.f32.mrb[0].mxu0
      %v10596 = vadd.f32 %v10483, %v10595
      %v10597 = vpop.f32.mrb[0].mxu0
      %v10598 = vadd.f32 %v10485, %v10597
      %10599 = vmatprep.mubr.bf16.mxu0 %v8486
      %10600 = vmatmul.mubr.bf16.gmra.mrb[0].mxu0 %v8485
      %v10601 = vpop.f32.mrb[0].mxu0
      %v10602 = vadd.f32 %v10489, %v10601
      %v10603 = vpop.f32.mrb[0].mxu0
      %v10604 = vadd.f32 %v10491, %v10603
      %v10605 = vpop.f32.mrb[0].mxu0
      %v10606 = vadd.f32 %v10493, %v10605
      %v10607 = vpop.f32.mrb[0].mxu0
      %v10608 = vadd.f32 %v10495, %v10607
      %10609 = vdwg.mxu0
      %10610 = vmatprep.subr.bf16.mxu0 0
      %10611 = vmatpush1.bf16.msra.mxu0 %v9490
      %10612 = vmatprep.subr.bf16.mxu0 0
      %10613 = vmatpush1.bf16.msra.mxu0 %v9497
      %10614 = vmatprep.subr.bf16.mxu0 0
      %10615 = vmatpush1.bf16.msra.mxu0 %v9504
      %10616 = vmatprep.subr.bf16.mxu0 0
      %10617 = vmatpush1.bf16.msra.mxu0 %v9511
      %10618 = vmatprep.subr.bf16.mxu0 0
      %10619 = vmatpush1.bf16.msra.mxu0 %v9518
      %10620 = vmatprep.subr.bf16.mxu0 0
      %10621 = vmatpush1.bf16.msra.mxu0 %v9525
      %10622 = vmatprep.subr.bf16.mxu0 0
      %10623 = vmatpush1.bf16.msra.mxu0 %v9532
      %10624 = vmatprep.subr.bf16.mxu0 0
      %10625 = vmatpush1.bf16.msra.mxu0 %v9539
      %10626 = vmatprep.subr.bf16.mxu0 0
      %10627 = vmatpush1.bf16.msra.mxu0 %v9546
      %10628 = vmatprep.subr.bf16.mxu0 0
      %10629 = vmatpush1.bf16.msra.mxu0 %v9553
      %10630 = vmatprep.subr.bf16.mxu0 0
      %10631 = vmatpush1.bf16.msra.mxu0 %v9560
      %10632 = vmatprep.subr.bf16.mxu0 0
      %10633 = vmatpush1.bf16.msra.mxu0 %v9567
      %10634 = vmatprep.subr.bf16.mxu0 0
      %10635 = vmatpush1.bf16.msra.mxu0 %v9574
      %10636 = vmatprep.subr.bf16.mxu0 0
      %10637 = vmatpush1.bf16.msra.mxu0 %v9581
      %10638 = vmatprep.subr.bf16.mxu0 0
      %10639 = vmatpush1.bf16.msra.mxu0 %v9588
      %10640 = vmatprep.subr.bf16.mxu0 0
      %10641 = vmatpush1.bf16.msra.mxu0 %v9595
      %10642 = vmatprep.mubr.bf16.mxu0 %v8456
      %10643 = vmatmul.mubr.bf16.gmra.mrb[0].mxu0 %v8455
      %v10644 = vpop.f32.mrb[0].mxu0
      %v10645 = vadd.f32 %v8772, %v10644
      %v10646 = vpop.f32.mrb[0].mxu0
      %v10647 = vpop.f32.mrb[0].mxu0
      %v10648 = vadd.f32 %v8772, %v10647
      %v10649 = vpop.f32.mrb[0].mxu0
      %10650 = vmatprep.mubr.bf16.mxu0 %v8460
      %10651 = vmatmul.mubr.bf16.gmra.mrb[0].mxu0 %v8459
      %v10652 = vpop.f32.mrb[0].mxu0
      %v10653 = vadd.f32 %v8772, %v10652
      %v10654 = vpop.f32.mrb[0].mxu0
      %v10655 = vpop.f32.mrb[0].mxu0
      %v10656 = vadd.f32 %v8772, %v10655
      %v10657 = vpop.f32.mrb[0].mxu0
      %10658 = vmatprep.mubr.bf16.mxu0 %v8464
      %10659 = vmatmul.mubr.bf16.gmra.mrb[0].mxu0 %v8463
      %v10660 = vpop.f32.mrb[0].mxu0
      %v10661 = vadd.f32 %v8772, %v10660
      %v10662 = vpop.f32.mrb[0].mxu0
      %v10663 = vpop.f32.mrb[0].mxu0
      %v10664 = vadd.f32 %v8772, %v10663
      %v10665 = vpop.f32.mrb[0].mxu0
      %10666 = vmatprep.mubr.bf16.mxu0 %v8468
      %10667 = vmatmul.mubr.bf16.gmra.mrb[0].mxu0 %v8467
      %v10668 = vpop.f32.mrb[0].mxu0
      %v10669 = vadd.f32 %v8772, %v10668
      %v10670 = vpop.f32.mrb[0].mxu0
      %v10671 = vpop.f32.mrb[0].mxu0
      %v10672 = vadd.f32 %v8772, %v10671
      %v10673 = vpop.f32.mrb[0].mxu0
      %10674 = vmatprep.mubr.bf16.mxu0 %v8472
      %10675 = vmatmul.mubr.bf16.gmra.mrb[0].mxu0 %v8471
      %v10676 = vpop.f32.mrb[0].mxu0
      %v10677 = vadd.f32 %v8772, %v10676
      %v10678 = vpop.f32.mrb[0].mxu0
      %v10679 = vpop.f32.mrb[0].mxu0
      %v10680 = vadd.f32 %v8772, %v10679
      %v10681 = vpop.f32.mrb[0].mxu0
      %10682 = vmatprep.mubr.bf16.mxu0 %v8476
      %10683 = vmatmul.mubr.bf16.gmra.mrb[0].mxu0 %v8475
      %v10684 = vpop.f32.mrb[0].mxu0
      %v10685 = vadd.f32 %v8772, %v10684
      %v10686 = vpop.f32.mrb[0].mxu0
      %v10687 = vpop.f32.mrb[0].mxu0
      %v10688 = vadd.f32 %v8772, %v10687
      %v10689 = vpop.f32.mrb[0].mxu0
      %10690 = vmatprep.mubr.bf16.mxu0 %v8480
      %10691 = vmatmul.mubr.bf16.gmra.mrb[0].mxu0 %v8479
      %v10692 = vpop.f32.mrb[0].mxu0
      %v10693 = vadd.f32 %v8772, %v10692
      %v10694 = vpop.f32.mrb[0].mxu0
      %v10695 = vpop.f32.mrb[0].mxu0
      %v10696 = vadd.f32 %v8772, %v10695
      %v10697 = vpop.f32.mrb[0].mxu0
      %10698 = vmatprep.mubr.bf16.mxu0 %v8484
      %10699 = vmatmul.mubr.bf16.gmra.mrb[0].mxu0 %v8483
      %v10700 = vpop.f32.mrb[0].mxu0
      %v10701 = vadd.f32 %v8772, %v10700
      %v10702 = vpop.f32.mrb[0].mxu0
      %v10703 = vpop.f32.mrb[0].mxu0
      %v10704 = vadd.f32 %v8772, %v10703
      %v10705 = vpop.f32.mrb[0].mxu0
      %10706 = vdwg.mxu0
      %10707 = vmatprep.subr.bf16.mxu0 0
      %10708 = vmatpush1.bf16.msra.mxu0 %v9602
      %10709 = vmatprep.subr.bf16.mxu0 0
      %10710 = vmatpush1.bf16.msra.mxu0 %v9609
      %10711 = vmatprep.subr.bf16.mxu0 0
      %10712 = vmatpush1.bf16.msra.mxu0 %v9616
      %10713 = vmatprep.subr.bf16.mxu0 0
      %10714 = vmatpush1.bf16.msra.mxu0 %v9623
      %10715 = vmatprep.subr.bf16.mxu0 0
      %10716 = vmatpush1.bf16.msra.mxu0 %v9630
      %10717 = vmatprep.subr.bf16.mxu0 0
      %10718 = vmatpush1.bf16.msra.mxu0 %v9637
      %10719 = vmatprep.subr.bf16.mxu0 0
      %10720 = vmatpush1.bf16.msra.mxu0 %v9644
      %10721 = vmatprep.subr.bf16.mxu0 0
      %10722 = vmatpush1.bf16.msra.mxu0 %v9651
      %10723 = vmatprep.subr.bf16.mxu0 0
      %10724 = vmatpush1.bf16.msra.mxu0 %v9658
      %10725 = vmatprep.subr.bf16.mxu0 0
      %10726 = vmatpush1.bf16.msra.mxu0 %v9665
      %10727 = vmatprep.subr.bf16.mxu0 0
      %10728 = vmatpush1.bf16.msra.mxu0 %v9672
      %10729 = vmatprep.subr.bf16.mxu0 0
      %10730 = vmatpush1.bf16.msra.mxu0 %v9679
      %10731 = vmatprep.subr.bf16.mxu0 0
      %10732 = vmatpush1.bf16.msra.mxu0 %v9686
      %10733 = vmatprep.subr.bf16.mxu0 0
      %10734 = vmatpush1.bf16.msra.mxu0 %v9693
      %10735 = vmatprep.subr.bf16.mxu0 0
      %10736 = vmatpush1.bf16.msra.mxu0 %v9700
      %10737 = vmatprep.subr.bf16.mxu0 0
      %10738 = vmatpush1.bf16.msra.mxu0 %v9707
      %10739 = vmatprep.mubr.bf16.mxu0 %v8458
      %10740 = vmatmul.mubr.bf16.gmra.mrb[0].mxu0 %v8457
      %v10741 = vpop.f32.mrb[0].mxu0
      %v10742 = vadd.f32 %v10645, %v10741
      %v10743 = vpop.f32.mrb[0].mxu0
      %v10744 = vpop.f32.mrb[0].mxu0
      %v10745 = vadd.f32 %v10648, %v10744
      %v10746 = vpop.f32.mrb[0].mxu0
      %10747 = vmatprep.mubr.bf16.mxu0 %v8462
      %10748 = vmatmul.mubr.bf16.gmra.mrb[0].mxu0 %v8461
      %v10749 = vpop.f32.mrb[0].mxu0
      %v10750 = vadd.f32 %v10653, %v10749
      %v10751 = vpop.f32.mrb[0].mxu0
      %v10752 = vpop.f32.mrb[0].mxu0
      %v10753 = vadd.f32 %v10656, %v10752
      %v10754 = vpop.f32.mrb[0].mxu0
      %10755 = vmatprep.mubr.bf16.mxu0 %v8466
      %10756 = vmatmul.mubr.bf16.gmra.mrb[0].mxu0 %v8465
      %v10757 = vpop.f32.mrb[0].mxu0
      %v10758 = vadd.f32 %v10661, %v10757
      %v10759 = vpop.f32.mrb[0].mxu0
      %v10760 = vpop.f32.mrb[0].mxu0
      %v10761 = vadd.f32 %v10664, %v10760
      %v10762 = vpop.f32.mrb[0].mxu0
      %10763 = vmatprep.mubr.bf16.mxu0 %v8470
      %10764 = vmatmul.mubr.bf16.gmra.mrb[0].mxu0 %v8469
      %v10765 = vpop.f32.mrb[0].mxu0
      %v10766 = vadd.f32 %v10669, %v10765
      %v10767 = vpop.f32.mrb[0].mxu0
      %v10768 = vpop.f32.mrb[0].mxu0
      %v10769 = vadd.f32 %v10672, %v10768
      %v10770 = vpop.f32.mrb[0].mxu0
      %10771 = vmatprep.mubr.bf16.mxu0 %v8474
      %10772 = vmatmul.mubr.bf16.gmra.mrb[0].mxu0 %v8473
      %v10773 = vpop.f32.mrb[0].mxu0
      %v10774 = vadd.f32 %v10677, %v10773
      %v10775 = vpop.f32.mrb[0].mxu0
      %v10776 = vpop.f32.mrb[0].mxu0
      %v10777 = vadd.f32 %v10680, %v10776
      %v10778 = vpop.f32.mrb[0].mxu0
      %10779 = vmatprep.mubr.bf16.mxu0 %v8478
      %10780 = vmatmul.mubr.bf16.gmra.mrb[0].mxu0 %v8477
      %v10781 = vpop.f32.mrb[0].mxu0
      %v10782 = vadd.f32 %v10685, %v10781
      %v10783 = vpop.f32.mrb[0].mxu0
      %v10784 = vpop.f32.mrb[0].mxu0
      %v10785 = vadd.f32 %v10688, %v10784
      %v10786 = vpop.f32.mrb[0].mxu0
      %10787 = vmatprep.mubr.bf16.mxu0 %v8482
      %10788 = vmatmul.mubr.bf16.gmra.mrb[0].mxu0 %v8481
      %v10789 = vpop.f32.mrb[0].mxu0
      %v10790 = vadd.f32 %v10693, %v10789
      %v10791 = vpop.f32.mrb[0].mxu0
      %v10792 = vpop.f32.mrb[0].mxu0
      %v10793 = vadd.f32 %v10696, %v10792
      %v10794 = vpop.f32.mrb[0].mxu0
      %10795 = vmatprep.mubr.bf16.mxu0 %v8486
      %10796 = vmatmul.mubr.bf16.gmra.mrb[0].mxu0 %v8485
      %v10797 = vpop.f32.mrb[0].mxu0
      %v10798 = vadd.f32 %v10701, %v10797
      %v10799 = vpop.f32.mrb[0].mxu0
      %v10800 = vpop.f32.mrb[0].mxu0
      %v10801 = vadd.f32 %v10704, %v10800
      %v10802 = vpop.f32.mrb[0].mxu0
      %10803 = vdwg.mxu0
      %v10804 = vmul.f32 %v10080, 0.5
      %v10805 = vmul.f32 %v10082, 0.5
      %v10806 = vmul.f32 %v10306, 0.5
      %v10807 = vmul.f32 %v10308, 0.5
      %v10808 = vmul.f32 %v10532, 0.5
      %v10809 = vmul.f32 %v10534, 0.5
      %v10810 = vmul.f32 %v10742, 0.5
      %v10811 = vmul.f32 %v10084, 0.5
      %v10812 = vmul.f32 %v10086, 0.5
      %v10813 = vmul.f32 %v10310, 0.5
      %v10814 = vmul.f32 %v10312, 0.5
      %v10815 = vmul.f32 %v10536, 0.5
      %v10816 = vmul.f32 %v10538, 0.5
      %v10817 = vmul.f32 %v10745, 0.5
      %v10818 = vmul.f32 %v10090, 0.5
      %v10819 = vmul.f32 %v10092, 0.5
      %v10820 = vmul.f32 %v10316, 0.5
      %v10821 = vmul.f32 %v10318, 0.5
      %v10822 = vmul.f32 %v10542, 0.5
      %v10823 = vmul.f32 %v10544, 0.5
      %v10824 = vmul.f32 %v10750, 0.5
      %v10825 = vmul.f32 %v10094, 0.5
      %v10826 = vmul.f32 %v10096, 0.5
      %v10827 = vmul.f32 %v10320, 0.5
      %v10828 = vmul.f32 %v10322, 0.5
      %v10829 = vmul.f32 %v10546, 0.5
      %v10830 = vmul.f32 %v10548, 0.5
      %v10831 = vmul.f32 %v10753, 0.5
      %v10832 = vmul.f32 %v10100, 0.5
      %v10833 = vmul.f32 %v10102, 0.5
      %v10834 = vmul.f32 %v10326, 0.5
      %v10835 = vmul.f32 %v10328, 0.5
      %v10836 = vmul.f32 %v10552, 0.5
      %v10837 = vmul.f32 %v10554, 0.5
      %v10838 = vmul.f32 %v10758, 0.5
      %v10839 = vmul.f32 %v10104, 0.5
      %v10840 = vmul.f32 %v10106, 0.5
      %v10841 = vmul.f32 %v10330, 0.5
      %v10842 = vmul.f32 %v10332, 0.5
      %v10843 = vmul.f32 %v10556, 0.5
      %v10844 = vmul.f32 %v10558, 0.5
      %v10845 = vmul.f32 %v10761, 0.5
      %v10846 = vmul.f32 %v10110, 0.5
      %v10847 = vmul.f32 %v10112, 0.5
      %v10848 = vmul.f32 %v10336, 0.5
      %v10849 = vmul.f32 %v10338, 0.5
      %v10850 = vmul.f32 %v10562, 0.5
      %v10851 = vmul.f32 %v10564, 0.5
      %v10852 = vmul.f32 %v10766, 0.5
      %v10853 = vmul.f32 %v10114, 0.5
      %v10854 = vmul.f32 %v10116, 0.5
      %v10855 = vmul.f32 %v10340, 0.5
      %v10856 = vmul.f32 %v10342, 0.5
      %v10857 = vmul.f32 %v10566, 0.5
      %v10858 = vmul.f32 %v10568, 0.5
      %v10859 = vmul.f32 %v10769, 0.5
      %v10860 = vmul.f32 %v10120, 0.5
      %v10861 = vmul.f32 %v10122, 0.5
      %v10862 = vmul.f32 %v10346, 0.5
      %v10863 = vmul.f32 %v10348, 0.5
      %v10864 = vmul.f32 %v10572, 0.5
      %v10865 = vmul.f32 %v10574, 0.5
      %v10866 = vmul.f32 %v10774, 0.5
      %v10867 = vmul.f32 %v10124, 0.5
      %v10868 = vmul.f32 %v10126, 0.5
      %v10869 = vmul.f32 %v10350, 0.5
      %v10870 = vmul.f32 %v10352, 0.5
      %v10871 = vmul.f32 %v10576, 0.5
      %v10872 = vmul.f32 %v10578, 0.5
      %v10873 = vmul.f32 %v10777, 0.5
      %v10874 = vmul.f32 %v10130, 0.5
      %v10875 = vmul.f32 %v10132, 0.5
      %v10876 = vmul.f32 %v10356, 0.5
      %v10877 = vmul.f32 %v10358, 0.5
      %v10878 = vmul.f32 %v10582, 0.5
      %v10879 = vmul.f32 %v10584, 0.5
      %v10880 = vmul.f32 %v10782, 0.5
      %v10881 = vmul.f32 %v10134, 0.5
      %v10882 = vmul.f32 %v10136, 0.5
      %v10883 = vmul.f32 %v10360, 0.5
      %v10884 = vmul.f32 %v10362, 0.5
      %v10885 = vmul.f32 %v10586, 0.5
      %v10886 = vmul.f32 %v10588, 0.5
      %v10887 = vmul.f32 %v10785, 0.5
      %v10888 = vmul.f32 %v10140, 0.5
      %v10889 = vmul.f32 %v10142, 0.5
      %v10890 = vmul.f32 %v10366, 0.5
      %v10891 = vmul.f32 %v10368, 0.5
      %v10892 = vmul.f32 %v10592, 0.5
      %v10893 = vmul.f32 %v10594, 0.5
      %v10894 = vmul.f32 %v10790, 0.5
      %v10895 = vmul.f32 %v10144, 0.5
      %v10896 = vmul.f32 %v10146, 0.5
      %v10897 = vmul.f32 %v10370, 0.5
      %v10898 = vmul.f32 %v10372, 0.5
      %v10899 = vmul.f32 %v10596, 0.5
      %v10900 = vmul.f32 %v10598, 0.5
      %v10901 = vmul.f32 %v10793, 0.5
      %v10902 = vmul.f32 %v10150, 0.5
      %v10903 = vmul.f32 %v10152, 0.5
      %v10904 = vmul.f32 %v10376, 0.5
      %v10905 = vmul.f32 %v10378, 0.5
      %v10906 = vmul.f32 %v10602, 0.5
      %v10907 = vmul.f32 %v10604, 0.5
      %v10908 = vmul.f32 %v10798, 0.5
      %v10909 = vmul.f32 %v10154, 0.5
      %v10910 = vmul.f32 %v10156, 0.5
      %v10911 = vmul.f32 %v10380, 0.5
      %v10912 = vmul.f32 %v10382, 0.5
      %v10913 = vmul.f32 %v10606, 0.5
      %v10914 = vmul.f32 %v10608, 0.5
      %v10915 = vmul.f32 %v10801, 0.5
      %v10916 = vtanh.pop %v10804
      %v10917 = vtanh.pop %v10805
      %v10918 = vtanh.pop %v10806
      %v10919 = vtanh.pop %v10807
      %v10920 = vtanh.pop %v10808
      %v10921 = vtanh.pop %v10809
      %v10922 = vtanh.pop %v10810
      %v10923 = vtanh.pop %v10811
      %v10924 = vtanh.pop %v10812
      %v10925 = vtanh.pop %v10813
      %v10926 = vtanh.pop %v10814
      %v10927 = vtanh.pop %v10815
      %v10928 = vtanh.pop %v10816
      %v10929 = vtanh.pop %v10817
      %v10930 = vtanh.pop %v10818
      %v10931 = vtanh.pop %v10819
      %v10932 = vtanh.pop %v10820
      %v10933 = vtanh.pop %v10821
      %v10934 = vtanh.pop %v10822
      %v10935 = vtanh.pop %v10823
      %v10936 = vtanh.pop %v10824
      %v10937 = vtanh.pop %v10825
      %v10938 = vtanh.pop %v10826
      %v10939 = vtanh.pop %v10827
      %v10940 = vtanh.pop %v10828
      %v10941 = vtanh.pop %v10829
      %v10942 = vtanh.pop %v10830
      %v10943 = vtanh.pop %v10831
      %v10944 = vtanh.pop %v10832
      %v10945 = vtanh.pop %v10833
      %v10946 = vtanh.pop %v10834
      %v10947 = vtanh.pop %v10835
      %v10948 = vtanh.pop %v10836
      %v10949 = vtanh.pop %v10837
      %v10950 = vtanh.pop %v10838
      %v10951 = vtanh.pop %v10839
      %v10952 = vtanh.pop %v10840
      %v10953 = vtanh.pop %v10841
      %v10954 = vtanh.pop %v10842
      %v10955 = vtanh.pop %v10843
      %v10956 = vtanh.pop %v10844
      %v10957 = vtanh.pop %v10845
      %v10958 = vtanh.pop %v10846
      %v10959 = vtanh.pop %v10847
      %v10960 = vtanh.pop %v10848
      %v10961 = vtanh.pop %v10849
      %v10962 = vtanh.pop %v10850
      %v10963 = vtanh.pop %v10851
      %v10964 = vtanh.pop %v10852
      %v10965 = vtanh.pop %v10853
      %v10966 = vtanh.pop %v10854
      %v10967 = vtanh.pop %v10855
      %v10968 = vtanh.pop %v10856
      %v10969 = vtanh.pop %v10857
      %v10970 = vtanh.pop %v10858
      %v10971 = vtanh.pop %v10859
      %v10972 = vtanh.pop %v10860
      %v10973 = vtanh.pop %v10861
      %v10974 = vtanh.pop %v10862
      %v10975 = vtanh.pop %v10863
      %v10976 = vtanh.pop %v10864
      %v10977 = vtanh.pop %v10865
      %v10978 = vtanh.pop %v10866
      %v10979 = vtanh.pop %v10867
      %v10980 = vtanh.pop %v10868
      %v10981 = vtanh.pop %v10869
      %v10982 = vtanh.pop %v10870
      %v10983 = vtanh.pop %v10871
      %v10984 = vtanh.pop %v10872
      %v10985 = vtanh.pop %v10873
      %v10986 = vtanh.pop %v10874
      %v10987 = vtanh.pop %v10875
      %v10988 = vtanh.pop %v10876
      %v10989 = vtanh.pop %v10877
      %v10990 = vtanh.pop %v10878
      %v10991 = vtanh.pop %v10879
      %v10992 = vtanh.pop %v10880
      %v10993 = vtanh.pop %v10881
      %v10994 = vtanh.pop %v10882
      %v10995 = vtanh.pop %v10883
      %v10996 = vtanh.pop %v10884
      %v10997 = vtanh.pop %v10885
      %v10998 = vtanh.pop %v10886
      %v10999 = vtanh.pop %v10887
      %v11000 = vtanh.pop %v10888
      %v11001 = vtanh.pop %v10889
      %v11002 = vtanh.pop %v10890
      %v11003 = vtanh.pop %v10891
      %v11004 = vtanh.pop %v10892
      %v11005 = vtanh.pop %v10893
      %v11006 = vtanh.pop %v10894
      %v11007 = vtanh.pop %v10895
      %v11008 = vtanh.pop %v10896
      %v11009 = vtanh.pop %v10897
      %v11010 = vtanh.pop %v10898
      %v11011 = vtanh.pop %v10899
      %v11012 = vtanh.pop %v10900
      %v11013 = vtanh.pop %v10901
      %v11014 = vtanh.pop %v10902
      %v11015 = vtanh.pop %v10903
      %v11016 = vtanh.pop %v10904
      %v11017 = vtanh.pop %v10905
      %v11018 = vtanh.pop %v10906
      %v11019 = vtanh.pop %v10907
      %v11020 = vtanh.pop %v10908
      %v11021 = vtanh.pop %v10909
      %v11022 = vtanh.pop %v10910
      %v11023 = vtanh.pop %v10911
      %v11024 = vtanh.pop %v10912
      %v11025 = vtanh.pop %v10913
      %v11026 = vtanh.pop %v10914
      %v11027 = vtanh.pop %v10915
      %v11028 = vmul.f32 %v10916, 0.5
      %v11029 = vmul.f32 %v10917, 0.5
      %v11030 = vmul.f32 %v10918, 0.5
      %v11031 = vmul.f32 %v10919, 0.5
      %v11032 = vmul.f32 %v10920, 0.5
      %v11033 = vmul.f32 %v10921, 0.5
      %v11034 = vmul.f32 %v10922, 0.5
      %v11035 = vmul.f32 %v10923, 0.5
      %v11036 = vmul.f32 %v10924, 0.5
      %v11037 = vmul.f32 %v10925, 0.5
      %v11038 = vmul.f32 %v10926, 0.5
      %v11039 = vmul.f32 %v10927, 0.5
      %v11040 = vmul.f32 %v10928, 0.5
      %v11041 = vmul.f32 %v10929, 0.5
      %v11042 = vmul.f32 %v10930, 0.5
      %v11043 = vmul.f32 %v10931, 0.5
      %v11044 = vmul.f32 %v10932, 0.5
      %v11045 = vmul.f32 %v10933, 0.5
      %v11046 = vmul.f32 %v10934, 0.5
      %v11047 = vmul.f32 %v10935, 0.5
      %v11048 = vmul.f32 %v10936, 0.5
      %v11049 = vmul.f32 %v10937, 0.5
      %v11050 = vmul.f32 %v10938, 0.5
      %v11051 = vmul.f32 %v10939, 0.5
      %v11052 = vmul.f32 %v10940, 0.5
      %v11053 = vmul.f32 %v10941, 0.5
      %v11054 = vmul.f32 %v10942, 0.5
      %v11055 = vmul.f32 %v10943, 0.5
      %v11056 = vmul.f32 %v10944, 0.5
      %v11057 = vmul.f32 %v10945, 0.5
      %v11058 = vmul.f32 %v10946, 0.5
      %v11059 = vmul.f32 %v10947, 0.5
      %v11060 = vmul.f32 %v10948, 0.5
      %v11061 = vmul.f32 %v10949, 0.5
      %v11062 = vmul.f32 %v10950, 0.5
      %v11063 = vmul.f32 %v10951, 0.5
      %v11064 = vmul.f32 %v10952, 0.5
      %v11065 = vmul.f32 %v10953, 0.5
      %v11066 = vmul.f32 %v10954, 0.5
      %v11067 = vmul.f32 %v10955, 0.5
      %v11068 = vmul.f32 %v10956, 0.5
      %v11069 = vmul.f32 %v10957, 0.5
      %v11070 = vmul.f32 %v10958, 0.5
      %v11071 = vmul.f32 %v10959, 0.5
      %v11072 = vmul.f32 %v10960, 0.5
      %v11073 = vmul.f32 %v10961, 0.5
      %v11074 = vmul.f32 %v10962, 0.5
      %v11075 = vmul.f32 %v10963, 0.5
      %v11076 = vmul.f32 %v10964, 0.5
      %v11077 = vmul.f32 %v10965, 0.5
      %v11078 = vmul.f32 %v10966, 0.5
      %v11079 = vmul.f32 %v10967, 0.5
      %v11080 = vmul.f32 %v10968, 0.5
      %v11081 = vmul.f32 %v10969, 0.5
      %v11082 = vmul.f32 %v10970, 0.5
      %v11083 = vmul.f32 %v10971, 0.5
      %v11084 = vmul.f32 %v10972, 0.5
      %v11085 = vmul.f32 %v10973, 0.5
      %v11086 = vmul.f32 %v10974, 0.5
      %v11087 = vmul.f32 %v10975, 0.5
      %v11088 = vmul.f32 %v10976, 0.5
      %v11089 = vmul.f32 %v10977, 0.5
      %v11090 = vmul.f32 %v10978, 0.5
      %v11091 = vmul.f32 %v10979, 0.5
      %v11092 = vmul.f32 %v10980, 0.5
      %v11093 = vmul.f32 %v10981, 0.5
      %v11094 = vmul.f32 %v10982, 0.5
      %v11095 = vmul.f32 %v10983, 0.5
      %v11096 = vmul.f32 %v10984, 0.5
      %v11097 = vmul.f32 %v10985, 0.5
      %v11098 = vmul.f32 %v10986, 0.5
      %v11099 = vmul.f32 %v10987, 0.5
      %v11100 = vmul.f32 %v10988, 0.5
      %v11101 = vmul.f32 %v10989, 0.5
      %v11102 = vmul.f32 %v10990, 0.5
      %v11103 = vmul.f32 %v10991, 0.5
      %v11104 = vmul.f32 %v10992, 0.5
      %v11105 = vmul.f32 %v10993, 0.5
      %v11106 = vmul.f32 %v10994, 0.5
      %v11107 = vmul.f32 %v10995, 0.5
      %v11108 = vmul.f32 %v10996, 0.5
      %v11109 = vmul.f32 %v10997, 0.5
      %v11110 = vmul.f32 %v10998, 0.5
      %v11111 = vmul.f32 %v10999, 0.5
      %v11112 = vmul.f32 %v11000, 0.5
      %v11113 = vmul.f32 %v11001, 0.5
      %v11114 = vmul.f32 %v11002, 0.5
      %v11115 = vmul.f32 %v11003, 0.5
      %v11116 = vmul.f32 %v11004, 0.5
      %v11117 = vmul.f32 %v11005, 0.5
      %v11118 = vmul.f32 %v11006, 0.5
      %v11119 = vmul.f32 %v11007, 0.5
      %v11120 = vmul.f32 %v11008, 0.5
      %v11121 = vmul.f32 %v11009, 0.5
      %v11122 = vmul.f32 %v11010, 0.5
      %v11123 = vmul.f32 %v11011, 0.5
      %v11124 = vmul.f32 %v11012, 0.5
      %v11125 = vmul.f32 %v11013, 0.5
      %v11126 = vmul.f32 %v11014, 0.5
      %v11127 = vmul.f32 %v11015, 0.5
      %v11128 = vmul.f32 %v11016, 0.5
      %v11129 = vmul.f32 %v11017, 0.5
      %v11130 = vmul.f32 %v11018, 0.5
      %v11131 = vmul.f32 %v11019, 0.5
      %v11132 = vmul.f32 %v11020, 0.5
      %v11133 = vmul.f32 %v11021, 0.5
      %v11134 = vmul.f32 %v11022, 0.5
      %v11135 = vmul.f32 %v11023, 0.5
      %v11136 = vmul.f32 %v11024, 0.5
      %v11137 = vmul.f32 %v11025, 0.5
      %v11138 = vmul.f32 %v11026, 0.5
      %v11139 = vmul.f32 %v11027, 0.5
      %v11140 = vadd.f32 %v11028, 0.5
      %v11141 = vadd.f32 %v11029, 0.5
      %v11142 = vadd.f32 %v11030, 0.5
      %v11143 = vadd.f32 %v11031, 0.5
      %v11144 = vadd.f32 %v11032, 0.5
      %v11145 = vadd.f32 %v11033, 0.5
      %v11146 = vadd.f32 %v11034, 0.5
      %v11147 = vadd.f32 %v11035, 0.5
      %v11148 = vadd.f32 %v11036, 0.5
      %v11149 = vadd.f32 %v11037, 0.5
      %v11150 = vadd.f32 %v11038, 0.5
      %v11151 = vadd.f32 %v11039, 0.5
      %v11152 = vadd.f32 %v11040, 0.5
      %v11153 = vadd.f32 %v11041, 0.5
      %v11154 = vadd.f32 %v11042, 0.5
      %v11155 = vadd.f32 %v11043, 0.5
      %v11156 = vadd.f32 %v11044, 0.5
      %v11157 = vadd.f32 %v11045, 0.5
      %v11158 = vadd.f32 %v11046, 0.5
      %v11159 = vadd.f32 %v11047, 0.5
      %v11160 = vadd.f32 %v11048, 0.5
      %v11161 = vadd.f32 %v11049, 0.5
      %v11162 = vadd.f32 %v11050, 0.5
      %v11163 = vadd.f32 %v11051, 0.5
      %v11164 = vadd.f32 %v11052, 0.5
      %v11165 = vadd.f32 %v11053, 0.5
      %v11166 = vadd.f32 %v11054, 0.5
      %v11167 = vadd.f32 %v11055, 0.5
      %v11168 = vadd.f32 %v11056, 0.5
      %v11169 = vadd.f32 %v11057, 0.5
      %v11170 = vadd.f32 %v11058, 0.5
      %v11171 = vadd.f32 %v11059, 0.5
      %v11172 = vadd.f32 %v11060, 0.5
      %v11173 = vadd.f32 %v11061, 0.5
      %v11174 = vadd.f32 %v11062, 0.5
      %v11175 = vadd.f32 %v11063, 0.5
      %v11176 = vadd.f32 %v11064, 0.5
      %v11177 = vadd.f32 %v11065, 0.5
      %v11178 = vadd.f32 %v11066, 0.5
      %v11179 = vadd.f32 %v11067, 0.5
      %v11180 = vadd.f32 %v11068, 0.5
      %v11181 = vadd.f32 %v11069, 0.5
      %v11182 = vadd.f32 %v11070, 0.5
      %v11183 = vadd.f32 %v11071, 0.5
      %v11184 = vadd.f32 %v11072, 0.5
      %v11185 = vadd.f32 %v11073, 0.5
      %v11186 = vadd.f32 %v11074, 0.5
      %v11187 = vadd.f32 %v11075, 0.5
      %v11188 = vadd.f32 %v11076, 0.5
      %v11189 = vadd.f32 %v11077, 0.5
      %v11190 = vadd.f32 %v11078, 0.5
      %v11191 = vadd.f32 %v11079, 0.5
      %v11192 = vadd.f32 %v11080, 0.5
      %v11193 = vadd.f32 %v11081, 0.5
      %v11194 = vadd.f32 %v11082, 0.5
      %v11195 = vadd.f32 %v11083, 0.5
      %v11196 = vadd.f32 %v11084, 0.5
      %v11197 = vadd.f32 %v11085, 0.5
      %v11198 = vadd.f32 %v11086, 0.5
      %v11199 = vadd.f32 %v11087, 0.5
      %v11200 = vadd.f32 %v11088, 0.5
      %v11201 = vadd.f32 %v11089, 0.5
      %v11202 = vadd.f32 %v11090, 0.5
      %v11203 = vadd.f32 %v11091, 0.5
      %v11204 = vadd.f32 %v11092, 0.5
      %v11205 = vadd.f32 %v11093, 0.5
      %v11206 = vadd.f32 %v11094, 0.5
      %v11207 = vadd.f32 %v11095, 0.5
      %v11208 = vadd.f32 %v11096, 0.5
      %v11209 = vadd.f32 %v11097, 0.5
      %v11210 = vadd.f32 %v11098, 0.5
      %v11211 = vadd.f32 %v11099, 0.5
      %v11212 = vadd.f32 %v11100, 0.5
      %v11213 = vadd.f32 %v11101, 0.5
      %v11214 = vadd.f32 %v11102, 0.5
      %v11215 = vadd.f32 %v11103, 0.5
      %v11216 = vadd.f32 %v11104, 0.5
      %v11217 = vadd.f32 %v11105, 0.5
      %v11218 = vadd.f32 %v11106, 0.5
      %v11219 = vadd.f32 %v11107, 0.5
      %v11220 = vadd.f32 %v11108, 0.5
      %v11221 = vadd.f32 %v11109, 0.5
      %v11222 = vadd.f32 %v11110, 0.5
      %v11223 = vadd.f32 %v11111, 0.5
      %v11224 = vadd.f32 %v11112, 0.5
      %v11225 = vadd.f32 %v11113, 0.5
      %v11226 = vadd.f32 %v11114, 0.5
      %v11227 = vadd.f32 %v11115, 0.5
      %v11228 = vadd.f32 %v11116, 0.5
      %v11229 = vadd.f32 %v11117, 0.5
      %v11230 = vadd.f32 %v11118, 0.5
      %v11231 = vadd.f32 %v11119, 0.5
      %v11232 = vadd.f32 %v11120, 0.5
      %v11233 = vadd.f32 %v11121, 0.5
      %v11234 = vadd.f32 %v11122, 0.5
      %v11235 = vadd.f32 %v11123, 0.5
      %v11236 = vadd.f32 %v11124, 0.5
      %v11237 = vadd.f32 %v11125, 0.5
      %v11238 = vadd.f32 %v11126, 0.5
      %v11239 = vadd.f32 %v11127, 0.5
      %v11240 = vadd.f32 %v11128, 0.5
      %v11241 = vadd.f32 %v11129, 0.5
      %v11242 = vadd.f32 %v11130, 0.5
      %v11243 = vadd.f32 %v11131, 0.5
      %v11244 = vadd.f32 %v11132, 0.5
      %v11245 = vadd.f32 %v11133, 0.5
      %v11246 = vadd.f32 %v11134, 0.5
      %v11247 = vadd.f32 %v11135, 0.5
      %v11248 = vadd.f32 %v11136, 0.5
      %v11249 = vadd.f32 %v11137, 0.5
      %v11250 = vadd.f32 %v11138, 0.5
      %v11251 = vadd.f32 %v11139, 0.5
      %11252 = vst [vmem:[%s570] sm:$0xff] %v11140
      %11253 = vst [vmem:[%s570 + $0x8] sm:$0xff] %v11141
      %11254 = vst [vmem:[%s570 + $0x10] sm:$0xff] %v11142
      %11255 = vst [vmem:[%s570 + $0x18] sm:$0xff] %v11143
      %11256 = vst [vmem:[%s570 + $0x20] sm:$0xff] %v11144
      %11257 = vst [vmem:[%s570 + $0x28] sm:$0xff] %v11145
      %11258 = vst [vmem:[%s570 + $0x30] sm:$0xff] %v11146
      %11259 = vst [vmem:[%s570 + $0x38] sm:$0xff] %v11147
      %11260 = vst [vmem:[%s570 + $0x40] sm:$0xff] %v11148
      %11261 = vst [vmem:[%s570 + $0x48] sm:$0xff] %v11149
      %11262 = vst [vmem:[%s570 + $0x50] sm:$0xff] %v11150
      %11263 = vst [vmem:[%s570 + $0x58] sm:$0xff] %v11151
      %11264 = vst [vmem:[%s570 + $0x60] sm:$0xff] %v11152
      %11265 = vst [vmem:[%s570 + $0x68] sm:$0xff] %v11153
      %11266 = vst [vmem:[%s570 + $0x70] sm:$0xff] %v11154
      %11267 = vst [vmem:[%s570 + $0x78] sm:$0xff] %v11155
      %11268 = vst [vmem:[%s570 + $0x80] sm:$0xff] %v11156
      %11269 = vst [vmem:[%s570 + $0x88] sm:$0xff] %v11157
      %11270 = vst [vmem:[%s570 + $0x90] sm:$0xff] %v11158
      %11271 = vst [vmem:[%s570 + $0x98] sm:$0xff] %v11159
      %11272 = vst [vmem:[%s570 + $0xa0] sm:$0xff] %v11160
      %11273 = vst [vmem:[%s570 + $0xa8] sm:$0xff] %v11161
      %11274 = vst [vmem:[%s570 + $0xb0] sm:$0xff] %v11162
      %11275 = vst [vmem:[%s570 + $0xb8] sm:$0xff] %v11163
      %11276 = vst [vmem:[%s570 + $0xc0] sm:$0xff] %v11164
      %11277 = vst [vmem:[%s570 + $0xc8] sm:$0xff] %v11165
      %11278 = vst [vmem:[%s570 + $0xd0] sm:$0xff] %v11166
      %11279 = vst [vmem:[%s570 + $0xd8] sm:$0xff] %v11167
      %11280 = vst [vmem:[%s570 + $0xe0] sm:$0xff] %v11168
      %11281 = vst [vmem:[%s570 + $0xe8] sm:$0xff] %v11169
      %11282 = vst [vmem:[%s570 + $0xf0] sm:$0xff] %v11170
      %11283 = vst [vmem:[%s570 + $0xf8] sm:$0xff] %v11171
      %11284 = vst [vmem:[%s570 + $0x100] sm:$0xff] %v11172
      %11285 = vst [vmem:[%s570 + $0x108] sm:$0xff] %v11173
      %11286 = vst [vmem:[%s570 + $0x110] sm:$0xff] %v11174
      %11287 = vst [vmem:[%s570 + $0x118] sm:$0xff] %v11175
      %11288 = vst [vmem:[%s570 + $0x120] sm:$0xff] %v11176
      %11289 = vst [vmem:[%s570 + $0x128] sm:$0xff] %v11177
      %11290 = vst [vmem:[%s570 + $0x130] sm:$0xff] %v11178
      %11291 = vst [vmem:[%s570 + $0x138] sm:$0xff] %v11179
      %11292 = vst [vmem:[%s570 + $0x140] sm:$0xff] %v11180
      %11293 = vst [vmem:[%s570 + $0x148] sm:$0xff] %v11181
      %11294 = vst [vmem:[%s570 + $0x150] sm:$0xff] %v11182
      %11295 = vst [vmem:[%s570 + $0x158] sm:$0xff] %v11183
      %11296 = vst [vmem:[%s570 + $0x160] sm:$0xff] %v11184
      %11297 = vst [vmem:[%s570 + $0x168] sm:$0xff] %v11185
      %11298 = vst [vmem:[%s570 + $0x170] sm:$0xff] %v11186
      %11299 = vst [vmem:[%s570 + $0x178] sm:$0xff] %v11187
      %11300 = vst [vmem:[%s570 + $0x180] sm:$0xff] %v11188
      %11301 = vst [vmem:[%s570 + $0x188] sm:$0xff] %v11189
      %11302 = vst [vmem:[%s570 + $0x190] sm:$0xff] %v11190
      %11303 = vst [vmem:[%s570 + $0x198] sm:$0xff] %v11191
      %11304 = vst [vmem:[%s570 + $0x1a0] sm:$0xff] %v11192
      %11305 = vst [vmem:[%s570 + $0x1a8] sm:$0xff] %v11193
      %11306 = vst [vmem:[%s570 + $0x1b0] sm:$0xff] %v11194
      %11307 = vst [vmem:[%s570 + $0x1b8] sm:$0xff] %v11195
      %11308 = vst [vmem:[%s570 + $0x1c0] sm:$0xff] %v11196
      %11309 = vst [vmem:[%s570 + $0x1c8] sm:$0xff] %v11197
      %11310 = vst [vmem:[%s570 + $0x1d0] sm:$0xff] %v11198
      %11311 = vst [vmem:[%s570 + $0x1d8] sm:$0xff] %v11199
      %11312 = vst [vmem:[%s570 + $0x1e0] sm:$0xff] %v11200
      %11313 = vst [vmem:[%s570 + $0x1e8] sm:$0xff] %v11201
      %11314 = vst [vmem:[%s570 + $0x1f0] sm:$0xff] %v11202
      %11315 = vst [vmem:[%s570 + $0x1f8] sm:$0xff] %v11203
      %11316 = vst [vmem:[%s570 + $0x200] sm:$0xff] %v11204
      %11317 = vst [vmem:[%s570 + $0x208] sm:$0xff] %v11205
      %11318 = vst [vmem:[%s570 + $0x210] sm:$0xff] %v11206
      %11319 = vst [vmem:[%s570 + $0x218] sm:$0xff] %v11207
      %11320 = vst [vmem:[%s570 + $0x220] sm:$0xff] %v11208
      %11321 = vst [vmem:[%s570 + $0x228] sm:$0xff] %v11209
      %11322 = vst [vmem:[%s570 + $0x230] sm:$0xff] %v11210
      %11323 = vst [vmem:[%s570 + $0x238] sm:$0xff] %v11211
      %11324 = vst [vmem:[%s570 + $0x240] sm:$0xff] %v11212
      %11325 = vst [vmem:[%s570 + $0x248] sm:$0xff] %v11213
      %11326 = vst [vmem:[%s570 + $0x250] sm:$0xff] %v11214
      %11327 = vst [vmem:[%s570 + $0x258] sm:$0xff] %v11215
      %11328 = vst [vmem:[%s570 + $0x260] sm:$0xff] %v11216
      %11329 = vst [vmem:[%s570 + $0x268] sm:$0xff] %v11217
      %11330 = vst [vmem:[%s570 + $0x270] sm:$0xff] %v11218
      %11331 = vst [vmem:[%s570 + $0x278] sm:$0xff] %v11219
      %11332 = vst [vmem:[%s570 + $0x280] sm:$0xff] %v11220
      %11333 = vst [vmem:[%s570 + $0x288] sm:$0xff] %v11221
      %11334 = vst [vmem:[%s570 + $0x290] sm:$0xff] %v11222
      %11335 = vst [vmem:[%s570 + $0x298] sm:$0xff] %v11223
      %11336 = vst [vmem:[%s570 + $0x2a0] sm:$0xff] %v11224
      %11337 = vst [vmem:[%s570 + $0x2a8] sm:$0xff] %v11225
      %11338 = vst [vmem:[%s570 + $0x2b0] sm:$0xff] %v11226
      %11339 = vst [vmem:[%s570 + $0x2b8] sm:$0xff] %v11227
      %11340 = vst [vmem:[%s570 + $0x2c0] sm:$0xff] %v11228
      %11341 = vst [vmem:[%s570 + $0x2c8] sm:$0xff] %v11229
      %11342 = vst [vmem:[%s570 + $0x2d0] sm:$0xff] %v11230
      %11343 = vst [vmem:[%s570 + $0x2d8] sm:$0xff] %v11231
      %11344 = vst [vmem:[%s570 + $0x2e0] sm:$0xff] %v11232
      %11345 = vst [vmem:[%s570 + $0x2e8] sm:$0xff] %v11233
      %11346 = vst [vmem:[%s570 + $0x2f0] sm:$0xff] %v11234
      %11347 = vst [vmem:[%s570 + $0x2f8] sm:$0xff] %v11235
      %11348 = vst [vmem:[%s570 + $0x300] sm:$0xff] %v11236
      %11349 = vst [vmem:[%s570 + $0x308] sm:$0xff] %v11237
      %11350 = vst [vmem:[%s570 + $0x310] sm:$0xff] %v11238
      %11351 = vst [vmem:[%s570 + $0x318] sm:$0xff] %v11239
      %11352 = vst [vmem:[%s570 + $0x320] sm:$0xff] %v11240
      %11353 = vst [vmem:[%s570 + $0x328] sm:$0xff] %v11241
      %11354 = vst [vmem:[%s570 + $0x330] sm:$0xff] %v11242
      %11355 = vst [vmem:[%s570 + $0x338] sm:$0xff] %v11243
      %11356 = vst [vmem:[%s570 + $0x340] sm:$0xff] %v11244
      %11357 = vst [vmem:[%s570 + $0x348] sm:$0xff] %v11245
      %11358 = vst [vmem:[%s570 + $0x350] sm:$0xff] %v11246
      %11359 = vst [vmem:[%s570 + $0x358] sm:$0xff] %v11247
      %11360 = vst [vmem:[%s570 + $0x360] sm:$0xff] %v11248
      %11361 = vst [vmem:[%s570 + $0x368] sm:$0xff] %v11249
      %11362 = vst [vmem:[%s570 + $0x370] sm:$0xff] %v11250
      %11363 = vst [vmem:[%s570 + $0x378] sm:$0xff] %v11251
      %11364 = vst [vmem:[%s577] sm:$0xff] %v5653
      %11365 = vst [vmem:[%s577 + $0x8] sm:$0xff] %v5655
      %11366 = vst [vmem:[%s577 + $0x10] sm:$0xff] %v5657
      %11367 = vst [vmem:[%s577 + $0x18] sm:$0xff] %v5659
      %11368 = vst [vmem:[%s577 + $0x20] sm:$0xff] %v5663
      %11369 = vst [vmem:[%s577 + $0x28] sm:$0xff] %v5665
      %11370 = vst [vmem:[%s577 + $0x30] sm:$0xff] %v5667
      %11371 = vst [vmem:[%s577 + $0x38] sm:$0xff] %v5669
      %11372 = vst [vmem:[%s577 + $0x40] sm:$0xff] %v5673
      %11373 = vst [vmem:[%s577 + $0x48] sm:$0xff] %v5675
      %11374 = vst [vmem:[%s577 + $0x50] sm:$0xff] %v5677
      %11375 = vst [vmem:[%s577 + $0x58] sm:$0xff] %v5679
      %11376 = vst [vmem:[%s577 + $0x60] sm:$0xff] %v5683
      %11377 = vst [vmem:[%s577 + $0x68] sm:$0xff] %v5685
      %11378 = vst [vmem:[%s577 + $0x70] sm:$0xff] %v5687
      %11379 = vst [vmem:[%s577 + $0x78] sm:$0xff] %v5689
      %11380 = vst [vmem:[%s577 + $0x80] sm:$0xff] %v5693
      %11381 = vst [vmem:[%s577 + $0x88] sm:$0xff] %v5695
      %11382 = vst [vmem:[%s577 + $0x90] sm:$0xff] %v5697
      %11383 = vst [vmem:[%s577 + $0x98] sm:$0xff] %v5699
      %11384 = vst [vmem:[%s577 + $0xa0] sm:$0xff] %v5703
      %11385 = vst [vmem:[%s577 + $0xa8] sm:$0xff] %v5705
      %11386 = vst [vmem:[%s577 + $0xb0] sm:$0xff] %v5707
      %11387 = vst [vmem:[%s577 + $0xb8] sm:$0xff] %v5709
      %11388 = vst [vmem:[%s577 + $0xc0] sm:$0xff] %v5713
      %11389 = vst [vmem:[%s577 + $0xc8] sm:$0xff] %v5715
      %11390 = vst [vmem:[%s577 + $0xd0] sm:$0xff] %v5717
      %11391 = vst [vmem:[%s577 + $0xd8] sm:$0xff] %v5719
      %11392 = vst [vmem:[%s577 + $0xe0] sm:$0xff] %v5723
      %11393 = vst [vmem:[%s577 + $0xe8] sm:$0xff] %v5725
      %11394 = vst [vmem:[%s577 + $0xf0] sm:$0xff] %v5727
      %11395 = vst [vmem:[%s577 + $0xf8] sm:$0xff] %v5729
      %11396 = vst [vmem:[%s584] sm:$0xff] %v5879
      %11397 = vst [vmem:[%s584 + $0x8] sm:$0xff] %v5881
      %11398 = vst [vmem:[%s584 + $0x10] sm:$0xff] %v5883
      %11399 = vst [vmem:[%s584 + $0x18] sm:$0xff] %v5885
      %11400 = vst [vmem:[%s584 + $0x20] sm:$0xff] %v5889
      %11401 = vst [vmem:[%s584 + $0x28] sm:$0xff] %v5891
      %11402 = vst [vmem:[%s584 + $0x30] sm:$0xff] %v5893
      %11403 = vst [vmem:[%s584 + $0x38] sm:$0xff] %v5895
      %11404 = vst [vmem:[%s584 + $0x40] sm:$0xff] %v5899
      %11405 = vst [vmem:[%s584 + $0x48] sm:$0xff] %v5901
      %11406 = vst [vmem:[%s584 + $0x50] sm:$0xff] %v5903
      %11407 = vst [vmem:[%s584 + $0x58] sm:$0xff] %v5905
      %11408 = vst [vmem:[%s584 + $0x60] sm:$0xff] %v5909
      %11409 = vst [vmem:[%s584 + $0x68] sm:$0xff] %v5911
      %11410 = vst [vmem:[%s584 + $0x70] sm:$0xff] %v5913
      %11411 = vst [vmem:[%s584 + $0x78] sm:$0xff] %v5915
      %11412 = vst [vmem:[%s584 + $0x80] sm:$0xff] %v5919
      %11413 = vst [vmem:[%s584 + $0x88] sm:$0xff] %v5921
      %11414 = vst [vmem:[%s584 + $0x90] sm:$0xff] %v5923
      %11415 = vst [vmem:[%s584 + $0x98] sm:$0xff] %v5925
      %11416 = vst [vmem:[%s584 + $0xa0] sm:$0xff] %v5929
      %11417 = vst [vmem:[%s584 + $0xa8] sm:$0xff] %v5931
      %11418 = vst [vmem:[%s584 + $0xb0] sm:$0xff] %v5933
      %11419 = vst [vmem:[%s584 + $0xb8] sm:$0xff] %v5935
      %11420 = vst [vmem:[%s584 + $0xc0] sm:$0xff] %v5939
      %11421 = vst [vmem:[%s584 + $0xc8] sm:$0xff] %v5941
      %11422 = vst [vmem:[%s584 + $0xd0] sm:$0xff] %v5943
      %11423 = vst [vmem:[%s584 + $0xd8] sm:$0xff] %v5945
      %11424 = vst [vmem:[%s584 + $0xe0] sm:$0xff] %v5949
      %11425 = vst [vmem:[%s584 + $0xe8] sm:$0xff] %v5951
      %11426 = vst [vmem:[%s584 + $0xf0] sm:$0xff] %v5953
      %11427 = vst [vmem:[%s584 + $0xf8] sm:$0xff] %v5955
      %s11428 = smul.u32 16, %s28
      %p11429 = scmp.lt.s32.totalorder %s11428, 63
      %s11430 = scalar_select %p11429, %s11428, 63
      %s11431 = smul.addr %s11430, 7
      %s11432 = smul.addr %s11431, 8
      %s11433 = scalar_lea.vmem %s14, %s11432
      %s11434 = smul.u32 16, %s28
      %p11435 = scmp.lt.s32.totalorder %s11434, 63
      %s11436 = scalar_select %p11435, %s11434, 63
      %s11437 = smul.addr %s11436, 2
      %s11438 = smul.addr %s11437, 8
      %s11439 = scalar_lea.vmem %s15, %s11438
      %s11440 = smul.u32 16, %s28
      %p11441 = scmp.lt.s32.totalorder %s11440, 63
      %s11442 = scalar_select %p11441, %s11440, 63
      %s11443 = smul.addr %s11442, 2
      %s11444 = smul.addr %s11443, 8
      %s11445 = scalar_lea.vmem %s16, %s11444
      // Predicated region
      $region77: #{vae_forward.1} parent=75 // pred_check
        %p11446 = pneg %p350
      $region78: #{vae_forward.1} parent=75 // pred_check_branch
        %11448 = sbr.rel (%p11446) target = $region80
      $region79: #{vae_forward.1} parent=75 // pred_region
        %s11449 = smul.u32 16, %s28
      $region80: #{vae_forward.1} parent=75 // pred_fallthru
        _
      // Predicated region
      $region81: #{vae_forward.1} parent=75 // pred_check
        %p11450 = pneg %p376
      $region82: #{vae_forward.1} parent=75 // pred_check_branch
        %11452 = sbr.rel (%p11450) target = $region84
      $region83: #{vae_forward.1} parent=75 // pred_region
        %s11453 = smul.u32 16, %s28
      $region84: #{vae_forward.1} parent=75 // pred_fallthru
        _
      // Predicated region
      $region85: #{vae_forward.1} parent=75 // pred_check
        %p11454 = pneg %p402
      $region86: #{vae_forward.1} parent=75 // pred_check_branch
        %11456 = sbr.rel (%p11454) target = $region88
      $region87: #{vae_forward.1} parent=75 // pred_region
        %s11457 = smul.u32 16, %s28
      $region88: #{vae_forward.1} parent=75 // pred_fallthru
        _
    $region76: #{vae_forward.1} parent=5 // pred_fallthru
      _
    %p11458 = scmp.le.s32.totalorder 2, %s23
    // Predicated region
    $region89: #{vae_forward.1} parent=5 // pred_check
      %p11459 = pneg %p11458
    $region90: #{vae_forward.1} parent=5 // pred_check_branch
      %11461 = sbr.rel (%p11459) target = $region92
    $region91: #{vae_forward.1} parent=5 // pred_region
      %s11462 = ssub.s32 %s23, 2
      // Predicated region
      $region93: #{vae_forward.1} parent=91 // pred_check
        %p11463 = pneg %p356
      $region94: #{vae_forward.1} parent=91 // pred_check_branch
        %11465 = sbr.rel (%p11463) target = $region96
      $region95: #{vae_forward.1} parent=91 // pred_region
        %s11466 = smul.u32 16, %s29
        %p11467 = scmp.lt.s32.totalorder %s11466, 63
        %s11468 = scalar_select %p11467, %s11466, 63
        %s11469 = smul.addr %s11468, 7
        %s11470 = smul.addr %s11469, 8
        %s11471 = scalar_lea.vmem %s14, %s11470
      $region96: #{vae_forward.1} parent=91 // pred_fallthru
        _
      // Predicated region
      $region97: #{vae_forward.1} parent=91 // pred_check
        %p11472 = pneg %p382
      $region98: #{vae_forward.1} parent=91 // pred_check_branch
        %11474 = sbr.rel (%p11472) target = $region100
      $region99: #{vae_forward.1} parent=91 // pred_region
        %s11475 = smul.u32 16, %s29
        %p11476 = scmp.lt.s32.totalorder %s11475, 63
        %s11477 = scalar_select %p11476, %s11475, 63
        %s11478 = smul.addr %s11477, 2
        %s11479 = smul.addr %s11478, 8
        %s11480 = scalar_lea.vmem %s15, %s11479
      $region100: #{vae_forward.1} parent=91 // pred_fallthru
        _
      // Predicated region
      $region101: #{vae_forward.1} parent=91 // pred_check
        %p11481 = pneg %p408
      $region102: #{vae_forward.1} parent=91 // pred_check_branch
        %11483 = sbr.rel (%p11481) target = $region104
      $region103: #{vae_forward.1} parent=91 // pred_region
        %s11484 = smul.u32 16, %s29
        %p11485 = scmp.lt.s32.totalorder %s11484, 63
        %s11486 = scalar_select %p11485, %s11484, 63
        %s11487 = smul.addr %s11486, 2
        %s11488 = smul.addr %s11487, 8
        %s11489 = scalar_lea.vmem %s16, %s11488
      $region104: #{vae_forward.1} parent=91 // pred_fallthru
        _
    $region92: #{vae_forward.1} parent=5 // pred_fallthru
      _
  $region6: #{vae_forward.1} parent=0 // loop_footer
    %s27 = sadd.s32 1, %s23
  $region7: #{vae_forward.1} parent=0 // loop_footer_branch
    %22 = sbr.rel target = $region3
  $region8: #{vae_forward.1} parent=0 // loop_exit
    _

</llo_original>
